<compile_context>
chip_gen: v7x
topology: tpu7x:2x2x1
jax: 0.10.0
libtpu: 0.0.40
codegen_flags: <defaults>
</compile_context>

<pallas_src>
import math

import numpy as np

import jax
import jax.numpy as jnp
from jax.experimental import pallas as pl
from jax.experimental.pallas import tpu as pltpu

# ------------------------- hyper-parameters (small) --------------------------
N_STEPS = 16
N_FEATURES = 4
N_PRED_STEPS = 8
N_PRED_FEATURES = 4
N_LAYERS = 2            # synthetic LLM transformer layers
PATCH_SIZE = 8
PATCH_STRIDE = 4
D_MODEL = 32
D_FFN = 32              # "d_ff": channel slice used by the FlattenHead
D_LLM = 64
N_HEADS = 4             # reprogramming cross-attention heads
LLM_HEADS = 4           # heads of the synthetic LLM
LLM_MLP = 4 * D_LLM
VOCAB_SIZE = 128        # synthetic word-embedding vocabulary
NUM_TOKENS = 32         # mapping-layer prototype count
PROMPT_LEN = 8          # synthetic prompt length

PATCH_NUM = (N_STEPS - PATCH_SIZE) // PATCH_STRIDE + 2   # Time-LLM formula -> 4
HEAD_NF = D_FFN * PATCH_NUM                              # FlattenHead in-features (128)
L_TOTAL = PROMPT_LEN + PATCH_NUM                         # per-series LLM sequence length (12)
DK = D_MODEL // N_HEADS                                  # 8
DH = D_LLM // LLM_HEADS                                  # 16


# ------------------------------ spec helpers ----------------------------------
def _shared_spec(a):
    """Full-extent block whose index_map ignores the grid index -> DMA'd once."""
    n = a.ndim
    return pl.BlockSpec(a.shape, lambda g: (0,) * n)


def _num_groups(bn):
    """2-way grid split only on v7x (2 TensorCores/chip); single step elsewhere."""
    try:
        kind = jax.devices()[0].device_kind.lower()
    except Exception:
        kind = ""
    return 2 if ("v7" in kind and bn % 2 == 0) else 1


def _group_attention_mask(bn_g):
    """Additive mask [bn_g*L, bn_g*L]: attend only within the same series, causally.

    Row layout inside a group: first bn_g*PROMPT_LEN prompt rows (series-major),
    then bn_g*PATCH_NUM patch rows (patch-major: row = p*bn_g + s)."""
    lp = bn_g * PROMPT_LEN
    lq = bn_g * PATCH_NUM
    sid = np.empty((lp + lq,), np.int64)
    pos = np.empty((lp + lq,), np.int64)
    r = np.arange(lp)
    sid[:lp] = r // PROMPT_LEN
    pos[:lp] = r % PROMPT_LEN
    r = np.arange(lq)
    sid[lp:] = r % bn_g
    pos[lp:] = PROMPT_LEN + r // bn_g
    ok = (sid[:, None] == sid[None, :]) & (pos[None, :] <= pos[:, None])
    return jnp.asarray(np.where(ok, 0.0, -1e30).astype(np.float32))


# ----------------------- single fused kernel ---------------------------------
def _timellm_kernel(patches_ref, prompt_ref,
                    pos_ref, mask_ref,
                    mapw_ref, mapb_ref, wemb_ref, pew_ref,
                    rpq_ref, rpbq_ref, rpkv_ref, rpbkv_ref, rpo_ref, rpbo_ref,
                    ln1g_ref, ln1b_ref, wqkv_ref, bqkv_ref, wo_ref, bo_ref,
                    ln2g_ref, ln2b_ref, w1_ref, b1_ref, w2_ref, b2_ref,
                    lnfg_ref, lnfb_ref, hwr_ref, hb_ref,
                    o_ref):
    bn_g = o_ref.shape[1]                      # series handled by this grid step
    rows = patches_ref.shape[0]                # bn_g * PATCH_NUM query rows

    # ---- text prototypes (mapping layer), f32 matmul for parity ----
    src = jnp.dot(mapw_ref[...], wemb_ref[...],
                  preferred_element_type=jnp.float32) + mapb_ref[...]       # [S, d_llm]
    src_b = src.astype(jnp.bfloat16)

    # ---- patch value embedding (bias-free Linear) + positional encoding ----
    enc = jnp.dot(patches_ref[...], pew_ref[...],
                  preferred_element_type=jnp.float32) + pos_ref[...]        # [rows, d_model]
    enc_b = enc.astype(jnp.bfloat16)

    # ---- reprogramming cross-attention (fused Q and K|V projections) ----
    q_all = jnp.dot(enc_b, rpq_ref[...],
                    preferred_element_type=jnp.float32) + rpbq_ref[...]     # [rows, H*dk]
    kv_all = jnp.dot(src_b, rpkv_ref[...],
                     preferred_element_type=jnp.float32) + rpbkv_ref[...]   # [S, 2*H*dk]
    scale_rp = 1.0 / math.sqrt(DK)
    rp_acc = jnp.zeros((rows, D_LLM), jnp.float32)
    for hd in range(N_HEADS):
        q = q_all[:, hd * DK:(hd + 1) * DK].astype(jnp.bfloat16)
        k = kv_all[:, hd * DK:(hd + 1) * DK].astype(jnp.bfloat16)
        v = kv_all[:, N_HEADS * DK + hd * DK:
                      N_HEADS * DK + (hd + 1) * DK].astype(jnp.bfloat16)
        s = jax.lax.dot_general(q, k, (((1,), (1,)), ((), ())),
                                preferred_element_type=jnp.float32) * scale_rp
        m = jnp.max(s, axis=-1, keepdims=True)
        e = jnp.exp(s - m)
        a = e * pl.reciprocal(jnp.sum(e, axis=-1, keepdims=True), approx=False)
        ctx = jnp.dot(a.astype(jnp.bfloat16), v, preferred_element_type=jnp.float32)
        # Per-head Wo slice accumulated == concat-heads @ Wo (no lane-concat relayout).
        rp_acc = rp_acc + jnp.dot(ctx.astype(jnp.bfloat16), rpo_ref[hd],
                                  preferred_element_type=jnp.float32)
    enc_llm = rp_acc + rpbo_ref[...]                                        # [rows, d_llm]

    # ---- residual stream: [all prompt rows ; all patch rows] for this group ----
    h = jnp.concatenate([prompt_ref[0], enc_llm], axis=0)    # [bn_g*L, d_llm] f32
    cbias = mask_ref[...]
    scale = 1.0 / math.sqrt(DH)

    def ln(v, g, b):
        mu = jnp.mean(v, axis=-1, keepdims=True)
        var = jnp.mean((v - mu) ** 2, axis=-1, keepdims=True)
        return (v - mu) * jax.lax.rsqrt(var + 1e-5) * g + b

    # TODO(synk): real backbone runs a frozen pretrained GPT2/LLaMA; replaced by a
    # deterministically-initialized causal pre-LN transformer of matching shapes.
    for l in range(N_LAYERS):
        xb = ln(h, ln1g_ref[l], ln1b_ref[l]).astype(jnp.bfloat16)
        qkv = jnp.dot(xb, wqkv_ref[l],
                      preferred_element_type=jnp.float32) + bqkv_ref[l]     # [M, 3*d_llm]
        attn = jnp.zeros(h.shape, jnp.float32)
        for hd in range(LLM_HEADS):
            q = qkv[:, hd * DH:(hd + 1) * DH].astype(jnp.bfloat16)
            k = qkv[:, D_LLM + hd * DH:D_LLM + (hd + 1) * DH].astype(jnp.bfloat16)
            v = qkv[:, 2 * D_LLM + hd * DH:2 * D_LLM + (hd + 1) * DH].astype(jnp.bfloat16)
            s = jax.lax.dot_general(q, k, (((1,), (1,)), ((), ())),
                                    preferred_element_type=jnp.float32) * scale + cbias
            m = jnp.max(s, axis=-1, keepdims=True)
            e = jnp.exp(s - m)
            a = e * pl.reciprocal(jnp.sum(e, axis=-1, keepdims=True), approx=False)
            ctx = jnp.dot(a.astype(jnp.bfloat16), v, preferred_element_type=jnp.float32)
            attn = attn + jnp.dot(ctx.astype(jnp.bfloat16), wo_ref[l, hd],
                                  preferred_element_type=jnp.float32)
        h = h + attn + bo_ref[l]

        xb2 = ln(h, ln2g_ref[l], ln2b_ref[l]).astype(jnp.bfloat16)
        ff = jnp.dot(xb2, w1_ref[l], preferred_element_type=jnp.float32) + b1_ref[l]
        # TODO(synk): tanh-approx GELU (GPT-2 style); PyTorch nn.GELU default is exact erf.
        ff = jax.nn.gelu(ff, approximate=True)
        h = h + jnp.dot(ff.astype(jnp.bfloat16), w2_ref[l],
                        preferred_element_type=jnp.float32) + b2_ref[l]

    h = ln(h, lnfg_ref[...], lnfb_ref[...])

    # ---- FlattenHead: one GEMM per patch position, M = bn_g contiguous rows ----
    base = bn_g * PROMPT_LEN
    acc = jnp.zeros((bn_g, N_PRED_STEPS), jnp.float32)
    for p in range(PATCH_NUM):
        rows_p = h[base + p * bn_g: base + (p + 1) * bn_g, 0:D_FFN].astype(jnp.bfloat16)
        acc = acc + jnp.dot(rows_p, hwr_ref[p], preferred_element_type=jnp.float32)
    o_ref[0] = acc + hb_ref[...]


def timellm_fused(patches, prompt_emb, pw, G, bn_g):
    rows = bn_g * PATCH_NUM
    shared = (pw["pos_rep"], pw["mask"],
              pw["map_W"], pw["map_b"], pw["word_emb"], pw["pe_W"],
              pw["rp_Wq"], pw["rp_bq"], pw["rp_Wkv"], pw["rp_bkv"], pw["rp_Wo"], pw["rp_bo"],
              pw["ln1_g"], pw["ln1_b"], pw["Wqkv"], pw["bqkv"], pw["Wo"], pw["bo"],
              pw["ln2_g"], pw["ln2_b"], pw["W1"], pw["b1"], pw["W2"], pw["b2"],
              pw["lnf_g"], pw["lnf_b"], pw["head_Wr"], pw["head_b"])
    return pl.pallas_call(
        _timellm_kernel,
        out_shape=jax.ShapeDtypeStruct((G, bn_g, N_PRED_STEPS), jnp.float32),
        grid=(G,),
        in_specs=[pl.BlockSpec((rows, PATCH_SIZE), lambda g: (g, 0)),
                  pl.BlockSpec((1, bn_g * PROMPT_LEN, D_LLM), lambda g: (g, 0, 0))]
                 + [_shared_spec(a) for a in shared],
        out_specs=pl.BlockSpec((1, bn_g, N_PRED_STEPS), lambda g: (g, 0, 0)),
        compiler_params=pltpu.CompilerParams(dimension_semantics=("parallel",)),
    )(patches, prompt_emb, *shared)


# ------------------------------- parameters ----------------------------------
def sinusoidal_pe(length, dim):
    pos = jnp.arange(length)[:, None].astype(jnp.float32)
    i = jnp.arange(dim // 2)[None, :].astype(jnp.float32)
    angle = pos / jnp.power(10000.0, 2.0 * i / dim)
    pe = jnp.zeros((length, dim), jnp.float32)
    pe = pe.at[:, 0::2].set(jnp.sin(angle))
    pe = pe.at[:, 1::2].set(jnp.cos(angle))
    return pe


def init_params(key):
    keys = iter(jax.random.split(key, 64))

    def w(shape, scale=0.02):
        return (scale * jax.random.normal(next(keys), shape)).astype(jnp.float32)

    dk = DK
    params = {
        # synthetic frozen-LLM word embedding table
        "word_emb": w((VOCAB_SIZE, D_LLM), 0.02),
        # mapping layer: nn.Linear(VOCAB_SIZE, NUM_TOKENS)
        "map_W": w((NUM_TOKENS, VOCAB_SIZE)),
        "map_b": jnp.zeros((NUM_TOKENS,), jnp.float32),
        # patch value embedding: nn.Linear(patch_size, d_model, bias=False)
        "pe_W": w((PATCH_SIZE, D_MODEL)),
        "pos_enc": sinusoidal_pe(PATCH_NUM, D_MODEL),
        # reprogramming layer
        "rp_Wq": w((D_MODEL, N_HEADS * dk)), "rp_bq": jnp.zeros((N_HEADS * dk,), jnp.float32),
        "rp_Wk": w((D_LLM, N_HEADS * dk)),   "rp_bk": jnp.zeros((N_HEADS * dk,), jnp.float32),
        "rp_Wv": w((D_LLM, N_HEADS * dk)),   "rp_bv": jnp.zeros((N_HEADS * dk,), jnp.float32),
        "rp_Wo": w((N_HEADS * dk, D_LLM)),   "rp_bo": jnp.zeros((D_LLM,), jnp.float32),
        # FlattenHead: nn.Linear(d_ff * patch_num, n_pred_steps)
        "head_W": w((HEAD_NF, N_PRED_STEPS)),
        "head_b": jnp.zeros((N_PRED_STEPS,), jnp.float32),
        "lnf_g": jnp.ones((D_LLM,), jnp.float32),
        "lnf_b": jnp.zeros((D_LLM,), jnp.float32),
        "llm_layers": [],
    }
    for _ in range(N_LAYERS):
        params["llm_layers"].append({
            "ln1_g": jnp.ones((D_LLM,), jnp.float32), "ln1_b": jnp.zeros((D_LLM,), jnp.float32),
            "Wq": w((D_LLM, D_LLM)), "bq": jnp.zeros((D_LLM,), jnp.float32),
            "Wk": w((D_LLM, D_LLM)), "bk": jnp.zeros((D_LLM,), jnp.float32),
            "Wv": w((D_LLM, D_LLM)), "bv": jnp.zeros((D_LLM,), jnp.float32),
            "Wo": w((D_LLM, D_LLM)), "bo": jnp.zeros((D_LLM,), jnp.float32),
            "ln2_g": jnp.ones((D_LLM,), jnp.float32), "ln2_b": jnp.zeros((D_LLM,), jnp.float32),
            "W1": w((D_LLM, LLM_MLP)), "b1": jnp.zeros((LLM_MLP,), jnp.float32),
            "W2": w((LLM_MLP, D_LLM)), "b2": jnp.zeros((D_LLM,), jnp.float32),
        })
    return params


def prepare_params(params, bn_g):
    """Repack weights: fused QKV / fused K|V, per-head Wo slices, layer stacking,
    bf16 matmul operands (mapping layer + patch embed stay f32 for parity)."""
    bf = lambda a: a.astype(jnp.bfloat16)
    f32 = lambda a: a.astype(jnp.float32)
    H, dk, Hl, dh = N_HEADS, DK, LLM_HEADS, DH

    pw = {
        "word_emb": f32(params["word_emb"]),
        "map_W": f32(params["map_W"]),
        "map_b": f32(params["map_b"]).reshape(NUM_TOKENS, 1),
        "pe_W": f32(params["pe_W"]),
        # patch rows inside a group are patch-major: row p*bn_g + s -> pos_enc[p]
        "pos_rep": jnp.repeat(f32(params["pos_enc"]), bn_g, axis=0),
        "rp_Wq": bf(params["rp_Wq"]),
        "rp_bq": f32(params["rp_bq"]).reshape(1, H * dk),
        "rp_Wkv": bf(jnp.concatenate([params["rp_Wk"], params["rp_Wv"]], axis=1)),
        "rp_bkv": f32(jnp.concatenate([params["rp_bk"], params["rp_bv"]])).reshape(1, 2 * H * dk),
        "rp_Wo": bf(params["rp_Wo"].reshape(H, dk, D_LLM)),
        "rp_bo": f32(params["rp_bo"]).reshape(1, D_LLM),
        "lnf_g": f32(params["lnf_g"]).reshape(1, D_LLM),
        "lnf_b": f32(params["lnf_b"]).reshape(1, D_LLM),
        # FlattenHead weight re-indexed so flat index f*P+p becomes [p, f, :]
        "head_Wr": bf(params["head_W"].reshape(D_FFN, PATCH_NUM, N_PRED_STEPS)
                      .transpose(1, 0, 2)),
        "head_b": f32(params["head_b"]).reshape(1, N_PRED_STEPS),
        # block-diagonal (per-series) causal additive mask, shared by every group
        "mask": _group_attention_mask(bn_g),
    }

    stk = lambda name: jnp.stack([lay[name] for lay in params["llm_layers"]], axis=0)
    pw["ln1_g"] = f32(stk("ln1_g")).reshape(N_LAYERS, 1, D_LLM)
    pw["ln1_b"] = f32(stk("ln1_b")).reshape(N_LAYERS, 1, D_LLM)
    pw["Wqkv"] = bf(jnp.concatenate([stk("Wq"), stk("Wk"), stk("Wv")], axis=-1))
    pw["bqkv"] = f32(jnp.concatenate([stk("bq"), stk("bk"), stk("bv")],
                                     axis=-1)).reshape(N_LAYERS, 1, 3 * D_LLM)
    pw["Wo"] = bf(stk("Wo").reshape(N_LAYERS, Hl, dh, D_LLM))
    pw["bo"] = f32(stk("bo")).reshape(N_LAYERS, 1, D_LLM)
    pw["ln2_g"] = f32(stk("ln2_g")).reshape(N_LAYERS, 1, D_LLM)
    pw["ln2_b"] = f32(stk("ln2_b")).reshape(N_LAYERS, 1, D_LLM)
    pw["W1"] = bf(stk("W1"))
    pw["b1"] = f32(stk("b1")).reshape(N_LAYERS, 1, LLM_MLP)
    pw["W2"] = bf(stk("W2"))
    pw["b2"] = f32(stk("b2")).reshape(N_LAYERS, 1, D_LLM)
    return pw


# ------------------------------ forward pass ----------------------------------
def timellm_forward(params, X, missing_mask):
    """Inference forward of _TimeLLM (eval mode -> no loss). Returns [B, n_pred_steps, N]."""
    B, T, Nf = X.shape
    BN = B * Nf
    G = _num_groups(BN)                       # 2 on v7x (megacore), 1 on v5e/v6e
    bn_g = BN // G
    pw = prepare_params(params, bn_g)

    x = X * missing_mask  # missing values set to 0 (PyPOTS convention)

    # ---- instance (RevIN-style) normalization, mask-aware ----
    cnt = jnp.maximum(jnp.sum(missing_mask, axis=1, keepdims=True), 1.0)
    means = jnp.sum(x, axis=1, keepdims=True) / cnt
    xc = (x - means) * missing_mask
    stdev = jnp.sqrt(jnp.sum(xc * xc, axis=1, keepdims=True) / cnt + 1e-5)
    x_norm = xc / stdev
    x_nvt = jnp.transpose(x_norm, (0, 2, 1))                         # [B, N, T]

    # ---- prompt embeddings ----
    # TODO(synk): real Time-LLM builds a text prompt from per-series statistics and
    # runs the frozen LLM tokenizer + embedding; replaced by deterministic token ids.
    token_ids = (jnp.arange(PROMPT_LEN)[None, :] + jnp.arange(BN)[:, None]) % VOCAB_SIZE
    prompt_emb = jnp.take(params["word_emb"], token_ids, axis=0).astype(jnp.float32)
    prompt_emb = prompt_emb.reshape(G, bn_g * PROMPT_LEN, D_LLM)     # series-major rows

    # ---- patching (ReplicationPad1d + unfold), patch-major rows per group ----
    last = x_nvt[:, :, -1:]
    x_pad = jnp.concatenate(
        [x_nvt, jnp.repeat(last, PATCH_STRIDE, axis=-1)], axis=-1)   # [B, N, T+stride]
    idx = np.arange(PATCH_NUM)[:, None] * PATCH_STRIDE + np.arange(PATCH_SIZE)[None, :]
    patches = x_pad[:, :, idx].reshape(G, bn_g, PATCH_NUM, PATCH_SIZE)
    patches = patches.transpose(0, 2, 1, 3).reshape(G * PATCH_NUM * bn_g, PATCH_SIZE)
    patches = patches.astype(jnp.float32)

    # ---- single fused kernel: reprogramming + LLM stack + FlattenHead ----
    out3 = timellm_fused(patches, prompt_emb, pw, G, bn_g)           # [G, bn_g, pred]

    # ---- reshape + de-normalize ----
    out = out3.reshape(B, Nf, N_PRED_STEPS).transpose(0, 2, 1)       # [B, n_pred_steps, N]
    out = out * stdev + means
    # core.py: forecasting_result[:, -n_pred_steps:]
    return out[:, -N_PRED_STEPS:, :]


# ----------------------------------- main -------------------------------------
if __name__ == "__main__":
    key = jax.random.PRNGKey(0)
    k_p, k_x, k_m = jax.random.split(key, 3)
    params = init_params(k_p)

    X = jax.random.normal(k_x, (2, N_STEPS, N_FEATURES), dtype=jnp.float32)
    missing_mask = (jax.random.uniform(k_m, (2, N_STEPS, N_FEATURES)) > 0.1).astype(jnp.float32)

    fwd = jax.jit(timellm_forward)
    forecast = jax.block_until_ready(fwd(params, X, missing_mask))

    assert forecast.shape == (2, N_PRED_STEPS, N_PRED_FEATURES), forecast.shape
    assert jnp.all(jnp.isfinite(forecast))
    print("KERNEL_OK")
</pallas_src>

<mosaic_0001>
module attributes {stable_mosaic.version = 11 : i64} {
  func.func @_timellm_kernel(%arg0: i32, %arg1: memref<32x8xf32, #tpu.memory_space<vmem>>, %arg2: memref<1x64x64xf32, #tpu.memory_space<vmem>>, %arg3: memref<32x32xf32, #tpu.memory_space<vmem>>, %arg4: memref<96x96xf32, #tpu.memory_space<vmem>>, %arg5: memref<32x128xf32, #tpu.memory_space<vmem>>, %arg6: memref<32x1xf32, #tpu.memory_space<vmem>>, %arg7: memref<128x64xf32, #tpu.memory_space<vmem>>, %arg8: memref<8x32xf32, #tpu.memory_space<vmem>>, %arg9: memref<32x32xbf16, #tpu.memory_space<vmem>>, %arg10: memref<1x32xf32, #tpu.memory_space<vmem>>, %arg11: memref<64x64xbf16, #tpu.memory_space<vmem>>, %arg12: memref<1x64xf32, #tpu.memory_space<vmem>>, %arg13: memref<4x8x64xbf16, #tpu.memory_space<vmem>>, %arg14: memref<1x64xf32, #tpu.memory_space<vmem>>, %arg15: memref<2x1x64xf32, #tpu.memory_space<vmem>>, %arg16: memref<2x1x64xf32, #tpu.memory_space<vmem>>, %arg17: memref<2x64x192xbf16, #tpu.memory_space<vmem>>, %arg18: memref<2x1x192xf32, #tpu.memory_space<vmem>>, %arg19: memref<2x4x16x64xbf16, #tpu.memory_space<vmem>>, %arg20: memref<2x1x64xf32, #tpu.memory_space<vmem>>, %arg21: memref<2x1x64xf32, #tpu.memory_space<vmem>>, %arg22: memref<2x1x64xf32, #tpu.memory_space<vmem>>, %arg23: memref<2x64x256xbf16, #tpu.memory_space<vmem>>, %arg24: memref<2x1x256xf32, #tpu.memory_space<vmem>>, %arg25: memref<2x256x64xbf16, #tpu.memory_space<vmem>>, %arg26: memref<2x1x64xf32, #tpu.memory_space<vmem>>, %arg27: memref<1x64xf32, #tpu.memory_space<vmem>>, %arg28: memref<1x64xf32, #tpu.memory_space<vmem>>, %arg29: memref<4x32x8xbf16, #tpu.memory_space<vmem>>, %arg30: memref<1x8xf32, #tpu.memory_space<vmem>>, %arg31: memref<1x8x8xf32, #tpu.memory_space<vmem>>) attributes {dimension_semantics = [#tpu.dimension_semantics<parallel>], iteration_bounds = array<i64: 1>, scalar_prefetch = 0 : i64, scratch_operands = 0 : i64, tpu.core_type = #tpu.core_type<tc>, window_params = [{transform_indices = @transform_0, window_bounds = array<i64: 32, 8>}, {transform_indices = @transform_1, window_bounds = array<i64: 1, 64, 64>}, {pipeline_mode = #tpu.pipeline_mode<synchronous>, transform_indices = @transform_2, window_bounds = array<i64: 32, 32>}, {pipeline_mode = #tpu.pipeline_mode<synchronous>, transform_indices = @transform_3, window_bounds = array<i64: 96, 96>}, {pipeline_mode = #tpu.pipeline_mode<synchronous>, transform_indices = @transform_4, window_bounds = array<i64: 32, 128>}, {pipeline_mode = #tpu.pipeline_mode<synchronous>, transform_indices = @transform_5, window_bounds = array<i64: 32, 1>}, {pipeline_mode = #tpu.pipeline_mode<synchronous>, transform_indices = @transform_6, window_bounds = array<i64: 128, 64>}, {pipeline_mode = #tpu.pipeline_mode<synchronous>, transform_indices = @transform_7, window_bounds = array<i64: 8, 32>}, {pipeline_mode = #tpu.pipeline_mode<synchronous>, transform_indices = @transform_8, window_bounds = array<i64: 32, 32>}, {pipeline_mode = #tpu.pipeline_mode<synchronous>, transform_indices = @transform_9, window_bounds = array<i64: 1, 32>}, {pipeline_mode = #tpu.pipeline_mode<synchronous>, transform_indices = @transform_10, window_bounds = array<i64: 64, 64>}, {pipeline_mode = #tpu.pipeline_mode<synchronous>, transform_indices = @transform_11, window_bounds = array<i64: 1, 64>}, {pipeline_mode = #tpu.pipeline_mode<synchronous>, transform_indices = @transform_12, window_bounds = array<i64: 4, 8, 64>}, {pipeline_mode = #tpu.pipeline_mode<synchronous>, transform_indices = @transform_13, window_bounds = array<i64: 1, 64>}, {pipeline_mode = #tpu.pipeline_mode<synchronous>, transform_indices = @transform_14, window_bounds = array<i64: 2, 1, 64>}, {pipeline_mode = #tpu.pipeline_mode<synchronous>, transform_indices = @transform_15, window_bounds = array<i64: 2, 1, 64>}, {pipeline_mode = #tpu.pipeline_mode<synchronous>, transform_indices = @transform_16, window_bounds = array<i64: 2, 64, 192>}, {pipeline_mode = #tpu.pipeline_mode<synchronous>, transform_indices = @transform_17, window_bounds = array<i64: 2, 1, 192>}, {pipeline_mode = #tpu.pipeline_mode<synchronous>, transform_indices = @transform_18, window_bounds = array<i64: 2, 4, 16, 64>}, {pipeline_mode = #tpu.pipeline_mode<synchronous>, transform_indices = @transform_19, window_bounds = array<i64: 2, 1, 64>}, {pipeline_mode = #tpu.pipeline_mode<synchronous>, transform_indices = @transform_20, window_bounds = array<i64: 2, 1, 64>}, {pipeline_mode = #tpu.pipeline_mode<synchronous>, transform_indices = @transform_21, window_bounds = array<i64: 2, 1, 64>}, {pipeline_mode = #tpu.pipeline_mode<synchronous>, transform_indices = @transform_22, window_bounds = array<i64: 2, 64, 256>}, {pipeline_mode = #tpu.pipeline_mode<synchronous>, transform_indices = @transform_23, window_bounds = array<i64: 2, 1, 256>}, {pipeline_mode = #tpu.pipeline_mode<synchronous>, transform_indices = @transform_24, window_bounds = array<i64: 2, 256, 64>}, {pipeline_mode = #tpu.pipeline_mode<synchronous>, transform_indices = @transform_25, window_bounds = array<i64: 2, 1, 64>}, {pipeline_mode = #tpu.pipeline_mode<synchronous>, transform_indices = @transform_26, window_bounds = array<i64: 1, 64>}, {pipeline_mode = #tpu.pipeline_mode<synchronous>, transform_indices = @transform_27, window_bounds = array<i64: 1, 64>}, {pipeline_mode = #tpu.pipeline_mode<synchronous>, transform_indices = @transform_28, window_bounds = array<i64: 4, 32, 8>}, {pipeline_mode = #tpu.pipeline_mode<synchronous>, transform_indices = @transform_29, window_bounds = array<i64: 1, 8>}, {transform_indices = @transform_30, window_bounds = array<i64: 1, 8, 8>}]} {
    %c0 = arith.constant 0 : index
    %c0_0 = arith.constant 0 : index
    %0 = vector.load %arg5[%c0, %c0_0] : memref<32x128xf32, #tpu.memory_space<vmem>>, vector<32x128xf32>
    %c0_1 = arith.constant 0 : index
    %c0_2 = arith.constant 0 : index
    %1 = vector.load %arg7[%c0_1, %c0_2] : memref<128x64xf32, #tpu.memory_space<vmem>>, vector<128x64xf32>
    %cst = arith.constant dense<0.000000e+00> : vector<32x64xf32>
    %2 = tpu.matmul %0, %1, %cst {dimension_numbers = #tpu.dot_dimension_numbers<[1], [0], [0], [1], [0, 0, 1, 1], [], []>} : vector<32x128xf32>, vector<128x64xf32>, vector<32x64xf32> -> vector<32x64xf32>
    %c0_3 = arith.constant 0 : index
    %c0_4 = arith.constant 0 : index
    %3 = vector.load %arg6[%c0_3, %c0_4] : memref<32x1xf32, #tpu.memory_space<vmem>>, vector<32x1xf32>
    %4 = vector.broadcast %3 : vector<32x1xf32> to vector<32x64xf32>
    %5 = arith.addf %2, %4 : vector<32x64xf32>
    %6 = arith.truncf %5 : vector<32x64xf32> to vector<32x64xbf16>
    %c0_5 = arith.constant 0 : index
    %c0_6 = arith.constant 0 : index
    %7 = vector.load %arg1[%c0_5, %c0_6] : memref<32x8xf32, #tpu.memory_space<vmem>>, vector<32x8xf32>
    %c0_7 = arith.constant 0 : index
    %c0_8 = arith.constant 0 : index
    %8 = vector.load %arg8[%c0_7, %c0_8] : memref<8x32xf32, #tpu.memory_space<vmem>>, vector<8x32xf32>
    %cst_9 = arith.constant dense<0.000000e+00> : vector<32x32xf32>
    %9 = tpu.matmul %7, %8, %cst_9 {dimension_numbers = #tpu.dot_dimension_numbers<[1], [0], [0], [1], [0, 0, 1, 1], [], []>} : vector<32x8xf32>, vector<8x32xf32>, vector<32x32xf32> -> vector<32x32xf32>
    %c0_10 = arith.constant 0 : index
    %c0_11 = arith.constant 0 : index
    %10 = vector.load %arg3[%c0_10, %c0_11] : memref<32x32xf32, #tpu.memory_space<vmem>>, vector<32x32xf32>
    %11 = arith.addf %9, %10 : vector<32x32xf32>
    %12 = arith.truncf %11 : vector<32x32xf32> to vector<32x32xbf16>
    %c0_12 = arith.constant 0 : index
    %c0_13 = arith.constant 0 : index
    %13 = vector.load %arg9[%c0_12, %c0_13] : memref<32x32xbf16, #tpu.memory_space<vmem>>, vector<32x32xbf16>
    %cst_14 = arith.constant dense<0.000000e+00> : vector<32x32xf32>
    %14 = tpu.matmul %12, %13, %cst_14 {dimension_numbers = #tpu.dot_dimension_numbers<[1], [0], [0], [1], [0, 0, 1, 1], [], []>} : vector<32x32xbf16>, vector<32x32xbf16>, vector<32x32xf32> -> vector<32x32xf32>
    %c0_15 = arith.constant 0 : index
    %c0_16 = arith.constant 0 : index
    %15 = vector.load %arg10[%c0_15, %c0_16] : memref<1x32xf32, #tpu.memory_space<vmem>>, vector<1x32xf32>
    %16 = vector.broadcast %15 : vector<1x32xf32> to vector<32x32xf32>
    %17 = arith.addf %14, %16 : vector<32x32xf32>
    %c0_17 = arith.constant 0 : index
    %c0_18 = arith.constant 0 : index
    %18 = vector.load %arg11[%c0_17, %c0_18] : memref<64x64xbf16, #tpu.memory_space<vmem>>, vector<64x64xbf16>
    %cst_19 = arith.constant dense<0.000000e+00> : vector<32x64xf32>
    %19 = tpu.matmul %6, %18, %cst_19 {dimension_numbers = #tpu.dot_dimension_numbers<[1], [0], [0], [1], [0, 0, 1, 1], [], []>} : vector<32x64xbf16>, vector<64x64xbf16>, vector<32x64xf32> -> vector<32x64xf32>
    %c0_20 = arith.constant 0 : index
    %c0_21 = arith.constant 0 : index
    %20 = vector.load %arg12[%c0_20, %c0_21] : memref<1x64xf32, #tpu.memory_space<vmem>>, vector<1x64xf32>
    %21 = vector.broadcast %20 : vector<1x64xf32> to vector<32x64xf32>
    %22 = arith.addf %19, %21 : vector<32x64xf32>
    %cst_22 = arith.constant 0.000000e+00 : f32
    %23 = vector.broadcast %cst_22 : f32 to vector<32x64xf32>
    %24 = vector.extract_strided_slice %17 {offsets = [0, 0], sizes = [32, 8], strides = [1, 1]} : vector<32x32xf32> to vector<32x8xf32>
    %25 = arith.truncf %24 : vector<32x8xf32> to vector<32x8xbf16>
    %26 = vector.extract_strided_slice %22 {offsets = [0, 0], sizes = [32, 8], strides = [1, 1]} : vector<32x64xf32> to vector<32x8xf32>
    %27 = arith.truncf %26 : vector<32x8xf32> to vector<32x8xbf16>
    %28 = vector.extract_strided_slice %22 {offsets = [0, 32], sizes = [32, 8], strides = [1, 1]} : vector<32x64xf32> to vector<32x8xf32>
    %29 = arith.truncf %28 : vector<32x8xf32> to vector<32x8xbf16>
    %cst_23 = arith.constant dense<0.000000e+00> : vector<32x32xf32>
    %30 = tpu.matmul %25, %27, %cst_23 {dimension_numbers = #tpu.dot_dimension_numbers<[1], [1], [0], [0], [0, 0, 1, 0], [], []>} : vector<32x8xbf16>, vector<32x8xbf16>, vector<32x32xf32> -> vector<32x32xf32>
    %cst_24 = arith.constant 0.353553385 : f32
    %31 = vector.broadcast %cst_24 : f32 to vector<32x32xf32>
    %32 = arith.mulf %30, %31 : vector<32x32xf32>
    %cst_25 = arith.constant dense<0xFF800000> : vector<32xf32>
    %33 = vector.multi_reduction <maximumf>, %32, %cst_25 [1] : vector<32x32xf32> to vector<32xf32>
    %34 = vector.shape_cast %33 : vector<32xf32> to vector<32x1xf32>
    %35 = vector.broadcast %34 : vector<32x1xf32> to vector<32x32xf32>
    %36 = arith.subf %32, %35 : vector<32x32xf32>
    %37 = math.exp %36 : vector<32x32xf32>
    %cst_26 = arith.constant dense<0.000000e+00> : vector<32xf32>
    %38 = vector.multi_reduction <add>, %37, %cst_26 [1] : vector<32x32xf32> to vector<32xf32>
    %39 = vector.shape_cast %38 : vector<32xf32> to vector<32x1xf32>
    %40 = tpu.reciprocal %39 : vector<32x1xf32> -> vector<32x1xf32>
    %41 = vector.broadcast %40 : vector<32x1xf32> to vector<32x32xf32>
    %42 = arith.mulf %37, %41 : vector<32x32xf32>
    %43 = arith.truncf %42 : vector<32x32xf32> to vector<32x32xbf16>
    %cst_27 = arith.constant dense<0.000000e+00> : vector<32x8xf32>
    %44 = tpu.matmul %43, %29, %cst_27 {dimension_numbers = #tpu.dot_dimension_numbers<[1], [0], [0], [1], [0, 0, 1, 1], [], []>} : vector<32x32xbf16>, vector<32x8xbf16>, vector<32x8xf32> -> vector<32x8xf32>
    %45 = arith.truncf %44 : vector<32x8xf32> to vector<32x8xbf16>
    %c0_28 = arith.constant 0 : index
    %c0_29 = arith.constant 0 : index
    %c0_30 = arith.constant 0 : index
    %46 = vector.load %arg13[%c0_28, %c0_29, %c0_30] : memref<4x8x64xbf16, #tpu.memory_space<vmem>>, vector<1x8x64xbf16>
    %47 = vector.shape_cast %46 : vector<1x8x64xbf16> to vector<8x64xbf16>
    %cst_31 = arith.constant dense<0.000000e+00> : vector<32x64xf32>
    %48 = tpu.matmul %45, %47, %cst_31 {dimension_numbers = #tpu.dot_dimension_numbers<[1], [0], [0], [1], [0, 0, 1, 1], [], []>} : vector<32x8xbf16>, vector<8x64xbf16>, vector<32x64xf32> -> vector<32x64xf32>
    %49 = arith.addf %23, %48 : vector<32x64xf32>
    %50 = vector.extract_strided_slice %17 {offsets = [0, 8], sizes = [32, 8], strides = [1, 1]} : vector<32x32xf32> to vector<32x8xf32>
    %51 = arith.truncf %50 : vector<32x8xf32> to vector<32x8xbf16>
    %52 = vector.extract_strided_slice %22 {offsets = [0, 8], sizes = [32, 8], strides = [1, 1]} : vector<32x64xf32> to vector<32x8xf32>
    %53 = arith.truncf %52 : vector<32x8xf32> to vector<32x8xbf16>
    %54 = vector.extract_strided_slice %22 {offsets = [0, 40], sizes = [32, 8], strides = [1, 1]} : vector<32x64xf32> to vector<32x8xf32>
    %55 = arith.truncf %54 : vector<32x8xf32> to vector<32x8xbf16>
    %cst_32 = arith.constant dense<0.000000e+00> : vector<32x32xf32>
    %56 = tpu.matmul %51, %53, %cst_32 {dimension_numbers = #tpu.dot_dimension_numbers<[1], [1], [0], [0], [0, 0, 1, 0], [], []>} : vector<32x8xbf16>, vector<32x8xbf16>, vector<32x32xf32> -> vector<32x32xf32>
    %cst_33 = arith.constant 0.353553385 : f32
    %57 = vector.broadcast %cst_33 : f32 to vector<32x32xf32>
    %58 = arith.mulf %56, %57 : vector<32x32xf32>
    %cst_34 = arith.constant dense<0xFF800000> : vector<32xf32>
    %59 = vector.multi_reduction <maximumf>, %58, %cst_34 [1] : vector<32x32xf32> to vector<32xf32>
    %60 = vector.shape_cast %59 : vector<32xf32> to vector<32x1xf32>
    %61 = vector.broadcast %60 : vector<32x1xf32> to vector<32x32xf32>
    %62 = arith.subf %58, %61 : vector<32x32xf32>
    %63 = math.exp %62 : vector<32x32xf32>
    %cst_35 = arith.constant dense<0.000000e+00> : vector<32xf32>
    %64 = vector.multi_reduction <add>, %63, %cst_35 [1] : vector<32x32xf32> to vector<32xf32>
    %65 = vector.shape_cast %64 : vector<32xf32> to vector<32x1xf32>
    %66 = tpu.reciprocal %65 : vector<32x1xf32> -> vector<32x1xf32>
    %67 = vector.broadcast %66 : vector<32x1xf32> to vector<32x32xf32>
    %68 = arith.mulf %63, %67 : vector<32x32xf32>
    %69 = arith.truncf %68 : vector<32x32xf32> to vector<32x32xbf16>
    %cst_36 = arith.constant dense<0.000000e+00> : vector<32x8xf32>
    %70 = tpu.matmul %69, %55, %cst_36 {dimension_numbers = #tpu.dot_dimension_numbers<[1], [0], [0], [1], [0, 0, 1, 1], [], []>} : vector<32x32xbf16>, vector<32x8xbf16>, vector<32x8xf32> -> vector<32x8xf32>
    %71 = arith.truncf %70 : vector<32x8xf32> to vector<32x8xbf16>
    %c1 = arith.constant 1 : index
    %c0_37 = arith.constant 0 : index
    %c0_38 = arith.constant 0 : index
    %72 = vector.load %arg13[%c1, %c0_37, %c0_38] : memref<4x8x64xbf16, #tpu.memory_space<vmem>>, vector<1x8x64xbf16>
    %73 = vector.shape_cast %72 : vector<1x8x64xbf16> to vector<8x64xbf16>
    %cst_39 = arith.constant dense<0.000000e+00> : vector<32x64xf32>
    %74 = tpu.matmul %71, %73, %cst_39 {dimension_numbers = #tpu.dot_dimension_numbers<[1], [0], [0], [1], [0, 0, 1, 1], [], []>} : vector<32x8xbf16>, vector<8x64xbf16>, vector<32x64xf32> -> vector<32x64xf32>
    %75 = arith.addf %49, %74 : vector<32x64xf32>
    %76 = vector.extract_strided_slice %17 {offsets = [0, 16], sizes = [32, 8], strides = [1, 1]} : vector<32x32xf32> to vector<32x8xf32>
    %77 = arith.truncf %76 : vector<32x8xf32> to vector<32x8xbf16>
    %78 = vector.extract_strided_slice %22 {offsets = [0, 16], sizes = [32, 8], strides = [1, 1]} : vector<32x64xf32> to vector<32x8xf32>
    %79 = arith.truncf %78 : vector<32x8xf32> to vector<32x8xbf16>
    %80 = vector.extract_strided_slice %22 {offsets = [0, 48], sizes = [32, 8], strides = [1, 1]} : vector<32x64xf32> to vector<32x8xf32>
    %81 = arith.truncf %80 : vector<32x8xf32> to vector<32x8xbf16>
    %cst_40 = arith.constant dense<0.000000e+00> : vector<32x32xf32>
    %82 = tpu.matmul %77, %79, %cst_40 {dimension_numbers = #tpu.dot_dimension_numbers<[1], [1], [0], [0], [0, 0, 1, 0], [], []>} : vector<32x8xbf16>, vector<32x8xbf16>, vector<32x32xf32> -> vector<32x32xf32>
    %cst_41 = arith.constant 0.353553385 : f32
    %83 = vector.broadcast %cst_41 : f32 to vector<32x32xf32>
    %84 = arith.mulf %82, %83 : vector<32x32xf32>
    %cst_42 = arith.constant dense<0xFF800000> : vector<32xf32>
    %85 = vector.multi_reduction <maximumf>, %84, %cst_42 [1] : vector<32x32xf32> to vector<32xf32>
    %86 = vector.shape_cast %85 : vector<32xf32> to vector<32x1xf32>
    %87 = vector.broadcast %86 : vector<32x1xf32> to vector<32x32xf32>
    %88 = arith.subf %84, %87 : vector<32x32xf32>
    %89 = math.exp %88 : vector<32x32xf32>
    %cst_43 = arith.constant dense<0.000000e+00> : vector<32xf32>
    %90 = vector.multi_reduction <add>, %89, %cst_43 [1] : vector<32x32xf32> to vector<32xf32>
    %91 = vector.shape_cast %90 : vector<32xf32> to vector<32x1xf32>
    %92 = tpu.reciprocal %91 : vector<32x1xf32> -> vector<32x1xf32>
    %93 = vector.broadcast %92 : vector<32x1xf32> to vector<32x32xf32>
    %94 = arith.mulf %89, %93 : vector<32x32xf32>
    %95 = arith.truncf %94 : vector<32x32xf32> to vector<32x32xbf16>
    %cst_44 = arith.constant dense<0.000000e+00> : vector<32x8xf32>
    %96 = tpu.matmul %95, %81, %cst_44 {dimension_numbers = #tpu.dot_dimension_numbers<[1], [0], [0], [1], [0, 0, 1, 1], [], []>} : vector<32x32xbf16>, vector<32x8xbf16>, vector<32x8xf32> -> vector<32x8xf32>
    %97 = arith.truncf %96 : vector<32x8xf32> to vector<32x8xbf16>
    %c2 = arith.constant 2 : index
    %c0_45 = arith.constant 0 : index
    %c0_46 = arith.constant 0 : index
    %98 = vector.load %arg13[%c2, %c0_45, %c0_46] : memref<4x8x64xbf16, #tpu.memory_space<vmem>>, vector<1x8x64xbf16>
    %99 = vector.shape_cast %98 : vector<1x8x64xbf16> to vector<8x64xbf16>
    %cst_47 = arith.constant dense<0.000000e+00> : vector<32x64xf32>
    %100 = tpu.matmul %97, %99, %cst_47 {dimension_numbers = #tpu.dot_dimension_numbers<[1], [0], [0], [1], [0, 0, 1, 1], [], []>} : vector<32x8xbf16>, vector<8x64xbf16>, vector<32x64xf32> -> vector<32x64xf32>
    %101 = arith.addf %75, %100 : vector<32x64xf32>
    %102 = vector.extract_strided_slice %17 {offsets = [0, 24], sizes = [32, 8], strides = [1, 1]} : vector<32x32xf32> to vector<32x8xf32>
    %103 = arith.truncf %102 : vector<32x8xf32> to vector<32x8xbf16>
    %104 = vector.extract_strided_slice %22 {offsets = [0, 24], sizes = [32, 8], strides = [1, 1]} : vector<32x64xf32> to vector<32x8xf32>
    %105 = arith.truncf %104 : vector<32x8xf32> to vector<32x8xbf16>
    %106 = vector.extract_strided_slice %22 {offsets = [0, 56], sizes = [32, 8], strides = [1, 1]} : vector<32x64xf32> to vector<32x8xf32>
    %107 = arith.truncf %106 : vector<32x8xf32> to vector<32x8xbf16>
    %cst_48 = arith.constant dense<0.000000e+00> : vector<32x32xf32>
    %108 = tpu.matmul %103, %105, %cst_48 {dimension_numbers = #tpu.dot_dimension_numbers<[1], [1], [0], [0], [0, 0, 1, 0], [], []>} : vector<32x8xbf16>, vector<32x8xbf16>, vector<32x32xf32> -> vector<32x32xf32>
    %cst_49 = arith.constant 0.353553385 : f32
    %109 = vector.broadcast %cst_49 : f32 to vector<32x32xf32>
    %110 = arith.mulf %108, %109 : vector<32x32xf32>
    %cst_50 = arith.constant dense<0xFF800000> : vector<32xf32>
    %111 = vector.multi_reduction <maximumf>, %110, %cst_50 [1] : vector<32x32xf32> to vector<32xf32>
    %112 = vector.shape_cast %111 : vector<32xf32> to vector<32x1xf32>
    %113 = vector.broadcast %112 : vector<32x1xf32> to vector<32x32xf32>
    %114 = arith.subf %110, %113 : vector<32x32xf32>
    %115 = math.exp %114 : vector<32x32xf32>
    %cst_51 = arith.constant dense<0.000000e+00> : vector<32xf32>
    %116 = vector.multi_reduction <add>, %115, %cst_51 [1] : vector<32x32xf32> to vector<32xf32>
    %117 = vector.shape_cast %116 : vector<32xf32> to vector<32x1xf32>
    %118 = tpu.reciprocal %117 : vector<32x1xf32> -> vector<32x1xf32>
    %119 = vector.broadcast %118 : vector<32x1xf32> to vector<32x32xf32>
    %120 = arith.mulf %115, %119 : vector<32x32xf32>
    %121 = arith.truncf %120 : vector<32x32xf32> to vector<32x32xbf16>
    %cst_52 = arith.constant dense<0.000000e+00> : vector<32x8xf32>
    %122 = tpu.matmul %121, %107, %cst_52 {dimension_numbers = #tpu.dot_dimension_numbers<[1], [0], [0], [1], [0, 0, 1, 1], [], []>} : vector<32x32xbf16>, vector<32x8xbf16>, vector<32x8xf32> -> vector<32x8xf32>
    %123 = arith.truncf %122 : vector<32x8xf32> to vector<32x8xbf16>
    %c3 = arith.constant 3 : index
    %c0_53 = arith.constant 0 : index
    %c0_54 = arith.constant 0 : index
    %124 = vector.load %arg13[%c3, %c0_53, %c0_54] : memref<4x8x64xbf16, #tpu.memory_space<vmem>>, vector<1x8x64xbf16>
    %125 = vector.shape_cast %124 : vector<1x8x64xbf16> to vector<8x64xbf16>
    %cst_55 = arith.constant dense<0.000000e+00> : vector<32x64xf32>
    %126 = tpu.matmul %123, %125, %cst_55 {dimension_numbers = #tpu.dot_dimension_numbers<[1], [0], [0], [1], [0, 0, 1, 1], [], []>} : vector<32x8xbf16>, vector<8x64xbf16>, vector<32x64xf32> -> vector<32x64xf32>
    %127 = arith.addf %101, %126 : vector<32x64xf32>
    %c0_56 = arith.constant 0 : index
    %c0_57 = arith.constant 0 : index
    %128 = vector.load %arg14[%c0_56, %c0_57] : memref<1x64xf32, #tpu.memory_space<vmem>>, vector<1x64xf32>
    %129 = vector.broadcast %128 : vector<1x64xf32> to vector<32x64xf32>
    %130 = arith.addf %127, %129 : vector<32x64xf32>
    %c0_58 = arith.constant 0 : index
    %c0_59 = arith.constant 0 : index
    %c0_60 = arith.constant 0 : index
    %131 = vector.load %arg2[%c0_58, %c0_59, %c0_60] : memref<1x64x64xf32, #tpu.memory_space<vmem>>, vector<1x64x64xf32>
    %132 = vector.shape_cast %131 : vector<1x64x64xf32> to vector<64x64xf32>
    %133 = tpu.concatenate %132, %130 in 0 : vector<64x64xf32>, vector<32x64xf32> -> vector<96x64xf32>
    %c0_61 = arith.constant 0 : index
    %c0_62 = arith.constant 0 : index
    %134 = vector.load %arg4[%c0_61, %c0_62] : memref<96x96xf32, #tpu.memory_space<vmem>>, vector<96x96xf32>
    %c0_63 = arith.constant 0 : index
    %c0_64 = arith.constant 0 : index
    %c0_65 = arith.constant 0 : index
    %135 = vector.load %arg15[%c0_63, %c0_64, %c0_65] : memref<2x1x64xf32, #tpu.memory_space<vmem>>, vector<1x1x64xf32>
    %136 = vector.shape_cast %135 : vector<1x1x64xf32> to vector<1x64xf32>
    %c0_66 = arith.constant 0 : index
    %c0_67 = arith.constant 0 : index
    %c0_68 = arith.constant 0 : index
    %137 = vector.load %arg16[%c0_66, %c0_67, %c0_68] : memref<2x1x64xf32, #tpu.memory_space<vmem>>, vector<1x1x64xf32>
    %138 = vector.shape_cast %137 : vector<1x1x64xf32> to vector<1x64xf32>
    %cst_69 = arith.constant dense<0.000000e+00> : vector<96xf32>
    %139 = vector.multi_reduction <add>, %133, %cst_69 [1] : vector<96x64xf32> to vector<96xf32>
    %140 = vector.shape_cast %139 : vector<96xf32> to vector<96x1xf32>
    %cst_70 = arith.constant 6.400000e+01 : f32
    %141 = vector.broadcast %cst_70 : f32 to vector<96x1xf32>
    %142 = arith.divf %140, %141 : vector<96x1xf32>
    %143 = vector.broadcast %142 : vector<96x1xf32> to vector<96x64xf32>
    %144 = arith.subf %133, %143 : vector<96x64xf32>
    %145 = arith.mulf %144, %144 : vector<96x64xf32>
    %cst_71 = arith.constant dense<0.000000e+00> : vector<96xf32>
    %146 = vector.multi_reduction <add>, %145, %cst_71 [1] : vector<96x64xf32> to vector<96xf32>
    %147 = vector.shape_cast %146 : vector<96xf32> to vector<96x1xf32>
    %cst_72 = arith.constant 6.400000e+01 : f32
    %148 = vector.broadcast %cst_72 : f32 to vector<96x1xf32>
    %149 = arith.divf %147, %148 : vector<96x1xf32>
    %150 = vector.broadcast %142 : vector<96x1xf32> to vector<96x64xf32>
    %151 = arith.subf %133, %150 : vector<96x64xf32>
    %cst_73 = arith.constant 9.99999974E-6 : f32
    %152 = vector.broadcast %cst_73 : f32 to vector<96x1xf32>
    %153 = arith.addf %149, %152 : vector<96x1xf32>
    %154 = math.rsqrt %153 : vector<96x1xf32>
    %155 = vector.broadcast %154 : vector<96x1xf32> to vector<96x64xf32>
    %156 = arith.mulf %151, %155 : vector<96x64xf32>
    %157 = vector.broadcast %136 : vector<1x64xf32> to vector<96x64xf32>
    %158 = arith.mulf %156, %157 : vector<96x64xf32>
    %159 = vector.broadcast %138 : vector<1x64xf32> to vector<96x64xf32>
    %160 = arith.addf %158, %159 : vector<96x64xf32>
    %161 = arith.truncf %160 : vector<96x64xf32> to vector<96x64xbf16>
    %c0_74 = arith.constant 0 : index
    %c0_75 = arith.constant 0 : index
    %c0_76 = arith.constant 0 : index
    %162 = vector.load %arg17[%c0_74, %c0_75, %c0_76] : memref<2x64x192xbf16, #tpu.memory_space<vmem>>, vector<1x64x192xbf16>
    %163 = vector.shape_cast %162 : vector<1x64x192xbf16> to vector<64x192xbf16>
    %cst_77 = arith.constant dense<0.000000e+00> : vector<96x192xf32>
    %164 = tpu.matmul %161, %163, %cst_77 {dimension_numbers = #tpu.dot_dimension_numbers<[1], [0], [0], [1], [0, 0, 1, 1], [], []>} : vector<96x64xbf16>, vector<64x192xbf16>, vector<96x192xf32> -> vector<96x192xf32>
    %c0_78 = arith.constant 0 : index
    %c0_79 = arith.constant 0 : index
    %c0_80 = arith.constant 0 : index
    %165 = vector.load %arg18[%c0_78, %c0_79, %c0_80] : memref<2x1x192xf32, #tpu.memory_space<vmem>>, vector<1x1x192xf32>
    %166 = vector.shape_cast %165 : vector<1x1x192xf32> to vector<1x192xf32>
    %167 = vector.broadcast %166 : vector<1x192xf32> to vector<96x192xf32>
    %168 = arith.addf %164, %167 : vector<96x192xf32>
    %cst_81 = arith.constant 0.000000e+00 : f32
    %169 = vector.broadcast %cst_81 : f32 to vector<96x64xf32>
    %170 = vector.extract_strided_slice %168 {offsets = [0, 0], sizes = [96, 16], strides = [1, 1]} : vector<96x192xf32> to vector<96x16xf32>
    %171 = arith.truncf %170 : vector<96x16xf32> to vector<96x16xbf16>
    %172 = vector.extract_strided_slice %168 {offsets = [0, 64], sizes = [96, 16], strides = [1, 1]} : vector<96x192xf32> to vector<96x16xf32>
    %173 = arith.truncf %172 : vector<96x16xf32> to vector<96x16xbf16>
    %174 = vector.extract_strided_slice %168 {offsets = [0, 128], sizes = [96, 16], strides = [1, 1]} : vector<96x192xf32> to vector<96x16xf32>
    %175 = arith.truncf %174 : vector<96x16xf32> to vector<96x16xbf16>
    %cst_82 = arith.constant dense<0.000000e+00> : vector<96x96xf32>
    %176 = tpu.matmul %171, %173, %cst_82 {dimension_numbers = #tpu.dot_dimension_numbers<[1], [1], [0], [0], [0, 0, 1, 0], [], []>} : vector<96x16xbf16>, vector<96x16xbf16>, vector<96x96xf32> -> vector<96x96xf32>
    %cst_83 = arith.constant 2.500000e-01 : f32
    %177 = vector.broadcast %cst_83 : f32 to vector<96x96xf32>
    %178 = arith.mulf %176, %177 : vector<96x96xf32>
    %179 = arith.addf %178, %134 : vector<96x96xf32>
    %cst_84 = arith.constant dense<0xFF800000> : vector<96xf32>
    %180 = vector.multi_reduction <maximumf>, %179, %cst_84 [1] : vector<96x96xf32> to vector<96xf32>
    %181 = vector.shape_cast %180 : vector<96xf32> to vector<96x1xf32>
    %182 = vector.broadcast %181 : vector<96x1xf32> to vector<96x96xf32>
    %183 = arith.subf %179, %182 : vector<96x96xf32>
    %184 = math.exp %183 : vector<96x96xf32>
    %cst_85 = arith.constant dense<0.000000e+00> : vector<96xf32>
    %185 = vector.multi_reduction <add>, %184, %cst_85 [1] : vector<96x96xf32> to vector<96xf32>
    %186 = vector.shape_cast %185 : vector<96xf32> to vector<96x1xf32>
    %187 = tpu.reciprocal %186 : vector<96x1xf32> -> vector<96x1xf32>
    %188 = vector.broadcast %187 : vector<96x1xf32> to vector<96x96xf32>
    %189 = arith.mulf %184, %188 : vector<96x96xf32>
    %190 = arith.truncf %189 : vector<96x96xf32> to vector<96x96xbf16>
    %cst_86 = arith.constant dense<0.000000e+00> : vector<96x16xf32>
    %191 = tpu.matmul %190, %175, %cst_86 {dimension_numbers = #tpu.dot_dimension_numbers<[1], [0], [0], [1], [0, 0, 1, 1], [], []>} : vector<96x96xbf16>, vector<96x16xbf16>, vector<96x16xf32> -> vector<96x16xf32>
    %192 = arith.truncf %191 : vector<96x16xf32> to vector<96x16xbf16>
    %c0_87 = arith.constant 0 : index
    %c0_88 = arith.constant 0 : index
    %c0_89 = arith.constant 0 : index
    %c0_90 = arith.constant 0 : index
    %193 = vector.load %arg19[%c0_87, %c0_88, %c0_89, %c0_90] : memref<2x4x16x64xbf16, #tpu.memory_space<vmem>>, vector<1x1x16x64xbf16>
    %194 = vector.shape_cast %193 : vector<1x1x16x64xbf16> to vector<16x64xbf16>
    %cst_91 = arith.constant dense<0.000000e+00> : vector<96x64xf32>
    %195 = tpu.matmul %192, %194, %cst_91 {dimension_numbers = #tpu.dot_dimension_numbers<[1], [0], [0], [1], [0, 0, 1, 1], [], []>} : vector<96x16xbf16>, vector<16x64xbf16>, vector<96x64xf32> -> vector<96x64xf32>
    %196 = arith.addf %169, %195 : vector<96x64xf32>
    %197 = vector.extract_strided_slice %168 {offsets = [0, 16], sizes = [96, 16], strides = [1, 1]} : vector<96x192xf32> to vector<96x16xf32>
    %198 = arith.truncf %197 : vector<96x16xf32> to vector<96x16xbf16>
    %199 = vector.extract_strided_slice %168 {offsets = [0, 80], sizes = [96, 16], strides = [1, 1]} : vector<96x192xf32> to vector<96x16xf32>
    %200 = arith.truncf %199 : vector<96x16xf32> to vector<96x16xbf16>
    %201 = vector.extract_strided_slice %168 {offsets = [0, 144], sizes = [96, 16], strides = [1, 1]} : vector<96x192xf32> to vector<96x16xf32>
    %202 = arith.truncf %201 : vector<96x16xf32> to vector<96x16xbf16>
    %cst_92 = arith.constant dense<0.000000e+00> : vector<96x96xf32>
    %203 = tpu.matmul %198, %200, %cst_92 {dimension_numbers = #tpu.dot_dimension_numbers<[1], [1], [0], [0], [0, 0, 1, 0], [], []>} : vector<96x16xbf16>, vector<96x16xbf16>, vector<96x96xf32> -> vector<96x96xf32>
    %cst_93 = arith.constant 2.500000e-01 : f32
    %204 = vector.broadcast %cst_93 : f32 to vector<96x96xf32>
    %205 = arith.mulf %203, %204 : vector<96x96xf32>
    %206 = arith.addf %205, %134 : vector<96x96xf32>
    %cst_94 = arith.constant dense<0xFF800000> : vector<96xf32>
    %207 = vector.multi_reduction <maximumf>, %206, %cst_94 [1] : vector<96x96xf32> to vector<96xf32>
    %208 = vector.shape_cast %207 : vector<96xf32> to vector<96x1xf32>
    %209 = vector.broadcast %208 : vector<96x1xf32> to vector<96x96xf32>
    %210 = arith.subf %206, %209 : vector<96x96xf32>
    %211 = math.exp %210 : vector<96x96xf32>
    %cst_95 = arith.constant dense<0.000000e+00> : vector<96xf32>
    %212 = vector.multi_reduction <add>, %211, %cst_95 [1] : vector<96x96xf32> to vector<96xf32>
    %213 = vector.shape_cast %212 : vector<96xf32> to vector<96x1xf32>
    %214 = tpu.reciprocal %213 : vector<96x1xf32> -> vector<96x1xf32>
    %215 = vector.broadcast %214 : vector<96x1xf32> to vector<96x96xf32>
    %216 = arith.mulf %211, %215 : vector<96x96xf32>
    %217 = arith.truncf %216 : vector<96x96xf32> to vector<96x96xbf16>
    %cst_96 = arith.constant dense<0.000000e+00> : vector<96x16xf32>
    %218 = tpu.matmul %217, %202, %cst_96 {dimension_numbers = #tpu.dot_dimension_numbers<[1], [0], [0], [1], [0, 0, 1, 1], [], []>} : vector<96x96xbf16>, vector<96x16xbf16>, vector<96x16xf32> -> vector<96x16xf32>
    %219 = arith.truncf %218 : vector<96x16xf32> to vector<96x16xbf16>
    %c0_97 = arith.constant 0 : index
    %c1_98 = arith.constant 1 : index
    %c0_99 = arith.constant 0 : index
    %c0_100 = arith.constant 0 : index
    %220 = vector.load %arg19[%c0_97, %c1_98, %c0_99, %c0_100] : memref<2x4x16x64xbf16, #tpu.memory_space<vmem>>, vector<1x1x16x64xbf16>
    %221 = vector.shape_cast %220 : vector<1x1x16x64xbf16> to vector<16x64xbf16>
    %cst_101 = arith.constant dense<0.000000e+00> : vector<96x64xf32>
    %222 = tpu.matmul %219, %221, %cst_101 {dimension_numbers = #tpu.dot_dimension_numbers<[1], [0], [0], [1], [0, 0, 1, 1], [], []>} : vector<96x16xbf16>, vector<16x64xbf16>, vector<96x64xf32> -> vector<96x64xf32>
    %223 = arith.addf %196, %222 : vector<96x64xf32>
    %224 = vector.extract_strided_slice %168 {offsets = [0, 32], sizes = [96, 16], strides = [1, 1]} : vector<96x192xf32> to vector<96x16xf32>
    %225 = arith.truncf %224 : vector<96x16xf32> to vector<96x16xbf16>
    %226 = vector.extract_strided_slice %168 {offsets = [0, 96], sizes = [96, 16], strides = [1, 1]} : vector<96x192xf32> to vector<96x16xf32>
    %227 = arith.truncf %226 : vector<96x16xf32> to vector<96x16xbf16>
    %228 = vector.extract_strided_slice %168 {offsets = [0, 160], sizes = [96, 16], strides = [1, 1]} : vector<96x192xf32> to vector<96x16xf32>
    %229 = arith.truncf %228 : vector<96x16xf32> to vector<96x16xbf16>
    %cst_102 = arith.constant dense<0.000000e+00> : vector<96x96xf32>
    %230 = tpu.matmul %225, %227, %cst_102 {dimension_numbers = #tpu.dot_dimension_numbers<[1], [1], [0], [0], [0, 0, 1, 0], [], []>} : vector<96x16xbf16>, vector<96x16xbf16>, vector<96x96xf32> -> vector<96x96xf32>
    %cst_103 = arith.constant 2.500000e-01 : f32
    %231 = vector.broadcast %cst_103 : f32 to vector<96x96xf32>
    %232 = arith.mulf %230, %231 : vector<96x96xf32>
    %233 = arith.addf %232, %134 : vector<96x96xf32>
    %cst_104 = arith.constant dense<0xFF800000> : vector<96xf32>
    %234 = vector.multi_reduction <maximumf>, %233, %cst_104 [1] : vector<96x96xf32> to vector<96xf32>
    %235 = vector.shape_cast %234 : vector<96xf32> to vector<96x1xf32>
    %236 = vector.broadcast %235 : vector<96x1xf32> to vector<96x96xf32>
    %237 = arith.subf %233, %236 : vector<96x96xf32>
    %238 = math.exp %237 : vector<96x96xf32>
    %cst_105 = arith.constant dense<0.000000e+00> : vector<96xf32>
    %239 = vector.multi_reduction <add>, %238, %cst_105 [1] : vector<96x96xf32> to vector<96xf32>
    %240 = vector.shape_cast %239 : vector<96xf32> to vector<96x1xf32>
    %241 = tpu.reciprocal %240 : vector<96x1xf32> -> vector<96x1xf32>
    %242 = vector.broadcast %241 : vector<96x1xf32> to vector<96x96xf32>
    %243 = arith.mulf %238, %242 : vector<96x96xf32>
    %244 = arith.truncf %243 : vector<96x96xf32> to vector<96x96xbf16>
    %cst_106 = arith.constant dense<0.000000e+00> : vector<96x16xf32>
    %245 = tpu.matmul %244, %229, %cst_106 {dimension_numbers = #tpu.dot_dimension_numbers<[1], [0], [0], [1], [0, 0, 1, 1], [], []>} : vector<96x96xbf16>, vector<96x16xbf16>, vector<96x16xf32> -> vector<96x16xf32>
    %246 = arith.truncf %245 : vector<96x16xf32> to vector<96x16xbf16>
    %c0_107 = arith.constant 0 : index
    %c2_108 = arith.constant 2 : index
    %c0_109 = arith.constant 0 : index
    %c0_110 = arith.constant 0 : index
    %247 = vector.load %arg19[%c0_107, %c2_108, %c0_109, %c0_110] : memref<2x4x16x64xbf16, #tpu.memory_space<vmem>>, vector<1x1x16x64xbf16>
    %248 = vector.shape_cast %247 : vector<1x1x16x64xbf16> to vector<16x64xbf16>
    %cst_111 = arith.constant dense<0.000000e+00> : vector<96x64xf32>
    %249 = tpu.matmul %246, %248, %cst_111 {dimension_numbers = #tpu.dot_dimension_numbers<[1], [0], [0], [1], [0, 0, 1, 1], [], []>} : vector<96x16xbf16>, vector<16x64xbf16>, vector<96x64xf32> -> vector<96x64xf32>
    %250 = arith.addf %223, %249 : vector<96x64xf32>
    %251 = vector.extract_strided_slice %168 {offsets = [0, 48], sizes = [96, 16], strides = [1, 1]} : vector<96x192xf32> to vector<96x16xf32>
    %252 = arith.truncf %251 : vector<96x16xf32> to vector<96x16xbf16>
    %253 = vector.extract_strided_slice %168 {offsets = [0, 112], sizes = [96, 16], strides = [1, 1]} : vector<96x192xf32> to vector<96x16xf32>
    %254 = arith.truncf %253 : vector<96x16xf32> to vector<96x16xbf16>
    %255 = vector.extract_strided_slice %168 {offsets = [0, 176], sizes = [96, 16], strides = [1, 1]} : vector<96x192xf32> to vector<96x16xf32>
    %256 = arith.truncf %255 : vector<96x16xf32> to vector<96x16xbf16>
    %cst_112 = arith.constant dense<0.000000e+00> : vector<96x96xf32>
    %257 = tpu.matmul %252, %254, %cst_112 {dimension_numbers = #tpu.dot_dimension_numbers<[1], [1], [0], [0], [0, 0, 1, 0], [], []>} : vector<96x16xbf16>, vector<96x16xbf16>, vector<96x96xf32> -> vector<96x96xf32>
    %cst_113 = arith.constant 2.500000e-01 : f32
    %258 = vector.broadcast %cst_113 : f32 to vector<96x96xf32>
    %259 = arith.mulf %257, %258 : vector<96x96xf32>
    %260 = arith.addf %259, %134 : vector<96x96xf32>
    %cst_114 = arith.constant dense<0xFF800000> : vector<96xf32>
    %261 = vector.multi_reduction <maximumf>, %260, %cst_114 [1] : vector<96x96xf32> to vector<96xf32>
    %262 = vector.shape_cast %261 : vector<96xf32> to vector<96x1xf32>
    %263 = vector.broadcast %262 : vector<96x1xf32> to vector<96x96xf32>
    %264 = arith.subf %260, %263 : vector<96x96xf32>
    %265 = math.exp %264 : vector<96x96xf32>
    %cst_115 = arith.constant dense<0.000000e+00> : vector<96xf32>
    %266 = vector.multi_reduction <add>, %265, %cst_115 [1] : vector<96x96xf32> to vector<96xf32>
    %267 = vector.shape_cast %266 : vector<96xf32> to vector<96x1xf32>
    %268 = tpu.reciprocal %267 : vector<96x1xf32> -> vector<96x1xf32>
    %269 = vector.broadcast %268 : vector<96x1xf32> to vector<96x96xf32>
    %270 = arith.mulf %265, %269 : vector<96x96xf32>
    %271 = arith.truncf %270 : vector<96x96xf32> to vector<96x96xbf16>
    %cst_116 = arith.constant dense<0.000000e+00> : vector<96x16xf32>
    %272 = tpu.matmul %271, %256, %cst_116 {dimension_numbers = #tpu.dot_dimension_numbers<[1], [0], [0], [1], [0, 0, 1, 1], [], []>} : vector<96x96xbf16>, vector<96x16xbf16>, vector<96x16xf32> -> vector<96x16xf32>
    %273 = arith.truncf %272 : vector<96x16xf32> to vector<96x16xbf16>
    %c0_117 = arith.constant 0 : index
    %c3_118 = arith.constant 3 : index
    %c0_119 = arith.constant 0 : index
    %c0_120 = arith.constant 0 : index
    %274 = vector.load %arg19[%c0_117, %c3_118, %c0_119, %c0_120] : memref<2x4x16x64xbf16, #tpu.memory_space<vmem>>, vector<1x1x16x64xbf16>
    %275 = vector.shape_cast %274 : vector<1x1x16x64xbf16> to vector<16x64xbf16>
    %cst_121 = arith.constant dense<0.000000e+00> : vector<96x64xf32>
    %276 = tpu.matmul %273, %275, %cst_121 {dimension_numbers = #tpu.dot_dimension_numbers<[1], [0], [0], [1], [0, 0, 1, 1], [], []>} : vector<96x16xbf16>, vector<16x64xbf16>, vector<96x64xf32> -> vector<96x64xf32>
    %277 = arith.addf %250, %276 : vector<96x64xf32>
    %278 = arith.addf %133, %277 : vector<96x64xf32>
    %c0_122 = arith.constant 0 : index
    %c0_123 = arith.constant 0 : index
    %c0_124 = arith.constant 0 : index
    %279 = vector.load %arg20[%c0_122, %c0_123, %c0_124] : memref<2x1x64xf32, #tpu.memory_space<vmem>>, vector<1x1x64xf32>
    %280 = vector.shape_cast %279 : vector<1x1x64xf32> to vector<1x64xf32>
    %281 = vector.broadcast %280 : vector<1x64xf32> to vector<96x64xf32>
    %282 = arith.addf %278, %281 : vector<96x64xf32>
    %c0_125 = arith.constant 0 : index
    %c0_126 = arith.constant 0 : index
    %c0_127 = arith.constant 0 : index
    %283 = vector.load %arg21[%c0_125, %c0_126, %c0_127] : memref<2x1x64xf32, #tpu.memory_space<vmem>>, vector<1x1x64xf32>
    %284 = vector.shape_cast %283 : vector<1x1x64xf32> to vector<1x64xf32>
    %c0_128 = arith.constant 0 : index
    %c0_129 = arith.constant 0 : index
    %c0_130 = arith.constant 0 : index
    %285 = vector.load %arg22[%c0_128, %c0_129, %c0_130] : memref<2x1x64xf32, #tpu.memory_space<vmem>>, vector<1x1x64xf32>
    %286 = vector.shape_cast %285 : vector<1x1x64xf32> to vector<1x64xf32>
    %cst_131 = arith.constant dense<0.000000e+00> : vector<96xf32>
    %287 = vector.multi_reduction <add>, %282, %cst_131 [1] : vector<96x64xf32> to vector<96xf32>
    %288 = vector.shape_cast %287 : vector<96xf32> to vector<96x1xf32>
    %cst_132 = arith.constant 6.400000e+01 : f32
    %289 = vector.broadcast %cst_132 : f32 to vector<96x1xf32>
    %290 = arith.divf %288, %289 : vector<96x1xf32>
    %291 = vector.broadcast %290 : vector<96x1xf32> to vector<96x64xf32>
    %292 = arith.subf %282, %291 : vector<96x64xf32>
    %293 = arith.mulf %292, %292 : vector<96x64xf32>
    %cst_133 = arith.constant dense<0.000000e+00> : vector<96xf32>
    %294 = vector.multi_reduction <add>, %293, %cst_133 [1] : vector<96x64xf32> to vector<96xf32>
    %295 = vector.shape_cast %294 : vector<96xf32> to vector<96x1xf32>
    %cst_134 = arith.constant 6.400000e+01 : f32
    %296 = vector.broadcast %cst_134 : f32 to vector<96x1xf32>
    %297 = arith.divf %295, %296 : vector<96x1xf32>
    %298 = vector.broadcast %290 : vector<96x1xf32> to vector<96x64xf32>
    %299 = arith.subf %282, %298 : vector<96x64xf32>
    %cst_135 = arith.constant 9.99999974E-6 : f32
    %300 = vector.broadcast %cst_135 : f32 to vector<96x1xf32>
    %301 = arith.addf %297, %300 : vector<96x1xf32>
    %302 = math.rsqrt %301 : vector<96x1xf32>
    %303 = vector.broadcast %302 : vector<96x1xf32> to vector<96x64xf32>
    %304 = arith.mulf %299, %303 : vector<96x64xf32>
    %305 = vector.broadcast %284 : vector<1x64xf32> to vector<96x64xf32>
    %306 = arith.mulf %304, %305 : vector<96x64xf32>
    %307 = vector.broadcast %286 : vector<1x64xf32> to vector<96x64xf32>
    %308 = arith.addf %306, %307 : vector<96x64xf32>
    %309 = arith.truncf %308 : vector<96x64xf32> to vector<96x64xbf16>
    %c0_136 = arith.constant 0 : index
    %c0_137 = arith.constant 0 : index
    %c0_138 = arith.constant 0 : index
    %310 = vector.load %arg23[%c0_136, %c0_137, %c0_138] : memref<2x64x256xbf16, #tpu.memory_space<vmem>>, vector<1x64x256xbf16>
    %311 = vector.shape_cast %310 : vector<1x64x256xbf16> to vector<64x256xbf16>
    %cst_139 = arith.constant dense<0.000000e+00> : vector<96x256xf32>
    %312 = tpu.matmul %309, %311, %cst_139 {dimension_numbers = #tpu.dot_dimension_numbers<[1], [0], [0], [1], [0, 0, 1, 1], [], []>} : vector<96x64xbf16>, vector<64x256xbf16>, vector<96x256xf32> -> vector<96x256xf32>
    %c0_140 = arith.constant 0 : index
    %c0_141 = arith.constant 0 : index
    %c0_142 = arith.constant 0 : index
    %313 = vector.load %arg24[%c0_140, %c0_141, %c0_142] : memref<2x1x256xf32, #tpu.memory_space<vmem>>, vector<1x1x256xf32>
    %314 = vector.shape_cast %313 : vector<1x1x256xf32> to vector<1x256xf32>
    %315 = vector.broadcast %314 : vector<1x256xf32> to vector<96x256xf32>
    %316 = arith.addf %312, %315 : vector<96x256xf32>
    %317 = arith.mulf %316, %316 : vector<96x256xf32>
    %318 = arith.mulf %316, %317 : vector<96x256xf32>
    %cst_143 = arith.constant 4.471500e-02 : f32
    %319 = vector.broadcast %cst_143 : f32 to vector<96x256xf32>
    %320 = arith.mulf %319, %318 : vector<96x256xf32>
    %321 = arith.addf %316, %320 : vector<96x256xf32>
    %cst_144 = arith.constant 0.797884583 : f32
    %322 = vector.broadcast %cst_144 : f32 to vector<96x256xf32>
    %323 = arith.mulf %322, %321 : vector<96x256xf32>
    %324 = math.tanh %323 : vector<96x256xf32>
    %cst_145 = arith.constant 1.000000e+00 : f32
    %325 = vector.broadcast %cst_145 : f32 to vector<96x256xf32>
    %326 = arith.addf %325, %324 : vector<96x256xf32>
    %cst_146 = arith.constant 5.000000e-01 : f32
    %327 = vector.broadcast %cst_146 : f32 to vector<96x256xf32>
    %328 = arith.mulf %327, %326 : vector<96x256xf32>
    %329 = arith.mulf %316, %328 : vector<96x256xf32>
    %330 = arith.truncf %329 : vector<96x256xf32> to vector<96x256xbf16>
    %c0_147 = arith.constant 0 : index
    %c0_148 = arith.constant 0 : index
    %c0_149 = arith.constant 0 : index
    %331 = vector.load %arg25[%c0_147, %c0_148, %c0_149] : memref<2x256x64xbf16, #tpu.memory_space<vmem>>, vector<1x256x64xbf16>
    %332 = vector.shape_cast %331 : vector<1x256x64xbf16> to vector<256x64xbf16>
    %cst_150 = arith.constant dense<0.000000e+00> : vector<96x64xf32>
    %333 = tpu.matmul %330, %332, %cst_150 {dimension_numbers = #tpu.dot_dimension_numbers<[1], [0], [0], [1], [0, 0, 1, 1], [], []>} : vector<96x256xbf16>, vector<256x64xbf16>, vector<96x64xf32> -> vector<96x64xf32>
    %334 = arith.addf %282, %333 : vector<96x64xf32>
    %c0_151 = arith.constant 0 : index
    %c0_152 = arith.constant 0 : index
    %c0_153 = arith.constant 0 : index
    %335 = vector.load %arg26[%c0_151, %c0_152, %c0_153] : memref<2x1x64xf32, #tpu.memory_space<vmem>>, vector<1x1x64xf32>
    %336 = vector.shape_cast %335 : vector<1x1x64xf32> to vector<1x64xf32>
    %337 = vector.broadcast %336 : vector<1x64xf32> to vector<96x64xf32>
    %338 = arith.addf %334, %337 : vector<96x64xf32>
    %c1_154 = arith.constant 1 : index
    %c0_155 = arith.constant 0 : index
    %c0_156 = arith.constant 0 : index
    %339 = vector.load %arg15[%c1_154, %c0_155, %c0_156] : memref<2x1x64xf32, #tpu.memory_space<vmem>>, vector<1x1x64xf32>
    %340 = vector.shape_cast %339 : vector<1x1x64xf32> to vector<1x64xf32>
    %c1_157 = arith.constant 1 : index
    %c0_158 = arith.constant 0 : index
    %c0_159 = arith.constant 0 : index
    %341 = vector.load %arg16[%c1_157, %c0_158, %c0_159] : memref<2x1x64xf32, #tpu.memory_space<vmem>>, vector<1x1x64xf32>
    %342 = vector.shape_cast %341 : vector<1x1x64xf32> to vector<1x64xf32>
    %cst_160 = arith.constant dense<0.000000e+00> : vector<96xf32>
    %343 = vector.multi_reduction <add>, %338, %cst_160 [1] : vector<96x64xf32> to vector<96xf32>
    %344 = vector.shape_cast %343 : vector<96xf32> to vector<96x1xf32>
    %cst_161 = arith.constant 6.400000e+01 : f32
    %345 = vector.broadcast %cst_161 : f32 to vector<96x1xf32>
    %346 = arith.divf %344, %345 : vector<96x1xf32>
    %347 = vector.broadcast %346 : vector<96x1xf32> to vector<96x64xf32>
    %348 = arith.subf %338, %347 : vector<96x64xf32>
    %349 = arith.mulf %348, %348 : vector<96x64xf32>
    %cst_162 = arith.constant dense<0.000000e+00> : vector<96xf32>
    %350 = vector.multi_reduction <add>, %349, %cst_162 [1] : vector<96x64xf32> to vector<96xf32>
    %351 = vector.shape_cast %350 : vector<96xf32> to vector<96x1xf32>
    %cst_163 = arith.constant 6.400000e+01 : f32
    %352 = vector.broadcast %cst_163 : f32 to vector<96x1xf32>
    %353 = arith.divf %351, %352 : vector<96x1xf32>
    %354 = vector.broadcast %346 : vector<96x1xf32> to vector<96x64xf32>
    %355 = arith.subf %338, %354 : vector<96x64xf32>
    %cst_164 = arith.constant 9.99999974E-6 : f32
    %356 = vector.broadcast %cst_164 : f32 to vector<96x1xf32>
    %357 = arith.addf %353, %356 : vector<96x1xf32>
    %358 = math.rsqrt %357 : vector<96x1xf32>
    %359 = vector.broadcast %358 : vector<96x1xf32> to vector<96x64xf32>
    %360 = arith.mulf %355, %359 : vector<96x64xf32>
    %361 = vector.broadcast %340 : vector<1x64xf32> to vector<96x64xf32>
    %362 = arith.mulf %360, %361 : vector<96x64xf32>
    %363 = vector.broadcast %342 : vector<1x64xf32> to vector<96x64xf32>
    %364 = arith.addf %362, %363 : vector<96x64xf32>
    %365 = arith.truncf %364 : vector<96x64xf32> to vector<96x64xbf16>
    %c1_165 = arith.constant 1 : index
    %c0_166 = arith.constant 0 : index
    %c0_167 = arith.constant 0 : index
    %366 = vector.load %arg17[%c1_165, %c0_166, %c0_167] : memref<2x64x192xbf16, #tpu.memory_space<vmem>>, vector<1x64x192xbf16>
    %367 = vector.shape_cast %366 : vector<1x64x192xbf16> to vector<64x192xbf16>
    %cst_168 = arith.constant dense<0.000000e+00> : vector<96x192xf32>
    %368 = tpu.matmul %365, %367, %cst_168 {dimension_numbers = #tpu.dot_dimension_numbers<[1], [0], [0], [1], [0, 0, 1, 1], [], []>} : vector<96x64xbf16>, vector<64x192xbf16>, vector<96x192xf32> -> vector<96x192xf32>
    %c1_169 = arith.constant 1 : index
    %c0_170 = arith.constant 0 : index
    %c0_171 = arith.constant 0 : index
    %369 = vector.load %arg18[%c1_169, %c0_170, %c0_171] : memref<2x1x192xf32, #tpu.memory_space<vmem>>, vector<1x1x192xf32>
    %370 = vector.shape_cast %369 : vector<1x1x192xf32> to vector<1x192xf32>
    %371 = vector.broadcast %370 : vector<1x192xf32> to vector<96x192xf32>
    %372 = arith.addf %368, %371 : vector<96x192xf32>
    %cst_172 = arith.constant 0.000000e+00 : f32
    %373 = vector.broadcast %cst_172 : f32 to vector<96x64xf32>
    %374 = vector.extract_strided_slice %372 {offsets = [0, 0], sizes = [96, 16], strides = [1, 1]} : vector<96x192xf32> to vector<96x16xf32>
    %375 = arith.truncf %374 : vector<96x16xf32> to vector<96x16xbf16>
    %376 = vector.extract_strided_slice %372 {offsets = [0, 64], sizes = [96, 16], strides = [1, 1]} : vector<96x192xf32> to vector<96x16xf32>
    %377 = arith.truncf %376 : vector<96x16xf32> to vector<96x16xbf16>
    %378 = vector.extract_strided_slice %372 {offsets = [0, 128], sizes = [96, 16], strides = [1, 1]} : vector<96x192xf32> to vector<96x16xf32>
    %379 = arith.truncf %378 : vector<96x16xf32> to vector<96x16xbf16>
    %cst_173 = arith.constant dense<0.000000e+00> : vector<96x96xf32>
    %380 = tpu.matmul %375, %377, %cst_173 {dimension_numbers = #tpu.dot_dimension_numbers<[1], [1], [0], [0], [0, 0, 1, 0], [], []>} : vector<96x16xbf16>, vector<96x16xbf16>, vector<96x96xf32> -> vector<96x96xf32>
    %cst_174 = arith.constant 2.500000e-01 : f32
    %381 = vector.broadcast %cst_174 : f32 to vector<96x96xf32>
    %382 = arith.mulf %380, %381 : vector<96x96xf32>
    %383 = arith.addf %382, %134 : vector<96x96xf32>
    %cst_175 = arith.constant dense<0xFF800000> : vector<96xf32>
    %384 = vector.multi_reduction <maximumf>, %383, %cst_175 [1] : vector<96x96xf32> to vector<96xf32>
    %385 = vector.shape_cast %384 : vector<96xf32> to vector<96x1xf32>
    %386 = vector.broadcast %385 : vector<96x1xf32> to vector<96x96xf32>
    %387 = arith.subf %383, %386 : vector<96x96xf32>
    %388 = math.exp %387 : vector<96x96xf32>
    %cst_176 = arith.constant dense<0.000000e+00> : vector<96xf32>
    %389 = vector.multi_reduction <add>, %388, %cst_176 [1] : vector<96x96xf32> to vector<96xf32>
    %390 = vector.shape_cast %389 : vector<96xf32> to vector<96x1xf32>
    %391 = tpu.reciprocal %390 : vector<96x1xf32> -> vector<96x1xf32>
    %392 = vector.broadcast %391 : vector<96x1xf32> to vector<96x96xf32>
    %393 = arith.mulf %388, %392 : vector<96x96xf32>
    %394 = arith.truncf %393 : vector<96x96xf32> to vector<96x96xbf16>
    %cst_177 = arith.constant dense<0.000000e+00> : vector<96x16xf32>
    %395 = tpu.matmul %394, %379, %cst_177 {dimension_numbers = #tpu.dot_dimension_numbers<[1], [0], [0], [1], [0, 0, 1, 1], [], []>} : vector<96x96xbf16>, vector<96x16xbf16>, vector<96x16xf32> -> vector<96x16xf32>
    %396 = arith.truncf %395 : vector<96x16xf32> to vector<96x16xbf16>
    %c1_178 = arith.constant 1 : index
    %c0_179 = arith.constant 0 : index
    %c0_180 = arith.constant 0 : index
    %c0_181 = arith.constant 0 : index
    %397 = vector.load %arg19[%c1_178, %c0_179, %c0_180, %c0_181] : memref<2x4x16x64xbf16, #tpu.memory_space<vmem>>, vector<1x1x16x64xbf16>
    %398 = vector.shape_cast %397 : vector<1x1x16x64xbf16> to vector<16x64xbf16>
    %cst_182 = arith.constant dense<0.000000e+00> : vector<96x64xf32>
    %399 = tpu.matmul %396, %398, %cst_182 {dimension_numbers = #tpu.dot_dimension_numbers<[1], [0], [0], [1], [0, 0, 1, 1], [], []>} : vector<96x16xbf16>, vector<16x64xbf16>, vector<96x64xf32> -> vector<96x64xf32>
    %400 = arith.addf %373, %399 : vector<96x64xf32>
    %401 = vector.extract_strided_slice %372 {offsets = [0, 16], sizes = [96, 16], strides = [1, 1]} : vector<96x192xf32> to vector<96x16xf32>
    %402 = arith.truncf %401 : vector<96x16xf32> to vector<96x16xbf16>
    %403 = vector.extract_strided_slice %372 {offsets = [0, 80], sizes = [96, 16], strides = [1, 1]} : vector<96x192xf32> to vector<96x16xf32>
    %404 = arith.truncf %403 : vector<96x16xf32> to vector<96x16xbf16>
    %405 = vector.extract_strided_slice %372 {offsets = [0, 144], sizes = [96, 16], strides = [1, 1]} : vector<96x192xf32> to vector<96x16xf32>
    %406 = arith.truncf %405 : vector<96x16xf32> to vector<96x16xbf16>
    %cst_183 = arith.constant dense<0.000000e+00> : vector<96x96xf32>
    %407 = tpu.matmul %402, %404, %cst_183 {dimension_numbers = #tpu.dot_dimension_numbers<[1], [1], [0], [0], [0, 0, 1, 0], [], []>} : vector<96x16xbf16>, vector<96x16xbf16>, vector<96x96xf32> -> vector<96x96xf32>
    %cst_184 = arith.constant 2.500000e-01 : f32
    %408 = vector.broadcast %cst_184 : f32 to vector<96x96xf32>
    %409 = arith.mulf %407, %408 : vector<96x96xf32>
    %410 = arith.addf %409, %134 : vector<96x96xf32>
    %cst_185 = arith.constant dense<0xFF800000> : vector<96xf32>
    %411 = vector.multi_reduction <maximumf>, %410, %cst_185 [1] : vector<96x96xf32> to vector<96xf32>
    %412 = vector.shape_cast %411 : vector<96xf32> to vector<96x1xf32>
    %413 = vector.broadcast %412 : vector<96x1xf32> to vector<96x96xf32>
    %414 = arith.subf %410, %413 : vector<96x96xf32>
    %415 = math.exp %414 : vector<96x96xf32>
    %cst_186 = arith.constant dense<0.000000e+00> : vector<96xf32>
    %416 = vector.multi_reduction <add>, %415, %cst_186 [1] : vector<96x96xf32> to vector<96xf32>
    %417 = vector.shape_cast %416 : vector<96xf32> to vector<96x1xf32>
    %418 = tpu.reciprocal %417 : vector<96x1xf32> -> vector<96x1xf32>
    %419 = vector.broadcast %418 : vector<96x1xf32> to vector<96x96xf32>
    %420 = arith.mulf %415, %419 : vector<96x96xf32>
    %421 = arith.truncf %420 : vector<96x96xf32> to vector<96x96xbf16>
    %cst_187 = arith.constant dense<0.000000e+00> : vector<96x16xf32>
    %422 = tpu.matmul %421, %406, %cst_187 {dimension_numbers = #tpu.dot_dimension_numbers<[1], [0], [0], [1], [0, 0, 1, 1], [], []>} : vector<96x96xbf16>, vector<96x16xbf16>, vector<96x16xf32> -> vector<96x16xf32>
    %423 = arith.truncf %422 : vector<96x16xf32> to vector<96x16xbf16>
    %c1_188 = arith.constant 1 : index
    %c1_189 = arith.constant 1 : index
    %c0_190 = arith.constant 0 : index
    %c0_191 = arith.constant 0 : index
    %424 = vector.load %arg19[%c1_188, %c1_189, %c0_190, %c0_191] : memref<2x4x16x64xbf16, #tpu.memory_space<vmem>>, vector<1x1x16x64xbf16>
    %425 = vector.shape_cast %424 : vector<1x1x16x64xbf16> to vector<16x64xbf16>
    %cst_192 = arith.constant dense<0.000000e+00> : vector<96x64xf32>
    %426 = tpu.matmul %423, %425, %cst_192 {dimension_numbers = #tpu.dot_dimension_numbers<[1], [0], [0], [1], [0, 0, 1, 1], [], []>} : vector<96x16xbf16>, vector<16x64xbf16>, vector<96x64xf32> -> vector<96x64xf32>
    %427 = arith.addf %400, %426 : vector<96x64xf32>
    %428 = vector.extract_strided_slice %372 {offsets = [0, 32], sizes = [96, 16], strides = [1, 1]} : vector<96x192xf32> to vector<96x16xf32>
    %429 = arith.truncf %428 : vector<96x16xf32> to vector<96x16xbf16>
    %430 = vector.extract_strided_slice %372 {offsets = [0, 96], sizes = [96, 16], strides = [1, 1]} : vector<96x192xf32> to vector<96x16xf32>
    %431 = arith.truncf %430 : vector<96x16xf32> to vector<96x16xbf16>
    %432 = vector.extract_strided_slice %372 {offsets = [0, 160], sizes = [96, 16], strides = [1, 1]} : vector<96x192xf32> to vector<96x16xf32>
    %433 = arith.truncf %432 : vector<96x16xf32> to vector<96x16xbf16>
    %cst_193 = arith.constant dense<0.000000e+00> : vector<96x96xf32>
    %434 = tpu.matmul %429, %431, %cst_193 {dimension_numbers = #tpu.dot_dimension_numbers<[1], [1], [0], [0], [0, 0, 1, 0], [], []>} : vector<96x16xbf16>, vector<96x16xbf16>, vector<96x96xf32> -> vector<96x96xf32>
    %cst_194 = arith.constant 2.500000e-01 : f32
    %435 = vector.broadcast %cst_194 : f32 to vector<96x96xf32>
    %436 = arith.mulf %434, %435 : vector<96x96xf32>
    %437 = arith.addf %436, %134 : vector<96x96xf32>
    %cst_195 = arith.constant dense<0xFF800000> : vector<96xf32>
    %438 = vector.multi_reduction <maximumf>, %437, %cst_195 [1] : vector<96x96xf32> to vector<96xf32>
    %439 = vector.shape_cast %438 : vector<96xf32> to vector<96x1xf32>
    %440 = vector.broadcast %439 : vector<96x1xf32> to vector<96x96xf32>
    %441 = arith.subf %437, %440 : vector<96x96xf32>
    %442 = math.exp %441 : vector<96x96xf32>
    %cst_196 = arith.constant dense<0.000000e+00> : vector<96xf32>
    %443 = vector.multi_reduction <add>, %442, %cst_196 [1] : vector<96x96xf32> to vector<96xf32>
    %444 = vector.shape_cast %443 : vector<96xf32> to vector<96x1xf32>
    %445 = tpu.reciprocal %444 : vector<96x1xf32> -> vector<96x1xf32>
    %446 = vector.broadcast %445 : vector<96x1xf32> to vector<96x96xf32>
    %447 = arith.mulf %442, %446 : vector<96x96xf32>
    %448 = arith.truncf %447 : vector<96x96xf32> to vector<96x96xbf16>
    %cst_197 = arith.constant dense<0.000000e+00> : vector<96x16xf32>
    %449 = tpu.matmul %448, %433, %cst_197 {dimension_numbers = #tpu.dot_dimension_numbers<[1], [0], [0], [1], [0, 0, 1, 1], [], []>} : vector<96x96xbf16>, vector<96x16xbf16>, vector<96x16xf32> -> vector<96x16xf32>
    %450 = arith.truncf %449 : vector<96x16xf32> to vector<96x16xbf16>
    %c1_198 = arith.constant 1 : index
    %c2_199 = arith.constant 2 : index
    %c0_200 = arith.constant 0 : index
    %c0_201 = arith.constant 0 : index
    %451 = vector.load %arg19[%c1_198, %c2_199, %c0_200, %c0_201] : memref<2x4x16x64xbf16, #tpu.memory_space<vmem>>, vector<1x1x16x64xbf16>
    %452 = vector.shape_cast %451 : vector<1x1x16x64xbf16> to vector<16x64xbf16>
    %cst_202 = arith.constant dense<0.000000e+00> : vector<96x64xf32>
    %453 = tpu.matmul %450, %452, %cst_202 {dimension_numbers = #tpu.dot_dimension_numbers<[1], [0], [0], [1], [0, 0, 1, 1], [], []>} : vector<96x16xbf16>, vector<16x64xbf16>, vector<96x64xf32> -> vector<96x64xf32>
    %454 = arith.addf %427, %453 : vector<96x64xf32>
    %455 = vector.extract_strided_slice %372 {offsets = [0, 48], sizes = [96, 16], strides = [1, 1]} : vector<96x192xf32> to vector<96x16xf32>
    %456 = arith.truncf %455 : vector<96x16xf32> to vector<96x16xbf16>
    %457 = vector.extract_strided_slice %372 {offsets = [0, 112], sizes = [96, 16], strides = [1, 1]} : vector<96x192xf32> to vector<96x16xf32>
    %458 = arith.truncf %457 : vector<96x16xf32> to vector<96x16xbf16>
    %459 = vector.extract_strided_slice %372 {offsets = [0, 176], sizes = [96, 16], strides = [1, 1]} : vector<96x192xf32> to vector<96x16xf32>
    %460 = arith.truncf %459 : vector<96x16xf32> to vector<96x16xbf16>
    %cst_203 = arith.constant dense<0.000000e+00> : vector<96x96xf32>
    %461 = tpu.matmul %456, %458, %cst_203 {dimension_numbers = #tpu.dot_dimension_numbers<[1], [1], [0], [0], [0, 0, 1, 0], [], []>} : vector<96x16xbf16>, vector<96x16xbf16>, vector<96x96xf32> -> vector<96x96xf32>
    %cst_204 = arith.constant 2.500000e-01 : f32
    %462 = vector.broadcast %cst_204 : f32 to vector<96x96xf32>
    %463 = arith.mulf %461, %462 : vector<96x96xf32>
    %464 = arith.addf %463, %134 : vector<96x96xf32>
    %cst_205 = arith.constant dense<0xFF800000> : vector<96xf32>
    %465 = vector.multi_reduction <maximumf>, %464, %cst_205 [1] : vector<96x96xf32> to vector<96xf32>
    %466 = vector.shape_cast %465 : vector<96xf32> to vector<96x1xf32>
    %467 = vector.broadcast %466 : vector<96x1xf32> to vector<96x96xf32>
    %468 = arith.subf %464, %467 : vector<96x96xf32>
    %469 = math.exp %468 : vector<96x96xf32>
    %cst_206 = arith.constant dense<0.000000e+00> : vector<96xf32>
    %470 = vector.multi_reduction <add>, %469, %cst_206 [1] : vector<96x96xf32> to vector<96xf32>
    %471 = vector.shape_cast %470 : vector<96xf32> to vector<96x1xf32>
    %472 = tpu.reciprocal %471 : vector<96x1xf32> -> vector<96x1xf32>
    %473 = vector.broadcast %472 : vector<96x1xf32> to vector<96x96xf32>
    %474 = arith.mulf %469, %473 : vector<96x96xf32>
    %475 = arith.truncf %474 : vector<96x96xf32> to vector<96x96xbf16>
    %cst_207 = arith.constant dense<0.000000e+00> : vector<96x16xf32>
    %476 = tpu.matmul %475, %460, %cst_207 {dimension_numbers = #tpu.dot_dimension_numbers<[1], [0], [0], [1], [0, 0, 1, 1], [], []>} : vector<96x96xbf16>, vector<96x16xbf16>, vector<96x16xf32> -> vector<96x16xf32>
    %477 = arith.truncf %476 : vector<96x16xf32> to vector<96x16xbf16>
    %c1_208 = arith.constant 1 : index
    %c3_209 = arith.constant 3 : index
    %c0_210 = arith.constant 0 : index
    %c0_211 = arith.constant 0 : index
    %478 = vector.load %arg19[%c1_208, %c3_209, %c0_210, %c0_211] : memref<2x4x16x64xbf16, #tpu.memory_space<vmem>>, vector<1x1x16x64xbf16>
    %479 = vector.shape_cast %478 : vector<1x1x16x64xbf16> to vector<16x64xbf16>
    %cst_212 = arith.constant dense<0.000000e+00> : vector<96x64xf32>
    %480 = tpu.matmul %477, %479, %cst_212 {dimension_numbers = #tpu.dot_dimension_numbers<[1], [0], [0], [1], [0, 0, 1, 1], [], []>} : vector<96x16xbf16>, vector<16x64xbf16>, vector<96x64xf32> -> vector<96x64xf32>
    %481 = arith.addf %454, %480 : vector<96x64xf32>
    %482 = arith.addf %338, %481 : vector<96x64xf32>
    %c1_213 = arith.constant 1 : index
    %c0_214 = arith.constant 0 : index
    %c0_215 = arith.constant 0 : index
    %483 = vector.load %arg20[%c1_213, %c0_214, %c0_215] : memref<2x1x64xf32, #tpu.memory_space<vmem>>, vector<1x1x64xf32>
    %484 = vector.shape_cast %483 : vector<1x1x64xf32> to vector<1x64xf32>
    %485 = vector.broadcast %484 : vector<1x64xf32> to vector<96x64xf32>
    %486 = arith.addf %482, %485 : vector<96x64xf32>
    %c1_216 = arith.constant 1 : index
    %c0_217 = arith.constant 0 : index
    %c0_218 = arith.constant 0 : index
    %487 = vector.load %arg21[%c1_216, %c0_217, %c0_218] : memref<2x1x64xf32, #tpu.memory_space<vmem>>, vector<1x1x64xf32>
    %488 = vector.shape_cast %487 : vector<1x1x64xf32> to vector<1x64xf32>
    %c1_219 = arith.constant 1 : index
    %c0_220 = arith.constant 0 : index
    %c0_221 = arith.constant 0 : index
    %489 = vector.load %arg22[%c1_219, %c0_220, %c0_221] : memref<2x1x64xf32, #tpu.memory_space<vmem>>, vector<1x1x64xf32>
    %490 = vector.shape_cast %489 : vector<1x1x64xf32> to vector<1x64xf32>
    %cst_222 = arith.constant dense<0.000000e+00> : vector<96xf32>
    %491 = vector.multi_reduction <add>, %486, %cst_222 [1] : vector<96x64xf32> to vector<96xf32>
    %492 = vector.shape_cast %491 : vector<96xf32> to vector<96x1xf32>
    %cst_223 = arith.constant 6.400000e+01 : f32
    %493 = vector.broadcast %cst_223 : f32 to vector<96x1xf32>
    %494 = arith.divf %492, %493 : vector<96x1xf32>
    %495 = vector.broadcast %494 : vector<96x1xf32> to vector<96x64xf32>
    %496 = arith.subf %486, %495 : vector<96x64xf32>
    %497 = arith.mulf %496, %496 : vector<96x64xf32>
    %cst_224 = arith.constant dense<0.000000e+00> : vector<96xf32>
    %498 = vector.multi_reduction <add>, %497, %cst_224 [1] : vector<96x64xf32> to vector<96xf32>
    %499 = vector.shape_cast %498 : vector<96xf32> to vector<96x1xf32>
    %cst_225 = arith.constant 6.400000e+01 : f32
    %500 = vector.broadcast %cst_225 : f32 to vector<96x1xf32>
    %501 = arith.divf %499, %500 : vector<96x1xf32>
    %502 = vector.broadcast %494 : vector<96x1xf32> to vector<96x64xf32>
    %503 = arith.subf %486, %502 : vector<96x64xf32>
    %cst_226 = arith.constant 9.99999974E-6 : f32
    %504 = vector.broadcast %cst_226 : f32 to vector<96x1xf32>
    %505 = arith.addf %501, %504 : vector<96x1xf32>
    %506 = math.rsqrt %505 : vector<96x1xf32>
    %507 = vector.broadcast %506 : vector<96x1xf32> to vector<96x64xf32>
    %508 = arith.mulf %503, %507 : vector<96x64xf32>
    %509 = vector.broadcast %488 : vector<1x64xf32> to vector<96x64xf32>
    %510 = arith.mulf %508, %509 : vector<96x64xf32>
    %511 = vector.broadcast %490 : vector<1x64xf32> to vector<96x64xf32>
    %512 = arith.addf %510, %511 : vector<96x64xf32>
    %513 = arith.truncf %512 : vector<96x64xf32> to vector<96x64xbf16>
    %c1_227 = arith.constant 1 : index
    %c0_228 = arith.constant 0 : index
    %c0_229 = arith.constant 0 : index
    %514 = vector.load %arg23[%c1_227, %c0_228, %c0_229] : memref<2x64x256xbf16, #tpu.memory_space<vmem>>, vector<1x64x256xbf16>
    %515 = vector.shape_cast %514 : vector<1x64x256xbf16> to vector<64x256xbf16>
    %cst_230 = arith.constant dense<0.000000e+00> : vector<96x256xf32>
    %516 = tpu.matmul %513, %515, %cst_230 {dimension_numbers = #tpu.dot_dimension_numbers<[1], [0], [0], [1], [0, 0, 1, 1], [], []>} : vector<96x64xbf16>, vector<64x256xbf16>, vector<96x256xf32> -> vector<96x256xf32>
    %c1_231 = arith.constant 1 : index
    %c0_232 = arith.constant 0 : index
    %c0_233 = arith.constant 0 : index
    %517 = vector.load %arg24[%c1_231, %c0_232, %c0_233] : memref<2x1x256xf32, #tpu.memory_space<vmem>>, vector<1x1x256xf32>
    %518 = vector.shape_cast %517 : vector<1x1x256xf32> to vector<1x256xf32>
    %519 = vector.broadcast %518 : vector<1x256xf32> to vector<96x256xf32>
    %520 = arith.addf %516, %519 : vector<96x256xf32>
    %521 = arith.mulf %520, %520 : vector<96x256xf32>
    %522 = arith.mulf %520, %521 : vector<96x256xf32>
    %cst_234 = arith.constant 4.471500e-02 : f32
    %523 = vector.broadcast %cst_234 : f32 to vector<96x256xf32>
    %524 = arith.mulf %523, %522 : vector<96x256xf32>
    %525 = arith.addf %520, %524 : vector<96x256xf32>
    %cst_235 = arith.constant 0.797884583 : f32
    %526 = vector.broadcast %cst_235 : f32 to vector<96x256xf32>
    %527 = arith.mulf %526, %525 : vector<96x256xf32>
    %528 = math.tanh %527 : vector<96x256xf32>
    %cst_236 = arith.constant 1.000000e+00 : f32
    %529 = vector.broadcast %cst_236 : f32 to vector<96x256xf32>
    %530 = arith.addf %529, %528 : vector<96x256xf32>
    %cst_237 = arith.constant 5.000000e-01 : f32
    %531 = vector.broadcast %cst_237 : f32 to vector<96x256xf32>
    %532 = arith.mulf %531, %530 : vector<96x256xf32>
    %533 = arith.mulf %520, %532 : vector<96x256xf32>
    %534 = arith.truncf %533 : vector<96x256xf32> to vector<96x256xbf16>
    %c1_238 = arith.constant 1 : index
    %c0_239 = arith.constant 0 : index
    %c0_240 = arith.constant 0 : index
    %535 = vector.load %arg25[%c1_238, %c0_239, %c0_240] : memref<2x256x64xbf16, #tpu.memory_space<vmem>>, vector<1x256x64xbf16>
    %536 = vector.shape_cast %535 : vector<1x256x64xbf16> to vector<256x64xbf16>
    %cst_241 = arith.constant dense<0.000000e+00> : vector<96x64xf32>
    %537 = tpu.matmul %534, %536, %cst_241 {dimension_numbers = #tpu.dot_dimension_numbers<[1], [0], [0], [1], [0, 0, 1, 1], [], []>} : vector<96x256xbf16>, vector<256x64xbf16>, vector<96x64xf32> -> vector<96x64xf32>
    %538 = arith.addf %486, %537 : vector<96x64xf32>
    %c1_242 = arith.constant 1 : index
    %c0_243 = arith.constant 0 : index
    %c0_244 = arith.constant 0 : index
    %539 = vector.load %arg26[%c1_242, %c0_243, %c0_244] : memref<2x1x64xf32, #tpu.memory_space<vmem>>, vector<1x1x64xf32>
    %540 = vector.shape_cast %539 : vector<1x1x64xf32> to vector<1x64xf32>
    %541 = vector.broadcast %540 : vector<1x64xf32> to vector<96x64xf32>
    %542 = arith.addf %538, %541 : vector<96x64xf32>
    %c0_245 = arith.constant 0 : index
    %c0_246 = arith.constant 0 : index
    %543 = vector.load %arg27[%c0_245, %c0_246] : memref<1x64xf32, #tpu.memory_space<vmem>>, vector<1x64xf32>
    %c0_247 = arith.constant 0 : index
    %c0_248 = arith.constant 0 : index
    %544 = vector.load %arg28[%c0_247, %c0_248] : memref<1x64xf32, #tpu.memory_space<vmem>>, vector<1x64xf32>
    %cst_249 = arith.constant dense<0.000000e+00> : vector<96xf32>
    %545 = vector.multi_reduction <add>, %542, %cst_249 [1] : vector<96x64xf32> to vector<96xf32>
    %546 = vector.shape_cast %545 : vector<96xf32> to vector<96x1xf32>
    %cst_250 = arith.constant 6.400000e+01 : f32
    %547 = vector.broadcast %cst_250 : f32 to vector<96x1xf32>
    %548 = arith.divf %546, %547 : vector<96x1xf32>
    %549 = vector.broadcast %548 : vector<96x1xf32> to vector<96x64xf32>
    %550 = arith.subf %542, %549 : vector<96x64xf32>
    %551 = arith.mulf %550, %550 : vector<96x64xf32>
    %cst_251 = arith.constant dense<0.000000e+00> : vector<96xf32>
    %552 = vector.multi_reduction <add>, %551, %cst_251 [1] : vector<96x64xf32> to vector<96xf32>
    %553 = vector.shape_cast %552 : vector<96xf32> to vector<96x1xf32>
    %cst_252 = arith.constant 6.400000e+01 : f32
    %554 = vector.broadcast %cst_252 : f32 to vector<96x1xf32>
    %555 = arith.divf %553, %554 : vector<96x1xf32>
    %556 = vector.broadcast %548 : vector<96x1xf32> to vector<96x64xf32>
    %557 = arith.subf %542, %556 : vector<96x64xf32>
    %cst_253 = arith.constant 9.99999974E-6 : f32
    %558 = vector.broadcast %cst_253 : f32 to vector<96x1xf32>
    %559 = arith.addf %555, %558 : vector<96x1xf32>
    %560 = math.rsqrt %559 : vector<96x1xf32>
    %561 = vector.broadcast %560 : vector<96x1xf32> to vector<96x64xf32>
    %562 = arith.mulf %557, %561 : vector<96x64xf32>
    %563 = vector.broadcast %543 : vector<1x64xf32> to vector<96x64xf32>
    %564 = arith.mulf %562, %563 : vector<96x64xf32>
    %565 = vector.broadcast %544 : vector<1x64xf32> to vector<96x64xf32>
    %566 = arith.addf %564, %565 : vector<96x64xf32>
    %cst_254 = arith.constant 0.000000e+00 : f32
    %567 = vector.broadcast %cst_254 : f32 to vector<8x8xf32>
    %568 = vector.extract_strided_slice %566 {offsets = [64, 0], sizes = [8, 32], strides = [1, 1]} : vector<96x64xf32> to vector<8x32xf32>
    %569 = arith.truncf %568 : vector<8x32xf32> to vector<8x32xbf16>
    %c0_255 = arith.constant 0 : index
    %c0_256 = arith.constant 0 : index
    %c0_257 = arith.constant 0 : index
    %570 = vector.load %arg29[%c0_255, %c0_256, %c0_257] : memref<4x32x8xbf16, #tpu.memory_space<vmem>>, vector<1x32x8xbf16>
    %571 = vector.shape_cast %570 : vector<1x32x8xbf16> to vector<32x8xbf16>
    %cst_258 = arith.constant dense<0.000000e+00> : vector<8x8xf32>
    %572 = tpu.matmul %569, %571, %cst_258 {dimension_numbers = #tpu.dot_dimension_numbers<[1], [0], [0], [1], [0, 0, 1, 1], [], []>} : vector<8x32xbf16>, vector<32x8xbf16>, vector<8x8xf32> -> vector<8x8xf32>
    %573 = arith.addf %567, %572 : vector<8x8xf32>
    %574 = vector.extract_strided_slice %566 {offsets = [72, 0], sizes = [8, 32], strides = [1, 1]} : vector<96x64xf32> to vector<8x32xf32>
    %575 = arith.truncf %574 : vector<8x32xf32> to vector<8x32xbf16>
    %c1_259 = arith.constant 1 : index
    %c0_260 = arith.constant 0 : index
    %c0_261 = arith.constant 0 : index
    %576 = vector.load %arg29[%c1_259, %c0_260, %c0_261] : memref<4x32x8xbf16, #tpu.memory_space<vmem>>, vector<1x32x8xbf16>
    %577 = vector.shape_cast %576 : vector<1x32x8xbf16> to vector<32x8xbf16>
    %cst_262 = arith.constant dense<0.000000e+00> : vector<8x8xf32>
    %578 = tpu.matmul %575, %577, %cst_262 {dimension_numbers = #tpu.dot_dimension_numbers<[1], [0], [0], [1], [0, 0, 1, 1], [], []>} : vector<8x32xbf16>, vector<32x8xbf16>, vector<8x8xf32> -> vector<8x8xf32>
    %579 = arith.addf %573, %578 : vector<8x8xf32>
    %580 = vector.extract_strided_slice %566 {offsets = [80, 0], sizes = [8, 32], strides = [1, 1]} : vector<96x64xf32> to vector<8x32xf32>
    %581 = arith.truncf %580 : vector<8x32xf32> to vector<8x32xbf16>
    %c2_263 = arith.constant 2 : index
    %c0_264 = arith.constant 0 : index
    %c0_265 = arith.constant 0 : index
    %582 = vector.load %arg29[%c2_263, %c0_264, %c0_265] : memref<4x32x8xbf16, #tpu.memory_space<vmem>>, vector<1x32x8xbf16>
    %583 = vector.shape_cast %582 : vector<1x32x8xbf16> to vector<32x8xbf16>
    %cst_266 = arith.constant dense<0.000000e+00> : vector<8x8xf32>
    %584 = tpu.matmul %581, %583, %cst_266 {dimension_numbers = #tpu.dot_dimension_numbers<[1], [0], [0], [1], [0, 0, 1, 1], [], []>} : vector<8x32xbf16>, vector<32x8xbf16>, vector<8x8xf32> -> vector<8x8xf32>
    %585 = arith.addf %579, %584 : vector<8x8xf32>
    %586 = vector.extract_strided_slice %566 {offsets = [88, 0], sizes = [8, 32], strides = [1, 1]} : vector<96x64xf32> to vector<8x32xf32>
    %587 = arith.truncf %586 : vector<8x32xf32> to vector<8x32xbf16>
    %c3_267 = arith.constant 3 : index
    %c0_268 = arith.constant 0 : index
    %c0_269 = arith.constant 0 : index
    %588 = vector.load %arg29[%c3_267, %c0_268, %c0_269] : memref<4x32x8xbf16, #tpu.memory_space<vmem>>, vector<1x32x8xbf16>
    %589 = vector.shape_cast %588 : vector<1x32x8xbf16> to vector<32x8xbf16>
    %cst_270 = arith.constant dense<0.000000e+00> : vector<8x8xf32>
    %590 = tpu.matmul %587, %589, %cst_270 {dimension_numbers = #tpu.dot_dimension_numbers<[1], [0], [0], [1], [0, 0, 1, 1], [], []>} : vector<8x32xbf16>, vector<32x8xbf16>, vector<8x8xf32> -> vector<8x8xf32>
    %591 = arith.addf %585, %590 : vector<8x8xf32>
    %c0_271 = arith.constant 0 : index
    %c0_272 = arith.constant 0 : index
    %592 = vector.load %arg30[%c0_271, %c0_272] : memref<1x8xf32, #tpu.memory_space<vmem>>, vector<1x8xf32>
    %593 = vector.broadcast %592 : vector<1x8xf32> to vector<8x8xf32>
    %594 = arith.addf %591, %593 : vector<8x8xf32>
    %c0_273 = arith.constant 0 : index
    %c0_274 = arith.constant 0 : index
    %c0_275 = arith.constant 0 : index
    %595 = vector.load %arg31[%c0_273, %c0_274, %c0_275] : memref<1x8x8xf32, #tpu.memory_space<vmem>>, vector<1x8x8xf32>
    %596 = vector.shape_cast %595 : vector<1x8x8xf32> to vector<8x8xf32>
    %597 = vector.shape_cast %594 : vector<8x8xf32> to vector<1x8x8xf32>
    tpu.vector_store %arg31[%c0_273, %c0_274, %c0_275], %597 {strides = array<i32>} : memref<1x8x8xf32, #tpu.memory_space<vmem>>, vector<1x8x8xf32>,
    return
  }
  func.func @transform_0(%arg0: i32) -> (i32, i32) {
    %c0_i32 = arith.constant 0 : i32
    %c0_i32_0 = arith.constant 0 : i32
    return %arg0, %c0_i32 : i32, i32
  }
  func.func @transform_1(%arg0: i32) -> (i32, i32, i32) {
    %c0_i32 = arith.constant 0 : i32
    %c0_i32_0 = arith.constant 0 : i32
    %c0_i32_1 = arith.constant 0 : i32
    return %arg0, %c0_i32, %c0_i32_0 : i32, i32, i32
  }
  func.func @transform_2(%arg0: i32) -> (i32, i32) {
    %c0_i32 = arith.constant 0 : i32
    %c0_i32_0 = arith.constant 0 : i32
    %c0_i32_1 = arith.constant 0 : i32
    return %c0_i32, %c0_i32_0 : i32, i32
  }
  func.func @transform_3(%arg0: i32) -> (i32, i32) {
    %c0_i32 = arith.constant 0 : i32
    %c0_i32_0 = arith.constant 0 : i32
    %c0_i32_1 = arith.constant 0 : i32
    return %c0_i32, %c0_i32_0 : i32, i32
  }
  func.func @transform_4(%arg0: i32) -> (i32, i32) {
    %c0_i32 = arith.constant 0 : i32
    %c0_i32_0 = arith.constant 0 : i32
    %c0_i32_1 = arith.constant 0 : i32
    return %c0_i32, %c0_i32_0 : i32, i32
  }
  func.func @transform_5(%arg0: i32) -> (i32, i32) {
    %c0_i32 = arith.constant 0 : i32
    %c0_i32_0 = arith.constant 0 : i32
    %c0_i32_1 = arith.constant 0 : i32
    return %c0_i32, %c0_i32_0 : i32, i32
  }
  func.func @transform_6(%arg0: i32) -> (i32, i32) {
    %c0_i32 = arith.constant 0 : i32
    %c0_i32_0 = arith.constant 0 : i32
    %c0_i32_1 = arith.constant 0 : i32
    return %c0_i32, %c0_i32_0 : i32, i32
  }
  func.func @transform_7(%arg0: i32) -> (i32, i32) {
    %c0_i32 = arith.constant 0 : i32
    %c0_i32_0 = arith.constant 0 : i32
    %c0_i32_1 = arith.constant 0 : i32
    return %c0_i32, %c0_i32_0 : i32, i32
  }
  func.func @transform_8(%arg0: i32) -> (i32, i32) {
    %c0_i32 = arith.constant 0 : i32
    %c0_i32_0 = arith.constant 0 : i32
    %c0_i32_1 = arith.constant 0 : i32
    return %c0_i32, %c0_i32_0 : i32, i32
  }
  func.func @transform_9(%arg0: i32) -> (i32, i32) {
    %c0_i32 = arith.constant 0 : i32
    %c0_i32_0 = arith.constant 0 : i32
    %c0_i32_1 = arith.constant 0 : i32
    return %c0_i32, %c0_i32_0 : i32, i32
  }
  func.func @transform_10(%arg0: i32) -> (i32, i32) {
    %c0_i32 = arith.constant 0 : i32
    %c0_i32_0 = arith.constant 0 : i32
    %c0_i32_1 = arith.constant 0 : i32
    return %c0_i32, %c0_i32_0 : i32, i32
  }
  func.func @transform_11(%arg0: i32) -> (i32, i32) {
    %c0_i32 = arith.constant 0 : i32
    %c0_i32_0 = arith.constant 0 : i32
    %c0_i32_1 = arith.constant 0 : i32
    return %c0_i32, %c0_i32_0 : i32, i32
  }
  func.func @transform_12(%arg0: i32) -> (i32, i32, i32) {
    %c0_i32 = arith.constant 0 : i32
    %c0_i32_0 = arith.constant 0 : i32
    %c0_i32_1 = arith.constant 0 : i32
    %c0_i32_2 = arith.constant 0 : i32
    return %c0_i32, %c0_i32_0, %c0_i32_1 : i32, i32, i32
  }
  func.func @transform_13(%arg0: i32) -> (i32, i32) {
    %c0_i32 = arith.constant 0 : i32
    %c0_i32_0 = arith.constant 0 : i32
    %c0_i32_1 = arith.constant 0 : i32
    return %c0_i32, %c0_i32_0 : i32, i32
  }
  func.func @transform_14(%arg0: i32) -> (i32, i32, i32) {
    %c0_i32 = arith.constant 0 : i32
    %c0_i32_0 = arith.constant 0 : i32
    %c0_i32_1 = arith.constant 0 : i32
    %c0_i32_2 = arith.constant 0 : i32
    return %c0_i32, %c0_i32_0, %c0_i32_1 : i32, i32, i32
  }
  func.func @transform_15(%arg0: i32) -> (i32, i32, i32) {
    %c0_i32 = arith.constant 0 : i32
    %c0_i32_0 = arith.constant 0 : i32
    %c0_i32_1 = arith.constant 0 : i32
    %c0_i32_2 = arith.constant 0 : i32
    return %c0_i32, %c0_i32_0, %c0_i32_1 : i32, i32, i32
  }
  func.func @transform_16(%arg0: i32) -> (i32, i32, i32) {
    %c0_i32 = arith.constant 0 : i32
    %c0_i32_0 = arith.constant 0 : i32
    %c0_i32_1 = arith.constant 0 : i32
    %c0_i32_2 = arith.constant 0 : i32
    return %c0_i32, %c0_i32_0, %c0_i32_1 : i32, i32, i32
  }
  func.func @transform_17(%arg0: i32) -> (i32, i32, i32) {
    %c0_i32 = arith.constant 0 : i32
    %c0_i32_0 = arith.constant 0 : i32
    %c0_i32_1 = arith.constant 0 : i32
    %c0_i32_2 = arith.constant 0 : i32
    return %c0_i32, %c0_i32_0, %c0_i32_1 : i32, i32, i32
  }
  func.func @transform_18(%arg0: i32) -> (i32, i32, i32, i32) {
    %c0_i32 = arith.constant 0 : i32
    %c0_i32_0 = arith.constant 0 : i32
    %c0_i32_1 = arith.constant 0 : i32
    %c0_i32_2 = arith.constant 0 : i32
    %c0_i32_3 = arith.constant 0 : i32
    return %c0_i32, %c0_i32_0, %c0_i32_1, %c0_i32_2 : i32, i32, i32, i32
  }
  func.func @transform_19(%arg0: i32) -> (i32, i32, i32) {
    %c0_i32 = arith.constant 0 : i32
    %c0_i32_0 = arith.constant 0 : i32
    %c0_i32_1 = arith.constant 0 : i32
    %c0_i32_2 = arith.constant 0 : i32
    return %c0_i32, %c0_i32_0, %c0_i32_1 : i32, i32, i32
  }
  func.func @transform_20(%arg0: i32) -> (i32, i32, i32) {
    %c0_i32 = arith.constant 0 : i32
    %c0_i32_0 = arith.constant 0 : i32
    %c0_i32_1 = arith.constant 0 : i32
    %c0_i32_2 = arith.constant 0 : i32
    return %c0_i32, %c0_i32_0, %c0_i32_1 : i32, i32, i32
  }
  func.func @transform_21(%arg0: i32) -> (i32, i32, i32) {
    %c0_i32 = arith.constant 0 : i32
    %c0_i32_0 = arith.constant 0 : i32
    %c0_i32_1 = arith.constant 0 : i32
    %c0_i32_2 = arith.constant 0 : i32
    return %c0_i32, %c0_i32_0, %c0_i32_1 : i32, i32, i32
  }
  func.func @transform_22(%arg0: i32) -> (i32, i32, i32) {
    %c0_i32 = arith.constant 0 : i32
    %c0_i32_0 = arith.constant 0 : i32
    %c0_i32_1 = arith.constant 0 : i32
    %c0_i32_2 = arith.constant 0 : i32
    return %c0_i32, %c0_i32_0, %c0_i32_1 : i32, i32, i32
  }
  func.func @transform_23(%arg0: i32) -> (i32, i32, i32) {
    %c0_i32 = arith.constant 0 : i32
    %c0_i32_0 = arith.constant 0 : i32
    %c0_i32_1 = arith.constant 0 : i32
    %c0_i32_2 = arith.constant 0 : i32
    return %c0_i32, %c0_i32_0, %c0_i32_1 : i32, i32, i32
  }
  func.func @transform_24(%arg0: i32) -> (i32, i32, i32) {
    %c0_i32 = arith.constant 0 : i32
    %c0_i32_0 = arith.constant 0 : i32
    %c0_i32_1 = arith.constant 0 : i32
    %c0_i32_2 = arith.constant 0 : i32
    return %c0_i32, %c0_i32_0, %c0_i32_1 : i32, i32, i32
  }
  func.func @transform_25(%arg0: i32) -> (i32, i32, i32) {
    %c0_i32 = arith.constant 0 : i32
    %c0_i32_0 = arith.constant 0 : i32
    %c0_i32_1 = arith.constant 0 : i32
    %c0_i32_2 = arith.constant 0 : i32
    return %c0_i32, %c0_i32_0, %c0_i32_1 : i32, i32, i32
  }
  func.func @transform_26(%arg0: i32) -> (i32, i32) {
    %c0_i32 = arith.constant 0 : i32
    %c0_i32_0 = arith.constant 0 : i32
    %c0_i32_1 = arith.constant 0 : i32
    return %c0_i32, %c0_i32_0 : i32, i32
  }
  func.func @transform_27(%arg0: i32) -> (i32, i32) {
    %c0_i32 = arith.constant 0 : i32
    %c0_i32_0 = arith.constant 0 : i32
    %c0_i32_1 = arith.constant 0 : i32
    return %c0_i32, %c0_i32_0 : i32, i32
  }
  func.func @transform_28(%arg0: i32) -> (i32, i32, i32) {
    %c0_i32 = arith.constant 0 : i32
    %c0_i32_0 = arith.constant 0 : i32
    %c0_i32_1 = arith.constant 0 : i32
    %c0_i32_2 = arith.constant 0 : i32
    return %c0_i32, %c0_i32_0, %c0_i32_1 : i32, i32, i32
  }
  func.func @transform_29(%arg0: i32) -> (i32, i32) {
    %c0_i32 = arith.constant 0 : i32
    %c0_i32_0 = arith.constant 0 : i32
    %c0_i32_1 = arith.constant 0 : i32
    return %c0_i32, %c0_i32_0 : i32, i32
  }
  func.func @transform_30(%arg0: i32) -> (i32, i32, i32) {
    %c0_i32 = arith.constant 0 : i32
    %c0_i32_0 = arith.constant 0 : i32
    %c0_i32_1 = arith.constant 0 : i32
    return %arg0, %c0_i32, %c0_i32_0 : i32, i32, i32
  }
}

</mosaic_0001>

<llo_original>
// kernel: timellm_forward.1
$region0: #{timellm_forward.1}
  #allocation0 [shape = 'u32[]', space=smem, size = 0x4, offset = 0x4, fixed_abs, tag = 'smem constant byte address 0x4 - core index']
  #allocation1 [shape = 'u32[144,128]{1,0:T(1,128)}', space=vmem, size = 0x12000, scoped, tag = 'internal scratch']
  %s0 = inlined_call_operand.smem [shape: u32[31], index: -1, kind: input, shape index: {}]
  %s1 = sld [smem:[%s0]]
  %s2 = scalar_lea.smem %s0, 1
  %s3 = sld [smem:[%s2]]
  %s4 = scalar_lea.smem %s0, 2
  %s5 = sld [smem:[%s4]]
  %s6 = scalar_lea.smem %s0, 3
  %s7 = sld [smem:[%s6]]
  %s8 = scalar_lea.smem %s0, 4
  %s9 = sld [smem:[%s8]]
  %s10 = scalar_lea.smem %s0, 5
  %s11 = sld [smem:[%s10]]
  %s12 = scalar_lea.smem %s0, 6
  %s13 = sld [smem:[%s12]]
  %s14 = scalar_lea.smem %s0, 7
  %s15 = sld [smem:[%s14]]
  %s16 = scalar_lea.smem %s0, 8
  %s17 = sld [smem:[%s16]]
  %s18 = scalar_lea.smem %s0, 9
  %s19 = sld [smem:[%s18]]
  %s20 = scalar_lea.smem %s0, 10
  %s21 = sld [smem:[%s20]]
  %s22 = scalar_lea.smem %s0, 11
  %s23 = sld [smem:[%s22]]
  %s24 = scalar_lea.smem %s0, 12
  %s25 = sld [smem:[%s24]]
  %s26 = scalar_lea.smem %s0, 13
  %s27 = sld [smem:[%s26]]
  %s28 = scalar_lea.smem %s0, 14
  %s29 = sld [smem:[%s28]]
  %s30 = scalar_lea.smem %s0, 15
  %s31 = sld [smem:[%s30]]
  %s32 = scalar_lea.smem %s0, 16
  %s33 = sld [smem:[%s32]]
  %s34 = scalar_lea.smem %s0, 17
  %s35 = sld [smem:[%s34]]
  %s36 = scalar_lea.smem %s0, 18
  %s37 = sld [smem:[%s36]]
  %s38 = scalar_lea.smem %s0, 19
  %s39 = sld [smem:[%s38]]
  %s40 = scalar_lea.smem %s0, 20
  %s41 = sld [smem:[%s40]]
  %s42 = scalar_lea.smem %s0, 21
  %s43 = sld [smem:[%s42]]
  %s44 = scalar_lea.smem %s0, 22
  %s45 = sld [smem:[%s44]]
  %s46 = scalar_lea.smem %s0, 23
  %s47 = sld [smem:[%s46]]
  %s48 = scalar_lea.smem %s0, 24
  %s49 = sld [smem:[%s48]]
  %s50 = scalar_lea.smem %s0, 25
  %s51 = sld [smem:[%s50]]
  %s52 = scalar_lea.smem %s0, 26
  %s53 = sld [smem:[%s52]]
  %s54 = scalar_lea.smem %s0, 27
  %s55 = sld [smem:[%s54]]
  %s56 = scalar_lea.smem %s0, 28
  %s57 = sld [smem:[%s56]]
  %s58 = scalar_lea.smem %s0, 29
  %s59 = sld [smem:[%s58]]
  %s60 = scalar_lea.smem %s0, 30
  %s61 = sld [smem:[%s60]]
  %s62 = sld [smem:[#allocation0]]
  $region130: #{timellm_forward.1} parent=0
    _
  %s64 = ssub.s32 1, %s62
  %s65 = scalar_select 0, %s64, %s62
  // Predicated region
  $region2: #{timellm_forward.1} parent=0 // pred_check
    _
  $region3: #{timellm_forward.1} parent=0 // pred_check_branch
    %67 = sbr.rel (0) target = $region5
  $region4: #{timellm_forward.1} parent=0 // pred_region
    _
  $region5: #{timellm_forward.1} parent=0 // pred_fallthru
    _
  // Predicated region
  $region6: #{timellm_forward.1} parent=0 // pred_check
    _
  $region7: #{timellm_forward.1} parent=0 // pred_check_branch
    %69 = sbr.rel (0) target = $region9
  $region8: #{timellm_forward.1} parent=0 // pred_region
    _
  $region9: #{timellm_forward.1} parent=0 // pred_fallthru
    _
  // Predicated region
  $region10: #{timellm_forward.1} parent=0 // pred_check
    _
  $region11: #{timellm_forward.1} parent=0 // pred_check_branch
    %71 = sbr.rel (0) target = $region13
  $region12: #{timellm_forward.1} parent=0 // pred_region
    _
  $region13: #{timellm_forward.1} parent=0 // pred_fallthru
    _
  // Predicated region
  $region14: #{timellm_forward.1} parent=0 // pred_check
    _
  $region15: #{timellm_forward.1} parent=0 // pred_check_branch
    %73 = sbr.rel (0) target = $region17
  $region16: #{timellm_forward.1} parent=0 // pred_region
    _
  $region17: #{timellm_forward.1} parent=0 // pred_fallthru
    _
  // Predicated region
  $region18: #{timellm_forward.1} parent=0 // pred_check
    _
  $region19: #{timellm_forward.1} parent=0 // pred_check_branch
    %75 = sbr.rel (0) target = $region21
  $region20: #{timellm_forward.1} parent=0 // pred_region
    _
  $region21: #{timellm_forward.1} parent=0 // pred_fallthru
    _
  // Predicated region
  $region22: #{timellm_forward.1} parent=0 // pred_check
    _
  $region23: #{timellm_forward.1} parent=0 // pred_check_branch
    %77 = sbr.rel (0) target = $region25
  $region24: #{timellm_forward.1} parent=0 // pred_region
    _
  $region25: #{timellm_forward.1} parent=0 // pred_fallthru
    _
  // Predicated region
  $region26: #{timellm_forward.1} parent=0 // pred_check
    _
  $region27: #{timellm_forward.1} parent=0 // pred_check_branch
    %79 = sbr.rel (0) target = $region29
  $region28: #{timellm_forward.1} parent=0 // pred_region
    _
  $region29: #{timellm_forward.1} parent=0 // pred_fallthru
    _
  // Predicated region
  $region30: #{timellm_forward.1} parent=0 // pred_check
    _
  $region31: #{timellm_forward.1} parent=0 // pred_check_branch
    %81 = sbr.rel (0) target = $region33
  $region32: #{timellm_forward.1} parent=0 // pred_region
    _
  $region33: #{timellm_forward.1} parent=0 // pred_fallthru
    _
  // Predicated region
  $region34: #{timellm_forward.1} parent=0 // pred_check
    _
  $region35: #{timellm_forward.1} parent=0 // pred_check_branch
    %83 = sbr.rel (0) target = $region37
  $region36: #{timellm_forward.1} parent=0 // pred_region
    _
  $region37: #{timellm_forward.1} parent=0 // pred_fallthru
    _
  // Predicated region
  $region38: #{timellm_forward.1} parent=0 // pred_check
    _
  $region39: #{timellm_forward.1} parent=0 // pred_check_branch
    %85 = sbr.rel (0) target = $region41
  $region40: #{timellm_forward.1} parent=0 // pred_region
    _
  $region41: #{timellm_forward.1} parent=0 // pred_fallthru
    _
  // Predicated region
  $region42: #{timellm_forward.1} parent=0 // pred_check
    _
  $region43: #{timellm_forward.1} parent=0 // pred_check_branch
    %87 = sbr.rel (0) target = $region45
  $region44: #{timellm_forward.1} parent=0 // pred_region
    _
  $region45: #{timellm_forward.1} parent=0 // pred_fallthru
    _
  // Predicated region
  $region46: #{timellm_forward.1} parent=0 // pred_check
    _
  $region47: #{timellm_forward.1} parent=0 // pred_check_branch
    %89 = sbr.rel (0) target = $region49
  $region48: #{timellm_forward.1} parent=0 // pred_region
    _
  $region49: #{timellm_forward.1} parent=0 // pred_fallthru
    _
  // Predicated region
  $region50: #{timellm_forward.1} parent=0 // pred_check
    _
  $region51: #{timellm_forward.1} parent=0 // pred_check_branch
    %91 = sbr.rel (0) target = $region53
  $region52: #{timellm_forward.1} parent=0 // pred_region
    _
  $region53: #{timellm_forward.1} parent=0 // pred_fallthru
    _
  // Predicated region
  $region54: #{timellm_forward.1} parent=0 // pred_check
    _
  $region55: #{timellm_forward.1} parent=0 // pred_check_branch
    %93 = sbr.rel (0) target = $region57
  $region56: #{timellm_forward.1} parent=0 // pred_region
    _
  $region57: #{timellm_forward.1} parent=0 // pred_fallthru
    _
  // Predicated region
  $region58: #{timellm_forward.1} parent=0 // pred_check
    _
  $region59: #{timellm_forward.1} parent=0 // pred_check_branch
    %95 = sbr.rel (0) target = $region61
  $region60: #{timellm_forward.1} parent=0 // pred_region
    _
  $region61: #{timellm_forward.1} parent=0 // pred_fallthru
    _
  // Predicated region
  $region62: #{timellm_forward.1} parent=0 // pred_check
    _
  $region63: #{timellm_forward.1} parent=0 // pred_check_branch
    %97 = sbr.rel (0) target = $region65
  $region64: #{timellm_forward.1} parent=0 // pred_region
    _
  $region65: #{timellm_forward.1} parent=0 // pred_fallthru
    _
  // Predicated region
  $region66: #{timellm_forward.1} parent=0 // pred_check
    _
  $region67: #{timellm_forward.1} parent=0 // pred_check_branch
    %99 = sbr.rel (0) target = $region69
  $region68: #{timellm_forward.1} parent=0 // pred_region
    _
  $region69: #{timellm_forward.1} parent=0 // pred_fallthru
    _
  // Predicated region
  $region70: #{timellm_forward.1} parent=0 // pred_check
    _
  $region71: #{timellm_forward.1} parent=0 // pred_check_branch
    %101 = sbr.rel (0) target = $region73
  $region72: #{timellm_forward.1} parent=0 // pred_region
    _
  $region73: #{timellm_forward.1} parent=0 // pred_fallthru
    _
  // Predicated region
  $region74: #{timellm_forward.1} parent=0 // pred_check
    _
  $region75: #{timellm_forward.1} parent=0 // pred_check_branch
    %103 = sbr.rel (0) target = $region77
  $region76: #{timellm_forward.1} parent=0 // pred_region
    _
  $region77: #{timellm_forward.1} parent=0 // pred_fallthru
    _
  // Predicated region
  $region78: #{timellm_forward.1} parent=0 // pred_check
    _
  $region79: #{timellm_forward.1} parent=0 // pred_check_branch
    %105 = sbr.rel (0) target = $region81
  $region80: #{timellm_forward.1} parent=0 // pred_region
    _
  $region81: #{timellm_forward.1} parent=0 // pred_fallthru
    _
  // Predicated region
  $region82: #{timellm_forward.1} parent=0 // pred_check
    _
  $region83: #{timellm_forward.1} parent=0 // pred_check_branch
    %107 = sbr.rel (0) target = $region85
  $region84: #{timellm_forward.1} parent=0 // pred_region
    _
  $region85: #{timellm_forward.1} parent=0 // pred_fallthru
    _
  // Predicated region
  $region86: #{timellm_forward.1} parent=0 // pred_check
    _
  $region87: #{timellm_forward.1} parent=0 // pred_check_branch
    %109 = sbr.rel (0) target = $region89
  $region88: #{timellm_forward.1} parent=0 // pred_region
    _
  $region89: #{timellm_forward.1} parent=0 // pred_fallthru
    _
  // Predicated region
  $region90: #{timellm_forward.1} parent=0 // pred_check
    _
  $region91: #{timellm_forward.1} parent=0 // pred_check_branch
    %111 = sbr.rel (0) target = $region93
  $region92: #{timellm_forward.1} parent=0 // pred_region
    _
  $region93: #{timellm_forward.1} parent=0 // pred_fallthru
    _
  // Predicated region
  $region94: #{timellm_forward.1} parent=0 // pred_check
    _
  $region95: #{timellm_forward.1} parent=0 // pred_check_branch
    %113 = sbr.rel (0) target = $region97
  $region96: #{timellm_forward.1} parent=0 // pred_region
    _
  $region97: #{timellm_forward.1} parent=0 // pred_fallthru
    _
  // Predicated region
  $region98: #{timellm_forward.1} parent=0 // pred_check
    _
  $region99: #{timellm_forward.1} parent=0 // pred_check_branch
    %115 = sbr.rel (0) target = $region101
  $region100: #{timellm_forward.1} parent=0 // pred_region
    _
  $region101: #{timellm_forward.1} parent=0 // pred_fallthru
    _
  // Predicated region
  $region102: #{timellm_forward.1} parent=0 // pred_check
    _
  $region103: #{timellm_forward.1} parent=0 // pred_check_branch
    %117 = sbr.rel (0) target = $region105
  $region104: #{timellm_forward.1} parent=0 // pred_region
    _
  $region105: #{timellm_forward.1} parent=0 // pred_fallthru
    _
  // Predicated region
  $region106: #{timellm_forward.1} parent=0 // pred_check
    _
  $region107: #{timellm_forward.1} parent=0 // pred_check_branch
    %119 = sbr.rel (0) target = $region109
  $region108: #{timellm_forward.1} parent=0 // pred_region
    _
  $region109: #{timellm_forward.1} parent=0 // pred_fallthru
    _
  // Predicated region
  $region110: #{timellm_forward.1} parent=0 // pred_check
    _
  $region111: #{timellm_forward.1} parent=0 // pred_check_branch
    %121 = sbr.rel (0) target = $region113
  $region112: #{timellm_forward.1} parent=0 // pred_region
    _
  $region113: #{timellm_forward.1} parent=0 // pred_fallthru
    _
  // Predicated region
  $region114: #{timellm_forward.1} parent=0 // pred_check
    _
  $region115: #{timellm_forward.1} parent=0 // pred_check_branch
    %123 = sbr.rel (0) target = $region117
  $region116: #{timellm_forward.1} parent=0 // pred_region
    _
  $region117: #{timellm_forward.1} parent=0 // pred_fallthru
    _
  // Predicated region
  $region118: #{timellm_forward.1} parent=0 // pred_check
    _
  $region119: #{timellm_forward.1} parent=0 // pred_check_branch
    %125 = sbr.rel (0) target = $region121
  $region120: #{timellm_forward.1} parent=0 // pred_region
    _
  $region121: #{timellm_forward.1} parent=0 // pred_fallthru
    _
  %v127 = vld [vmem:[%s9] sm:$0xff]
  %v128 = vld [vmem:[%s9 + $0x8] sm:$0xff]
  %v129 = vld [vmem:[%s9 + $0x10] sm:$0xff]
  %v130 = vld [vmem:[%s9 + $0x18] sm:$0xff]
  %v131 = vld [vmem:[%s13] sm:$0xff]
  %v132 = vld [vmem:[%s13 + $0x8] sm:$0xff]
  %v133 = vld [vmem:[%s13 + $0x10] sm:$0xff]
  %v134 = vld [vmem:[%s13 + $0x18] sm:$0xff]
  %v135 = vld [vmem:[%s13 + $0x20] sm:$0xff]
  %v136 = vld [vmem:[%s13 + $0x28] sm:$0xff]
  %v137 = vld [vmem:[%s13 + $0x30] sm:$0xff]
  %v138 = vld [vmem:[%s13 + $0x38] sm:$0xff]
  %v139 = vld [vmem:[%s13 + $0x40] sm:$0xff]
  %v140 = vld [vmem:[%s13 + $0x48] sm:$0xff]
  %v141 = vld [vmem:[%s13 + $0x50] sm:$0xff]
  %v142 = vld [vmem:[%s13 + $0x58] sm:$0xff]
  %v143 = vld [vmem:[%s13 + $0x60] sm:$0xff]
  %v144 = vld [vmem:[%s13 + $0x68] sm:$0xff]
  %v145 = vld [vmem:[%s13 + $0x70] sm:$0xff]
  %v146 = vld [vmem:[%s13 + $0x78] sm:$0xff]
  %v147 = vld [vmem:[%s11] sm:$0xff]
  %v148 = vld [vmem:[%s11 + $0x8] sm:$0xff]
  %v149 = vld [vmem:[%s11 + $0x10] sm:$0xff]
  %v150 = vld [vmem:[%s11 + $0x18] sm:$0xff]
  %152 = vset.pattern.permute.xlu0 0
  %153 = vperm.xlu0 %152, %v147
  %v154 = vpop.permute.xlu0 %153
  %157 = vset.pattern.permute.xlu0 0
  %158 = vperm.xlu0 %157, %v148
  %v159 = vpop.permute.xlu0 %158
  %162 = vset.pattern.permute.xlu0 0
  %163 = vperm.xlu0 %162, %v149
  %v164 = vpop.permute.xlu0 %163
  %167 = vset.pattern.permute.xlu0 0
  %168 = vperm.xlu0 %167, %v150
  %v169 = vpop.permute.xlu0 %168
  %171 = vmatprep.subr.mxu0 0.0
  %172 = vmatpush1.msra.mxu0 %v131
  %173 = vmatprep.subr.mxu0 0.0
  %174 = vmatpush1.msra.mxu0 %v132
  %175 = vmatprep.subr.mxu0 0.0
  %176 = vmatpush1.msra.mxu0 %v133
  %177 = vmatprep.subr.mxu0 0.0
  %178 = vmatpush1.msra.mxu0 %v134
  %179 = vmatprep.subr.mxu0 0.0
  %180 = vmatpush1.msra.mxu0 %v135
  %181 = vmatprep.subr.mxu0 0.0
  %182 = vmatpush1.msra.mxu0 %v136
  %183 = vmatprep.subr.mxu0 0.0
  %184 = vmatpush1.msra.mxu0 %v137
  %185 = vmatprep.subr.mxu0 0.0
  %186 = vmatpush1.msra.mxu0 %v138
  %187 = vmatprep.subr.mxu0 0.0
  %188 = vmatpush1.msra.mxu0 %v139
  %189 = vmatprep.subr.mxu0 0.0
  %190 = vmatpush1.msra.mxu0 %v140
  %191 = vmatprep.subr.mxu0 0.0
  %192 = vmatpush1.msra.mxu0 %v141
  %193 = vmatprep.subr.mxu0 0.0
  %194 = vmatpush1.msra.mxu0 %v142
  %195 = vmatprep.subr.mxu0 0.0
  %196 = vmatpush1.msra.mxu0 %v143
  %197 = vmatprep.subr.mxu0 0.0
  %198 = vmatpush1.msra.mxu0 %v144
  %199 = vmatprep.subr.mxu0 0.0
  %200 = vmatpush1.msra.mxu0 %v145
  %201 = vmatprep.subr.mxu0 0.0
  %202 = vmatpush1.msra.mxu0 %v146
  %203 = vmatprep.subr.mxu0 0.0
  %204 = vmatpush1.msra.mxu0 0.0
  %205 = vmatprep.subr.mxu0 0.0
  %206 = vmatpush1.msra.mxu0 0.0
  %207 = vmatprep.subr.mxu0 0.0
  %208 = vmatpush1.msra.mxu0 0.0
  %209 = vmatprep.subr.mxu0 0.0
  %210 = vmatpush1.msra.mxu0 0.0
  %211 = vmatprep.subr.mxu0 0.0
  %212 = vmatpush1.msra.mxu0 0.0
  %213 = vmatprep.subr.mxu0 0.0
  %214 = vmatpush1.msra.mxu0 0.0
  %215 = vmatprep.subr.mxu0 0.0
  %216 = vmatpush1.msra.mxu0 0.0
  %217 = vmatprep.subr.mxu0 0.0
  %218 = vmatpush1.msra.mxu0 0.0
  %219 = vmatprep.subr.mxu0 0.0
  %220 = vmatpush1.msra.mxu0 0.0
  %221 = vmatprep.subr.mxu0 0.0
  %222 = vmatpush1.msra.mxu0 0.0
  %223 = vmatprep.subr.mxu0 0.0
  %224 = vmatpush1.msra.mxu0 0.0
  %225 = vmatprep.subr.mxu0 0.0
  %226 = vmatpush1.msra.mxu0 0.0
  %227 = vmatprep.subr.mxu0 0.0
  %228 = vmatpush1.msra.mxu0 0.0
  %229 = vmatprep.subr.mxu0 0.0
  %230 = vmatpush1.msra.mxu0 0.0
  %231 = vmatprep.subr.mxu0 0.0
  %232 = vmatpush1.msra.mxu0 0.0
  %233 = vmatprep.subr.mxu0 0.0
  %234 = vmatpush1.msra.mxu0 0.0
  %235 = vmatprep.mubr.f32.mxu0 0.0
  %236 = vmatmul.mubr.f32.gmra.mrb[0].mxu0 %v127
  %v237 = vpop.f32.mrb[0].mxu0
  %v238 = vadd.f32 %v154, %v237
  %v239 = vpop.f32.mrb[0].mxu0
  %240 = vmatprep.mubr.f32.mxu0 0.0
  %241 = vmatmul.mubr.f32.gmra.mrb[0].mxu0 %v128
  %v242 = vpop.f32.mrb[0].mxu0
  %v243 = vadd.f32 %v159, %v242
  %v244 = vpop.f32.mrb[0].mxu0
  %245 = vmatprep.mubr.f32.mxu0 0.0
  %246 = vmatmul.mubr.f32.gmra.mrb[0].mxu0 %v129
  %v247 = vpop.f32.mrb[0].mxu0
  %v248 = vadd.f32 %v164, %v247
  %v249 = vpop.f32.mrb[0].mxu0
  %250 = vmatprep.mubr.f32.mxu0 0.0
  %251 = vmatmul.mubr.f32.gmra.mrb[0].mxu0 %v130
  %v252 = vpop.f32.mrb[0].mxu0
  %v253 = vadd.f32 %v169, %v252
  %v254 = vpop.f32.mrb[0].mxu0
  %255 = vdwg.mxu0
  %v256 = vpack.c.bf16 %v243, %v238
  %v257 = vpack.c.bf16 %v253, %v248
  %v258 = vld [vmem:[%s1] sm:$0xff]
  %v259 = vld [vmem:[%s1 + $0x8] sm:$0xff]
  %v260 = vld [vmem:[%s1 + $0x10] sm:$0xff]
  %v261 = vld [vmem:[%s1 + $0x18] sm:$0xff]
  %v262 = vld [vmem:[%s15] sm:$0xff]
  %v263 = vld [vmem:[%s5] sm:$0xff]
  %v264 = vld [vmem:[%s5 + $0x8] sm:$0xff]
  %v265 = vld [vmem:[%s5 + $0x10] sm:$0xff]
  %v266 = vld [vmem:[%s5 + $0x18] sm:$0xff]
  %vm267 = vcmask 64512
  %v269 = vsel %vm267, %v258, 0
  %v272 = vsel %vm267, %v259, 0
  %v275 = vsel %vm267, %v260, 0
  %v278 = vsel %vm267, %v261, 0
  %280 = vmatprep.subr.mxu0 0.0
  %281 = vmatpush1.msra.mxu0 %v262
  %282 = vmatprep.subr.mxu0 0.0
  %283 = vmatpush1.msra.mxu0 0.0
  %284 = vmatprep.subr.mxu0 0.0
  %285 = vmatpush1.msra.mxu0 0.0
  %286 = vmatprep.subr.mxu0 0.0
  %287 = vmatpush1.msra.mxu0 0.0
  %288 = vmatprep.subr.mxu0 0.0
  %289 = vmatpush1.msra.mxu0 0.0
  %290 = vmatprep.subr.mxu0 0.0
  %291 = vmatpush1.msra.mxu0 0.0
  %292 = vmatprep.subr.mxu0 0.0
  %293 = vmatpush1.msra.mxu0 0.0
  %294 = vmatprep.subr.mxu0 0.0
  %295 = vmatpush1.msra.mxu0 0.0
  %296 = vmatprep.subr.mxu0 0.0
  %297 = vmatpush1.msra.mxu0 0.0
  %298 = vmatprep.subr.mxu0 0.0
  %299 = vmatpush1.msra.mxu0 0.0
  %300 = vmatprep.subr.mxu0 0.0
  %301 = vmatpush1.msra.mxu0 0.0
  %302 = vmatprep.subr.mxu0 0.0
  %303 = vmatpush1.msra.mxu0 0.0
  %304 = vmatprep.subr.mxu0 0.0
  %305 = vmatpush1.msra.mxu0 0.0
  %306 = vmatprep.subr.mxu0 0.0
  %307 = vmatpush1.msra.mxu0 0.0
  %308 = vmatprep.subr.mxu0 0.0
  %309 = vmatpush1.msra.mxu0 0.0
  %310 = vmatprep.subr.mxu0 0.0
  %311 = vmatpush1.msra.mxu0 0.0
  %312 = vmatprep.subr.mxu0 0.0
  %313 = vmatpush1.msra.mxu0 0.0
  %314 = vmatprep.subr.mxu0 0.0
  %315 = vmatpush1.msra.mxu0 0.0
  %316 = vmatprep.subr.mxu0 0.0
  %317 = vmatpush1.msra.mxu0 0.0
  %318 = vmatprep.subr.mxu0 0.0
  %319 = vmatpush1.msra.mxu0 0.0
  %320 = vmatprep.subr.mxu0 0.0
  %321 = vmatpush1.msra.mxu0 0.0
  %322 = vmatprep.subr.mxu0 0.0
  %323 = vmatpush1.msra.mxu0 0.0
  %324 = vmatprep.subr.mxu0 0.0
  %325 = vmatpush1.msra.mxu0 0.0
  %326 = vmatprep.subr.mxu0 0.0
  %327 = vmatpush1.msra.mxu0 0.0
  %328 = vmatprep.subr.mxu0 0.0
  %329 = vmatpush1.msra.mxu0 0.0
  %330 = vmatprep.subr.mxu0 0.0
  %331 = vmatpush1.msra.mxu0 0.0
  %332 = vmatprep.subr.mxu0 0.0
  %333 = vmatpush1.msra.mxu0 0.0
  %334 = vmatprep.subr.mxu0 0.0
  %335 = vmatpush1.msra.mxu0 0.0
  %336 = vmatprep.subr.mxu0 0.0
  %337 = vmatpush1.msra.mxu0 0.0
  %338 = vmatprep.subr.mxu0 0.0
  %339 = vmatpush1.msra.mxu0 0.0
  %340 = vmatprep.subr.mxu0 0.0
  %341 = vmatpush1.msra.mxu0 0.0
  %342 = vmatprep.subr.mxu0 0.0
  %343 = vmatpush1.msra.mxu0 0.0
  %344 = vmatprep.mubr.f32.mxu0 0.0
  %345 = vmatmul.mubr.f32.gmra.mrb[0].mxu0 %v269
  %v346 = vpop.f32.mrb[0].mxu0
  %v347 = vadd.f32 %v263, %v346
  %v348 = vpop.f32.mrb[0].mxu0
  %349 = vmatprep.mubr.f32.mxu0 0.0
  %350 = vmatmul.mubr.f32.gmra.mrb[0].mxu0 %v272
  %v351 = vpop.f32.mrb[0].mxu0
  %v352 = vadd.f32 %v264, %v351
  %v353 = vpop.f32.mrb[0].mxu0
  %354 = vmatprep.mubr.f32.mxu0 0.0
  %355 = vmatmul.mubr.f32.gmra.mrb[0].mxu0 %v275
  %v356 = vpop.f32.mrb[0].mxu0
  %v357 = vadd.f32 %v265, %v356
  %v358 = vpop.f32.mrb[0].mxu0
  %359 = vmatprep.mubr.f32.mxu0 0.0
  %360 = vmatmul.mubr.f32.gmra.mrb[0].mxu0 %v278
  %v361 = vpop.f32.mrb[0].mxu0
  %v362 = vadd.f32 %v266, %v361
  %v363 = vpop.f32.mrb[0].mxu0
  %364 = vdwg.mxu0
  %v365 = vpack.c.bf16 %v352, %v347
  %v366 = vpack.c.bf16 %v362, %v357
  %v367 = vld [vmem:[%s17] sm:$0xf]
  %v368 = vld [vmem:[%s17 + $0x4] sm:$0xf]
  %v369 = vld [vmem:[%s17 + $0x8] sm:$0xf]
  %v370 = vld [vmem:[%s17 + $0xc] sm:$0xf]
  %v371 = vld [vmem:[%s19] sm:$0x1]
  %v373 = vlaneseq
  %v374 = vshrl.u32 %v373, 7
  %v375 = vsub.s32 0, %v374
  %v376 = vrot.slane %v371, %v375
  %v382 = vunpack.c.l.b16 %v367
  %v383 = vunpack.c.l.b16 %v368
  %v384 = vunpack.c.l.b16 %v369
  %v385 = vunpack.c.l.b16 %v370
  %v386 = vpack.c.b16 %v383, %v382
  %v387 = vpack.c.b16 %v385, %v384
  %vm390 = vcmask 261120
  %v392 = vsel %vm390, %v365, 0
  %v395 = vsel %vm390, %v366, 0
  %397 = vmatprep.subr.bf16.mxu0 0
  %398 = vmatpush1.bf16.msra.mxu0 %v386
  %399 = vmatprep.subr.bf16.mxu0 0
  %400 = vmatpush1.bf16.msra.mxu0 %v387
  %401 = vmatprep.subr.bf16.mxu0 0
  %402 = vmatpush1.bf16.msra.mxu0 0
  %403 = vmatprep.subr.bf16.mxu0 0
  %404 = vmatpush1.bf16.msra.mxu0 0
  %405 = vmatprep.subr.bf16.mxu0 0
  %406 = vmatpush1.bf16.msra.mxu0 0
  %407 = vmatprep.subr.bf16.mxu0 0
  %408 = vmatpush1.bf16.msra.mxu0 0
  %409 = vmatprep.subr.bf16.mxu0 0
  %410 = vmatpush1.bf16.msra.mxu0 0
  %411 = vmatprep.subr.bf16.mxu0 0
  %412 = vmatpush1.bf16.msra.mxu0 0
  %413 = vmatprep.subr.bf16.mxu0 0
  %414 = vmatpush1.bf16.msra.mxu0 0
  %415 = vmatprep.subr.bf16.mxu0 0
  %416 = vmatpush1.bf16.msra.mxu0 0
  %417 = vmatprep.subr.bf16.mxu0 0
  %418 = vmatpush1.bf16.msra.mxu0 0
  %419 = vmatprep.subr.bf16.mxu0 0
  %420 = vmatpush1.bf16.msra.mxu0 0
  %421 = vmatprep.subr.bf16.mxu0 0
  %422 = vmatpush1.bf16.msra.mxu0 0
  %423 = vmatprep.subr.bf16.mxu0 0
  %424 = vmatpush1.bf16.msra.mxu0 0
  %425 = vmatprep.subr.bf16.mxu0 0
  %426 = vmatpush1.bf16.msra.mxu0 0
  %427 = vmatprep.subr.bf16.mxu0 0
  %428 = vmatpush1.bf16.msra.mxu0 0
  %429 = vmatprep.mubr.bf16.mxu0 0
  %430 = vmatmul.mubr.bf16.gmra.mrb[0].mxu0 %v392
  %v431 = vpop.f32.mrb[0].mxu0
  %v432 = vadd.f32 %v376, %v431
  %v433 = vpop.f32.mrb[0].mxu0
  %v434 = vpop.f32.mrb[0].mxu0
  %v435 = vadd.f32 %v376, %v434
  %v436 = vpop.f32.mrb[0].mxu0
  %437 = vmatprep.mubr.bf16.mxu0 0
  %438 = vmatmul.mubr.bf16.gmra.mrb[0].mxu0 %v395
  %v439 = vpop.f32.mrb[0].mxu0
  %v440 = vadd.f32 %v376, %v439
  %v441 = vpop.f32.mrb[0].mxu0
  %v442 = vpop.f32.mrb[0].mxu0
  %v443 = vadd.f32 %v376, %v442
  %v444 = vpop.f32.mrb[0].mxu0
  %445 = vdwg.mxu0
  %v446 = vld [vmem:[%s21] sm:$0xf]
  %v447 = vld [vmem:[%s21 + $0x4] sm:$0xf]
  %v448 = vld [vmem:[%s21 + $0x8] sm:$0xf]
  %v449 = vld [vmem:[%s21 + $0xc] sm:$0xf]
  %v450 = vld [vmem:[%s21 + $0x10] sm:$0xf]
  %v451 = vld [vmem:[%s21 + $0x14] sm:$0xf]
  %v452 = vld [vmem:[%s21 + $0x18] sm:$0xf]
  %v453 = vld [vmem:[%s21 + $0x1c] sm:$0xf]
  %v454 = vld [vmem:[%s23] sm:$0x1]
  %v456 = vlaneseq
  %v457 = vshrl.u32 %v456, 7
  %v458 = vsub.s32 0, %v457
  %v459 = vrot.slane %v454, %v458
  %v469 = vunpack.c.l.b16 %v446
  %v470 = vunpack.c.l.b16 %v447
  %v471 = vunpack.c.l.b16 %v448
  %v472 = vunpack.c.l.b16 %v449
  %v473 = vunpack.c.l.b16 %v450
  %v474 = vunpack.c.l.b16 %v451
  %v475 = vunpack.c.l.b16 %v452
  %v476 = vunpack.c.l.b16 %v453
  %v477 = vpack.c.b16 %v470, %v469
  %v478 = vpack.c.b16 %v472, %v471
  %v479 = vpack.c.b16 %v474, %v473
  %v480 = vpack.c.b16 %v476, %v475
  %vm485 = vcmask 523264
  %v487 = vsel %vm485, %v256, 0
  %v490 = vsel %vm485, %v257, 0
  %492 = vmatprep.subr.bf16.mxu0 0
  %493 = vmatpush1.bf16.msra.mxu0 %v477
  %494 = vmatprep.subr.bf16.mxu0 0
  %495 = vmatpush1.bf16.msra.mxu0 %v478
  %496 = vmatprep.subr.bf16.mxu0 0
  %497 = vmatpush1.bf16.msra.mxu0 %v479
  %498 = vmatprep.subr.bf16.mxu0 0
  %499 = vmatpush1.bf16.msra.mxu0 %v480
  %500 = vmatprep.subr.bf16.mxu0 0
  %501 = vmatpush1.bf16.msra.mxu0 0
  %502 = vmatprep.subr.bf16.mxu0 0
  %503 = vmatpush1.bf16.msra.mxu0 0
  %504 = vmatprep.subr.bf16.mxu0 0
  %505 = vmatpush1.bf16.msra.mxu0 0
  %506 = vmatprep.subr.bf16.mxu0 0
  %507 = vmatpush1.bf16.msra.mxu0 0
  %508 = vmatprep.subr.bf16.mxu0 0
  %509 = vmatpush1.bf16.msra.mxu0 0
  %510 = vmatprep.subr.bf16.mxu0 0
  %511 = vmatpush1.bf16.msra.mxu0 0
  %512 = vmatprep.subr.bf16.mxu0 0
  %513 = vmatpush1.bf16.msra.mxu0 0
  %514 = vmatprep.subr.bf16.mxu0 0
  %515 = vmatpush1.bf16.msra.mxu0 0
  %516 = vmatprep.subr.bf16.mxu0 0
  %517 = vmatpush1.bf16.msra.mxu0 0
  %518 = vmatprep.subr.bf16.mxu0 0
  %519 = vmatpush1.bf16.msra.mxu0 0
  %520 = vmatprep.subr.bf16.mxu0 0
  %521 = vmatpush1.bf16.msra.mxu0 0
  %522 = vmatprep.subr.bf16.mxu0 0
  %523 = vmatpush1.bf16.msra.mxu0 0
  %524 = vmatprep.mubr.bf16.mxu0 0
  %525 = vmatmul.mubr.bf16.gmra.mrb[0].mxu0 %v487
  %v526 = vpop.f32.mrb[0].mxu0
  %v527 = vadd.f32 %v459, %v526
  %v528 = vpop.f32.mrb[0].mxu0
  %v529 = vpop.f32.mrb[0].mxu0
  %v530 = vadd.f32 %v459, %v529
  %v531 = vpop.f32.mrb[0].mxu0
  %532 = vmatprep.mubr.bf16.mxu0 0
  %533 = vmatmul.mubr.bf16.gmra.mrb[0].mxu0 %v490
  %v534 = vpop.f32.mrb[0].mxu0
  %v535 = vadd.f32 %v459, %v534
  %v536 = vpop.f32.mrb[0].mxu0
  %v537 = vpop.f32.mrb[0].mxu0
  %v538 = vadd.f32 %v459, %v537
  %v539 = vpop.f32.mrb[0].mxu0
  %540 = vdwg.mxu0
  %v541 = vpack.c.bf16 %v435, %v432
  %v542 = vpack.c.bf16 %v443, %v440
  %v543 = vpack.c.bf16 %v530, %v527
  %v544 = vpack.c.bf16 %v538, %v535
  %v546 = vsel %vm267, %v541, 0
  %v549 = vsel %vm267, %v542, 0
  %v552 = vsel %vm267, %v543, 0
  %v555 = vsel %vm267, %v544, 0
  %557 = vmatprep.subr.bf16.mxu0 0
  %558 = vmatpush1.bf16.xpose.msra.mxu0 %v552
  %559 = vmatprep.subr.bf16.mxu0 0
  %560 = vmatpush1.bf16.xpose.msra.mxu0 %v555
  %561 = vmatprep.subr.bf16.mxu0 0
  %562 = vmatpush1.bf16.xpose.msra.mxu0 0
  %563 = vmatprep.subr.bf16.mxu0 0
  %564 = vmatpush1.bf16.xpose.msra.mxu0 0
  %565 = vmatprep.subr.bf16.mxu0 0
  %566 = vmatpush1.bf16.xpose.msra.mxu0 0
  %567 = vmatprep.subr.bf16.mxu0 0
  %568 = vmatpush1.bf16.xpose.msra.mxu0 0
  %569 = vmatprep.subr.bf16.mxu0 0
  %570 = vmatpush1.bf16.xpose.msra.mxu0 0
  %571 = vmatprep.subr.bf16.mxu0 0
  %572 = vmatpush1.bf16.xpose.msra.mxu0 0
  %573 = vmatprep.subr.bf16.mxu0 0
  %574 = vmatpush1.bf16.xpose.msra.mxu0 0
  %575 = vmatprep.subr.bf16.mxu0 0
  %576 = vmatpush1.bf16.xpose.msra.mxu0 0
  %577 = vmatprep.subr.bf16.mxu0 0
  %578 = vmatpush1.bf16.xpose.msra.mxu0 0
  %579 = vmatprep.subr.bf16.mxu0 0
  %580 = vmatpush1.bf16.xpose.msra.mxu0 0
  %581 = vmatprep.subr.bf16.mxu0 0
  %582 = vmatpush1.bf16.xpose.msra.mxu0 0
  %583 = vmatprep.subr.bf16.mxu0 0
  %584 = vmatpush1.bf16.xpose.msra.mxu0 0
  %585 = vmatprep.subr.bf16.mxu0 0
  %586 = vmatpush1.bf16.xpose.msra.mxu0 0
  %587 = vmatprep.subr.bf16.mxu0 0
  %588 = vmatpush1.bf16.xpose.msra.mxu0 0
  %589 = vmatprep.mubr.bf16.mxu0 0
  %590 = vmatmul.mubr.bf16.gmra.mrb[0].mxu0 %v546
  %v591 = vpop.f32.mrb[0].mxu0
  %v592 = vadd.f32 0.0, %v591
  %v593 = vpop.f32.mrb[0].mxu0
  %v594 = vpop.f32.mrb[0].mxu0
  %v595 = vadd.f32 0.0, %v594
  %v596 = vpop.f32.mrb[0].mxu0
  %597 = vmatprep.mubr.bf16.mxu0 0
  %598 = vmatmul.mubr.bf16.gmra.mrb[0].mxu0 %v549
  %v599 = vpop.f32.mrb[0].mxu0
  %v600 = vadd.f32 0.0, %v599
  %v601 = vpop.f32.mrb[0].mxu0
  %v602 = vpop.f32.mrb[0].mxu0
  %v603 = vadd.f32 0.0, %v602
  %v604 = vpop.f32.mrb[0].mxu0
  %605 = vdwg.mxu0
  %v606 = vmul.f32 %v592, 0.35355338
  %v607 = vmul.f32 %v595, 0.35355338
  %v608 = vmul.f32 %v600, 0.35355338
  %v609 = vmul.f32 %v603, 0.35355338
  %v610 = vsel %vm390, %v606, -inf
  %611 = vmax.xlane.f32.xlu0 %v610
  %v612 = vpop.xlane.xlu0 %611
  %v613 = vsel %vm390, %v607, -inf
  %614 = vmax.xlane.f32.xlu0 %v613
  %v615 = vpop.xlane.xlu0 %614
  %v616 = vsel %vm390, %v608, -inf
  %617 = vmax.xlane.f32.xlu0 %v616
  %v618 = vpop.xlane.xlu0 %617
  %v619 = vsel %vm390, %v609, -inf
  %620 = vmax.xlane.f32.xlu0 %v619
  %v621 = vpop.xlane.xlu0 %620
  %v622 = vsub.f32 %v606, %v612
  %v623 = vsub.f32 %v607, %v615
  %v624 = vsub.f32 %v608, %v618
  %v625 = vsub.f32 %v609, %v621
  %v626 = vmul.f32 %v622, 1.442695
  %v627 = vpow.pop %v626
  %v628 = vmul.f32 %v623, 1.442695
  %v629 = vpow.pop %v628
  %v630 = vmul.f32 %v624, 1.442695
  %v631 = vpow.pop %v630
  %v632 = vmul.f32 %v625, 1.442695
  %v633 = vpow.pop %v632
  %v634 = vsel %vm390, %v627, 0.0
  %635 = vadd.xlane.f32.xlu0 %v634
  %v636 = vpop.xlane.xlu0 %635
  %v637 = vsel %vm390, %v629, 0.0
  %638 = vadd.xlane.f32.xlu0 %v637
  %v639 = vpop.xlane.xlu0 %638
  %v640 = vsel %vm390, %v631, 0.0
  %641 = vadd.xlane.f32.xlu0 %v640
  %v642 = vpop.xlane.xlu0 %641
  %v643 = vsel %vm390, %v633, 0.0
  %644 = vadd.xlane.f32.xlu0 %v643
  %v645 = vpop.xlane.xlu0 %644
  %v646 = vrcp.pop %v636
  %v647 = vrcp.pop %v639
  %v648 = vrcp.pop %v642
  %v649 = vrcp.pop %v645
  %v650 = vmul.f32 %v627, %v646
  %v651 = vmul.f32 %v629, %v647
  %v652 = vmul.f32 %v631, %v648
  %v653 = vmul.f32 %v633, %v649
  %v654 = vpack.c.bf16 %v651, %v650
  %v655 = vpack.c.bf16 %v653, %v652
  %658 = vrot.lane.b32.xlu0 %v543, 96
  %v659 = vpop.permute.xlu0 %658
  %660 = vrot.lane.b32.xlu0 %v544, 96
  %v661 = vpop.permute.xlu0 %660
  %v665 = vsel %vm390, %v654, 0
  %v668 = vsel %vm390, %v655, 0
  %670 = vmatprep.subr.bf16.mxu0 0
  %671 = vmatpush1.bf16.msra.mxu0 %v659
  %672 = vmatprep.subr.bf16.mxu0 0
  %673 = vmatpush1.bf16.msra.mxu0 %v661
  %674 = vmatprep.subr.bf16.mxu0 0
  %675 = vmatpush1.bf16.msra.mxu0 0
  %676 = vmatprep.subr.bf16.mxu0 0
  %677 = vmatpush1.bf16.msra.mxu0 0
  %678 = vmatprep.subr.bf16.mxu0 0
  %679 = vmatpush1.bf16.msra.mxu0 0
  %680 = vmatprep.subr.bf16.mxu0 0
  %681 = vmatpush1.bf16.msra.mxu0 0
  %682 = vmatprep.subr.bf16.mxu0 0
  %683 = vmatpush1.bf16.msra.mxu0 0
  %684 = vmatprep.subr.bf16.mxu0 0
  %685 = vmatpush1.bf16.msra.mxu0 0
  %686 = vmatprep.subr.bf16.mxu0 0
  %687 = vmatpush1.bf16.msra.mxu0 0
  %688 = vmatprep.subr.bf16.mxu0 0
  %689 = vmatpush1.bf16.msra.mxu0 0
  %690 = vmatprep.subr.bf16.mxu0 0
  %691 = vmatpush1.bf16.msra.mxu0 0
  %692 = vmatprep.subr.bf16.mxu0 0
  %693 = vmatpush1.bf16.msra.mxu0 0
  %694 = vmatprep.subr.bf16.mxu0 0
  %695 = vmatpush1.bf16.msra.mxu0 0
  %696 = vmatprep.subr.bf16.mxu0 0
  %697 = vmatpush1.bf16.msra.mxu0 0
  %698 = vmatprep.subr.bf16.mxu0 0
  %699 = vmatpush1.bf16.msra.mxu0 0
  %700 = vmatprep.subr.bf16.mxu0 0
  %701 = vmatpush1.bf16.msra.mxu0 0
  %702 = vmatprep.mubr.bf16.mxu0 0
  %703 = vmatmul.mubr.bf16.gmra.mrb[0].mxu0 %v665
  %v704 = vpop.f32.mrb[0].mxu0
  %v705 = vadd.f32 0.0, %v704
  %v706 = vpop.f32.mrb[0].mxu0
  %v707 = vpop.f32.mrb[0].mxu0
  %v708 = vadd.f32 0.0, %v707
  %v709 = vpop.f32.mrb[0].mxu0
  %710 = vmatprep.mubr.bf16.mxu0 0
  %711 = vmatmul.mubr.bf16.gmra.mrb[0].mxu0 %v668
  %v712 = vpop.f32.mrb[0].mxu0
  %v713 = vadd.f32 0.0, %v712
  %v714 = vpop.f32.mrb[0].mxu0
  %v715 = vpop.f32.mrb[0].mxu0
  %v716 = vadd.f32 0.0, %v715
  %v717 = vpop.f32.mrb[0].mxu0
  %718 = vdwg.mxu0
  %v719 = vpack.c.bf16 %v708, %v705
  %v720 = vpack.c.bf16 %v716, %v713
  %v721 = vld [vmem:[%s25] sm:$0xf]
  %724 = vrot.lane.b32.xlu0 %v541, 120
  %v725 = vpop.permute.xlu0 %724
  %726 = vrot.lane.b32.xlu0 %v542, 120
  %v727 = vpop.permute.xlu0 %726
  %728 = vrot.lane.b32.xlu0 %v543, 120
  %v729 = vpop.permute.xlu0 %728
  %730 = vrot.lane.b32.xlu0 %v544, 120
  %v731 = vpop.permute.xlu0 %730
  %v733 = vsel %vm267, %v725, 0
  %v736 = vsel %vm267, %v727, 0
  %v739 = vsel %vm267, %v729, 0
  %v742 = vsel %vm267, %v731, 0
  %744 = vmatprep.subr.bf16.mxu0 0
  %745 = vmatpush1.bf16.xpose.msra.mxu0 %v739
  %746 = vmatprep.subr.bf16.mxu0 0
  %747 = vmatpush1.bf16.xpose.msra.mxu0 %v742
  %748 = vmatprep.subr.bf16.mxu0 0
  %749 = vmatpush1.bf16.xpose.msra.mxu0 0
  %750 = vmatprep.subr.bf16.mxu0 0
  %751 = vmatpush1.bf16.xpose.msra.mxu0 0
  %752 = vmatprep.subr.bf16.mxu0 0
  %753 = vmatpush1.bf16.xpose.msra.mxu0 0
  %754 = vmatprep.subr.bf16.mxu0 0
  %755 = vmatpush1.bf16.xpose.msra.mxu0 0
  %756 = vmatprep.subr.bf16.mxu0 0
  %757 = vmatpush1.bf16.xpose.msra.mxu0 0
  %758 = vmatprep.subr.bf16.mxu0 0
  %759 = vmatpush1.bf16.xpose.msra.mxu0 0
  %760 = vmatprep.subr.bf16.mxu0 0
  %761 = vmatpush1.bf16.xpose.msra.mxu0 0
  %762 = vmatprep.subr.bf16.mxu0 0
  %763 = vmatpush1.bf16.xpose.msra.mxu0 0
  %764 = vmatprep.subr.bf16.mxu0 0
  %765 = vmatpush1.bf16.xpose.msra.mxu0 0
  %766 = vmatprep.subr.bf16.mxu0 0
  %767 = vmatpush1.bf16.xpose.msra.mxu0 0
  %768 = vmatprep.subr.bf16.mxu0 0
  %769 = vmatpush1.bf16.xpose.msra.mxu0 0
  %770 = vmatprep.subr.bf16.mxu0 0
  %771 = vmatpush1.bf16.xpose.msra.mxu0 0
  %772 = vmatprep.subr.bf16.mxu0 0
  %773 = vmatpush1.bf16.xpose.msra.mxu0 0
  %774 = vmatprep.subr.bf16.mxu0 0
  %775 = vmatpush1.bf16.xpose.msra.mxu0 0
  %776 = vmatprep.mubr.bf16.mxu0 0
  %777 = vmatmul.mubr.bf16.gmra.mrb[0].mxu0 %v733
  %v778 = vpop.f32.mrb[0].mxu0
  %v779 = vadd.f32 0.0, %v778
  %v780 = vpop.f32.mrb[0].mxu0
  %v781 = vpop.f32.mrb[0].mxu0
  %v782 = vadd.f32 0.0, %v781
  %v783 = vpop.f32.mrb[0].mxu0
  %784 = vmatprep.mubr.bf16.mxu0 0
  %785 = vmatmul.mubr.bf16.gmra.mrb[0].mxu0 %v736
  %v786 = vpop.f32.mrb[0].mxu0
  %v787 = vadd.f32 0.0, %v786
  %v788 = vpop.f32.mrb[0].mxu0
  %v789 = vpop.f32.mrb[0].mxu0
  %v790 = vadd.f32 0.0, %v789
  %v791 = vpop.f32.mrb[0].mxu0
  %792 = vdwg.mxu0
  %v793 = vmul.f32 %v779, 0.35355338
  %v794 = vmul.f32 %v782, 0.35355338
  %v795 = vmul.f32 %v787, 0.35355338
  %v796 = vmul.f32 %v790, 0.35355338
  %v797 = vsel %vm390, %v793, -inf
  %798 = vmax.xlane.f32.xlu0 %v797
  %v799 = vpop.xlane.xlu0 %798
  %v800 = vsel %vm390, %v794, -inf
  %801 = vmax.xlane.f32.xlu0 %v800
  %v802 = vpop.xlane.xlu0 %801
  %v803 = vsel %vm390, %v795, -inf
  %804 = vmax.xlane.f32.xlu0 %v803
  %v805 = vpop.xlane.xlu0 %804
  %v806 = vsel %vm390, %v796, -inf
  %807 = vmax.xlane.f32.xlu0 %v806
  %v808 = vpop.xlane.xlu0 %807
  %v809 = vsub.f32 %v793, %v799
  %v810 = vsub.f32 %v794, %v802
  %v811 = vsub.f32 %v795, %v805
  %v812 = vsub.f32 %v796, %v808
  %v813 = vmul.f32 %v809, 1.442695
  %v814 = vpow.pop %v813
  %v815 = vmul.f32 %v810, 1.442695
  %v816 = vpow.pop %v815
  %v817 = vmul.f32 %v811, 1.442695
  %v818 = vpow.pop %v817
  %v819 = vmul.f32 %v812, 1.442695
  %v820 = vpow.pop %v819
  %v821 = vsel %vm390, %v814, 0.0
  %822 = vadd.xlane.f32.xlu0 %v821
  %v823 = vpop.xlane.xlu0 %822
  %v824 = vsel %vm390, %v816, 0.0
  %825 = vadd.xlane.f32.xlu0 %v824
  %v826 = vpop.xlane.xlu0 %825
  %v827 = vsel %vm390, %v818, 0.0
  %828 = vadd.xlane.f32.xlu0 %v827
  %v829 = vpop.xlane.xlu0 %828
  %v830 = vsel %vm390, %v820, 0.0
  %831 = vadd.xlane.f32.xlu0 %v830
  %v832 = vpop.xlane.xlu0 %831
  %v833 = vrcp.pop %v823
  %v834 = vrcp.pop %v826
  %v835 = vrcp.pop %v829
  %v836 = vrcp.pop %v832
  %v837 = vmul.f32 %v814, %v833
  %v838 = vmul.f32 %v816, %v834
  %v839 = vmul.f32 %v818, %v835
  %v840 = vmul.f32 %v820, %v836
  %v841 = vpack.c.bf16 %v838, %v837
  %v842 = vpack.c.bf16 %v840, %v839
  %843 = vrot.lane.b32.xlu0 %v543, 88
  %v844 = vpop.permute.xlu0 %843
  %845 = vrot.lane.b32.xlu0 %v544, 88
  %v846 = vpop.permute.xlu0 %845
  %v850 = vsel %vm390, %v841, 0
  %v853 = vsel %vm390, %v842, 0
  %855 = vmatprep.subr.bf16.mxu0 0
  %856 = vmatpush1.bf16.msra.mxu0 %v844
  %857 = vmatprep.subr.bf16.mxu0 0
  %858 = vmatpush1.bf16.msra.mxu0 %v846
  %859 = vmatprep.subr.bf16.mxu0 0
  %860 = vmatpush1.bf16.msra.mxu0 0
  %861 = vmatprep.subr.bf16.mxu0 0
  %862 = vmatpush1.bf16.msra.mxu0 0
  %863 = vmatprep.subr.bf16.mxu0 0
  %864 = vmatpush1.bf16.msra.mxu0 0
  %865 = vmatprep.subr.bf16.mxu0 0
  %866 = vmatpush1.bf16.msra.mxu0 0
  %867 = vmatprep.subr.bf16.mxu0 0
  %868 = vmatpush1.bf16.msra.mxu0 0
  %869 = vmatprep.subr.bf16.mxu0 0
  %870 = vmatpush1.bf16.msra.mxu0 0
  %871 = vmatprep.subr.bf16.mxu0 0
  %872 = vmatpush1.bf16.msra.mxu0 0
  %873 = vmatprep.subr.bf16.mxu0 0
  %874 = vmatpush1.bf16.msra.mxu0 0
  %875 = vmatprep.subr.bf16.mxu0 0
  %876 = vmatpush1.bf16.msra.mxu0 0
  %877 = vmatprep.subr.bf16.mxu0 0
  %878 = vmatpush1.bf16.msra.mxu0 0
  %879 = vmatprep.subr.bf16.mxu0 0
  %880 = vmatpush1.bf16.msra.mxu0 0
  %881 = vmatprep.subr.bf16.mxu0 0
  %882 = vmatpush1.bf16.msra.mxu0 0
  %883 = vmatprep.subr.bf16.mxu0 0
  %884 = vmatpush1.bf16.msra.mxu0 0
  %885 = vmatprep.subr.bf16.mxu0 0
  %886 = vmatpush1.bf16.msra.mxu0 0
  %887 = vmatprep.mubr.bf16.mxu0 0
  %888 = vmatmul.mubr.bf16.gmra.mrb[0].mxu0 %v850
  %v889 = vpop.f32.mrb[0].mxu0
  %v890 = vadd.f32 0.0, %v889
  %v891 = vpop.f32.mrb[0].mxu0
  %v892 = vpop.f32.mrb[0].mxu0
  %v893 = vadd.f32 0.0, %v892
  %v894 = vpop.f32.mrb[0].mxu0
  %895 = vmatprep.mubr.bf16.mxu0 0
  %896 = vmatmul.mubr.bf16.gmra.mrb[0].mxu0 %v853
  %v897 = vpop.f32.mrb[0].mxu0
  %v898 = vadd.f32 0.0, %v897
  %v899 = vpop.f32.mrb[0].mxu0
  %v900 = vpop.f32.mrb[0].mxu0
  %v901 = vadd.f32 0.0, %v900
  %v902 = vpop.f32.mrb[0].mxu0
  %903 = vdwg.mxu0
  %v904 = vpack.c.bf16 %v893, %v890
  %v905 = vpack.c.bf16 %v901, %v898
  %s906 = scalar_lea.vmem %s25, 4
  %v907 = vld [vmem:[%s906] sm:$0xf]
  %v909 = vsel %vm267, %v904, 0
  %v912 = vsel %vm267, %v905, 0
  %vm914 = vcmask 1043456
  %v916 = vsel %vm914, %v907, 0
  %918 = vmatprep.subr.bf16.mxu0 0
  %919 = vmatpush1.bf16.msra.mxu0 %v916
  %920 = vmatprep.subr.bf16.mxu0 0
  %921 = vmatpush1.bf16.msra.mxu0 0
  %922 = vmatprep.subr.bf16.mxu0 0
  %923 = vmatpush1.bf16.msra.mxu0 0
  %924 = vmatprep.subr.bf16.mxu0 0
  %925 = vmatpush1.bf16.msra.mxu0 0
  %926 = vmatprep.subr.bf16.mxu0 0
  %927 = vmatpush1.bf16.msra.mxu0 0
  %928 = vmatprep.subr.bf16.mxu0 0
  %929 = vmatpush1.bf16.msra.mxu0 0
  %930 = vmatprep.subr.bf16.mxu0 0
  %931 = vmatpush1.bf16.msra.mxu0 0
  %932 = vmatprep.subr.bf16.mxu0 0
  %933 = vmatpush1.bf16.msra.mxu0 0
  %934 = vmatprep.subr.bf16.mxu0 0
  %935 = vmatpush1.bf16.msra.mxu0 0
  %936 = vmatprep.subr.bf16.mxu0 0
  %937 = vmatpush1.bf16.msra.mxu0 0
  %938 = vmatprep.subr.bf16.mxu0 0
  %939 = vmatpush1.bf16.msra.mxu0 0
  %940 = vmatprep.subr.bf16.mxu0 0
  %941 = vmatpush1.bf16.msra.mxu0 0
  %942 = vmatprep.subr.bf16.mxu0 0
  %943 = vmatpush1.bf16.msra.mxu0 0
  %944 = vmatprep.subr.bf16.mxu0 0
  %945 = vmatpush1.bf16.msra.mxu0 0
  %946 = vmatprep.subr.bf16.mxu0 0
  %947 = vmatpush1.bf16.msra.mxu0 0
  %948 = vmatprep.subr.bf16.mxu0 0
  %949 = vmatpush1.bf16.msra.mxu0 0
  %950 = vmatprep.mubr.bf16.mxu0 0
  %951 = vmatmul.mubr.bf16.gmra.mrb[0].mxu0 %v909
  %v952 = vpop.f32.mrb[0].mxu0
  %v953 = vadd.f32 0.0, %v952
  %v954 = vpop.f32.mrb[0].mxu0
  %v955 = vpop.f32.mrb[0].mxu0
  %v956 = vadd.f32 0.0, %v955
  %v957 = vpop.f32.mrb[0].mxu0
  %958 = vmatprep.mubr.bf16.mxu0 0
  %959 = vmatmul.mubr.bf16.gmra.mrb[0].mxu0 %v912
  %v960 = vpop.f32.mrb[0].mxu0
  %v961 = vadd.f32 0.0, %v960
  %v962 = vpop.f32.mrb[0].mxu0
  %v963 = vpop.f32.mrb[0].mxu0
  %v964 = vadd.f32 0.0, %v963
  %v965 = vpop.f32.mrb[0].mxu0
  %966 = vdwg.mxu0
  %v968 = vsel %vm267, %v719, 0
  %v971 = vsel %vm267, %v720, 0
  %v974 = vsel %vm914, %v721, 0
  %976 = vmatprep.subr.bf16.mxu0 0
  %977 = vmatpush1.bf16.msra.mxu0 %v974
  %978 = vmatprep.subr.bf16.mxu0 0
  %979 = vmatpush1.bf16.msra.mxu0 0
  %980 = vmatprep.subr.bf16.mxu0 0
  %981 = vmatpush1.bf16.msra.mxu0 0
  %982 = vmatprep.subr.bf16.mxu0 0
  %983 = vmatpush1.bf16.msra.mxu0 0
  %984 = vmatprep.subr.bf16.mxu0 0
  %985 = vmatpush1.bf16.msra.mxu0 0
  %986 = vmatprep.subr.bf16.mxu0 0
  %987 = vmatpush1.bf16.msra.mxu0 0
  %988 = vmatprep.subr.bf16.mxu0 0
  %989 = vmatpush1.bf16.msra.mxu0 0
  %990 = vmatprep.subr.bf16.mxu0 0
  %991 = vmatpush1.bf16.msra.mxu0 0
  %992 = vmatprep.subr.bf16.mxu0 0
  %993 = vmatpush1.bf16.msra.mxu0 0
  %994 = vmatprep.subr.bf16.mxu0 0
  %995 = vmatpush1.bf16.msra.mxu0 0
  %996 = vmatprep.subr.bf16.mxu0 0
  %997 = vmatpush1.bf16.msra.mxu0 0
  %998 = vmatprep.subr.bf16.mxu0 0
  %999 = vmatpush1.bf16.msra.mxu0 0
  %1000 = vmatprep.subr.bf16.mxu0 0
  %1001 = vmatpush1.bf16.msra.mxu0 0
  %1002 = vmatprep.subr.bf16.mxu0 0
  %1003 = vmatpush1.bf16.msra.mxu0 0
  %1004 = vmatprep.subr.bf16.mxu0 0
  %1005 = vmatpush1.bf16.msra.mxu0 0
  %1006 = vmatprep.subr.bf16.mxu0 0
  %1007 = vmatpush1.bf16.msra.mxu0 0
  %1008 = vmatprep.mubr.bf16.mxu0 0
  %1009 = vmatmul.mubr.bf16.gmra.mrb[0].mxu0 %v968
  %v1010 = vpop.f32.mrb[0].mxu0
  %v1011 = vadd.f32 %v953, %v1010
  %v1012 = vpop.f32.mrb[0].mxu0
  %v1013 = vpop.f32.mrb[0].mxu0
  %v1014 = vadd.f32 %v956, %v1013
  %v1015 = vpop.f32.mrb[0].mxu0
  %1016 = vmatprep.mubr.bf16.mxu0 0
  %1017 = vmatmul.mubr.bf16.gmra.mrb[0].mxu0 %v971
  %v1018 = vpop.f32.mrb[0].mxu0
  %v1019 = vadd.f32 %v961, %v1018
  %v1020 = vpop.f32.mrb[0].mxu0
  %v1021 = vpop.f32.mrb[0].mxu0
  %v1022 = vadd.f32 %v964, %v1021
  %v1023 = vpop.f32.mrb[0].mxu0
  %1024 = vdwg.mxu0
  %1025 = vrot.lane.b32.xlu0 %v541, 112
  %v1026 = vpop.permute.xlu0 %1025
  %1027 = vrot.lane.b32.xlu0 %v542, 112
  %v1028 = vpop.permute.xlu0 %1027
  %1029 = vrot.lane.b32.xlu0 %v543, 112
  %v1030 = vpop.permute.xlu0 %1029
  %1031 = vrot.lane.b32.xlu0 %v544, 112
  %v1032 = vpop.permute.xlu0 %1031
  %v1034 = vsel %vm267, %v1026, 0
  %v1037 = vsel %vm267, %v1028, 0
  %v1040 = vsel %vm267, %v1030, 0
  %v1043 = vsel %vm267, %v1032, 0
  %1045 = vmatprep.subr.bf16.mxu0 0
  %1046 = vmatpush1.bf16.xpose.msra.mxu0 %v1040
  %1047 = vmatprep.subr.bf16.mxu0 0
  %1048 = vmatpush1.bf16.xpose.msra.mxu0 %v1043
  %1049 = vmatprep.subr.bf16.mxu0 0
  %1050 = vmatpush1.bf16.xpose.msra.mxu0 0
  %1051 = vmatprep.subr.bf16.mxu0 0
  %1052 = vmatpush1.bf16.xpose.msra.mxu0 0
  %1053 = vmatprep.subr.bf16.mxu0 0
  %1054 = vmatpush1.bf16.xpose.msra.mxu0 0
  %1055 = vmatprep.subr.bf16.mxu0 0
  %1056 = vmatpush1.bf16.xpose.msra.mxu0 0
  %1057 = vmatprep.subr.bf16.mxu0 0
  %1058 = vmatpush1.bf16.xpose.msra.mxu0 0
  %1059 = vmatprep.subr.bf16.mxu0 0
  %1060 = vmatpush1.bf16.xpose.msra.mxu0 0
  %1061 = vmatprep.subr.bf16.mxu0 0
  %1062 = vmatpush1.bf16.xpose.msra.mxu0 0
  %1063 = vmatprep.subr.bf16.mxu0 0
  %1064 = vmatpush1.bf16.xpose.msra.mxu0 0
  %1065 = vmatprep.subr.bf16.mxu0 0
  %1066 = vmatpush1.bf16.xpose.msra.mxu0 0
  %1067 = vmatprep.subr.bf16.mxu0 0
  %1068 = vmatpush1.bf16.xpose.msra.mxu0 0
  %1069 = vmatprep.subr.bf16.mxu0 0
  %1070 = vmatpush1.bf16.xpose.msra.mxu0 0
  %1071 = vmatprep.subr.bf16.mxu0 0
  %1072 = vmatpush1.bf16.xpose.msra.mxu0 0
  %1073 = vmatprep.subr.bf16.mxu0 0
  %1074 = vmatpush1.bf16.xpose.msra.mxu0 0
  %1075 = vmatprep.subr.bf16.mxu0 0
  %1076 = vmatpush1.bf16.xpose.msra.mxu0 0
  %1077 = vmatprep.mubr.bf16.mxu0 0
  %1078 = vmatmul.mubr.bf16.gmra.mrb[0].mxu0 %v1034
  %v1079 = vpop.f32.mrb[0].mxu0
  %v1080 = vadd.f32 0.0, %v1079
  %v1081 = vpop.f32.mrb[0].mxu0
  %v1082 = vpop.f32.mrb[0].mxu0
  %v1083 = vadd.f32 0.0, %v1082
  %v1084 = vpop.f32.mrb[0].mxu0
  %1085 = vmatprep.mubr.bf16.mxu0 0
  %1086 = vmatmul.mubr.bf16.gmra.mrb[0].mxu0 %v1037
  %v1087 = vpop.f32.mrb[0].mxu0
  %v1088 = vadd.f32 0.0, %v1087
  %v1089 = vpop.f32.mrb[0].mxu0
  %v1090 = vpop.f32.mrb[0].mxu0
  %v1091 = vadd.f32 0.0, %v1090
  %v1092 = vpop.f32.mrb[0].mxu0
  %1093 = vdwg.mxu0
  %v1094 = vmul.f32 %v1080, 0.35355338
  %v1095 = vmul.f32 %v1083, 0.35355338
  %v1096 = vmul.f32 %v1088, 0.35355338
  %v1097 = vmul.f32 %v1091, 0.35355338
  %v1098 = vsel %vm390, %v1094, -inf
  %1099 = vmax.xlane.f32.xlu0 %v1098
  %v1100 = vpop.xlane.xlu0 %1099
  %v1101 = vsel %vm390, %v1095, -inf
  %1102 = vmax.xlane.f32.xlu0 %v1101
  %v1103 = vpop.xlane.xlu0 %1102
  %v1104 = vsel %vm390, %v1096, -inf
  %1105 = vmax.xlane.f32.xlu0 %v1104
  %v1106 = vpop.xlane.xlu0 %1105
  %v1107 = vsel %vm390, %v1097, -inf
  %1108 = vmax.xlane.f32.xlu0 %v1107
  %v1109 = vpop.xlane.xlu0 %1108
  %v1110 = vsub.f32 %v1094, %v1100
  %v1111 = vsub.f32 %v1095, %v1103
  %v1112 = vsub.f32 %v1096, %v1106
  %v1113 = vsub.f32 %v1097, %v1109
  %v1114 = vmul.f32 %v1110, 1.442695
  %v1115 = vpow.pop %v1114
  %v1116 = vmul.f32 %v1111, 1.442695
  %v1117 = vpow.pop %v1116
  %v1118 = vmul.f32 %v1112, 1.442695
  %v1119 = vpow.pop %v1118
  %v1120 = vmul.f32 %v1113, 1.442695
  %v1121 = vpow.pop %v1120
  %v1122 = vsel %vm390, %v1115, 0.0
  %1123 = vadd.xlane.f32.xlu0 %v1122
  %v1124 = vpop.xlane.xlu0 %1123
  %v1125 = vsel %vm390, %v1117, 0.0
  %1126 = vadd.xlane.f32.xlu0 %v1125
  %v1127 = vpop.xlane.xlu0 %1126
  %v1128 = vsel %vm390, %v1119, 0.0
  %1129 = vadd.xlane.f32.xlu0 %v1128
  %v1130 = vpop.xlane.xlu0 %1129
  %v1131 = vsel %vm390, %v1121, 0.0
  %1132 = vadd.xlane.f32.xlu0 %v1131
  %v1133 = vpop.xlane.xlu0 %1132
  %v1134 = vrcp.pop %v1124
  %v1135 = vrcp.pop %v1127
  %v1136 = vrcp.pop %v1130
  %v1137 = vrcp.pop %v1133
  %v1138 = vmul.f32 %v1115, %v1134
  %v1139 = vmul.f32 %v1117, %v1135
  %v1140 = vmul.f32 %v1119, %v1136
  %v1141 = vmul.f32 %v1121, %v1137
  %v1142 = vpack.c.bf16 %v1139, %v1138
  %v1143 = vpack.c.bf16 %v1141, %v1140
  %1144 = vrot.lane.b32.xlu0 %v543, 80
  %v1145 = vpop.permute.xlu0 %1144
  %1146 = vrot.lane.b32.xlu0 %v544, 80
  %v1147 = vpop.permute.xlu0 %1146
  %v1151 = vsel %vm390, %v1142, 0
  %v1154 = vsel %vm390, %v1143, 0
  %1156 = vmatprep.subr.bf16.mxu0 0
  %1157 = vmatpush1.bf16.msra.mxu0 %v1145
  %1158 = vmatprep.subr.bf16.mxu0 0
  %1159 = vmatpush1.bf16.msra.mxu0 %v1147
  %1160 = vmatprep.subr.bf16.mxu0 0
  %1161 = vmatpush1.bf16.msra.mxu0 0
  %1162 = vmatprep.subr.bf16.mxu0 0
  %1163 = vmatpush1.bf16.msra.mxu0 0
  %1164 = vmatprep.subr.bf16.mxu0 0
  %1165 = vmatpush1.bf16.msra.mxu0 0
  %1166 = vmatprep.subr.bf16.mxu0 0
  %1167 = vmatpush1.bf16.msra.mxu0 0
  %1168 = vmatprep.subr.bf16.mxu0 0
  %1169 = vmatpush1.bf16.msra.mxu0 0
  %1170 = vmatprep.subr.bf16.mxu0 0
  %1171 = vmatpush1.bf16.msra.mxu0 0
  %1172 = vmatprep.subr.bf16.mxu0 0
  %1173 = vmatpush1.bf16.msra.mxu0 0
  %1174 = vmatprep.subr.bf16.mxu0 0
  %1175 = vmatpush1.bf16.msra.mxu0 0
  %1176 = vmatprep.subr.bf16.mxu0 0
  %1177 = vmatpush1.bf16.msra.mxu0 0
  %1178 = vmatprep.subr.bf16.mxu0 0
  %1179 = vmatpush1.bf16.msra.mxu0 0
  %1180 = vmatprep.subr.bf16.mxu0 0
  %1181 = vmatpush1.bf16.msra.mxu0 0
  %1182 = vmatprep.subr.bf16.mxu0 0
  %1183 = vmatpush1.bf16.msra.mxu0 0
  %1184 = vmatprep.subr.bf16.mxu0 0
  %1185 = vmatpush1.bf16.msra.mxu0 0
  %1186 = vmatprep.subr.bf16.mxu0 0
  %1187 = vmatpush1.bf16.msra.mxu0 0
  %1188 = vmatprep.mubr.bf16.mxu0 0
  %1189 = vmatmul.mubr.bf16.gmra.mrb[0].mxu0 %v1151
  %v1190 = vpop.f32.mrb[0].mxu0
  %v1191 = vadd.f32 0.0, %v1190
  %v1192 = vpop.f32.mrb[0].mxu0
  %v1193 = vpop.f32.mrb[0].mxu0
  %v1194 = vadd.f32 0.0, %v1193
  %v1195 = vpop.f32.mrb[0].mxu0
  %1196 = vmatprep.mubr.bf16.mxu0 0
  %1197 = vmatmul.mubr.bf16.gmra.mrb[0].mxu0 %v1154
  %v1198 = vpop.f32.mrb[0].mxu0
  %v1199 = vadd.f32 0.0, %v1198
  %v1200 = vpop.f32.mrb[0].mxu0
  %v1201 = vpop.f32.mrb[0].mxu0
  %v1202 = vadd.f32 0.0, %v1201
  %v1203 = vpop.f32.mrb[0].mxu0
  %1204 = vdwg.mxu0
  %v1205 = vpack.c.bf16 %v1194, %v1191
  %v1206 = vpack.c.bf16 %v1202, %v1199
  %s1207 = scalar_lea.vmem %s25, 8
  %v1208 = vld [vmem:[%s1207] sm:$0xf]
  %v1210 = vsel %vm267, %v1205, 0
  %v1213 = vsel %vm267, %v1206, 0
  %v1216 = vsel %vm914, %v1208, 0
  %1218 = vmatprep.subr.bf16.mxu0 0
  %1219 = vmatpush1.bf16.msra.mxu0 %v1216
  %1220 = vmatprep.subr.bf16.mxu0 0
  %1221 = vmatpush1.bf16.msra.mxu0 0
  %1222 = vmatprep.subr.bf16.mxu0 0
  %1223 = vmatpush1.bf16.msra.mxu0 0
  %1224 = vmatprep.subr.bf16.mxu0 0
  %1225 = vmatpush1.bf16.msra.mxu0 0
  %1226 = vmatprep.subr.bf16.mxu0 0
  %1227 = vmatpush1.bf16.msra.mxu0 0
  %1228 = vmatprep.subr.bf16.mxu0 0
  %1229 = vmatpush1.bf16.msra.mxu0 0
  %1230 = vmatprep.subr.bf16.mxu0 0
  %1231 = vmatpush1.bf16.msra.mxu0 0
  %1232 = vmatprep.subr.bf16.mxu0 0
  %1233 = vmatpush1.bf16.msra.mxu0 0
  %1234 = vmatprep.subr.bf16.mxu0 0
  %1235 = vmatpush1.bf16.msra.mxu0 0
  %1236 = vmatprep.subr.bf16.mxu0 0
  %1237 = vmatpush1.bf16.msra.mxu0 0
  %1238 = vmatprep.subr.bf16.mxu0 0
  %1239 = vmatpush1.bf16.msra.mxu0 0
  %1240 = vmatprep.subr.bf16.mxu0 0
  %1241 = vmatpush1.bf16.msra.mxu0 0
  %1242 = vmatprep.subr.bf16.mxu0 0
  %1243 = vmatpush1.bf16.msra.mxu0 0
  %1244 = vmatprep.subr.bf16.mxu0 0
  %1245 = vmatpush1.bf16.msra.mxu0 0
  %1246 = vmatprep.subr.bf16.mxu0 0
  %1247 = vmatpush1.bf16.msra.mxu0 0
  %1248 = vmatprep.subr.bf16.mxu0 0
  %1249 = vmatpush1.bf16.msra.mxu0 0
  %1250 = vmatprep.mubr.bf16.mxu0 0
  %1251 = vmatmul.mubr.bf16.gmra.mrb[0].mxu0 %v1210
  %v1252 = vpop.f32.mrb[0].mxu0
  %v1253 = vadd.f32 0.0, %v1252
  %v1254 = vpop.f32.mrb[0].mxu0
  %v1255 = vpop.f32.mrb[0].mxu0
  %v1256 = vadd.f32 0.0, %v1255
  %v1257 = vpop.f32.mrb[0].mxu0
  %1258 = vmatprep.mubr.bf16.mxu0 0
  %1259 = vmatmul.mubr.bf16.gmra.mrb[0].mxu0 %v1213
  %v1260 = vpop.f32.mrb[0].mxu0
  %v1261 = vadd.f32 0.0, %v1260
  %v1262 = vpop.f32.mrb[0].mxu0
  %v1263 = vpop.f32.mrb[0].mxu0
  %v1264 = vadd.f32 0.0, %v1263
  %v1265 = vpop.f32.mrb[0].mxu0
  %1266 = vdwg.mxu0
  %v1267 = vadd.f32 %v1011, %v1253
  %v1268 = vadd.f32 %v1014, %v1256
  %v1269 = vadd.f32 %v1019, %v1261
  %v1270 = vadd.f32 %v1022, %v1264
  %1271 = vrot.lane.b32.xlu0 %v541, 104
  %v1272 = vpop.permute.xlu0 %1271
  %1273 = vrot.lane.b32.xlu0 %v542, 104
  %v1274 = vpop.permute.xlu0 %1273
  %1275 = vrot.lane.b32.xlu0 %v543, 104
  %v1276 = vpop.permute.xlu0 %1275
  %1277 = vrot.lane.b32.xlu0 %v544, 104
  %v1278 = vpop.permute.xlu0 %1277
  %v1280 = vsel %vm267, %v1272, 0
  %v1283 = vsel %vm267, %v1274, 0
  %v1286 = vsel %vm267, %v1276, 0
  %v1289 = vsel %vm267, %v1278, 0
  %1291 = vmatprep.subr.bf16.mxu0 0
  %1292 = vmatpush1.bf16.xpose.msra.mxu0 %v1286
  %1293 = vmatprep.subr.bf16.mxu0 0
  %1294 = vmatpush1.bf16.xpose.msra.mxu0 %v1289
  %1295 = vmatprep.subr.bf16.mxu0 0
  %1296 = vmatpush1.bf16.xpose.msra.mxu0 0
  %1297 = vmatprep.subr.bf16.mxu0 0
  %1298 = vmatpush1.bf16.xpose.msra.mxu0 0
  %1299 = vmatprep.subr.bf16.mxu0 0
  %1300 = vmatpush1.bf16.xpose.msra.mxu0 0
  %1301 = vmatprep.subr.bf16.mxu0 0
  %1302 = vmatpush1.bf16.xpose.msra.mxu0 0
  %1303 = vmatprep.subr.bf16.mxu0 0
  %1304 = vmatpush1.bf16.xpose.msra.mxu0 0
  %1305 = vmatprep.subr.bf16.mxu0 0
  %1306 = vmatpush1.bf16.xpose.msra.mxu0 0
  %1307 = vmatprep.subr.bf16.mxu0 0
  %1308 = vmatpush1.bf16.xpose.msra.mxu0 0
  %1309 = vmatprep.subr.bf16.mxu0 0
  %1310 = vmatpush1.bf16.xpose.msra.mxu0 0
  %1311 = vmatprep.subr.bf16.mxu0 0
  %1312 = vmatpush1.bf16.xpose.msra.mxu0 0
  %1313 = vmatprep.subr.bf16.mxu0 0
  %1314 = vmatpush1.bf16.xpose.msra.mxu0 0
  %1315 = vmatprep.subr.bf16.mxu0 0
  %1316 = vmatpush1.bf16.xpose.msra.mxu0 0
  %1317 = vmatprep.subr.bf16.mxu0 0
  %1318 = vmatpush1.bf16.xpose.msra.mxu0 0
  %1319 = vmatprep.subr.bf16.mxu0 0
  %1320 = vmatpush1.bf16.xpose.msra.mxu0 0
  %1321 = vmatprep.subr.bf16.mxu0 0
  %1322 = vmatpush1.bf16.xpose.msra.mxu0 0
  %1323 = vmatprep.mubr.bf16.mxu0 0
  %1324 = vmatmul.mubr.bf16.gmra.mrb[0].mxu0 %v1280
  %v1325 = vpop.f32.mrb[0].mxu0
  %v1326 = vadd.f32 0.0, %v1325
  %v1327 = vpop.f32.mrb[0].mxu0
  %v1328 = vpop.f32.mrb[0].mxu0
  %v1329 = vadd.f32 0.0, %v1328
  %v1330 = vpop.f32.mrb[0].mxu0
  %1331 = vmatprep.mubr.bf16.mxu0 0
  %1332 = vmatmul.mubr.bf16.gmra.mrb[0].mxu0 %v1283
  %v1333 = vpop.f32.mrb[0].mxu0
  %v1334 = vadd.f32 0.0, %v1333
  %v1335 = vpop.f32.mrb[0].mxu0
  %v1336 = vpop.f32.mrb[0].mxu0
  %v1337 = vadd.f32 0.0, %v1336
  %v1338 = vpop.f32.mrb[0].mxu0
  %1339 = vdwg.mxu0
  %v1340 = vmul.f32 %v1326, 0.35355338
  %v1341 = vmul.f32 %v1329, 0.35355338
  %v1342 = vmul.f32 %v1334, 0.35355338
  %v1343 = vmul.f32 %v1337, 0.35355338
  %v1344 = vsel %vm390, %v1340, -inf
  %1345 = vmax.xlane.f32.xlu0 %v1344
  %v1346 = vpop.xlane.xlu0 %1345
  %v1347 = vsel %vm390, %v1341, -inf
  %1348 = vmax.xlane.f32.xlu0 %v1347
  %v1349 = vpop.xlane.xlu0 %1348
  %v1350 = vsel %vm390, %v1342, -inf
  %1351 = vmax.xlane.f32.xlu0 %v1350
  %v1352 = vpop.xlane.xlu0 %1351
  %v1353 = vsel %vm390, %v1343, -inf
  %1354 = vmax.xlane.f32.xlu0 %v1353
  %v1355 = vpop.xlane.xlu0 %1354
  %v1356 = vsub.f32 %v1340, %v1346
  %v1357 = vsub.f32 %v1341, %v1349
  %v1358 = vsub.f32 %v1342, %v1352
  %v1359 = vsub.f32 %v1343, %v1355
  %v1360 = vmul.f32 %v1356, 1.442695
  %v1361 = vpow.pop %v1360
  %v1362 = vmul.f32 %v1357, 1.442695
  %v1363 = vpow.pop %v1362
  %v1364 = vmul.f32 %v1358, 1.442695
  %v1365 = vpow.pop %v1364
  %v1366 = vmul.f32 %v1359, 1.442695
  %v1367 = vpow.pop %v1366
  %v1368 = vsel %vm390, %v1361, 0.0
  %1369 = vadd.xlane.f32.xlu0 %v1368
  %v1370 = vpop.xlane.xlu0 %1369
  %v1371 = vsel %vm390, %v1363, 0.0
  %1372 = vadd.xlane.f32.xlu0 %v1371
  %v1373 = vpop.xlane.xlu0 %1372
  %v1374 = vsel %vm390, %v1365, 0.0
  %1375 = vadd.xlane.f32.xlu0 %v1374
  %v1376 = vpop.xlane.xlu0 %1375
  %v1377 = vsel %vm390, %v1367, 0.0
  %1378 = vadd.xlane.f32.xlu0 %v1377
  %v1379 = vpop.xlane.xlu0 %1378
  %v1380 = vrcp.pop %v1370
  %v1381 = vrcp.pop %v1373
  %v1382 = vrcp.pop %v1376
  %v1383 = vrcp.pop %v1379
  %v1384 = vmul.f32 %v1361, %v1380
  %v1385 = vmul.f32 %v1363, %v1381
  %v1386 = vmul.f32 %v1365, %v1382
  %v1387 = vmul.f32 %v1367, %v1383
  %v1388 = vpack.c.bf16 %v1385, %v1384
  %v1389 = vpack.c.bf16 %v1387, %v1386
  %1390 = vrot.lane.b32.xlu0 %v543, 72
  %v1391 = vpop.permute.xlu0 %1390
  %1392 = vrot.lane.b32.xlu0 %v544, 72
  %v1393 = vpop.permute.xlu0 %1392
  %v1397 = vsel %vm390, %v1388, 0
  %v1400 = vsel %vm390, %v1389, 0
  %1402 = vmatprep.subr.bf16.mxu0 0
  %1403 = vmatpush1.bf16.msra.mxu0 %v1391
  %1404 = vmatprep.subr.bf16.mxu0 0
  %1405 = vmatpush1.bf16.msra.mxu0 %v1393
  %1406 = vmatprep.subr.bf16.mxu0 0
  %1407 = vmatpush1.bf16.msra.mxu0 0
  %1408 = vmatprep.subr.bf16.mxu0 0
  %1409 = vmatpush1.bf16.msra.mxu0 0
  %1410 = vmatprep.subr.bf16.mxu0 0
  %1411 = vmatpush1.bf16.msra.mxu0 0
  %1412 = vmatprep.subr.bf16.mxu0 0
  %1413 = vmatpush1.bf16.msra.mxu0 0
  %1414 = vmatprep.subr.bf16.mxu0 0
  %1415 = vmatpush1.bf16.msra.mxu0 0
  %1416 = vmatprep.subr.bf16.mxu0 0
  %1417 = vmatpush1.bf16.msra.mxu0 0
  %1418 = vmatprep.subr.bf16.mxu0 0
  %1419 = vmatpush1.bf16.msra.mxu0 0
  %1420 = vmatprep.subr.bf16.mxu0 0
  %1421 = vmatpush1.bf16.msra.mxu0 0
  %1422 = vmatprep.subr.bf16.mxu0 0
  %1423 = vmatpush1.bf16.msra.mxu0 0
  %1424 = vmatprep.subr.bf16.mxu0 0
  %1425 = vmatpush1.bf16.msra.mxu0 0
  %1426 = vmatprep.subr.bf16.mxu0 0
  %1427 = vmatpush1.bf16.msra.mxu0 0
  %1428 = vmatprep.subr.bf16.mxu0 0
  %1429 = vmatpush1.bf16.msra.mxu0 0
  %1430 = vmatprep.subr.bf16.mxu0 0
  %1431 = vmatpush1.bf16.msra.mxu0 0
  %1432 = vmatprep.subr.bf16.mxu0 0
  %1433 = vmatpush1.bf16.msra.mxu0 0
  %1434 = vmatprep.mubr.bf16.mxu0 0
  %1435 = vmatmul.mubr.bf16.gmra.mrb[0].mxu0 %v1397
  %v1436 = vpop.f32.mrb[0].mxu0
  %v1437 = vadd.f32 0.0, %v1436
  %v1438 = vpop.f32.mrb[0].mxu0
  %v1439 = vpop.f32.mrb[0].mxu0
  %v1440 = vadd.f32 0.0, %v1439
  %v1441 = vpop.f32.mrb[0].mxu0
  %1442 = vmatprep.mubr.bf16.mxu0 0
  %1443 = vmatmul.mubr.bf16.gmra.mrb[0].mxu0 %v1400
  %v1444 = vpop.f32.mrb[0].mxu0
  %v1445 = vadd.f32 0.0, %v1444
  %v1446 = vpop.f32.mrb[0].mxu0
  %v1447 = vpop.f32.mrb[0].mxu0
  %v1448 = vadd.f32 0.0, %v1447
  %v1449 = vpop.f32.mrb[0].mxu0
  %1450 = vdwg.mxu0
  %v1451 = vpack.c.bf16 %v1440, %v1437
  %v1452 = vpack.c.bf16 %v1448, %v1445
  %s1453 = scalar_lea.vmem %s25, 12
  %v1454 = vld [vmem:[%s1453] sm:$0xf]
  %v1456 = vsel %vm267, %v1451, 0
  %v1459 = vsel %vm267, %v1452, 0
  %v1462 = vsel %vm914, %v1454, 0
  %1464 = vmatprep.subr.bf16.mxu0 0
  %1465 = vmatpush1.bf16.msra.mxu0 %v1462
  %1466 = vmatprep.subr.bf16.mxu0 0
  %1467 = vmatpush1.bf16.msra.mxu0 0
  %1468 = vmatprep.subr.bf16.mxu0 0
  %1469 = vmatpush1.bf16.msra.mxu0 0
  %1470 = vmatprep.subr.bf16.mxu0 0
  %1471 = vmatpush1.bf16.msra.mxu0 0
  %1472 = vmatprep.subr.bf16.mxu0 0
  %1473 = vmatpush1.bf16.msra.mxu0 0
  %1474 = vmatprep.subr.bf16.mxu0 0
  %1475 = vmatpush1.bf16.msra.mxu0 0
  %1476 = vmatprep.subr.bf16.mxu0 0
  %1477 = vmatpush1.bf16.msra.mxu0 0
  %1478 = vmatprep.subr.bf16.mxu0 0
  %1479 = vmatpush1.bf16.msra.mxu0 0
  %1480 = vmatprep.subr.bf16.mxu0 0
  %1481 = vmatpush1.bf16.msra.mxu0 0
  %1482 = vmatprep.subr.bf16.mxu0 0
  %1483 = vmatpush1.bf16.msra.mxu0 0
  %1484 = vmatprep.subr.bf16.mxu0 0
  %1485 = vmatpush1.bf16.msra.mxu0 0
  %1486 = vmatprep.subr.bf16.mxu0 0
  %1487 = vmatpush1.bf16.msra.mxu0 0
  %1488 = vmatprep.subr.bf16.mxu0 0
  %1489 = vmatpush1.bf16.msra.mxu0 0
  %1490 = vmatprep.subr.bf16.mxu0 0
  %1491 = vmatpush1.bf16.msra.mxu0 0
  %1492 = vmatprep.subr.bf16.mxu0 0
  %1493 = vmatpush1.bf16.msra.mxu0 0
  %1494 = vmatprep.subr.bf16.mxu0 0
  %1495 = vmatpush1.bf16.msra.mxu0 0
  %1496 = vmatprep.mubr.bf16.mxu0 0
  %1497 = vmatmul.mubr.bf16.gmra.mrb[0].mxu0 %v1456
  %v1498 = vpop.f32.mrb[0].mxu0
  %v1499 = vadd.f32 0.0, %v1498
  %v1500 = vpop.f32.mrb[0].mxu0
  %v1501 = vpop.f32.mrb[0].mxu0
  %v1502 = vadd.f32 0.0, %v1501
  %v1503 = vpop.f32.mrb[0].mxu0
  %1504 = vmatprep.mubr.bf16.mxu0 0
  %1505 = vmatmul.mubr.bf16.gmra.mrb[0].mxu0 %v1459
  %v1506 = vpop.f32.mrb[0].mxu0
  %v1507 = vadd.f32 0.0, %v1506
  %v1508 = vpop.f32.mrb[0].mxu0
  %v1509 = vpop.f32.mrb[0].mxu0
  %v1510 = vadd.f32 0.0, %v1509
  %v1511 = vpop.f32.mrb[0].mxu0
  %1512 = vdwg.mxu0
  %v1513 = vadd.f32 %v1267, %v1499
  %v1514 = vadd.f32 %v1268, %v1502
  %v1515 = vadd.f32 %v1269, %v1507
  %v1516 = vadd.f32 %v1270, %v1510
  %v1517 = vld [vmem:[%s27] sm:$0x1]
  %v1519 = vlaneseq
  %v1520 = vshrl.u32 %v1519, 7
  %v1521 = vsub.s32 0, %v1520
  %v1522 = vrot.slane %v1517, %v1521
  %v1524 = vadd.f32 %v1513, %v1522
  %v1525 = vadd.f32 %v1514, %v1522
  %v1526 = vadd.f32 %v1515, %v1522
  %v1527 = vadd.f32 %v1516, %v1522
  %v1528 = vld [vmem:[%s3] sm:$0xff]
  %v1529 = vld [vmem:[%s3 + $0x8] sm:$0xff]
  %v1530 = vld [vmem:[%s3 + $0x10] sm:$0xff]
  %v1531 = vld [vmem:[%s3 + $0x18] sm:$0xff]
  %v1532 = vld [vmem:[%s3 + $0x20] sm:$0xff]
  %v1533 = vld [vmem:[%s3 + $0x28] sm:$0xff]
  %v1534 = vld [vmem:[%s3 + $0x30] sm:$0xff]
  %v1535 = vld [vmem:[%s3 + $0x38] sm:$0xff]
  %v1536 = vld [vmem:[%s7] sm:$0xff]
  %v1537 = vld [vmem:[%s7 + $0x8] sm:$0xff]
  %v1538 = vld [vmem:[%s7 + $0x10] sm:$0xff]
  %v1539 = vld [vmem:[%s7 + $0x18] sm:$0xff]
  %v1540 = vld [vmem:[%s7 + $0x20] sm:$0xff]
  %v1541 = vld [vmem:[%s7 + $0x28] sm:$0xff]
  %v1542 = vld [vmem:[%s7 + $0x30] sm:$0xff]
  %v1543 = vld [vmem:[%s7 + $0x38] sm:$0xff]
  %v1544 = vld [vmem:[%s7 + $0x40] sm:$0xff]
  %v1545 = vld [vmem:[%s7 + $0x48] sm:$0xff]
  %v1546 = vld [vmem:[%s7 + $0x50] sm:$0xff]
  %v1547 = vld [vmem:[%s7 + $0x58] sm:$0xff]
  %v1548 = vld [vmem:[%s29] sm:$0x1]
  %v1549 = vld [vmem:[%s31] sm:$0x1]
  %v1550 = vsel %vm485, %v1528, 0.0
  %1551 = vadd.xlane.f32.xlu0 %v1550
  %v1552 = vpop.xlane.xlu0 %1551
  %v1553 = vsel %vm485, %v1529, 0.0
  %1554 = vadd.xlane.f32.xlu0 %v1553
  %v1555 = vpop.xlane.xlu0 %1554
  %v1556 = vsel %vm485, %v1530, 0.0
  %1557 = vadd.xlane.f32.xlu0 %v1556
  %v1558 = vpop.xlane.xlu0 %1557
  %v1559 = vsel %vm485, %v1531, 0.0
  %1560 = vadd.xlane.f32.xlu0 %v1559
  %v1561 = vpop.xlane.xlu0 %1560
  %v1562 = vsel %vm485, %v1532, 0.0
  %1563 = vadd.xlane.f32.xlu0 %v1562
  %v1564 = vpop.xlane.xlu0 %1563
  %v1565 = vsel %vm485, %v1533, 0.0
  %1566 = vadd.xlane.f32.xlu0 %v1565
  %v1567 = vpop.xlane.xlu0 %1566
  %v1568 = vsel %vm485, %v1534, 0.0
  %1569 = vadd.xlane.f32.xlu0 %v1568
  %v1570 = vpop.xlane.xlu0 %1569
  %v1571 = vsel %vm485, %v1535, 0.0
  %1572 = vadd.xlane.f32.xlu0 %v1571
  %v1573 = vpop.xlane.xlu0 %1572
  %v1574 = vsel %vm485, %v1524, 0.0
  %1575 = vadd.xlane.f32.xlu0 %v1574
  %v1576 = vpop.xlane.xlu0 %1575
  %v1577 = vsel %vm485, %v1525, 0.0
  %1578 = vadd.xlane.f32.xlu0 %v1577
  %v1579 = vpop.xlane.xlu0 %1578
  %v1580 = vsel %vm485, %v1526, 0.0
  %1581 = vadd.xlane.f32.xlu0 %v1580
  %v1582 = vpop.xlane.xlu0 %1581
  %v1583 = vsel %vm485, %v1527, 0.0
  %1584 = vadd.xlane.f32.xlu0 %v1583
  %v1585 = vpop.xlane.xlu0 %1584
  %v1586 = vrcp.pop 64.0
  %v1587 = vmul.f32 %v1552, %v1586
  %v1588 = vmul.f32 %v1555, %v1586
  %v1589 = vmul.f32 %v1558, %v1586
  %v1590 = vmul.f32 %v1561, %v1586
  %v1591 = vmul.f32 %v1564, %v1586
  %v1592 = vmul.f32 %v1567, %v1586
  %v1593 = vmul.f32 %v1570, %v1586
  %v1594 = vmul.f32 %v1573, %v1586
  %v1595 = vmul.f32 %v1576, %v1586
  %v1596 = vmul.f32 %v1579, %v1586
  %v1597 = vmul.f32 %v1582, %v1586
  %v1598 = vmul.f32 %v1585, %v1586
  %v1599 = vsub.f32 %v1528, %v1587
  %v1600 = vsub.f32 %v1529, %v1588
  %v1601 = vsub.f32 %v1530, %v1589
  %v1602 = vsub.f32 %v1531, %v1590
  %v1603 = vsub.f32 %v1532, %v1591
  %v1604 = vsub.f32 %v1533, %v1592
  %v1605 = vsub.f32 %v1534, %v1593
  %v1606 = vsub.f32 %v1535, %v1594
  %v1607 = vsub.f32 %v1524, %v1595
  %v1608 = vsub.f32 %v1525, %v1596
  %v1609 = vsub.f32 %v1526, %v1597
  %v1610 = vsub.f32 %v1527, %v1598
  %v1611 = vmul.f32 %v1599, %v1599
  %v1612 = vmul.f32 %v1600, %v1600
  %v1613 = vmul.f32 %v1601, %v1601
  %v1614 = vmul.f32 %v1602, %v1602
  %v1615 = vmul.f32 %v1603, %v1603
  %v1616 = vmul.f32 %v1604, %v1604
  %v1617 = vmul.f32 %v1605, %v1605
  %v1618 = vmul.f32 %v1606, %v1606
  %v1619 = vmul.f32 %v1607, %v1607
  %v1620 = vmul.f32 %v1608, %v1608
  %v1621 = vmul.f32 %v1609, %v1609
  %v1622 = vmul.f32 %v1610, %v1610
  %v1623 = vsel %vm485, %v1611, 0.0
  %1624 = vadd.xlane.f32.xlu0 %v1623
  %v1625 = vpop.xlane.xlu0 %1624
  %v1626 = vsel %vm485, %v1612, 0.0
  %1627 = vadd.xlane.f32.xlu0 %v1626
  %v1628 = vpop.xlane.xlu0 %1627
  %v1629 = vsel %vm485, %v1613, 0.0
  %1630 = vadd.xlane.f32.xlu0 %v1629
  %v1631 = vpop.xlane.xlu0 %1630
  %v1632 = vsel %vm485, %v1614, 0.0
  %1633 = vadd.xlane.f32.xlu0 %v1632
  %v1634 = vpop.xlane.xlu0 %1633
  %v1635 = vsel %vm485, %v1615, 0.0
  %1636 = vadd.xlane.f32.xlu0 %v1635
  %v1637 = vpop.xlane.xlu0 %1636
  %v1638 = vsel %vm485, %v1616, 0.0
  %1639 = vadd.xlane.f32.xlu0 %v1638
  %v1640 = vpop.xlane.xlu0 %1639
  %v1641 = vsel %vm485, %v1617, 0.0
  %1642 = vadd.xlane.f32.xlu0 %v1641
  %v1643 = vpop.xlane.xlu0 %1642
  %v1644 = vsel %vm485, %v1618, 0.0
  %1645 = vadd.xlane.f32.xlu0 %v1644
  %v1646 = vpop.xlane.xlu0 %1645
  %v1647 = vsel %vm485, %v1619, 0.0
  %1648 = vadd.xlane.f32.xlu0 %v1647
  %v1649 = vpop.xlane.xlu0 %1648
  %v1650 = vsel %vm485, %v1620, 0.0
  %1651 = vadd.xlane.f32.xlu0 %v1650
  %v1652 = vpop.xlane.xlu0 %1651
  %v1653 = vsel %vm485, %v1621, 0.0
  %1654 = vadd.xlane.f32.xlu0 %v1653
  %v1655 = vpop.xlane.xlu0 %1654
  %v1656 = vsel %vm485, %v1622, 0.0
  %1657 = vadd.xlane.f32.xlu0 %v1656
  %v1658 = vpop.xlane.xlu0 %1657
  %v1659 = vmul.f32 %v1625, %v1586
  %v1660 = vmul.f32 %v1628, %v1586
  %v1661 = vmul.f32 %v1631, %v1586
  %v1662 = vmul.f32 %v1634, %v1586
  %v1663 = vmul.f32 %v1637, %v1586
  %v1664 = vmul.f32 %v1640, %v1586
  %v1665 = vmul.f32 %v1643, %v1586
  %v1666 = vmul.f32 %v1646, %v1586
  %v1667 = vmul.f32 %v1649, %v1586
  %v1668 = vmul.f32 %v1652, %v1586
  %v1669 = vmul.f32 %v1655, %v1586
  %v1670 = vmul.f32 %v1658, %v1586
  %v1671 = vadd.f32 %v1659, 1e-05
  %v1672 = vadd.f32 %v1660, 1e-05
  %v1673 = vadd.f32 %v1661, 1e-05
  %v1674 = vadd.f32 %v1662, 1e-05
  %v1675 = vadd.f32 %v1663, 1e-05
  %v1676 = vadd.f32 %v1664, 1e-05
  %v1677 = vadd.f32 %v1665, 1e-05
  %v1678 = vadd.f32 %v1666, 1e-05
  %v1679 = vadd.f32 %v1667, 1e-05
  %v1680 = vadd.f32 %v1668, 1e-05
  %v1681 = vadd.f32 %v1669, 1e-05
  %v1682 = vadd.f32 %v1670, 1e-05
  %v1683 = vrsqrt.pop %v1671
  %v1684 = vrsqrt.pop %v1672
  %v1685 = vrsqrt.pop %v1673
  %v1686 = vrsqrt.pop %v1674
  %v1687 = vrsqrt.pop %v1675
  %v1688 = vrsqrt.pop %v1676
  %v1689 = vrsqrt.pop %v1677
  %v1690 = vrsqrt.pop %v1678
  %v1691 = vrsqrt.pop %v1679
  %v1692 = vrsqrt.pop %v1680
  %v1693 = vrsqrt.pop %v1681
  %v1694 = vrsqrt.pop %v1682
  %v1695 = vmul.f32 %v1599, %v1683
  %v1696 = vmul.f32 %v1600, %v1684
  %v1697 = vmul.f32 %v1601, %v1685
  %v1698 = vmul.f32 %v1602, %v1686
  %v1699 = vmul.f32 %v1603, %v1687
  %v1700 = vmul.f32 %v1604, %v1688
  %v1701 = vmul.f32 %v1605, %v1689
  %v1702 = vmul.f32 %v1606, %v1690
  %v1703 = vmul.f32 %v1607, %v1691
  %v1704 = vmul.f32 %v1608, %v1692
  %v1705 = vmul.f32 %v1609, %v1693
  %v1706 = vmul.f32 %v1610, %v1694
  %v1708 = vlaneseq
  %v1709 = vshrl.u32 %v1708, 7
  %v1710 = vsub.s32 0, %v1709
  %v1711 = vrot.slane %v1548, %v1710
  %v1713 = vmul.f32 %v1695, %v1711
  %v1714 = vmul.f32 %v1696, %v1711
  %v1715 = vmul.f32 %v1697, %v1711
  %v1716 = vmul.f32 %v1698, %v1711
  %v1717 = vmul.f32 %v1699, %v1711
  %v1718 = vmul.f32 %v1700, %v1711
  %v1719 = vmul.f32 %v1701, %v1711
  %v1720 = vmul.f32 %v1702, %v1711
  %v1721 = vmul.f32 %v1703, %v1711
  %v1722 = vmul.f32 %v1704, %v1711
  %v1723 = vmul.f32 %v1705, %v1711
  %v1724 = vmul.f32 %v1706, %v1711
  %v1726 = vlaneseq
  %v1727 = vshrl.u32 %v1726, 7
  %v1728 = vsub.s32 0, %v1727
  %v1729 = vrot.slane %v1549, %v1728
  %v1731 = vadd.f32 %v1713, %v1729
  %v1732 = vadd.f32 %v1714, %v1729
  %v1733 = vadd.f32 %v1715, %v1729
  %v1734 = vadd.f32 %v1716, %v1729
  %v1735 = vadd.f32 %v1717, %v1729
  %v1736 = vadd.f32 %v1718, %v1729
  %v1737 = vadd.f32 %v1719, %v1729
  %v1738 = vadd.f32 %v1720, %v1729
  %v1739 = vadd.f32 %v1721, %v1729
  %v1740 = vadd.f32 %v1722, %v1729
  %v1741 = vadd.f32 %v1723, %v1729
  %v1742 = vadd.f32 %v1724, %v1729
  %v1743 = vpack.c.bf16 %v1732, %v1731
  %v1744 = vpack.c.bf16 %v1734, %v1733
  %v1745 = vpack.c.bf16 %v1736, %v1735
  %v1746 = vpack.c.bf16 %v1738, %v1737
  %v1747 = vpack.c.bf16 %v1740, %v1739
  %v1748 = vpack.c.bf16 %v1742, %v1741
  %v1749 = vld [vmem:[%s33] sm:$0xff]
  %v1750 = vld [vmem:[%s33 + $0x8] sm:$0xff]
  %v1751 = vld [vmem:[%s33 + $0x10] sm:$0xff]
  %v1752 = vld [vmem:[%s33 + $0x18] sm:$0xff]
  %v1753 = vld [vmem:[%s33 + $0x20] sm:$0xff]
  %v1754 = vld [vmem:[%s33 + $0x28] sm:$0xff]
  %v1755 = vld [vmem:[%s33 + $0x30] sm:$0xff]
  %v1756 = vld [vmem:[%s33 + $0x38] sm:$0xff]
  %v1757 = vld [vmem:[%s35] sm:$0x3]
  %v1759 = vlaneseq
  %v1760 = vshrl.u32 %v1759, 7
  %v1761 = vsub.s32 0, %v1760
  %v1762 = vrot.slane %v1757, %v1761
  %v1763 = vlaneseq
  %v1764 = vshrl.u32 %v1763, 7
  %v1765 = vsub.s32 1, %v1764
  %v1766 = vrot.slane %v1757, %v1765
  %v1777 = vunpack.c.l.b16 %v1749
  %v1778 = vunpack.c.h.b16 %v1749
  %v1779 = vunpack.c.l.b16 %v1750
  %v1780 = vunpack.c.h.b16 %v1750
  %v1781 = vunpack.c.l.b16 %v1751
  %v1782 = vunpack.c.h.b16 %v1751
  %v1783 = vunpack.c.l.b16 %v1752
  %v1784 = vunpack.c.h.b16 %v1752
  %v1785 = vunpack.c.l.b16 %v1753
  %v1786 = vunpack.c.h.b16 %v1753
  %v1787 = vunpack.c.l.b16 %v1754
  %v1788 = vunpack.c.h.b16 %v1754
  %v1789 = vunpack.c.l.b16 %v1755
  %v1790 = vunpack.c.h.b16 %v1755
  %v1791 = vunpack.c.l.b16 %v1756
  %v1792 = vunpack.c.h.b16 %v1756
  %v1793 = vpack.c.b16 %v1779, %v1777
  %v1794 = vpack.c.b16 %v1780, %v1778
  %v1795 = vpack.c.b16 %v1783, %v1781
  %v1796 = vpack.c.b16 %v1784, %v1782
  %v1797 = vpack.c.b16 %v1787, %v1785
  %v1798 = vpack.c.b16 %v1788, %v1786
  %v1799 = vpack.c.b16 %v1791, %v1789
  %v1800 = vpack.c.b16 %v1792, %v1790
  %v1810 = vsel %vm485, %v1743, 0
  %v1813 = vsel %vm485, %v1744, 0
  %v1816 = vsel %vm485, %v1745, 0
  %v1819 = vsel %vm485, %v1746, 0
  %v1822 = vsel %vm485, %v1747, 0
  %v1825 = vsel %vm485, %v1748, 0
  %1827 = vmatprep.subr.bf16.mxu0 %v1794
  %1828 = vmatpush1.bf16.msra.mxu0 %v1793
  %1829 = vmatprep.subr.bf16.mxu0 %v1796
  %1830 = vmatpush1.bf16.msra.mxu0 %v1795
  %1831 = vmatprep.subr.bf16.mxu0 %v1798
  %1832 = vmatpush1.bf16.msra.mxu0 %v1797
  %1833 = vmatprep.subr.bf16.mxu0 %v1800
  %1834 = vmatpush1.bf16.msra.mxu0 %v1799
  %1835 = vmatprep.subr.bf16.mxu0 0
  %1836 = vmatpush1.bf16.msra.mxu0 0
  %1837 = vmatprep.subr.bf16.mxu0 0
  %1838 = vmatpush1.bf16.msra.mxu0 0
  %1839 = vmatprep.subr.bf16.mxu0 0
  %1840 = vmatpush1.bf16.msra.mxu0 0
  %1841 = vmatprep.subr.bf16.mxu0 0
  %1842 = vmatpush1.bf16.msra.mxu0 0
  %1843 = vmatprep.subr.bf16.mxu0 0
  %1844 = vmatpush1.bf16.msra.mxu0 0
  %1845 = vmatprep.subr.bf16.mxu0 0
  %1846 = vmatpush1.bf16.msra.mxu0 0
  %1847 = vmatprep.subr.bf16.mxu0 0
  %1848 = vmatpush1.bf16.msra.mxu0 0
  %1849 = vmatprep.subr.bf16.mxu0 0
  %1850 = vmatpush1.bf16.msra.mxu0 0
  %1851 = vmatprep.subr.bf16.mxu0 0
  %1852 = vmatpush1.bf16.msra.mxu0 0
  %1853 = vmatprep.subr.bf16.mxu0 0
  %1854 = vmatpush1.bf16.msra.mxu0 0
  %1855 = vmatprep.subr.bf16.mxu0 0
  %1856 = vmatpush1.bf16.msra.mxu0 0
  %1857 = vmatprep.subr.bf16.mxu0 0
  %1858 = vmatpush1.bf16.msra.mxu0 0
  %1859 = vmatprep.mubr.bf16.mxu0 0
  %1860 = vmatmul.mubr.bf16.gmra.mrb[0].mxu0 %v1810
  %v1861 = vpop.f32.mrb[0].mxu0
  %v1862 = vadd.f32 %v1762, %v1861
  %v1863 = vpop.f32.mrb[0].mxu0
  %v1864 = vadd.f32 %v1766, %v1863
  %v1865 = vpop.f32.mrb[0].mxu0
  %v1866 = vadd.f32 %v1762, %v1865
  %v1867 = vpop.f32.mrb[0].mxu0
  %v1868 = vadd.f32 %v1766, %v1867
  %1869 = vmatprep.mubr.bf16.mxu0 0
  %1870 = vmatmul.mubr.bf16.gmra.mrb[0].mxu0 %v1813
  %v1871 = vpop.f32.mrb[0].mxu0
  %v1872 = vadd.f32 %v1762, %v1871
  %v1873 = vpop.f32.mrb[0].mxu0
  %v1874 = vadd.f32 %v1766, %v1873
  %v1875 = vpop.f32.mrb[0].mxu0
  %v1876 = vadd.f32 %v1762, %v1875
  %v1877 = vpop.f32.mrb[0].mxu0
  %v1878 = vadd.f32 %v1766, %v1877
  %1879 = vmatprep.mubr.bf16.mxu0 0
  %1880 = vmatmul.mubr.bf16.gmra.mrb[0].mxu0 %v1816
  %v1881 = vpop.f32.mrb[0].mxu0
  %v1882 = vadd.f32 %v1762, %v1881
  %v1883 = vpop.f32.mrb[0].mxu0
  %v1884 = vadd.f32 %v1766, %v1883
  %v1885 = vpop.f32.mrb[0].mxu0
  %v1886 = vadd.f32 %v1762, %v1885
  %v1887 = vpop.f32.mrb[0].mxu0
  %v1888 = vadd.f32 %v1766, %v1887
  %1889 = vmatprep.mubr.bf16.mxu0 0
  %1890 = vmatmul.mubr.bf16.gmra.mrb[0].mxu0 %v1819
  %v1891 = vpop.f32.mrb[0].mxu0
  %v1892 = vadd.f32 %v1762, %v1891
  %v1893 = vpop.f32.mrb[0].mxu0
  %v1894 = vadd.f32 %v1766, %v1893
  %v1895 = vpop.f32.mrb[0].mxu0
  %v1896 = vadd.f32 %v1762, %v1895
  %v1897 = vpop.f32.mrb[0].mxu0
  %v1898 = vadd.f32 %v1766, %v1897
  %1899 = vmatprep.mubr.bf16.mxu0 0
  %1900 = vmatmul.mubr.bf16.gmra.mrb[0].mxu0 %v1822
  %v1901 = vpop.f32.mrb[0].mxu0
  %v1902 = vadd.f32 %v1762, %v1901
  %v1903 = vpop.f32.mrb[0].mxu0
  %v1904 = vadd.f32 %v1766, %v1903
  %v1905 = vpop.f32.mrb[0].mxu0
  %v1906 = vadd.f32 %v1762, %v1905
  %v1907 = vpop.f32.mrb[0].mxu0
  %v1908 = vadd.f32 %v1766, %v1907
  %1909 = vmatprep.mubr.bf16.mxu0 0
  %1910 = vmatmul.mubr.bf16.gmra.mrb[0].mxu0 %v1825
  %v1911 = vpop.f32.mrb[0].mxu0
  %v1912 = vadd.f32 %v1762, %v1911
  %v1913 = vpop.f32.mrb[0].mxu0
  %v1914 = vadd.f32 %v1766, %v1913
  %v1915 = vpop.f32.mrb[0].mxu0
  %v1916 = vadd.f32 %v1762, %v1915
  %v1917 = vpop.f32.mrb[0].mxu0
  %v1918 = vadd.f32 %v1766, %v1917
  %1919 = vdwg.mxu0
  %v1920 = vpack.c.bf16 %v1866, %v1862
  %v1921 = vpack.c.bf16 %v1876, %v1872
  %v1922 = vpack.c.bf16 %v1886, %v1882
  %v1923 = vpack.c.bf16 %v1896, %v1892
  %v1924 = vpack.c.bf16 %v1906, %v1902
  %v1925 = vpack.c.bf16 %v1916, %v1912
  %v1926 = vpack.c.bf16 %v1868, %v1864
  %v1927 = vpack.c.bf16 %v1878, %v1874
  %v1928 = vpack.c.bf16 %v1888, %v1884
  %v1929 = vpack.c.bf16 %v1898, %v1894
  %v1930 = vpack.c.bf16 %v1908, %v1904
  %v1931 = vpack.c.bf16 %v1918, %v1914
  %1938 = vrot.lane.b32.xlu0 %v1920, 64
  %v1939 = vpop.permute.xlu0 %1938
  %1940 = vrot.lane.b32.xlu0 %v1921, 64
  %v1941 = vpop.permute.xlu0 %1940
  %1942 = vrot.lane.b32.xlu0 %v1922, 64
  %v1943 = vpop.permute.xlu0 %1942
  %1944 = vrot.lane.b32.xlu0 %v1923, 64
  %v1945 = vpop.permute.xlu0 %1944
  %1946 = vrot.lane.b32.xlu0 %v1924, 64
  %v1947 = vpop.permute.xlu0 %1946
  %1948 = vrot.lane.b32.xlu0 %v1925, 64
  %v1949 = vpop.permute.xlu0 %1948
  %vm1950 = vcmask 130048
  %v1952 = vsel %vm1950, %v1920, 0
  %v1955 = vsel %vm1950, %v1921, 0
  %v1958 = vsel %vm1950, %v1922, 0
  %v1961 = vsel %vm1950, %v1923, 0
  %v1964 = vsel %vm1950, %v1924, 0
  %v1967 = vsel %vm1950, %v1925, 0
  %v1970 = vsel %vm1950, %v1939, 0
  %v1973 = vsel %vm1950, %v1941, 0
  %v1976 = vsel %vm1950, %v1943, 0
  %v1979 = vsel %vm1950, %v1945, 0
  %v1982 = vsel %vm1950, %v1947, 0
  %v1985 = vsel %vm1950, %v1949, 0
  %1987 = vmatprep.subr.bf16.mxu0 0
  %1988 = vmatpush1.bf16.xpose.msra.mxu0 %v1970
  %1989 = vmatprep.subr.bf16.mxu0 0
  %1990 = vmatpush1.bf16.xpose.msra.mxu0 %v1973
  %1991 = vmatprep.subr.bf16.mxu0 0
  %1992 = vmatpush1.bf16.xpose.msra.mxu0 %v1976
  %1993 = vmatprep.subr.bf16.mxu0 0
  %1994 = vmatpush1.bf16.xpose.msra.mxu0 %v1979
  %1995 = vmatprep.subr.bf16.mxu0 0
  %1996 = vmatpush1.bf16.xpose.msra.mxu0 %v1982
  %1997 = vmatprep.subr.bf16.mxu0 0
  %1998 = vmatpush1.bf16.xpose.msra.mxu0 %v1985
  %1999 = vmatprep.subr.bf16.mxu0 0
  %2000 = vmatpush1.bf16.xpose.msra.mxu0 0
  %2001 = vmatprep.subr.bf16.mxu0 0
  %2002 = vmatpush1.bf16.xpose.msra.mxu0 0
  %2003 = vmatprep.subr.bf16.mxu0 0
  %2004 = vmatpush1.bf16.xpose.msra.mxu0 0
  %2005 = vmatprep.subr.bf16.mxu0 0
  %2006 = vmatpush1.bf16.xpose.msra.mxu0 0
  %2007 = vmatprep.subr.bf16.mxu0 0
  %2008 = vmatpush1.bf16.xpose.msra.mxu0 0
  %2009 = vmatprep.subr.bf16.mxu0 0
  %2010 = vmatpush1.bf16.xpose.msra.mxu0 0
  %2011 = vmatprep.subr.bf16.mxu0 0
  %2012 = vmatpush1.bf16.xpose.msra.mxu0 0
  %2013 = vmatprep.subr.bf16.mxu0 0
  %2014 = vmatpush1.bf16.xpose.msra.mxu0 0
  %2015 = vmatprep.subr.bf16.mxu0 0
  %2016 = vmatpush1.bf16.xpose.msra.mxu0 0
  %2017 = vmatprep.subr.bf16.mxu0 0
  %2018 = vmatpush1.bf16.xpose.msra.mxu0 0
  %2019 = vmatprep.mubr.bf16.mxu0 0
  %2020 = vmatmul.mubr.bf16.gmra.mrb[0].mxu0 %v1952
  %v2021 = vpop.f32.mrb[0].mxu0
  %v2022 = vadd.f32 0.0, %v2021
  %v2023 = vpop.f32.mrb[0].mxu0
  %v2024 = vpop.f32.mrb[0].mxu0
  %v2025 = vadd.f32 0.0, %v2024
  %v2026 = vpop.f32.mrb[0].mxu0
  %2027 = vmatprep.mubr.bf16.mxu0 0
  %2028 = vmatmul.mubr.bf16.gmra.mrb[0].mxu0 %v1955
  %v2029 = vpop.f32.mrb[0].mxu0
  %v2030 = vadd.f32 0.0, %v2029
  %v2031 = vpop.f32.mrb[0].mxu0
  %v2032 = vpop.f32.mrb[0].mxu0
  %v2033 = vadd.f32 0.0, %v2032
  %v2034 = vpop.f32.mrb[0].mxu0
  %2035 = vmatprep.mubr.bf16.mxu0 0
  %2036 = vmatmul.mubr.bf16.gmra.mrb[0].mxu0 %v1958
  %v2037 = vpop.f32.mrb[0].mxu0
  %v2038 = vadd.f32 0.0, %v2037
  %v2039 = vpop.f32.mrb[0].mxu0
  %v2040 = vpop.f32.mrb[0].mxu0
  %v2041 = vadd.f32 0.0, %v2040
  %v2042 = vpop.f32.mrb[0].mxu0
  %2043 = vmatprep.mubr.bf16.mxu0 0
  %2044 = vmatmul.mubr.bf16.gmra.mrb[0].mxu0 %v1961
  %v2045 = vpop.f32.mrb[0].mxu0
  %v2046 = vadd.f32 0.0, %v2045
  %v2047 = vpop.f32.mrb[0].mxu0
  %v2048 = vpop.f32.mrb[0].mxu0
  %v2049 = vadd.f32 0.0, %v2048
  %v2050 = vpop.f32.mrb[0].mxu0
  %2051 = vmatprep.mubr.bf16.mxu0 0
  %2052 = vmatmul.mubr.bf16.gmra.mrb[0].mxu0 %v1964
  %v2053 = vpop.f32.mrb[0].mxu0
  %v2054 = vadd.f32 0.0, %v2053
  %v2055 = vpop.f32.mrb[0].mxu0
  %v2056 = vpop.f32.mrb[0].mxu0
  %v2057 = vadd.f32 0.0, %v2056
  %v2058 = vpop.f32.mrb[0].mxu0
  %2059 = vmatprep.mubr.bf16.mxu0 0
  %2060 = vmatmul.mubr.bf16.gmra.mrb[0].mxu0 %v1967
  %v2061 = vpop.f32.mrb[0].mxu0
  %v2062 = vadd.f32 0.0, %v2061
  %v2063 = vpop.f32.mrb[0].mxu0
  %v2064 = vpop.f32.mrb[0].mxu0
  %v2065 = vadd.f32 0.0, %v2064
  %v2066 = vpop.f32.mrb[0].mxu0
  %2067 = vdwg.mxu0
  %v2068 = vmul.f32 %v2022, 0.25
  %v2069 = vmul.f32 %v2025, 0.25
  %v2070 = vmul.f32 %v2030, 0.25
  %v2071 = vmul.f32 %v2033, 0.25
  %v2072 = vmul.f32 %v2038, 0.25
  %v2073 = vmul.f32 %v2041, 0.25
  %v2074 = vmul.f32 %v2046, 0.25
  %v2075 = vmul.f32 %v2049, 0.25
  %v2076 = vmul.f32 %v2054, 0.25
  %v2077 = vmul.f32 %v2057, 0.25
  %v2078 = vmul.f32 %v2062, 0.25
  %v2079 = vmul.f32 %v2065, 0.25
  %v2080 = vadd.f32 %v2068, %v1536
  %v2081 = vadd.f32 %v2069, %v1537
  %v2082 = vadd.f32 %v2070, %v1538
  %v2083 = vadd.f32 %v2071, %v1539
  %v2084 = vadd.f32 %v2072, %v1540
  %v2085 = vadd.f32 %v2073, %v1541
  %v2086 = vadd.f32 %v2074, %v1542
  %v2087 = vadd.f32 %v2075, %v1543
  %v2088 = vadd.f32 %v2076, %v1544
  %v2089 = vadd.f32 %v2077, %v1545
  %v2090 = vadd.f32 %v2078, %v1546
  %v2091 = vadd.f32 %v2079, %v1547
  %vm2092 = vcmask 785408
  %v2093 = vsel %vm2092, %v2080, -inf
  %2094 = vmax.xlane.f32.xlu0 %v2093
  %v2095 = vpop.xlane.xlu0 %2094
  %v2096 = vsel %vm2092, %v2081, -inf
  %2097 = vmax.xlane.f32.xlu0 %v2096
  %v2098 = vpop.xlane.xlu0 %2097
  %v2099 = vsel %vm2092, %v2082, -inf
  %2100 = vmax.xlane.f32.xlu0 %v2099
  %v2101 = vpop.xlane.xlu0 %2100
  %v2102 = vsel %vm2092, %v2083, -inf
  %2103 = vmax.xlane.f32.xlu0 %v2102
  %v2104 = vpop.xlane.xlu0 %2103
  %v2105 = vsel %vm2092, %v2084, -inf
  %2106 = vmax.xlane.f32.xlu0 %v2105
  %v2107 = vpop.xlane.xlu0 %2106
  %v2108 = vsel %vm2092, %v2085, -inf
  %2109 = vmax.xlane.f32.xlu0 %v2108
  %v2110 = vpop.xlane.xlu0 %2109
  %v2111 = vsel %vm2092, %v2086, -inf
  %2112 = vmax.xlane.f32.xlu0 %v2111
  %v2113 = vpop.xlane.xlu0 %2112
  %v2114 = vsel %vm2092, %v2087, -inf
  %2115 = vmax.xlane.f32.xlu0 %v2114
  %v2116 = vpop.xlane.xlu0 %2115
  %v2117 = vsel %vm2092, %v2088, -inf
  %2118 = vmax.xlane.f32.xlu0 %v2117
  %v2119 = vpop.xlane.xlu0 %2118
  %v2120 = vsel %vm2092, %v2089, -inf
  %2121 = vmax.xlane.f32.xlu0 %v2120
  %v2122 = vpop.xlane.xlu0 %2121
  %v2123 = vsel %vm2092, %v2090, -inf
  %2124 = vmax.xlane.f32.xlu0 %v2123
  %v2125 = vpop.xlane.xlu0 %2124
  %v2126 = vsel %vm2092, %v2091, -inf
  %2127 = vmax.xlane.f32.xlu0 %v2126
  %v2128 = vpop.xlane.xlu0 %2127
  %v2129 = vsub.f32 %v2080, %v2095
  %v2130 = vsub.f32 %v2081, %v2098
  %v2131 = vsub.f32 %v2082, %v2101
  %v2132 = vsub.f32 %v2083, %v2104
  %v2133 = vsub.f32 %v2084, %v2107
  %v2134 = vsub.f32 %v2085, %v2110
  %v2135 = vsub.f32 %v2086, %v2113
  %v2136 = vsub.f32 %v2087, %v2116
  %v2137 = vsub.f32 %v2088, %v2119
  %v2138 = vsub.f32 %v2089, %v2122
  %v2139 = vsub.f32 %v2090, %v2125
  %v2140 = vsub.f32 %v2091, %v2128
  %v2141 = vmul.f32 %v2129, 1.442695
  %v2142 = vpow.pop %v2141
  %v2143 = vmul.f32 %v2130, 1.442695
  %v2144 = vpow.pop %v2143
  %v2145 = vmul.f32 %v2131, 1.442695
  %v2146 = vpow.pop %v2145
  %v2147 = vmul.f32 %v2132, 1.442695
  %v2148 = vpow.pop %v2147
  %v2149 = vmul.f32 %v2133, 1.442695
  %v2150 = vpow.pop %v2149
  %v2151 = vmul.f32 %v2134, 1.442695
  %v2152 = vpow.pop %v2151
  %v2153 = vmul.f32 %v2135, 1.442695
  %v2154 = vpow.pop %v2153
  %v2155 = vmul.f32 %v2136, 1.442695
  %v2156 = vpow.pop %v2155
  %v2157 = vmul.f32 %v2137, 1.442695
  %v2158 = vpow.pop %v2157
  %v2159 = vmul.f32 %v2138, 1.442695
  %v2160 = vpow.pop %v2159
  %v2161 = vmul.f32 %v2139, 1.442695
  %v2162 = vpow.pop %v2161
  %v2163 = vmul.f32 %v2140, 1.442695
  %v2164 = vpow.pop %v2163
  %v2165 = vsel %vm2092, %v2142, 0.0
  %2166 = vadd.xlane.f32.xlu0 %v2165
  %v2167 = vpop.xlane.xlu0 %2166
  %v2168 = vsel %vm2092, %v2144, 0.0
  %2169 = vadd.xlane.f32.xlu0 %v2168
  %v2170 = vpop.xlane.xlu0 %2169
  %v2171 = vsel %vm2092, %v2146, 0.0
  %2172 = vadd.xlane.f32.xlu0 %v2171
  %v2173 = vpop.xlane.xlu0 %2172
  %v2174 = vsel %vm2092, %v2148, 0.0
  %2175 = vadd.xlane.f32.xlu0 %v2174
  %v2176 = vpop.xlane.xlu0 %2175
  %v2177 = vsel %vm2092, %v2150, 0.0
  %2178 = vadd.xlane.f32.xlu0 %v2177
  %v2179 = vpop.xlane.xlu0 %2178
  %v2180 = vsel %vm2092, %v2152, 0.0
  %2181 = vadd.xlane.f32.xlu0 %v2180
  %v2182 = vpop.xlane.xlu0 %2181
  %v2183 = vsel %vm2092, %v2154, 0.0
  %2184 = vadd.xlane.f32.xlu0 %v2183
  %v2185 = vpop.xlane.xlu0 %2184
  %v2186 = vsel %vm2092, %v2156, 0.0
  %2187 = vadd.xlane.f32.xlu0 %v2186
  %v2188 = vpop.xlane.xlu0 %2187
  %v2189 = vsel %vm2092, %v2158, 0.0
  %2190 = vadd.xlane.f32.xlu0 %v2189
  %v2191 = vpop.xlane.xlu0 %2190
  %v2192 = vsel %vm2092, %v2160, 0.0
  %2193 = vadd.xlane.f32.xlu0 %v2192
  %v2194 = vpop.xlane.xlu0 %2193
  %v2195 = vsel %vm2092, %v2162, 0.0
  %2196 = vadd.xlane.f32.xlu0 %v2195
  %v2197 = vpop.xlane.xlu0 %2196
  %v2198 = vsel %vm2092, %v2164, 0.0
  %2199 = vadd.xlane.f32.xlu0 %v2198
  %v2200 = vpop.xlane.xlu0 %2199
  %v2201 = vrcp.pop %v2167
  %v2202 = vrcp.pop %v2170
  %v2203 = vrcp.pop %v2173
  %v2204 = vrcp.pop %v2176
  %v2205 = vrcp.pop %v2179
  %v2206 = vrcp.pop %v2182
  %v2207 = vrcp.pop %v2185
  %v2208 = vrcp.pop %v2188
  %v2209 = vrcp.pop %v2191
  %v2210 = vrcp.pop %v2194
  %v2211 = vrcp.pop %v2197
  %v2212 = vrcp.pop %v2200
  %v2213 = vmul.f32 %v2142, %v2201
  %v2214 = vmul.f32 %v2144, %v2202
  %v2215 = vmul.f32 %v2146, %v2203
  %v2216 = vmul.f32 %v2148, %v2204
  %v2217 = vmul.f32 %v2150, %v2205
  %v2218 = vmul.f32 %v2152, %v2206
  %v2219 = vmul.f32 %v2154, %v2207
  %v2220 = vmul.f32 %v2156, %v2208
  %v2221 = vmul.f32 %v2158, %v2209
  %v2222 = vmul.f32 %v2160, %v2210
  %v2223 = vmul.f32 %v2162, %v2211
  %v2224 = vmul.f32 %v2164, %v2212
  %v2225 = vpack.c.bf16 %v2214, %v2213
  %v2226 = vpack.c.bf16 %v2216, %v2215
  %v2227 = vpack.c.bf16 %v2218, %v2217
  %v2228 = vpack.c.bf16 %v2220, %v2219
  %v2229 = vpack.c.bf16 %v2222, %v2221
  %v2230 = vpack.c.bf16 %v2224, %v2223
  %v2232 = vsel %vm2092, %v2225, 0
  %v2235 = vsel %vm2092, %v2226, 0
  %v2238 = vsel %vm2092, %v2227, 0
  %v2241 = vsel %vm2092, %v2228, 0
  %v2244 = vsel %vm2092, %v2229, 0
  %v2247 = vsel %vm2092, %v2230, 0
  %2249 = vmatprep.subr.bf16.mxu0 0
  %2250 = vmatpush1.bf16.msra.mxu0 %v1926
  %2251 = vmatprep.subr.bf16.mxu0 0
  %2252 = vmatpush1.bf16.msra.mxu0 %v1927
  %2253 = vmatprep.subr.bf16.mxu0 0
  %2254 = vmatpush1.bf16.msra.mxu0 %v1928
  %2255 = vmatprep.subr.bf16.mxu0 0
  %2256 = vmatpush1.bf16.msra.mxu0 %v1929
  %2257 = vmatprep.subr.bf16.mxu0 0
  %2258 = vmatpush1.bf16.msra.mxu0 %v1930
  %2259 = vmatprep.subr.bf16.mxu0 0
  %2260 = vmatpush1.bf16.msra.mxu0 %v1931
  %2261 = vmatprep.subr.bf16.mxu0 0
  %2262 = vmatpush1.bf16.msra.mxu0 0
  %2263 = vmatprep.subr.bf16.mxu0 0
  %2264 = vmatpush1.bf16.msra.mxu0 0
  %2265 = vmatprep.subr.bf16.mxu0 0
  %2266 = vmatpush1.bf16.msra.mxu0 0
  %2267 = vmatprep.subr.bf16.mxu0 0
  %2268 = vmatpush1.bf16.msra.mxu0 0
  %2269 = vmatprep.subr.bf16.mxu0 0
  %2270 = vmatpush1.bf16.msra.mxu0 0
  %2271 = vmatprep.subr.bf16.mxu0 0
  %2272 = vmatpush1.bf16.msra.mxu0 0
  %2273 = vmatprep.subr.bf16.mxu0 0
  %2274 = vmatpush1.bf16.msra.mxu0 0
  %2275 = vmatprep.subr.bf16.mxu0 0
  %2276 = vmatpush1.bf16.msra.mxu0 0
  %2277 = vmatprep.subr.bf16.mxu0 0
  %2278 = vmatpush1.bf16.msra.mxu0 0
  %2279 = vmatprep.subr.bf16.mxu0 0
  %2280 = vmatpush1.bf16.msra.mxu0 0
  %2281 = vmatprep.mubr.bf16.mxu0 0
  %2282 = vmatmul.mubr.bf16.gmra.mrb[0].mxu0 %v2232
  %v2283 = vpop.f32.mrb[0].mxu0
  %v2284 = vadd.f32 0.0, %v2283
  %v2285 = vpop.f32.mrb[0].mxu0
  %v2286 = vpop.f32.mrb[0].mxu0
  %v2287 = vadd.f32 0.0, %v2286
  %v2288 = vpop.f32.mrb[0].mxu0
  %2289 = vmatprep.mubr.bf16.mxu0 0
  %2290 = vmatmul.mubr.bf16.gmra.mrb[0].mxu0 %v2235
  %v2291 = vpop.f32.mrb[0].mxu0
  %v2292 = vadd.f32 0.0, %v2291
  %v2293 = vpop.f32.mrb[0].mxu0
  %v2294 = vpop.f32.mrb[0].mxu0
  %v2295 = vadd.f32 0.0, %v2294
  %v2296 = vpop.f32.mrb[0].mxu0
  %2297 = vmatprep.mubr.bf16.mxu0 0
  %2298 = vmatmul.mubr.bf16.gmra.mrb[0].mxu0 %v2238
  %v2299 = vpop.f32.mrb[0].mxu0
  %v2300 = vadd.f32 0.0, %v2299
  %v2301 = vpop.f32.mrb[0].mxu0
  %v2302 = vpop.f32.mrb[0].mxu0
  %v2303 = vadd.f32 0.0, %v2302
  %v2304 = vpop.f32.mrb[0].mxu0
  %2305 = vmatprep.mubr.bf16.mxu0 0
  %2306 = vmatmul.mubr.bf16.gmra.mrb[0].mxu0 %v2241
  %v2307 = vpop.f32.mrb[0].mxu0
  %v2308 = vadd.f32 0.0, %v2307
  %v2309 = vpop.f32.mrb[0].mxu0
  %v2310 = vpop.f32.mrb[0].mxu0
  %v2311 = vadd.f32 0.0, %v2310
  %v2312 = vpop.f32.mrb[0].mxu0
  %2313 = vmatprep.mubr.bf16.mxu0 0
  %2314 = vmatmul.mubr.bf16.gmra.mrb[0].mxu0 %v2244
  %v2315 = vpop.f32.mrb[0].mxu0
  %v2316 = vadd.f32 0.0, %v2315
  %v2317 = vpop.f32.mrb[0].mxu0
  %v2318 = vpop.f32.mrb[0].mxu0
  %v2319 = vadd.f32 0.0, %v2318
  %v2320 = vpop.f32.mrb[0].mxu0
  %2321 = vmatprep.mubr.bf16.mxu0 0
  %2322 = vmatmul.mubr.bf16.gmra.mrb[0].mxu0 %v2247
  %v2323 = vpop.f32.mrb[0].mxu0
  %v2324 = vadd.f32 0.0, %v2323
  %v2325 = vpop.f32.mrb[0].mxu0
  %v2326 = vpop.f32.mrb[0].mxu0
  %v2327 = vadd.f32 0.0, %v2326
  %v2328 = vpop.f32.mrb[0].mxu0
  %2329 = vdwg.mxu0
  %v2330 = vpack.c.bf16 %v2287, %v2284
  %v2331 = vpack.c.bf16 %v2295, %v2292
  %v2332 = vpack.c.bf16 %v2303, %v2300
  %v2333 = vpack.c.bf16 %v2311, %v2308
  %v2334 = vpack.c.bf16 %v2319, %v2316
  %v2335 = vpack.c.bf16 %v2327, %v2324
  %v2336 = vld [vmem:[%s37] sm:$0xf]
  %v2337 = vld [vmem:[%s37 + $0x4] sm:$0xf]
  %2338 = vrot.lane.b32.xlu0 %v1920, 112
  %v2339 = vpop.permute.xlu0 %2338
  %2340 = vrot.lane.b32.xlu0 %v1921, 112
  %v2341 = vpop.permute.xlu0 %2340
  %2342 = vrot.lane.b32.xlu0 %v1922, 112
  %v2343 = vpop.permute.xlu0 %2342
  %2344 = vrot.lane.b32.xlu0 %v1923, 112
  %v2345 = vpop.permute.xlu0 %2344
  %2346 = vrot.lane.b32.xlu0 %v1924, 112
  %v2347 = vpop.permute.xlu0 %2346
  %2348 = vrot.lane.b32.xlu0 %v1925, 112
  %v2349 = vpop.permute.xlu0 %2348
  %2350 = vrot.lane.b32.xlu0 %v1920, 48
  %v2351 = vpop.permute.xlu0 %2350
  %2352 = vrot.lane.b32.xlu0 %v1921, 48
  %v2353 = vpop.permute.xlu0 %2352
  %2354 = vrot.lane.b32.xlu0 %v1922, 48
  %v2355 = vpop.permute.xlu0 %2354
  %2356 = vrot.lane.b32.xlu0 %v1923, 48
  %v2357 = vpop.permute.xlu0 %2356
  %2358 = vrot.lane.b32.xlu0 %v1924, 48
  %v2359 = vpop.permute.xlu0 %2358
  %2360 = vrot.lane.b32.xlu0 %v1925, 48
  %v2361 = vpop.permute.xlu0 %2360
  %v2363 = vsel %vm1950, %v2339, 0
  %v2366 = vsel %vm1950, %v2341, 0
  %v2369 = vsel %vm1950, %v2343, 0
  %v2372 = vsel %vm1950, %v2345, 0
  %v2375 = vsel %vm1950, %v2347, 0
  %v2378 = vsel %vm1950, %v2349, 0
  %v2381 = vsel %vm1950, %v2351, 0
  %v2384 = vsel %vm1950, %v2353, 0
  %v2387 = vsel %vm1950, %v2355, 0
  %v2390 = vsel %vm1950, %v2357, 0
  %v2393 = vsel %vm1950, %v2359, 0
  %v2396 = vsel %vm1950, %v2361, 0
  %2398 = vmatprep.subr.bf16.mxu0 0
  %2399 = vmatpush1.bf16.xpose.msra.mxu0 %v2381
  %2400 = vmatprep.subr.bf16.mxu0 0
  %2401 = vmatpush1.bf16.xpose.msra.mxu0 %v2384
  %2402 = vmatprep.subr.bf16.mxu0 0
  %2403 = vmatpush1.bf16.xpose.msra.mxu0 %v2387
  %2404 = vmatprep.subr.bf16.mxu0 0
  %2405 = vmatpush1.bf16.xpose.msra.mxu0 %v2390
  %2406 = vmatprep.subr.bf16.mxu0 0
  %2407 = vmatpush1.bf16.xpose.msra.mxu0 %v2393
  %2408 = vmatprep.subr.bf16.mxu0 0
  %2409 = vmatpush1.bf16.xpose.msra.mxu0 %v2396
  %2410 = vmatprep.subr.bf16.mxu0 0
  %2411 = vmatpush1.bf16.xpose.msra.mxu0 0
  %2412 = vmatprep.subr.bf16.mxu0 0
  %2413 = vmatpush1.bf16.xpose.msra.mxu0 0
  %2414 = vmatprep.subr.bf16.mxu0 0
  %2415 = vmatpush1.bf16.xpose.msra.mxu0 0
  %2416 = vmatprep.subr.bf16.mxu0 0
  %2417 = vmatpush1.bf16.xpose.msra.mxu0 0
  %2418 = vmatprep.subr.bf16.mxu0 0
  %2419 = vmatpush1.bf16.xpose.msra.mxu0 0
  %2420 = vmatprep.subr.bf16.mxu0 0
  %2421 = vmatpush1.bf16.xpose.msra.mxu0 0
  %2422 = vmatprep.subr.bf16.mxu0 0
  %2423 = vmatpush1.bf16.xpose.msra.mxu0 0
  %2424 = vmatprep.subr.bf16.mxu0 0
  %2425 = vmatpush1.bf16.xpose.msra.mxu0 0
  %2426 = vmatprep.subr.bf16.mxu0 0
  %2427 = vmatpush1.bf16.xpose.msra.mxu0 0
  %2428 = vmatprep.subr.bf16.mxu0 0
  %2429 = vmatpush1.bf16.xpose.msra.mxu0 0
  %2430 = vmatprep.mubr.bf16.mxu0 0
  %2431 = vmatmul.mubr.bf16.gmra.mrb[0].mxu0 %v2363
  %v2432 = vpop.f32.mrb[0].mxu0
  %v2433 = vadd.f32 0.0, %v2432
  %v2434 = vpop.f32.mrb[0].mxu0
  %v2435 = vpop.f32.mrb[0].mxu0
  %v2436 = vadd.f32 0.0, %v2435
  %v2437 = vpop.f32.mrb[0].mxu0
  %2438 = vmatprep.mubr.bf16.mxu0 0
  %2439 = vmatmul.mubr.bf16.gmra.mrb[0].mxu0 %v2366
  %v2440 = vpop.f32.mrb[0].mxu0
  %v2441 = vadd.f32 0.0, %v2440
  %v2442 = vpop.f32.mrb[0].mxu0
  %v2443 = vpop.f32.mrb[0].mxu0
  %v2444 = vadd.f32 0.0, %v2443
  %v2445 = vpop.f32.mrb[0].mxu0
  %2446 = vmatprep.mubr.bf16.mxu0 0
  %2447 = vmatmul.mubr.bf16.gmra.mrb[0].mxu0 %v2369
  %v2448 = vpop.f32.mrb[0].mxu0
  %v2449 = vadd.f32 0.0, %v2448
  %v2450 = vpop.f32.mrb[0].mxu0
  %v2451 = vpop.f32.mrb[0].mxu0
  %v2452 = vadd.f32 0.0, %v2451
  %v2453 = vpop.f32.mrb[0].mxu0
  %2454 = vmatprep.mubr.bf16.mxu0 0
  %2455 = vmatmul.mubr.bf16.gmra.mrb[0].mxu0 %v2372
  %v2456 = vpop.f32.mrb[0].mxu0
  %v2457 = vadd.f32 0.0, %v2456
  %v2458 = vpop.f32.mrb[0].mxu0
  %v2459 = vpop.f32.mrb[0].mxu0
  %v2460 = vadd.f32 0.0, %v2459
  %v2461 = vpop.f32.mrb[0].mxu0
  %2462 = vmatprep.mubr.bf16.mxu0 0
  %2463 = vmatmul.mubr.bf16.gmra.mrb[0].mxu0 %v2375
  %v2464 = vpop.f32.mrb[0].mxu0
  %v2465 = vadd.f32 0.0, %v2464
  %v2466 = vpop.f32.mrb[0].mxu0
  %v2467 = vpop.f32.mrb[0].mxu0
  %v2468 = vadd.f32 0.0, %v2467
  %v2469 = vpop.f32.mrb[0].mxu0
  %2470 = vmatprep.mubr.bf16.mxu0 0
  %2471 = vmatmul.mubr.bf16.gmra.mrb[0].mxu0 %v2378
  %v2472 = vpop.f32.mrb[0].mxu0
  %v2473 = vadd.f32 0.0, %v2472
  %v2474 = vpop.f32.mrb[0].mxu0
  %v2475 = vpop.f32.mrb[0].mxu0
  %v2476 = vadd.f32 0.0, %v2475
  %v2477 = vpop.f32.mrb[0].mxu0
  %2478 = vdwg.mxu0
  %v2479 = vmul.f32 %v2433, 0.25
  %v2480 = vmul.f32 %v2436, 0.25
  %v2481 = vmul.f32 %v2441, 0.25
  %v2482 = vmul.f32 %v2444, 0.25
  %v2483 = vmul.f32 %v2449, 0.25
  %v2484 = vmul.f32 %v2452, 0.25
  %v2485 = vmul.f32 %v2457, 0.25
  %v2486 = vmul.f32 %v2460, 0.25
  %v2487 = vmul.f32 %v2465, 0.25
  %v2488 = vmul.f32 %v2468, 0.25
  %v2489 = vmul.f32 %v2473, 0.25
  %v2490 = vmul.f32 %v2476, 0.25
  %v2491 = vadd.f32 %v2479, %v1536
  %v2492 = vadd.f32 %v2480, %v1537
  %v2493 = vadd.f32 %v2481, %v1538
  %v2494 = vadd.f32 %v2482, %v1539
  %v2495 = vadd.f32 %v2483, %v1540
  %v2496 = vadd.f32 %v2484, %v1541
  %v2497 = vadd.f32 %v2485, %v1542
  %v2498 = vadd.f32 %v2486, %v1543
  %v2499 = vadd.f32 %v2487, %v1544
  %v2500 = vadd.f32 %v2488, %v1545
  %v2501 = vadd.f32 %v2489, %v1546
  %v2502 = vadd.f32 %v2490, %v1547
  %v2503 = vsel %vm2092, %v2491, -inf
  %2504 = vmax.xlane.f32.xlu0 %v2503
  %v2505 = vpop.xlane.xlu0 %2504
  %v2506 = vsel %vm2092, %v2492, -inf
  %2507 = vmax.xlane.f32.xlu0 %v2506
  %v2508 = vpop.xlane.xlu0 %2507
  %v2509 = vsel %vm2092, %v2493, -inf
  %2510 = vmax.xlane.f32.xlu0 %v2509
  %v2511 = vpop.xlane.xlu0 %2510
  %v2512 = vsel %vm2092, %v2494, -inf
  %2513 = vmax.xlane.f32.xlu0 %v2512
  %v2514 = vpop.xlane.xlu0 %2513
  %v2515 = vsel %vm2092, %v2495, -inf
  %2516 = vmax.xlane.f32.xlu0 %v2515
  %v2517 = vpop.xlane.xlu0 %2516
  %v2518 = vsel %vm2092, %v2496, -inf
  %2519 = vmax.xlane.f32.xlu0 %v2518
  %v2520 = vpop.xlane.xlu0 %2519
  %v2521 = vsel %vm2092, %v2497, -inf
  %2522 = vmax.xlane.f32.xlu0 %v2521
  %v2523 = vpop.xlane.xlu0 %2522
  %v2524 = vsel %vm2092, %v2498, -inf
  %2525 = vmax.xlane.f32.xlu0 %v2524
  %v2526 = vpop.xlane.xlu0 %2525
  %v2527 = vsel %vm2092, %v2499, -inf
  %2528 = vmax.xlane.f32.xlu0 %v2527
  %v2529 = vpop.xlane.xlu0 %2528
  %v2530 = vsel %vm2092, %v2500, -inf
  %2531 = vmax.xlane.f32.xlu0 %v2530
  %v2532 = vpop.xlane.xlu0 %2531
  %v2533 = vsel %vm2092, %v2501, -inf
  %2534 = vmax.xlane.f32.xlu0 %v2533
  %v2535 = vpop.xlane.xlu0 %2534
  %v2536 = vsel %vm2092, %v2502, -inf
  %2537 = vmax.xlane.f32.xlu0 %v2536
  %v2538 = vpop.xlane.xlu0 %2537
  %v2539 = vsub.f32 %v2491, %v2505
  %v2540 = vsub.f32 %v2492, %v2508
  %v2541 = vsub.f32 %v2493, %v2511
  %v2542 = vsub.f32 %v2494, %v2514
  %v2543 = vsub.f32 %v2495, %v2517
  %v2544 = vsub.f32 %v2496, %v2520
  %v2545 = vsub.f32 %v2497, %v2523
  %v2546 = vsub.f32 %v2498, %v2526
  %v2547 = vsub.f32 %v2499, %v2529
  %v2548 = vsub.f32 %v2500, %v2532
  %v2549 = vsub.f32 %v2501, %v2535
  %v2550 = vsub.f32 %v2502, %v2538
  %v2551 = vmul.f32 %v2539, 1.442695
  %v2552 = vpow.pop %v2551
  %v2553 = vmul.f32 %v2540, 1.442695
  %v2554 = vpow.pop %v2553
  %v2555 = vmul.f32 %v2541, 1.442695
  %v2556 = vpow.pop %v2555
  %v2557 = vmul.f32 %v2542, 1.442695
  %v2558 = vpow.pop %v2557
  %v2559 = vmul.f32 %v2543, 1.442695
  %v2560 = vpow.pop %v2559
  %v2561 = vmul.f32 %v2544, 1.442695
  %v2562 = vpow.pop %v2561
  %v2563 = vmul.f32 %v2545, 1.442695
  %v2564 = vpow.pop %v2563
  %v2565 = vmul.f32 %v2546, 1.442695
  %v2566 = vpow.pop %v2565
  %v2567 = vmul.f32 %v2547, 1.442695
  %v2568 = vpow.pop %v2567
  %v2569 = vmul.f32 %v2548, 1.442695
  %v2570 = vpow.pop %v2569
  %v2571 = vmul.f32 %v2549, 1.442695
  %v2572 = vpow.pop %v2571
  %v2573 = vmul.f32 %v2550, 1.442695
  %v2574 = vpow.pop %v2573
  %v2575 = vsel %vm2092, %v2552, 0.0
  %2576 = vadd.xlane.f32.xlu0 %v2575
  %v2577 = vpop.xlane.xlu0 %2576
  %v2578 = vsel %vm2092, %v2554, 0.0
  %2579 = vadd.xlane.f32.xlu0 %v2578
  %v2580 = vpop.xlane.xlu0 %2579
  %v2581 = vsel %vm2092, %v2556, 0.0
  %2582 = vadd.xlane.f32.xlu0 %v2581
  %v2583 = vpop.xlane.xlu0 %2582
  %v2584 = vsel %vm2092, %v2558, 0.0
  %2585 = vadd.xlane.f32.xlu0 %v2584
  %v2586 = vpop.xlane.xlu0 %2585
  %v2587 = vsel %vm2092, %v2560, 0.0
  %2588 = vadd.xlane.f32.xlu0 %v2587
  %v2589 = vpop.xlane.xlu0 %2588
  %v2590 = vsel %vm2092, %v2562, 0.0
  %2591 = vadd.xlane.f32.xlu0 %v2590
  %v2592 = vpop.xlane.xlu0 %2591
  %v2593 = vsel %vm2092, %v2564, 0.0
  %2594 = vadd.xlane.f32.xlu0 %v2593
  %v2595 = vpop.xlane.xlu0 %2594
  %v2596 = vsel %vm2092, %v2566, 0.0
  %2597 = vadd.xlane.f32.xlu0 %v2596
  %v2598 = vpop.xlane.xlu0 %2597
  %v2599 = vsel %vm2092, %v2568, 0.0
  %2600 = vadd.xlane.f32.xlu0 %v2599
  %v2601 = vpop.xlane.xlu0 %2600
  %v2602 = vsel %vm2092, %v2570, 0.0
  %2603 = vadd.xlane.f32.xlu0 %v2602
  %v2604 = vpop.xlane.xlu0 %2603
  %v2605 = vsel %vm2092, %v2572, 0.0
  %2606 = vadd.xlane.f32.xlu0 %v2605
  %v2607 = vpop.xlane.xlu0 %2606
  %v2608 = vsel %vm2092, %v2574, 0.0
  %2609 = vadd.xlane.f32.xlu0 %v2608
  %v2610 = vpop.xlane.xlu0 %2609
  %v2611 = vrcp.pop %v2577
  %v2612 = vrcp.pop %v2580
  %v2613 = vrcp.pop %v2583
  %v2614 = vrcp.pop %v2586
  %v2615 = vrcp.pop %v2589
  %v2616 = vrcp.pop %v2592
  %v2617 = vrcp.pop %v2595
  %v2618 = vrcp.pop %v2598
  %v2619 = vrcp.pop %v2601
  %v2620 = vrcp.pop %v2604
  %v2621 = vrcp.pop %v2607
  %v2622 = vrcp.pop %v2610
  %v2623 = vmul.f32 %v2552, %v2611
  %v2624 = vmul.f32 %v2554, %v2612
  %v2625 = vmul.f32 %v2556, %v2613
  %v2626 = vmul.f32 %v2558, %v2614
  %v2627 = vmul.f32 %v2560, %v2615
  %v2628 = vmul.f32 %v2562, %v2616
  %v2629 = vmul.f32 %v2564, %v2617
  %v2630 = vmul.f32 %v2566, %v2618
  %v2631 = vmul.f32 %v2568, %v2619
  %v2632 = vmul.f32 %v2570, %v2620
  %v2633 = vmul.f32 %v2572, %v2621
  %v2634 = vmul.f32 %v2574, %v2622
  %v2635 = vpack.c.bf16 %v2624, %v2623
  %v2636 = vpack.c.bf16 %v2626, %v2625
  %v2637 = vpack.c.bf16 %v2628, %v2627
  %v2638 = vpack.c.bf16 %v2630, %v2629
  %v2639 = vpack.c.bf16 %v2632, %v2631
  %v2640 = vpack.c.bf16 %v2634, %v2633
  %2647 = vrot.lane.b32.xlu0 %v1926, 112
  %v2648 = vpop.permute.xlu0 %2647
  %2649 = vrot.lane.b32.xlu0 %v1927, 112
  %v2650 = vpop.permute.xlu0 %2649
  %2651 = vrot.lane.b32.xlu0 %v1928, 112
  %v2652 = vpop.permute.xlu0 %2651
  %2653 = vrot.lane.b32.xlu0 %v1929, 112
  %v2654 = vpop.permute.xlu0 %2653
  %2655 = vrot.lane.b32.xlu0 %v1930, 112
  %v2656 = vpop.permute.xlu0 %2655
  %2657 = vrot.lane.b32.xlu0 %v1931, 112
  %v2658 = vpop.permute.xlu0 %2657
  %v2666 = vsel %vm2092, %v2635, 0
  %v2669 = vsel %vm2092, %v2636, 0
  %v2672 = vsel %vm2092, %v2637, 0
  %v2675 = vsel %vm2092, %v2638, 0
  %v2678 = vsel %vm2092, %v2639, 0
  %v2681 = vsel %vm2092, %v2640, 0
  %2683 = vmatprep.subr.bf16.mxu0 0
  %2684 = vmatpush1.bf16.msra.mxu0 %v2648
  %2685 = vmatprep.subr.bf16.mxu0 0
  %2686 = vmatpush1.bf16.msra.mxu0 %v2650
  %2687 = vmatprep.subr.bf16.mxu0 0
  %2688 = vmatpush1.bf16.msra.mxu0 %v2652
  %2689 = vmatprep.subr.bf16.mxu0 0
  %2690 = vmatpush1.bf16.msra.mxu0 %v2654
  %2691 = vmatprep.subr.bf16.mxu0 0
  %2692 = vmatpush1.bf16.msra.mxu0 %v2656
  %2693 = vmatprep.subr.bf16.mxu0 0
  %2694 = vmatpush1.bf16.msra.mxu0 %v2658
  %2695 = vmatprep.subr.bf16.mxu0 0
  %2696 = vmatpush1.bf16.msra.mxu0 0
  %2697 = vmatprep.subr.bf16.mxu0 0
  %2698 = vmatpush1.bf16.msra.mxu0 0
  %2699 = vmatprep.subr.bf16.mxu0 0
  %2700 = vmatpush1.bf16.msra.mxu0 0
  %2701 = vmatprep.subr.bf16.mxu0 0
  %2702 = vmatpush1.bf16.msra.mxu0 0
  %2703 = vmatprep.subr.bf16.mxu0 0
  %2704 = vmatpush1.bf16.msra.mxu0 0
  %2705 = vmatprep.subr.bf16.mxu0 0
  %2706 = vmatpush1.bf16.msra.mxu0 0
  %2707 = vmatprep.subr.bf16.mxu0 0
  %2708 = vmatpush1.bf16.msra.mxu0 0
  %2709 = vmatprep.subr.bf16.mxu0 0
  %2710 = vmatpush1.bf16.msra.mxu0 0
  %2711 = vmatprep.subr.bf16.mxu0 0
  %2712 = vmatpush1.bf16.msra.mxu0 0
  %2713 = vmatprep.subr.bf16.mxu0 0
  %2714 = vmatpush1.bf16.msra.mxu0 0
  %2715 = vmatprep.mubr.bf16.mxu0 0
  %2716 = vmatmul.mubr.bf16.gmra.mrb[0].mxu0 %v2666
  %v2717 = vpop.f32.mrb[0].mxu0
  %v2718 = vadd.f32 0.0, %v2717
  %v2719 = vpop.f32.mrb[0].mxu0
  %v2720 = vpop.f32.mrb[0].mxu0
  %v2721 = vadd.f32 0.0, %v2720
  %v2722 = vpop.f32.mrb[0].mxu0
  %2723 = vmatprep.mubr.bf16.mxu0 0
  %2724 = vmatmul.mubr.bf16.gmra.mrb[0].mxu0 %v2669
  %v2725 = vpop.f32.mrb[0].mxu0
  %v2726 = vadd.f32 0.0, %v2725
  %v2727 = vpop.f32.mrb[0].mxu0
  %v2728 = vpop.f32.mrb[0].mxu0
  %v2729 = vadd.f32 0.0, %v2728
  %v2730 = vpop.f32.mrb[0].mxu0
  %2731 = vmatprep.mubr.bf16.mxu0 0
  %2732 = vmatmul.mubr.bf16.gmra.mrb[0].mxu0 %v2672
  %v2733 = vpop.f32.mrb[0].mxu0
  %v2734 = vadd.f32 0.0, %v2733
  %v2735 = vpop.f32.mrb[0].mxu0
  %v2736 = vpop.f32.mrb[0].mxu0
  %v2737 = vadd.f32 0.0, %v2736
  %v2738 = vpop.f32.mrb[0].mxu0
  %2739 = vmatprep.mubr.bf16.mxu0 0
  %2740 = vmatmul.mubr.bf16.gmra.mrb[0].mxu0 %v2675
  %v2741 = vpop.f32.mrb[0].mxu0
  %v2742 = vadd.f32 0.0, %v2741
  %v2743 = vpop.f32.mrb[0].mxu0
  %v2744 = vpop.f32.mrb[0].mxu0
  %v2745 = vadd.f32 0.0, %v2744
  %v2746 = vpop.f32.mrb[0].mxu0
  %2747 = vmatprep.mubr.bf16.mxu0 0
  %2748 = vmatmul.mubr.bf16.gmra.mrb[0].mxu0 %v2678
  %v2749 = vpop.f32.mrb[0].mxu0
  %v2750 = vadd.f32 0.0, %v2749
  %v2751 = vpop.f32.mrb[0].mxu0
  %v2752 = vpop.f32.mrb[0].mxu0
  %v2753 = vadd.f32 0.0, %v2752
  %v2754 = vpop.f32.mrb[0].mxu0
  %2755 = vmatprep.mubr.bf16.mxu0 0
  %2756 = vmatmul.mubr.bf16.gmra.mrb[0].mxu0 %v2681
  %v2757 = vpop.f32.mrb[0].mxu0
  %v2758 = vadd.f32 0.0, %v2757
  %v2759 = vpop.f32.mrb[0].mxu0
  %v2760 = vpop.f32.mrb[0].mxu0
  %v2761 = vadd.f32 0.0, %v2760
  %v2762 = vpop.f32.mrb[0].mxu0
  %2763 = vdwg.mxu0
  %v2764 = vpack.c.bf16 %v2721, %v2718
  %v2765 = vpack.c.bf16 %v2729, %v2726
  %v2766 = vpack.c.bf16 %v2737, %v2734
  %v2767 = vpack.c.bf16 %v2745, %v2742
  %v2768 = vpack.c.bf16 %v2753, %v2750
  %v2769 = vpack.c.bf16 %v2761, %v2758
  %s2770 = scalar_lea.vmem %s37, 8
  %v2771 = vld [vmem:[%s2770] sm:$0xf]
  %v2772 = vld [vmem:[%s2770 + $0x4] sm:$0xf]
  %v2775 = vunpack.c.l.b16 %v2771
  %v2776 = vunpack.c.l.b16 %v2772
  %v2777 = vpack.c.b16 %v2776, %v2775
  %v2780 = vsel %vm1950, %v2764, 0
  %v2783 = vsel %vm1950, %v2765, 0
  %v2786 = vsel %vm1950, %v2766, 0
  %v2789 = vsel %vm1950, %v2767, 0
  %v2792 = vsel %vm1950, %v2768, 0
  %v2795 = vsel %vm1950, %v2769, 0
  %2797 = vmatprep.subr.bf16.mxu0 0
  %2798 = vmatpush1.bf16.msra.mxu0 %v2777
  %2799 = vmatprep.subr.bf16.mxu0 0
  %2800 = vmatpush1.bf16.msra.mxu0 0
  %2801 = vmatprep.subr.bf16.mxu0 0
  %2802 = vmatpush1.bf16.msra.mxu0 0
  %2803 = vmatprep.subr.bf16.mxu0 0
  %2804 = vmatpush1.bf16.msra.mxu0 0
  %2805 = vmatprep.subr.bf16.mxu0 0
  %2806 = vmatpush1.bf16.msra.mxu0 0
  %2807 = vmatprep.subr.bf16.mxu0 0
  %2808 = vmatpush1.bf16.msra.mxu0 0
  %2809 = vmatprep.subr.bf16.mxu0 0
  %2810 = vmatpush1.bf16.msra.mxu0 0
  %2811 = vmatprep.subr.bf16.mxu0 0
  %2812 = vmatpush1.bf16.msra.mxu0 0
  %2813 = vmatprep.subr.bf16.mxu0 0
  %2814 = vmatpush1.bf16.msra.mxu0 0
  %2815 = vmatprep.subr.bf16.mxu0 0
  %2816 = vmatpush1.bf16.msra.mxu0 0
  %2817 = vmatprep.subr.bf16.mxu0 0
  %2818 = vmatpush1.bf16.msra.mxu0 0
  %2819 = vmatprep.subr.bf16.mxu0 0
  %2820 = vmatpush1.bf16.msra.mxu0 0
  %2821 = vmatprep.subr.bf16.mxu0 0
  %2822 = vmatpush1.bf16.msra.mxu0 0
  %2823 = vmatprep.subr.bf16.mxu0 0
  %2824 = vmatpush1.bf16.msra.mxu0 0
  %2825 = vmatprep.subr.bf16.mxu0 0
  %2826 = vmatpush1.bf16.msra.mxu0 0
  %2827 = vmatprep.subr.bf16.mxu0 0
  %2828 = vmatpush1.bf16.msra.mxu0 0
  %2829 = vmatprep.mubr.bf16.mxu0 0
  %2830 = vmatmul.mubr.bf16.gmra.mrb[0].mxu0 %v2780
  %v2831 = vpop.f32.mrb[0].mxu0
  %v2832 = vadd.f32 0.0, %v2831
  %v2833 = vpop.f32.mrb[0].mxu0
  %v2834 = vpop.f32.mrb[0].mxu0
  %v2835 = vadd.f32 0.0, %v2834
  %v2836 = vpop.f32.mrb[0].mxu0
  %2837 = vmatprep.mubr.bf16.mxu0 0
  %2838 = vmatmul.mubr.bf16.gmra.mrb[0].mxu0 %v2783
  %v2839 = vpop.f32.mrb[0].mxu0
  %v2840 = vadd.f32 0.0, %v2839
  %v2841 = vpop.f32.mrb[0].mxu0
  %v2842 = vpop.f32.mrb[0].mxu0
  %v2843 = vadd.f32 0.0, %v2842
  %v2844 = vpop.f32.mrb[0].mxu0
  %2845 = vmatprep.mubr.bf16.mxu0 0
  %2846 = vmatmul.mubr.bf16.gmra.mrb[0].mxu0 %v2786
  %v2847 = vpop.f32.mrb[0].mxu0
  %v2848 = vadd.f32 0.0, %v2847
  %v2849 = vpop.f32.mrb[0].mxu0
  %v2850 = vpop.f32.mrb[0].mxu0
  %v2851 = vadd.f32 0.0, %v2850
  %v2852 = vpop.f32.mrb[0].mxu0
  %2853 = vmatprep.mubr.bf16.mxu0 0
  %2854 = vmatmul.mubr.bf16.gmra.mrb[0].mxu0 %v2789
  %v2855 = vpop.f32.mrb[0].mxu0
  %v2856 = vadd.f32 0.0, %v2855
  %v2857 = vpop.f32.mrb[0].mxu0
  %v2858 = vpop.f32.mrb[0].mxu0
  %v2859 = vadd.f32 0.0, %v2858
  %v2860 = vpop.f32.mrb[0].mxu0
  %2861 = vmatprep.mubr.bf16.mxu0 0
  %2862 = vmatmul.mubr.bf16.gmra.mrb[0].mxu0 %v2792
  %v2863 = vpop.f32.mrb[0].mxu0
  %v2864 = vadd.f32 0.0, %v2863
  %v2865 = vpop.f32.mrb[0].mxu0
  %v2866 = vpop.f32.mrb[0].mxu0
  %v2867 = vadd.f32 0.0, %v2866
  %v2868 = vpop.f32.mrb[0].mxu0
  %2869 = vmatprep.mubr.bf16.mxu0 0
  %2870 = vmatmul.mubr.bf16.gmra.mrb[0].mxu0 %v2795
  %v2871 = vpop.f32.mrb[0].mxu0
  %v2872 = vadd.f32 0.0, %v2871
  %v2873 = vpop.f32.mrb[0].mxu0
  %v2874 = vpop.f32.mrb[0].mxu0
  %v2875 = vadd.f32 0.0, %v2874
  %v2876 = vpop.f32.mrb[0].mxu0
  %2877 = vdwg.mxu0
  %v2880 = vunpack.c.l.b16 %v2336
  %v2881 = vunpack.c.l.b16 %v2337
  %v2882 = vpack.c.b16 %v2881, %v2880
  %v2885 = vsel %vm1950, %v2330, 0
  %v2888 = vsel %vm1950, %v2331, 0
  %v2891 = vsel %vm1950, %v2332, 0
  %v2894 = vsel %vm1950, %v2333, 0
  %v2897 = vsel %vm1950, %v2334, 0
  %v2900 = vsel %vm1950, %v2335, 0
  %2902 = vmatprep.subr.bf16.mxu0 0
  %2903 = vmatpush1.bf16.msra.mxu0 %v2882
  %2904 = vmatprep.subr.bf16.mxu0 0
  %2905 = vmatpush1.bf16.msra.mxu0 0
  %2906 = vmatprep.subr.bf16.mxu0 0
  %2907 = vmatpush1.bf16.msra.mxu0 0
  %2908 = vmatprep.subr.bf16.mxu0 0
  %2909 = vmatpush1.bf16.msra.mxu0 0
  %2910 = vmatprep.subr.bf16.mxu0 0
  %2911 = vmatpush1.bf16.msra.mxu0 0
  %2912 = vmatprep.subr.bf16.mxu0 0
  %2913 = vmatpush1.bf16.msra.mxu0 0
  %2914 = vmatprep.subr.bf16.mxu0 0
  %2915 = vmatpush1.bf16.msra.mxu0 0
  %2916 = vmatprep.subr.bf16.mxu0 0
  %2917 = vmatpush1.bf16.msra.mxu0 0
  %2918 = vmatprep.subr.bf16.mxu0 0
  %2919 = vmatpush1.bf16.msra.mxu0 0
  %2920 = vmatprep.subr.bf16.mxu0 0
  %2921 = vmatpush1.bf16.msra.mxu0 0
  %2922 = vmatprep.subr.bf16.mxu0 0
  %2923 = vmatpush1.bf16.msra.mxu0 0
  %2924 = vmatprep.subr.bf16.mxu0 0
  %2925 = vmatpush1.bf16.msra.mxu0 0
  %2926 = vmatprep.subr.bf16.mxu0 0
  %2927 = vmatpush1.bf16.msra.mxu0 0
  %2928 = vmatprep.subr.bf16.mxu0 0
  %2929 = vmatpush1.bf16.msra.mxu0 0
  %2930 = vmatprep.subr.bf16.mxu0 0
  %2931 = vmatpush1.bf16.msra.mxu0 0
  %2932 = vmatprep.subr.bf16.mxu0 0
  %2933 = vmatpush1.bf16.msra.mxu0 0
  %2934 = vmatprep.mubr.bf16.mxu0 0
  %2935 = vmatmul.mubr.bf16.gmra.mrb[0].mxu0 %v2885
  %v2936 = vpop.f32.mrb[0].mxu0
  %v2937 = vadd.f32 %v2832, %v2936
  %v2938 = vpop.f32.mrb[0].mxu0
  %v2939 = vpop.f32.mrb[0].mxu0
  %v2940 = vadd.f32 %v2835, %v2939
  %v2941 = vpop.f32.mrb[0].mxu0
  %2942 = vmatprep.mubr.bf16.mxu0 0
  %2943 = vmatmul.mubr.bf16.gmra.mrb[0].mxu0 %v2888
  %v2944 = vpop.f32.mrb[0].mxu0
  %v2945 = vadd.f32 %v2840, %v2944
  %v2946 = vpop.f32.mrb[0].mxu0
  %v2947 = vpop.f32.mrb[0].mxu0
  %v2948 = vadd.f32 %v2843, %v2947
  %v2949 = vpop.f32.mrb[0].mxu0
  %2950 = vmatprep.mubr.bf16.mxu0 0
  %2951 = vmatmul.mubr.bf16.gmra.mrb[0].mxu0 %v2891
  %v2952 = vpop.f32.mrb[0].mxu0
  %v2953 = vadd.f32 %v2848, %v2952
  %v2954 = vpop.f32.mrb[0].mxu0
  %v2955 = vpop.f32.mrb[0].mxu0
  %v2956 = vadd.f32 %v2851, %v2955
  %v2957 = vpop.f32.mrb[0].mxu0
  %2958 = vmatprep.mubr.bf16.mxu0 0
  %2959 = vmatmul.mubr.bf16.gmra.mrb[0].mxu0 %v2894
  %v2960 = vpop.f32.mrb[0].mxu0
  %v2961 = vadd.f32 %v2856, %v2960
  %v2962 = vpop.f32.mrb[0].mxu0
  %v2963 = vpop.f32.mrb[0].mxu0
  %v2964 = vadd.f32 %v2859, %v2963
  %v2965 = vpop.f32.mrb[0].mxu0
  %2966 = vmatprep.mubr.bf16.mxu0 0
  %2967 = vmatmul.mubr.bf16.gmra.mrb[0].mxu0 %v2897
  %v2968 = vpop.f32.mrb[0].mxu0
  %v2969 = vadd.f32 %v2864, %v2968
  %v2970 = vpop.f32.mrb[0].mxu0
  %v2971 = vpop.f32.mrb[0].mxu0
  %v2972 = vadd.f32 %v2867, %v2971
  %v2973 = vpop.f32.mrb[0].mxu0
  %2974 = vmatprep.mubr.bf16.mxu0 0
  %2975 = vmatmul.mubr.bf16.gmra.mrb[0].mxu0 %v2900
  %v2976 = vpop.f32.mrb[0].mxu0
  %v2977 = vadd.f32 %v2872, %v2976
  %v2978 = vpop.f32.mrb[0].mxu0
  %v2979 = vpop.f32.mrb[0].mxu0
  %v2980 = vadd.f32 %v2875, %v2979
  %v2981 = vpop.f32.mrb[0].mxu0
  %2982 = vdwg.mxu0
  %2983 = vrot.lane.b32.xlu0 %v1920, 96
  %v2984 = vpop.permute.xlu0 %2983
  %2985 = vrot.lane.b32.xlu0 %v1921, 96
  %v2986 = vpop.permute.xlu0 %2985
  %2987 = vrot.lane.b32.xlu0 %v1922, 96
  %v2988 = vpop.permute.xlu0 %2987
  %2989 = vrot.lane.b32.xlu0 %v1923, 96
  %v2990 = vpop.permute.xlu0 %2989
  %2991 = vrot.lane.b32.xlu0 %v1924, 96
  %v2992 = vpop.permute.xlu0 %2991
  %2993 = vrot.lane.b32.xlu0 %v1925, 96
  %v2994 = vpop.permute.xlu0 %2993
  %2995 = vrot.lane.b32.xlu0 %v1920, 32
  %v2996 = vpop.permute.xlu0 %2995
  %2997 = vrot.lane.b32.xlu0 %v1921, 32
  %v2998 = vpop.permute.xlu0 %2997
  %2999 = vrot.lane.b32.xlu0 %v1922, 32
  %v3000 = vpop.permute.xlu0 %2999
  %3001 = vrot.lane.b32.xlu0 %v1923, 32
  %v3002 = vpop.permute.xlu0 %3001
  %3003 = vrot.lane.b32.xlu0 %v1924, 32
  %v3004 = vpop.permute.xlu0 %3003
  %3005 = vrot.lane.b32.xlu0 %v1925, 32
  %v3006 = vpop.permute.xlu0 %3005
  %v3008 = vsel %vm1950, %v2984, 0
  %v3011 = vsel %vm1950, %v2986, 0
  %v3014 = vsel %vm1950, %v2988, 0
  %v3017 = vsel %vm1950, %v2990, 0
  %v3020 = vsel %vm1950, %v2992, 0
  %v3023 = vsel %vm1950, %v2994, 0
  %v3026 = vsel %vm1950, %v2996, 0
  %v3029 = vsel %vm1950, %v2998, 0
  %v3032 = vsel %vm1950, %v3000, 0
  %v3035 = vsel %vm1950, %v3002, 0
  %v3038 = vsel %vm1950, %v3004, 0
  %v3041 = vsel %vm1950, %v3006, 0
  %3043 = vmatprep.subr.bf16.mxu0 0
  %3044 = vmatpush1.bf16.xpose.msra.mxu0 %v3026
  %3045 = vmatprep.subr.bf16.mxu0 0
  %3046 = vmatpush1.bf16.xpose.msra.mxu0 %v3029
  %3047 = vmatprep.subr.bf16.mxu0 0
  %3048 = vmatpush1.bf16.xpose.msra.mxu0 %v3032
  %3049 = vmatprep.subr.bf16.mxu0 0
  %3050 = vmatpush1.bf16.xpose.msra.mxu0 %v3035
  %3051 = vmatprep.subr.bf16.mxu0 0
  %3052 = vmatpush1.bf16.xpose.msra.mxu0 %v3038
  %3053 = vmatprep.subr.bf16.mxu0 0
  %3054 = vmatpush1.bf16.xpose.msra.mxu0 %v3041
  %3055 = vmatprep.subr.bf16.mxu0 0
  %3056 = vmatpush1.bf16.xpose.msra.mxu0 0
  %3057 = vmatprep.subr.bf16.mxu0 0
  %3058 = vmatpush1.bf16.xpose.msra.mxu0 0
  %3059 = vmatprep.subr.bf16.mxu0 0
  %3060 = vmatpush1.bf16.xpose.msra.mxu0 0
  %3061 = vmatprep.subr.bf16.mxu0 0
  %3062 = vmatpush1.bf16.xpose.msra.mxu0 0
  %3063 = vmatprep.subr.bf16.mxu0 0
  %3064 = vmatpush1.bf16.xpose.msra.mxu0 0
  %3065 = vmatprep.subr.bf16.mxu0 0
  %3066 = vmatpush1.bf16.xpose.msra.mxu0 0
  %3067 = vmatprep.subr.bf16.mxu0 0
  %3068 = vmatpush1.bf16.xpose.msra.mxu0 0
  %3069 = vmatprep.subr.bf16.mxu0 0
  %3070 = vmatpush1.bf16.xpose.msra.mxu0 0
  %3071 = vmatprep.subr.bf16.mxu0 0
  %3072 = vmatpush1.bf16.xpose.msra.mxu0 0
  %3073 = vmatprep.subr.bf16.mxu0 0
  %3074 = vmatpush1.bf16.xpose.msra.mxu0 0
  %3075 = vmatprep.mubr.bf16.mxu0 0
  %3076 = vmatmul.mubr.bf16.gmra.mrb[0].mxu0 %v3008
  %v3077 = vpop.f32.mrb[0].mxu0
  %v3078 = vadd.f32 0.0, %v3077
  %v3079 = vpop.f32.mrb[0].mxu0
  %v3080 = vpop.f32.mrb[0].mxu0
  %v3081 = vadd.f32 0.0, %v3080
  %v3082 = vpop.f32.mrb[0].mxu0
  %3083 = vmatprep.mubr.bf16.mxu0 0
  %3084 = vmatmul.mubr.bf16.gmra.mrb[0].mxu0 %v3011
  %v3085 = vpop.f32.mrb[0].mxu0
  %v3086 = vadd.f32 0.0, %v3085
  %v3087 = vpop.f32.mrb[0].mxu0
  %v3088 = vpop.f32.mrb[0].mxu0
  %v3089 = vadd.f32 0.0, %v3088
  %v3090 = vpop.f32.mrb[0].mxu0
  %3091 = vmatprep.mubr.bf16.mxu0 0
  %3092 = vmatmul.mubr.bf16.gmra.mrb[0].mxu0 %v3014
  %v3093 = vpop.f32.mrb[0].mxu0
  %v3094 = vadd.f32 0.0, %v3093
  %v3095 = vpop.f32.mrb[0].mxu0
  %v3096 = vpop.f32.mrb[0].mxu0
  %v3097 = vadd.f32 0.0, %v3096
  %v3098 = vpop.f32.mrb[0].mxu0
  %3099 = vmatprep.mubr.bf16.mxu0 0
  %3100 = vmatmul.mubr.bf16.gmra.mrb[0].mxu0 %v3017
  %v3101 = vpop.f32.mrb[0].mxu0
  %v3102 = vadd.f32 0.0, %v3101
  %v3103 = vpop.f32.mrb[0].mxu0
  %v3104 = vpop.f32.mrb[0].mxu0
  %v3105 = vadd.f32 0.0, %v3104
  %v3106 = vpop.f32.mrb[0].mxu0
  %3107 = vmatprep.mubr.bf16.mxu0 0
  %3108 = vmatmul.mubr.bf16.gmra.mrb[0].mxu0 %v3020
  %v3109 = vpop.f32.mrb[0].mxu0
  %v3110 = vadd.f32 0.0, %v3109
  %v3111 = vpop.f32.mrb[0].mxu0
  %v3112 = vpop.f32.mrb[0].mxu0
  %v3113 = vadd.f32 0.0, %v3112
  %v3114 = vpop.f32.mrb[0].mxu0
  %3115 = vmatprep.mubr.bf16.mxu0 0
  %3116 = vmatmul.mubr.bf16.gmra.mrb[0].mxu0 %v3023
  %v3117 = vpop.f32.mrb[0].mxu0
  %v3118 = vadd.f32 0.0, %v3117
  %v3119 = vpop.f32.mrb[0].mxu0
  %v3120 = vpop.f32.mrb[0].mxu0
  %v3121 = vadd.f32 0.0, %v3120
  %v3122 = vpop.f32.mrb[0].mxu0
  %3123 = vdwg.mxu0
  %v3124 = vmul.f32 %v3078, 0.25
  %v3125 = vmul.f32 %v3081, 0.25
  %v3126 = vmul.f32 %v3086, 0.25
  %v3127 = vmul.f32 %v3089, 0.25
  %v3128 = vmul.f32 %v3094, 0.25
  %v3129 = vmul.f32 %v3097, 0.25
  %v3130 = vmul.f32 %v3102, 0.25
  %v3131 = vmul.f32 %v3105, 0.25
  %v3132 = vmul.f32 %v3110, 0.25
  %v3133 = vmul.f32 %v3113, 0.25
  %v3134 = vmul.f32 %v3118, 0.25
  %v3135 = vmul.f32 %v3121, 0.25
  %v3136 = vadd.f32 %v3124, %v1536
  %v3137 = vadd.f32 %v3125, %v1537
  %v3138 = vadd.f32 %v3126, %v1538
  %v3139 = vadd.f32 %v3127, %v1539
  %v3140 = vadd.f32 %v3128, %v1540
  %v3141 = vadd.f32 %v3129, %v1541
  %v3142 = vadd.f32 %v3130, %v1542
  %v3143 = vadd.f32 %v3131, %v1543
  %v3144 = vadd.f32 %v3132, %v1544
  %v3145 = vadd.f32 %v3133, %v1545
  %v3146 = vadd.f32 %v3134, %v1546
  %v3147 = vadd.f32 %v3135, %v1547
  %v3148 = vsel %vm2092, %v3136, -inf
  %3149 = vmax.xlane.f32.xlu0 %v3148
  %v3150 = vpop.xlane.xlu0 %3149
  %v3151 = vsel %vm2092, %v3137, -inf
  %3152 = vmax.xlane.f32.xlu0 %v3151
  %v3153 = vpop.xlane.xlu0 %3152
  %v3154 = vsel %vm2092, %v3138, -inf
  %3155 = vmax.xlane.f32.xlu0 %v3154
  %v3156 = vpop.xlane.xlu0 %3155
  %v3157 = vsel %vm2092, %v3139, -inf
  %3158 = vmax.xlane.f32.xlu0 %v3157
  %v3159 = vpop.xlane.xlu0 %3158
  %v3160 = vsel %vm2092, %v3140, -inf
  %3161 = vmax.xlane.f32.xlu0 %v3160
  %v3162 = vpop.xlane.xlu0 %3161
  %v3163 = vsel %vm2092, %v3141, -inf
  %3164 = vmax.xlane.f32.xlu0 %v3163
  %v3165 = vpop.xlane.xlu0 %3164
  %v3166 = vsel %vm2092, %v3142, -inf
  %3167 = vmax.xlane.f32.xlu0 %v3166
  %v3168 = vpop.xlane.xlu0 %3167
  %v3169 = vsel %vm2092, %v3143, -inf
  %3170 = vmax.xlane.f32.xlu0 %v3169
  %v3171 = vpop.xlane.xlu0 %3170
  %v3172 = vsel %vm2092, %v3144, -inf
  %3173 = vmax.xlane.f32.xlu0 %v3172
  %v3174 = vpop.xlane.xlu0 %3173
  %v3175 = vsel %vm2092, %v3145, -inf
  %3176 = vmax.xlane.f32.xlu0 %v3175
  %v3177 = vpop.xlane.xlu0 %3176
  %v3178 = vsel %vm2092, %v3146, -inf
  %3179 = vmax.xlane.f32.xlu0 %v3178
  %v3180 = vpop.xlane.xlu0 %3179
  %v3181 = vsel %vm2092, %v3147, -inf
  %3182 = vmax.xlane.f32.xlu0 %v3181
  %v3183 = vpop.xlane.xlu0 %3182
  %v3184 = vsub.f32 %v3136, %v3150
  %v3185 = vsub.f32 %v3137, %v3153
  %v3186 = vsub.f32 %v3138, %v3156
  %v3187 = vsub.f32 %v3139, %v3159
  %v3188 = vsub.f32 %v3140, %v3162
  %v3189 = vsub.f32 %v3141, %v3165
  %v3190 = vsub.f32 %v3142, %v3168
  %v3191 = vsub.f32 %v3143, %v3171
  %v3192 = vsub.f32 %v3144, %v3174
  %v3193 = vsub.f32 %v3145, %v3177
  %v3194 = vsub.f32 %v3146, %v3180
  %v3195 = vsub.f32 %v3147, %v3183
  %v3196 = vmul.f32 %v3184, 1.442695
  %v3197 = vpow.pop %v3196
  %v3198 = vmul.f32 %v3185, 1.442695
  %v3199 = vpow.pop %v3198
  %v3200 = vmul.f32 %v3186, 1.442695
  %v3201 = vpow.pop %v3200
  %v3202 = vmul.f32 %v3187, 1.442695
  %v3203 = vpow.pop %v3202
  %v3204 = vmul.f32 %v3188, 1.442695
  %v3205 = vpow.pop %v3204
  %v3206 = vmul.f32 %v3189, 1.442695
  %v3207 = vpow.pop %v3206
  %v3208 = vmul.f32 %v3190, 1.442695
  %v3209 = vpow.pop %v3208
  %v3210 = vmul.f32 %v3191, 1.442695
  %v3211 = vpow.pop %v3210
  %v3212 = vmul.f32 %v3192, 1.442695
  %v3213 = vpow.pop %v3212
  %v3214 = vmul.f32 %v3193, 1.442695
  %v3215 = vpow.pop %v3214
  %v3216 = vmul.f32 %v3194, 1.442695
  %v3217 = vpow.pop %v3216
  %v3218 = vmul.f32 %v3195, 1.442695
  %v3219 = vpow.pop %v3218
  %v3220 = vsel %vm2092, %v3197, 0.0
  %3221 = vadd.xlane.f32.xlu0 %v3220
  %v3222 = vpop.xlane.xlu0 %3221
  %v3223 = vsel %vm2092, %v3199, 0.0
  %3224 = vadd.xlane.f32.xlu0 %v3223
  %v3225 = vpop.xlane.xlu0 %3224
  %v3226 = vsel %vm2092, %v3201, 0.0
  %3227 = vadd.xlane.f32.xlu0 %v3226
  %v3228 = vpop.xlane.xlu0 %3227
  %v3229 = vsel %vm2092, %v3203, 0.0
  %3230 = vadd.xlane.f32.xlu0 %v3229
  %v3231 = vpop.xlane.xlu0 %3230
  %v3232 = vsel %vm2092, %v3205, 0.0
  %3233 = vadd.xlane.f32.xlu0 %v3232
  %v3234 = vpop.xlane.xlu0 %3233
  %v3235 = vsel %vm2092, %v3207, 0.0
  %3236 = vadd.xlane.f32.xlu0 %v3235
  %v3237 = vpop.xlane.xlu0 %3236
  %v3238 = vsel %vm2092, %v3209, 0.0
  %3239 = vadd.xlane.f32.xlu0 %v3238
  %v3240 = vpop.xlane.xlu0 %3239
  %v3241 = vsel %vm2092, %v3211, 0.0
  %3242 = vadd.xlane.f32.xlu0 %v3241
  %v3243 = vpop.xlane.xlu0 %3242
  %v3244 = vsel %vm2092, %v3213, 0.0
  %3245 = vadd.xlane.f32.xlu0 %v3244
  %v3246 = vpop.xlane.xlu0 %3245
  %v3247 = vsel %vm2092, %v3215, 0.0
  %3248 = vadd.xlane.f32.xlu0 %v3247
  %v3249 = vpop.xlane.xlu0 %3248
  %v3250 = vsel %vm2092, %v3217, 0.0
  %3251 = vadd.xlane.f32.xlu0 %v3250
  %v3252 = vpop.xlane.xlu0 %3251
  %v3253 = vsel %vm2092, %v3219, 0.0
  %3254 = vadd.xlane.f32.xlu0 %v3253
  %v3255 = vpop.xlane.xlu0 %3254
  %v3256 = vrcp.pop %v3222
  %v3257 = vrcp.pop %v3225
  %v3258 = vrcp.pop %v3228
  %v3259 = vrcp.pop %v3231
  %v3260 = vrcp.pop %v3234
  %v3261 = vrcp.pop %v3237
  %v3262 = vrcp.pop %v3240
  %v3263 = vrcp.pop %v3243
  %v3264 = vrcp.pop %v3246
  %v3265 = vrcp.pop %v3249
  %v3266 = vrcp.pop %v3252
  %v3267 = vrcp.pop %v3255
  %v3268 = vmul.f32 %v3197, %v3256
  %v3269 = vmul.f32 %v3199, %v3257
  %v3270 = vmul.f32 %v3201, %v3258
  %v3271 = vmul.f32 %v3203, %v3259
  %v3272 = vmul.f32 %v3205, %v3260
  %v3273 = vmul.f32 %v3207, %v3261
  %v3274 = vmul.f32 %v3209, %v3262
  %v3275 = vmul.f32 %v3211, %v3263
  %v3276 = vmul.f32 %v3213, %v3264
  %v3277 = vmul.f32 %v3215, %v3265
  %v3278 = vmul.f32 %v3217, %v3266
  %v3279 = vmul.f32 %v3219, %v3267
  %v3280 = vpack.c.bf16 %v3269, %v3268
  %v3281 = vpack.c.bf16 %v3271, %v3270
  %v3282 = vpack.c.bf16 %v3273, %v3272
  %v3283 = vpack.c.bf16 %v3275, %v3274
  %v3284 = vpack.c.bf16 %v3277, %v3276
  %v3285 = vpack.c.bf16 %v3279, %v3278
  %3286 = vrot.lane.b32.xlu0 %v1926, 96
  %v3287 = vpop.permute.xlu0 %3286
  %3288 = vrot.lane.b32.xlu0 %v1927, 96
  %v3289 = vpop.permute.xlu0 %3288
  %3290 = vrot.lane.b32.xlu0 %v1928, 96
  %v3291 = vpop.permute.xlu0 %3290
  %3292 = vrot.lane.b32.xlu0 %v1929, 96
  %v3293 = vpop.permute.xlu0 %3292
  %3294 = vrot.lane.b32.xlu0 %v1930, 96
  %v3295 = vpop.permute.xlu0 %3294
  %3296 = vrot.lane.b32.xlu0 %v1931, 96
  %v3297 = vpop.permute.xlu0 %3296
  %v3305 = vsel %vm2092, %v3280, 0
  %v3308 = vsel %vm2092, %v3281, 0
  %v3311 = vsel %vm2092, %v3282, 0
  %v3314 = vsel %vm2092, %v3283, 0
  %v3317 = vsel %vm2092, %v3284, 0
  %v3320 = vsel %vm2092, %v3285, 0
  %3322 = vmatprep.subr.bf16.mxu0 0
  %3323 = vmatpush1.bf16.msra.mxu0 %v3287
  %3324 = vmatprep.subr.bf16.mxu0 0
  %3325 = vmatpush1.bf16.msra.mxu0 %v3289
  %3326 = vmatprep.subr.bf16.mxu0 0
  %3327 = vmatpush1.bf16.msra.mxu0 %v3291
  %3328 = vmatprep.subr.bf16.mxu0 0
  %3329 = vmatpush1.bf16.msra.mxu0 %v3293
  %3330 = vmatprep.subr.bf16.mxu0 0
  %3331 = vmatpush1.bf16.msra.mxu0 %v3295
  %3332 = vmatprep.subr.bf16.mxu0 0
  %3333 = vmatpush1.bf16.msra.mxu0 %v3297
  %3334 = vmatprep.subr.bf16.mxu0 0
  %3335 = vmatpush1.bf16.msra.mxu0 0
  %3336 = vmatprep.subr.bf16.mxu0 0
  %3337 = vmatpush1.bf16.msra.mxu0 0
  %3338 = vmatprep.subr.bf16.mxu0 0
  %3339 = vmatpush1.bf16.msra.mxu0 0
  %3340 = vmatprep.subr.bf16.mxu0 0
  %3341 = vmatpush1.bf16.msra.mxu0 0
  %3342 = vmatprep.subr.bf16.mxu0 0
  %3343 = vmatpush1.bf16.msra.mxu0 0
  %3344 = vmatprep.subr.bf16.mxu0 0
  %3345 = vmatpush1.bf16.msra.mxu0 0
  %3346 = vmatprep.subr.bf16.mxu0 0
  %3347 = vmatpush1.bf16.msra.mxu0 0
  %3348 = vmatprep.subr.bf16.mxu0 0
  %3349 = vmatpush1.bf16.msra.mxu0 0
  %3350 = vmatprep.subr.bf16.mxu0 0
  %3351 = vmatpush1.bf16.msra.mxu0 0
  %3352 = vmatprep.subr.bf16.mxu0 0
  %3353 = vmatpush1.bf16.msra.mxu0 0
  %3354 = vmatprep.mubr.bf16.mxu0 0
  %3355 = vmatmul.mubr.bf16.gmra.mrb[0].mxu0 %v3305
  %v3356 = vpop.f32.mrb[0].mxu0
  %v3357 = vadd.f32 0.0, %v3356
  %v3358 = vpop.f32.mrb[0].mxu0
  %v3359 = vpop.f32.mrb[0].mxu0
  %v3360 = vadd.f32 0.0, %v3359
  %v3361 = vpop.f32.mrb[0].mxu0
  %3362 = vmatprep.mubr.bf16.mxu0 0
  %3363 = vmatmul.mubr.bf16.gmra.mrb[0].mxu0 %v3308
  %v3364 = vpop.f32.mrb[0].mxu0
  %v3365 = vadd.f32 0.0, %v3364
  %v3366 = vpop.f32.mrb[0].mxu0
  %v3367 = vpop.f32.mrb[0].mxu0
  %v3368 = vadd.f32 0.0, %v3367
  %v3369 = vpop.f32.mrb[0].mxu0
  %3370 = vmatprep.mubr.bf16.mxu0 0
  %3371 = vmatmul.mubr.bf16.gmra.mrb[0].mxu0 %v3311
  %v3372 = vpop.f32.mrb[0].mxu0
  %v3373 = vadd.f32 0.0, %v3372
  %v3374 = vpop.f32.mrb[0].mxu0
  %v3375 = vpop.f32.mrb[0].mxu0
  %v3376 = vadd.f32 0.0, %v3375
  %v3377 = vpop.f32.mrb[0].mxu0
  %3378 = vmatprep.mubr.bf16.mxu0 0
  %3379 = vmatmul.mubr.bf16.gmra.mrb[0].mxu0 %v3314
  %v3380 = vpop.f32.mrb[0].mxu0
  %v3381 = vadd.f32 0.0, %v3380
  %v3382 = vpop.f32.mrb[0].mxu0
  %v3383 = vpop.f32.mrb[0].mxu0
  %v3384 = vadd.f32 0.0, %v3383
  %v3385 = vpop.f32.mrb[0].mxu0
  %3386 = vmatprep.mubr.bf16.mxu0 0
  %3387 = vmatmul.mubr.bf16.gmra.mrb[0].mxu0 %v3317
  %v3388 = vpop.f32.mrb[0].mxu0
  %v3389 = vadd.f32 0.0, %v3388
  %v3390 = vpop.f32.mrb[0].mxu0
  %v3391 = vpop.f32.mrb[0].mxu0
  %v3392 = vadd.f32 0.0, %v3391
  %v3393 = vpop.f32.mrb[0].mxu0
  %3394 = vmatprep.mubr.bf16.mxu0 0
  %3395 = vmatmul.mubr.bf16.gmra.mrb[0].mxu0 %v3320
  %v3396 = vpop.f32.mrb[0].mxu0
  %v3397 = vadd.f32 0.0, %v3396
  %v3398 = vpop.f32.mrb[0].mxu0
  %v3399 = vpop.f32.mrb[0].mxu0
  %v3400 = vadd.f32 0.0, %v3399
  %v3401 = vpop.f32.mrb[0].mxu0
  %3402 = vdwg.mxu0
  %v3403 = vpack.c.bf16 %v3360, %v3357
  %v3404 = vpack.c.bf16 %v3368, %v3365
  %v3405 = vpack.c.bf16 %v3376, %v3373
  %v3406 = vpack.c.bf16 %v3384, %v3381
  %v3407 = vpack.c.bf16 %v3392, %v3389
  %v3408 = vpack.c.bf16 %v3400, %v3397
  %s3409 = scalar_lea.vmem %s37, 16
  %v3410 = vld [vmem:[%s3409] sm:$0xf]
  %v3411 = vld [vmem:[%s3409 + $0x4] sm:$0xf]
  %v3414 = vunpack.c.l.b16 %v3410
  %v3415 = vunpack.c.l.b16 %v3411
  %v3416 = vpack.c.b16 %v3415, %v3414
  %v3419 = vsel %vm1950, %v3403, 0
  %v3422 = vsel %vm1950, %v3404, 0
  %v3425 = vsel %vm1950, %v3405, 0
  %v3428 = vsel %vm1950, %v3406, 0
  %v3431 = vsel %vm1950, %v3407, 0
  %v3434 = vsel %vm1950, %v3408, 0
  %3436 = vmatprep.subr.bf16.mxu0 0
  %3437 = vmatpush1.bf16.msra.mxu0 %v3416
  %3438 = vmatprep.subr.bf16.mxu0 0
  %3439 = vmatpush1.bf16.msra.mxu0 0
  %3440 = vmatprep.subr.bf16.mxu0 0
  %3441 = vmatpush1.bf16.msra.mxu0 0
  %3442 = vmatprep.subr.bf16.mxu0 0
  %3443 = vmatpush1.bf16.msra.mxu0 0
  %3444 = vmatprep.subr.bf16.mxu0 0
  %3445 = vmatpush1.bf16.msra.mxu0 0
  %3446 = vmatprep.subr.bf16.mxu0 0
  %3447 = vmatpush1.bf16.msra.mxu0 0
  %3448 = vmatprep.subr.bf16.mxu0 0
  %3449 = vmatpush1.bf16.msra.mxu0 0
  %3450 = vmatprep.subr.bf16.mxu0 0
  %3451 = vmatpush1.bf16.msra.mxu0 0
  %3452 = vmatprep.subr.bf16.mxu0 0
  %3453 = vmatpush1.bf16.msra.mxu0 0
  %3454 = vmatprep.subr.bf16.mxu0 0
  %3455 = vmatpush1.bf16.msra.mxu0 0
  %3456 = vmatprep.subr.bf16.mxu0 0
  %3457 = vmatpush1.bf16.msra.mxu0 0
  %3458 = vmatprep.subr.bf16.mxu0 0
  %3459 = vmatpush1.bf16.msra.mxu0 0
  %3460 = vmatprep.subr.bf16.mxu0 0
  %3461 = vmatpush1.bf16.msra.mxu0 0
  %3462 = vmatprep.subr.bf16.mxu0 0
  %3463 = vmatpush1.bf16.msra.mxu0 0
  %3464 = vmatprep.subr.bf16.mxu0 0
  %3465 = vmatpush1.bf16.msra.mxu0 0
  %3466 = vmatprep.subr.bf16.mxu0 0
  %3467 = vmatpush1.bf16.msra.mxu0 0
  %3468 = vmatprep.mubr.bf16.mxu0 0
  %3469 = vmatmul.mubr.bf16.gmra.mrb[0].mxu0 %v3419
  %v3470 = vpop.f32.mrb[0].mxu0
  %v3471 = vadd.f32 0.0, %v3470
  %v3472 = vpop.f32.mrb[0].mxu0
  %v3473 = vpop.f32.mrb[0].mxu0
  %v3474 = vadd.f32 0.0, %v3473
  %v3475 = vpop.f32.mrb[0].mxu0
  %3476 = vmatprep.mubr.bf16.mxu0 0
  %3477 = vmatmul.mubr.bf16.gmra.mrb[0].mxu0 %v3422
  %v3478 = vpop.f32.mrb[0].mxu0
  %v3479 = vadd.f32 0.0, %v3478
  %v3480 = vpop.f32.mrb[0].mxu0
  %v3481 = vpop.f32.mrb[0].mxu0
  %v3482 = vadd.f32 0.0, %v3481
  %v3483 = vpop.f32.mrb[0].mxu0
  %3484 = vmatprep.mubr.bf16.mxu0 0
  %3485 = vmatmul.mubr.bf16.gmra.mrb[0].mxu0 %v3425
  %v3486 = vpop.f32.mrb[0].mxu0
  %v3487 = vadd.f32 0.0, %v3486
  %v3488 = vpop.f32.mrb[0].mxu0
  %v3489 = vpop.f32.mrb[0].mxu0
  %v3490 = vadd.f32 0.0, %v3489
  %v3491 = vpop.f32.mrb[0].mxu0
  %3492 = vmatprep.mubr.bf16.mxu0 0
  %3493 = vmatmul.mubr.bf16.gmra.mrb[0].mxu0 %v3428
  %v3494 = vpop.f32.mrb[0].mxu0
  %v3495 = vadd.f32 0.0, %v3494
  %v3496 = vpop.f32.mrb[0].mxu0
  %v3497 = vpop.f32.mrb[0].mxu0
  %v3498 = vadd.f32 0.0, %v3497
  %v3499 = vpop.f32.mrb[0].mxu0
  %3500 = vmatprep.mubr.bf16.mxu0 0
  %3501 = vmatmul.mubr.bf16.gmra.mrb[0].mxu0 %v3431
  %v3502 = vpop.f32.mrb[0].mxu0
  %v3503 = vadd.f32 0.0, %v3502
  %v3504 = vpop.f32.mrb[0].mxu0
  %v3505 = vpop.f32.mrb[0].mxu0
  %v3506 = vadd.f32 0.0, %v3505
  %v3507 = vpop.f32.mrb[0].mxu0
  %3508 = vmatprep.mubr.bf16.mxu0 0
  %3509 = vmatmul.mubr.bf16.gmra.mrb[0].mxu0 %v3434
  %v3510 = vpop.f32.mrb[0].mxu0
  %v3511 = vadd.f32 0.0, %v3510
  %v3512 = vpop.f32.mrb[0].mxu0
  %v3513 = vpop.f32.mrb[0].mxu0
  %v3514 = vadd.f32 0.0, %v3513
  %v3515 = vpop.f32.mrb[0].mxu0
  %3516 = vdwg.mxu0
  %v3517 = vadd.f32 %v2937, %v3471
  %v3518 = vadd.f32 %v2940, %v3474
  %v3519 = vadd.f32 %v2945, %v3479
  %v3520 = vadd.f32 %v2948, %v3482
  %v3521 = vadd.f32 %v2953, %v3487
  %v3522 = vadd.f32 %v2956, %v3490
  %v3523 = vadd.f32 %v2961, %v3495
  %v3524 = vadd.f32 %v2964, %v3498
  %v3525 = vadd.f32 %v2969, %v3503
  %v3526 = vadd.f32 %v2972, %v3506
  %v3527 = vadd.f32 %v2977, %v3511
  %v3528 = vadd.f32 %v2980, %v3514
  %3529 = vrot.lane.b32.xlu0 %v1920, 80
  %v3530 = vpop.permute.xlu0 %3529
  %3531 = vrot.lane.b32.xlu0 %v1921, 80
  %v3532 = vpop.permute.xlu0 %3531
  %3533 = vrot.lane.b32.xlu0 %v1922, 80
  %v3534 = vpop.permute.xlu0 %3533
  %3535 = vrot.lane.b32.xlu0 %v1923, 80
  %v3536 = vpop.permute.xlu0 %3535
  %3537 = vrot.lane.b32.xlu0 %v1924, 80
  %v3538 = vpop.permute.xlu0 %3537
  %3539 = vrot.lane.b32.xlu0 %v1925, 80
  %v3540 = vpop.permute.xlu0 %3539
  %3541 = vrot.lane.b32.xlu0 %v1920, 16
  %v3542 = vpop.permute.xlu0 %3541
  %3543 = vrot.lane.b32.xlu0 %v1921, 16
  %v3544 = vpop.permute.xlu0 %3543
  %3545 = vrot.lane.b32.xlu0 %v1922, 16
  %v3546 = vpop.permute.xlu0 %3545
  %3547 = vrot.lane.b32.xlu0 %v1923, 16
  %v3548 = vpop.permute.xlu0 %3547
  %3549 = vrot.lane.b32.xlu0 %v1924, 16
  %v3550 = vpop.permute.xlu0 %3549
  %3551 = vrot.lane.b32.xlu0 %v1925, 16
  %v3552 = vpop.permute.xlu0 %3551
  %v3554 = vsel %vm1950, %v3530, 0
  %v3557 = vsel %vm1950, %v3532, 0
  %v3560 = vsel %vm1950, %v3534, 0
  %v3563 = vsel %vm1950, %v3536, 0
  %v3566 = vsel %vm1950, %v3538, 0
  %v3569 = vsel %vm1950, %v3540, 0
  %v3572 = vsel %vm1950, %v3542, 0
  %v3575 = vsel %vm1950, %v3544, 0
  %v3578 = vsel %vm1950, %v3546, 0
  %v3581 = vsel %vm1950, %v3548, 0
  %v3584 = vsel %vm1950, %v3550, 0
  %v3587 = vsel %vm1950, %v3552, 0
  %3589 = vmatprep.subr.bf16.mxu0 0
  %3590 = vmatpush1.bf16.xpose.msra.mxu0 %v3572
  %3591 = vmatprep.subr.bf16.mxu0 0
  %3592 = vmatpush1.bf16.xpose.msra.mxu0 %v3575
  %3593 = vmatprep.subr.bf16.mxu0 0
  %3594 = vmatpush1.bf16.xpose.msra.mxu0 %v3578
  %3595 = vmatprep.subr.bf16.mxu0 0
  %3596 = vmatpush1.bf16.xpose.msra.mxu0 %v3581
  %3597 = vmatprep.subr.bf16.mxu0 0
  %3598 = vmatpush1.bf16.xpose.msra.mxu0 %v3584
  %3599 = vmatprep.subr.bf16.mxu0 0
  %3600 = vmatpush1.bf16.xpose.msra.mxu0 %v3587
  %3601 = vmatprep.subr.bf16.mxu0 0
  %3602 = vmatpush1.bf16.xpose.msra.mxu0 0
  %3603 = vmatprep.subr.bf16.mxu0 0
  %3604 = vmatpush1.bf16.xpose.msra.mxu0 0
  %3605 = vmatprep.subr.bf16.mxu0 0
  %3606 = vmatpush1.bf16.xpose.msra.mxu0 0
  %3607 = vmatprep.subr.bf16.mxu0 0
  %3608 = vmatpush1.bf16.xpose.msra.mxu0 0
  %3609 = vmatprep.subr.bf16.mxu0 0
  %3610 = vmatpush1.bf16.xpose.msra.mxu0 0
  %3611 = vmatprep.subr.bf16.mxu0 0
  %3612 = vmatpush1.bf16.xpose.msra.mxu0 0
  %3613 = vmatprep.subr.bf16.mxu0 0
  %3614 = vmatpush1.bf16.xpose.msra.mxu0 0
  %3615 = vmatprep.subr.bf16.mxu0 0
  %3616 = vmatpush1.bf16.xpose.msra.mxu0 0
  %3617 = vmatprep.subr.bf16.mxu0 0
  %3618 = vmatpush1.bf16.xpose.msra.mxu0 0
  %3619 = vmatprep.subr.bf16.mxu0 0
  %3620 = vmatpush1.bf16.xpose.msra.mxu0 0
  %3621 = vmatprep.mubr.bf16.mxu0 0
  %3622 = vmatmul.mubr.bf16.gmra.mrb[0].mxu0 %v3554
  %v3623 = vpop.f32.mrb[0].mxu0
  %v3624 = vadd.f32 0.0, %v3623
  %v3625 = vpop.f32.mrb[0].mxu0
  %v3626 = vpop.f32.mrb[0].mxu0
  %v3627 = vadd.f32 0.0, %v3626
  %v3628 = vpop.f32.mrb[0].mxu0
  %3629 = vmatprep.mubr.bf16.mxu0 0
  %3630 = vmatmul.mubr.bf16.gmra.mrb[0].mxu0 %v3557
  %v3631 = vpop.f32.mrb[0].mxu0
  %v3632 = vadd.f32 0.0, %v3631
  %v3633 = vpop.f32.mrb[0].mxu0
  %v3634 = vpop.f32.mrb[0].mxu0
  %v3635 = vadd.f32 0.0, %v3634
  %v3636 = vpop.f32.mrb[0].mxu0
  %3637 = vmatprep.mubr.bf16.mxu0 0
  %3638 = vmatmul.mubr.bf16.gmra.mrb[0].mxu0 %v3560
  %v3639 = vpop.f32.mrb[0].mxu0
  %v3640 = vadd.f32 0.0, %v3639
  %v3641 = vpop.f32.mrb[0].mxu0
  %v3642 = vpop.f32.mrb[0].mxu0
  %v3643 = vadd.f32 0.0, %v3642
  %v3644 = vpop.f32.mrb[0].mxu0
  %3645 = vmatprep.mubr.bf16.mxu0 0
  %3646 = vmatmul.mubr.bf16.gmra.mrb[0].mxu0 %v3563
  %v3647 = vpop.f32.mrb[0].mxu0
  %v3648 = vadd.f32 0.0, %v3647
  %v3649 = vpop.f32.mrb[0].mxu0
  %v3650 = vpop.f32.mrb[0].mxu0
  %v3651 = vadd.f32 0.0, %v3650
  %v3652 = vpop.f32.mrb[0].mxu0
  %3653 = vmatprep.mubr.bf16.mxu0 0
  %3654 = vmatmul.mubr.bf16.gmra.mrb[0].mxu0 %v3566
  %v3655 = vpop.f32.mrb[0].mxu0
  %v3656 = vadd.f32 0.0, %v3655
  %v3657 = vpop.f32.mrb[0].mxu0
  %v3658 = vpop.f32.mrb[0].mxu0
  %v3659 = vadd.f32 0.0, %v3658
  %v3660 = vpop.f32.mrb[0].mxu0
  %3661 = vmatprep.mubr.bf16.mxu0 0
  %3662 = vmatmul.mubr.bf16.gmra.mrb[0].mxu0 %v3569
  %v3663 = vpop.f32.mrb[0].mxu0
  %v3664 = vadd.f32 0.0, %v3663
  %v3665 = vpop.f32.mrb[0].mxu0
  %v3666 = vpop.f32.mrb[0].mxu0
  %v3667 = vadd.f32 0.0, %v3666
  %v3668 = vpop.f32.mrb[0].mxu0
  %3669 = vdwg.mxu0
  %v3670 = vmul.f32 %v3624, 0.25
  %v3671 = vmul.f32 %v3627, 0.25
  %v3672 = vmul.f32 %v3632, 0.25
  %v3673 = vmul.f32 %v3635, 0.25
  %v3674 = vmul.f32 %v3640, 0.25
  %v3675 = vmul.f32 %v3643, 0.25
  %v3676 = vmul.f32 %v3648, 0.25
  %v3677 = vmul.f32 %v3651, 0.25
  %v3678 = vmul.f32 %v3656, 0.25
  %v3679 = vmul.f32 %v3659, 0.25
  %v3680 = vmul.f32 %v3664, 0.25
  %v3681 = vmul.f32 %v3667, 0.25
  %v3682 = vadd.f32 %v3670, %v1536
  %v3683 = vadd.f32 %v3671, %v1537
  %v3684 = vadd.f32 %v3672, %v1538
  %v3685 = vadd.f32 %v3673, %v1539
  %v3686 = vadd.f32 %v3674, %v1540
  %v3687 = vadd.f32 %v3675, %v1541
  %v3688 = vadd.f32 %v3676, %v1542
  %v3689 = vadd.f32 %v3677, %v1543
  %v3690 = vadd.f32 %v3678, %v1544
  %v3691 = vadd.f32 %v3679, %v1545
  %v3692 = vadd.f32 %v3680, %v1546
  %v3693 = vadd.f32 %v3681, %v1547
  %v3694 = vsel %vm2092, %v3682, -inf
  %3695 = vmax.xlane.f32.xlu0 %v3694
  %v3696 = vpop.xlane.xlu0 %3695
  %v3697 = vsel %vm2092, %v3683, -inf
  %3698 = vmax.xlane.f32.xlu0 %v3697
  %v3699 = vpop.xlane.xlu0 %3698
  %v3700 = vsel %vm2092, %v3684, -inf
  %3701 = vmax.xlane.f32.xlu0 %v3700
  %v3702 = vpop.xlane.xlu0 %3701
  %v3703 = vsel %vm2092, %v3685, -inf
  %3704 = vmax.xlane.f32.xlu0 %v3703
  %v3705 = vpop.xlane.xlu0 %3704
  %v3706 = vsel %vm2092, %v3686, -inf
  %3707 = vmax.xlane.f32.xlu0 %v3706
  %v3708 = vpop.xlane.xlu0 %3707
  %v3709 = vsel %vm2092, %v3687, -inf
  %3710 = vmax.xlane.f32.xlu0 %v3709
  %v3711 = vpop.xlane.xlu0 %3710
  %v3712 = vsel %vm2092, %v3688, -inf
  %3713 = vmax.xlane.f32.xlu0 %v3712
  %v3714 = vpop.xlane.xlu0 %3713
  %v3715 = vsel %vm2092, %v3689, -inf
  %3716 = vmax.xlane.f32.xlu0 %v3715
  %v3717 = vpop.xlane.xlu0 %3716
  %v3718 = vsel %vm2092, %v3690, -inf
  %3719 = vmax.xlane.f32.xlu0 %v3718
  %v3720 = vpop.xlane.xlu0 %3719
  %v3721 = vsel %vm2092, %v3691, -inf
  %3722 = vmax.xlane.f32.xlu0 %v3721
  %v3723 = vpop.xlane.xlu0 %3722
  %v3724 = vsel %vm2092, %v3692, -inf
  %3725 = vmax.xlane.f32.xlu0 %v3724
  %v3726 = vpop.xlane.xlu0 %3725
  %v3727 = vsel %vm2092, %v3693, -inf
  %3728 = vmax.xlane.f32.xlu0 %v3727
  %v3729 = vpop.xlane.xlu0 %3728
  %v3730 = vsub.f32 %v3682, %v3696
  %v3731 = vsub.f32 %v3683, %v3699
  %v3732 = vsub.f32 %v3684, %v3702
  %v3733 = vsub.f32 %v3685, %v3705
  %v3734 = vsub.f32 %v3686, %v3708
  %v3735 = vsub.f32 %v3687, %v3711
  %v3736 = vsub.f32 %v3688, %v3714
  %v3737 = vsub.f32 %v3689, %v3717
  %v3738 = vsub.f32 %v3690, %v3720
  %v3739 = vsub.f32 %v3691, %v3723
  %v3740 = vsub.f32 %v3692, %v3726
  %v3741 = vsub.f32 %v3693, %v3729
  %v3742 = vmul.f32 %v3730, 1.442695
  %v3743 = vpow.pop %v3742
  %v3744 = vmul.f32 %v3731, 1.442695
  %v3745 = vpow.pop %v3744
  %v3746 = vmul.f32 %v3732, 1.442695
  %v3747 = vpow.pop %v3746
  %v3748 = vmul.f32 %v3733, 1.442695
  %v3749 = vpow.pop %v3748
  %v3750 = vmul.f32 %v3734, 1.442695
  %v3751 = vpow.pop %v3750
  %v3752 = vmul.f32 %v3735, 1.442695
  %v3753 = vpow.pop %v3752
  %v3754 = vmul.f32 %v3736, 1.442695
  %v3755 = vpow.pop %v3754
  %v3756 = vmul.f32 %v3737, 1.442695
  %v3757 = vpow.pop %v3756
  %v3758 = vmul.f32 %v3738, 1.442695
  %v3759 = vpow.pop %v3758
  %v3760 = vmul.f32 %v3739, 1.442695
  %v3761 = vpow.pop %v3760
  %v3762 = vmul.f32 %v3740, 1.442695
  %v3763 = vpow.pop %v3762
  %v3764 = vmul.f32 %v3741, 1.442695
  %v3765 = vpow.pop %v3764
  %v3766 = vsel %vm2092, %v3743, 0.0
  %3767 = vadd.xlane.f32.xlu0 %v3766
  %v3768 = vpop.xlane.xlu0 %3767
  %v3769 = vsel %vm2092, %v3745, 0.0
  %3770 = vadd.xlane.f32.xlu0 %v3769
  %v3771 = vpop.xlane.xlu0 %3770
  %v3772 = vsel %vm2092, %v3747, 0.0
  %3773 = vadd.xlane.f32.xlu0 %v3772
  %v3774 = vpop.xlane.xlu0 %3773
  %v3775 = vsel %vm2092, %v3749, 0.0
  %3776 = vadd.xlane.f32.xlu0 %v3775
  %v3777 = vpop.xlane.xlu0 %3776
  %v3778 = vsel %vm2092, %v3751, 0.0
  %3779 = vadd.xlane.f32.xlu0 %v3778
  %v3780 = vpop.xlane.xlu0 %3779
  %v3781 = vsel %vm2092, %v3753, 0.0
  %3782 = vadd.xlane.f32.xlu0 %v3781
  %v3783 = vpop.xlane.xlu0 %3782
  %v3784 = vsel %vm2092, %v3755, 0.0
  %3785 = vadd.xlane.f32.xlu0 %v3784
  %v3786 = vpop.xlane.xlu0 %3785
  %v3787 = vsel %vm2092, %v3757, 0.0
  %3788 = vadd.xlane.f32.xlu0 %v3787
  %v3789 = vpop.xlane.xlu0 %3788
  %v3790 = vsel %vm2092, %v3759, 0.0
  %3791 = vadd.xlane.f32.xlu0 %v3790
  %v3792 = vpop.xlane.xlu0 %3791
  %v3793 = vsel %vm2092, %v3761, 0.0
  %3794 = vadd.xlane.f32.xlu0 %v3793
  %v3795 = vpop.xlane.xlu0 %3794
  %v3796 = vsel %vm2092, %v3763, 0.0
  %3797 = vadd.xlane.f32.xlu0 %v3796
  %v3798 = vpop.xlane.xlu0 %3797
  %v3799 = vsel %vm2092, %v3765, 0.0
  %3800 = vadd.xlane.f32.xlu0 %v3799
  %v3801 = vpop.xlane.xlu0 %3800
  %v3802 = vrcp.pop %v3768
  %v3803 = vrcp.pop %v3771
  %v3804 = vrcp.pop %v3774
  %v3805 = vrcp.pop %v3777
  %v3806 = vrcp.pop %v3780
  %v3807 = vrcp.pop %v3783
  %v3808 = vrcp.pop %v3786
  %v3809 = vrcp.pop %v3789
  %v3810 = vrcp.pop %v3792
  %v3811 = vrcp.pop %v3795
  %v3812 = vrcp.pop %v3798
  %v3813 = vrcp.pop %v3801
  %v3814 = vmul.f32 %v3743, %v3802
  %v3815 = vmul.f32 %v3745, %v3803
  %v3816 = vmul.f32 %v3747, %v3804
  %v3817 = vmul.f32 %v3749, %v3805
  %v3818 = vmul.f32 %v3751, %v3806
  %v3819 = vmul.f32 %v3753, %v3807
  %v3820 = vmul.f32 %v3755, %v3808
  %v3821 = vmul.f32 %v3757, %v3809
  %v3822 = vmul.f32 %v3759, %v3810
  %v3823 = vmul.f32 %v3761, %v3811
  %v3824 = vmul.f32 %v3763, %v3812
  %v3825 = vmul.f32 %v3765, %v3813
  %v3826 = vpack.c.bf16 %v3815, %v3814
  %v3827 = vpack.c.bf16 %v3817, %v3816
  %v3828 = vpack.c.bf16 %v3819, %v3818
  %v3829 = vpack.c.bf16 %v3821, %v3820
  %v3830 = vpack.c.bf16 %v3823, %v3822
  %v3831 = vpack.c.bf16 %v3825, %v3824
  %3832 = vrot.lane.b32.xlu0 %v1926, 80
  %v3833 = vpop.permute.xlu0 %3832
  %3834 = vrot.lane.b32.xlu0 %v1927, 80
  %v3835 = vpop.permute.xlu0 %3834
  %3836 = vrot.lane.b32.xlu0 %v1928, 80
  %v3837 = vpop.permute.xlu0 %3836
  %3838 = vrot.lane.b32.xlu0 %v1929, 80
  %v3839 = vpop.permute.xlu0 %3838
  %3840 = vrot.lane.b32.xlu0 %v1930, 80
  %v3841 = vpop.permute.xlu0 %3840
  %3842 = vrot.lane.b32.xlu0 %v1931, 80
  %v3843 = vpop.permute.xlu0 %3842
  %v3851 = vsel %vm2092, %v3826, 0
  %v3854 = vsel %vm2092, %v3827, 0
  %v3857 = vsel %vm2092, %v3828, 0
  %v3860 = vsel %vm2092, %v3829, 0
  %v3863 = vsel %vm2092, %v3830, 0
  %v3866 = vsel %vm2092, %v3831, 0
  %3868 = vmatprep.subr.bf16.mxu0 0
  %3869 = vmatpush1.bf16.msra.mxu0 %v3833
  %3870 = vmatprep.subr.bf16.mxu0 0
  %3871 = vmatpush1.bf16.msra.mxu0 %v3835
  %3872 = vmatprep.subr.bf16.mxu0 0
  %3873 = vmatpush1.bf16.msra.mxu0 %v3837
  %3874 = vmatprep.subr.bf16.mxu0 0
  %3875 = vmatpush1.bf16.msra.mxu0 %v3839
  %3876 = vmatprep.subr.bf16.mxu0 0
  %3877 = vmatpush1.bf16.msra.mxu0 %v3841
  %3878 = vmatprep.subr.bf16.mxu0 0
  %3879 = vmatpush1.bf16.msra.mxu0 %v3843
  %3880 = vmatprep.subr.bf16.mxu0 0
  %3881 = vmatpush1.bf16.msra.mxu0 0
  %3882 = vmatprep.subr.bf16.mxu0 0
  %3883 = vmatpush1.bf16.msra.mxu0 0
  %3884 = vmatprep.subr.bf16.mxu0 0
  %3885 = vmatpush1.bf16.msra.mxu0 0
  %3886 = vmatprep.subr.bf16.mxu0 0
  %3887 = vmatpush1.bf16.msra.mxu0 0
  %3888 = vmatprep.subr.bf16.mxu0 0
  %3889 = vmatpush1.bf16.msra.mxu0 0
  %3890 = vmatprep.subr.bf16.mxu0 0
  %3891 = vmatpush1.bf16.msra.mxu0 0
  %3892 = vmatprep.subr.bf16.mxu0 0
  %3893 = vmatpush1.bf16.msra.mxu0 0
  %3894 = vmatprep.subr.bf16.mxu0 0
  %3895 = vmatpush1.bf16.msra.mxu0 0
  %3896 = vmatprep.subr.bf16.mxu0 0
  %3897 = vmatpush1.bf16.msra.mxu0 0
  %3898 = vmatprep.subr.bf16.mxu0 0
  %3899 = vmatpush1.bf16.msra.mxu0 0
  %3900 = vmatprep.mubr.bf16.mxu0 0
  %3901 = vmatmul.mubr.bf16.gmra.mrb[0].mxu0 %v3851
  %v3902 = vpop.f32.mrb[0].mxu0
  %v3903 = vadd.f32 0.0, %v3902
  %v3904 = vpop.f32.mrb[0].mxu0
  %v3905 = vpop.f32.mrb[0].mxu0
  %v3906 = vadd.f32 0.0, %v3905
  %v3907 = vpop.f32.mrb[0].mxu0
  %3908 = vmatprep.mubr.bf16.mxu0 0
  %3909 = vmatmul.mubr.bf16.gmra.mrb[0].mxu0 %v3854
  %v3910 = vpop.f32.mrb[0].mxu0
  %v3911 = vadd.f32 0.0, %v3910
  %v3912 = vpop.f32.mrb[0].mxu0
  %v3913 = vpop.f32.mrb[0].mxu0
  %v3914 = vadd.f32 0.0, %v3913
  %v3915 = vpop.f32.mrb[0].mxu0
  %3916 = vmatprep.mubr.bf16.mxu0 0
  %3917 = vmatmul.mubr.bf16.gmra.mrb[0].mxu0 %v3857
  %v3918 = vpop.f32.mrb[0].mxu0
  %v3919 = vadd.f32 0.0, %v3918
  %v3920 = vpop.f32.mrb[0].mxu0
  %v3921 = vpop.f32.mrb[0].mxu0
  %v3922 = vadd.f32 0.0, %v3921
  %v3923 = vpop.f32.mrb[0].mxu0
  %3924 = vmatprep.mubr.bf16.mxu0 0
  %3925 = vmatmul.mubr.bf16.gmra.mrb[0].mxu0 %v3860
  %v3926 = vpop.f32.mrb[0].mxu0
  %v3927 = vadd.f32 0.0, %v3926
  %v3928 = vpop.f32.mrb[0].mxu0
  %v3929 = vpop.f32.mrb[0].mxu0
  %v3930 = vadd.f32 0.0, %v3929
  %v3931 = vpop.f32.mrb[0].mxu0
  %3932 = vmatprep.mubr.bf16.mxu0 0
  %3933 = vmatmul.mubr.bf16.gmra.mrb[0].mxu0 %v3863
  %v3934 = vpop.f32.mrb[0].mxu0
  %v3935 = vadd.f32 0.0, %v3934
  %v3936 = vpop.f32.mrb[0].mxu0
  %v3937 = vpop.f32.mrb[0].mxu0
  %v3938 = vadd.f32 0.0, %v3937
  %v3939 = vpop.f32.mrb[0].mxu0
  %3940 = vmatprep.mubr.bf16.mxu0 0
  %3941 = vmatmul.mubr.bf16.gmra.mrb[0].mxu0 %v3866
  %v3942 = vpop.f32.mrb[0].mxu0
  %v3943 = vadd.f32 0.0, %v3942
  %v3944 = vpop.f32.mrb[0].mxu0
  %v3945 = vpop.f32.mrb[0].mxu0
  %v3946 = vadd.f32 0.0, %v3945
  %v3947 = vpop.f32.mrb[0].mxu0
  %3948 = vdwg.mxu0
  %v3949 = vpack.c.bf16 %v3906, %v3903
  %v3950 = vpack.c.bf16 %v3914, %v3911
  %v3951 = vpack.c.bf16 %v3922, %v3919
  %v3952 = vpack.c.bf16 %v3930, %v3927
  %v3953 = vpack.c.bf16 %v3938, %v3935
  %v3954 = vpack.c.bf16 %v3946, %v3943
  %s3955 = scalar_lea.vmem %s37, 24
  %v3956 = vld [vmem:[%s3955] sm:$0xf]
  %v3957 = vld [vmem:[%s3955 + $0x4] sm:$0xf]
  %v3960 = vunpack.c.l.b16 %v3956
  %v3961 = vunpack.c.l.b16 %v3957
  %v3962 = vpack.c.b16 %v3961, %v3960
  %v3965 = vsel %vm1950, %v3949, 0
  %v3968 = vsel %vm1950, %v3950, 0
  %v3971 = vsel %vm1950, %v3951, 0
  %v3974 = vsel %vm1950, %v3952, 0
  %v3977 = vsel %vm1950, %v3953, 0
  %v3980 = vsel %vm1950, %v3954, 0
  %3982 = vmatprep.subr.bf16.mxu0 0
  %3983 = vmatpush1.bf16.msra.mxu0 %v3962
  %3984 = vmatprep.subr.bf16.mxu0 0
  %3985 = vmatpush1.bf16.msra.mxu0 0
  %3986 = vmatprep.subr.bf16.mxu0 0
  %3987 = vmatpush1.bf16.msra.mxu0 0
  %3988 = vmatprep.subr.bf16.mxu0 0
  %3989 = vmatpush1.bf16.msra.mxu0 0
  %3990 = vmatprep.subr.bf16.mxu0 0
  %3991 = vmatpush1.bf16.msra.mxu0 0
  %3992 = vmatprep.subr.bf16.mxu0 0
  %3993 = vmatpush1.bf16.msra.mxu0 0
  %3994 = vmatprep.subr.bf16.mxu0 0
  %3995 = vmatpush1.bf16.msra.mxu0 0
  %3996 = vmatprep.subr.bf16.mxu0 0
  %3997 = vmatpush1.bf16.msra.mxu0 0
  %3998 = vmatprep.subr.bf16.mxu0 0
  %3999 = vmatpush1.bf16.msra.mxu0 0
  %4000 = vmatprep.subr.bf16.mxu0 0
  %4001 = vmatpush1.bf16.msra.mxu0 0
  %4002 = vmatprep.subr.bf16.mxu0 0
  %4003 = vmatpush1.bf16.msra.mxu0 0
  %4004 = vmatprep.subr.bf16.mxu0 0
  %4005 = vmatpush1.bf16.msra.mxu0 0
  %4006 = vmatprep.subr.bf16.mxu0 0
  %4007 = vmatpush1.bf16.msra.mxu0 0
  %4008 = vmatprep.subr.bf16.mxu0 0
  %4009 = vmatpush1.bf16.msra.mxu0 0
  %4010 = vmatprep.subr.bf16.mxu0 0
  %4011 = vmatpush1.bf16.msra.mxu0 0
  %4012 = vmatprep.subr.bf16.mxu0 0
  %4013 = vmatpush1.bf16.msra.mxu0 0
  %4014 = vmatprep.mubr.bf16.mxu0 0
  %4015 = vmatmul.mubr.bf16.gmra.mrb[0].mxu0 %v3965
  %v4016 = vpop.f32.mrb[0].mxu0
  %v4017 = vadd.f32 0.0, %v4016
  %v4018 = vpop.f32.mrb[0].mxu0
  %v4019 = vpop.f32.mrb[0].mxu0
  %v4020 = vadd.f32 0.0, %v4019
  %v4021 = vpop.f32.mrb[0].mxu0
  %4022 = vmatprep.mubr.bf16.mxu0 0
  %4023 = vmatmul.mubr.bf16.gmra.mrb[0].mxu0 %v3968
  %v4024 = vpop.f32.mrb[0].mxu0
  %v4025 = vadd.f32 0.0, %v4024
  %v4026 = vpop.f32.mrb[0].mxu0
  %v4027 = vpop.f32.mrb[0].mxu0
  %v4028 = vadd.f32 0.0, %v4027
  %v4029 = vpop.f32.mrb[0].mxu0
  %4030 = vmatprep.mubr.bf16.mxu0 0
  %4031 = vmatmul.mubr.bf16.gmra.mrb[0].mxu0 %v3971
  %v4032 = vpop.f32.mrb[0].mxu0
  %v4033 = vadd.f32 0.0, %v4032
  %v4034 = vpop.f32.mrb[0].mxu0
  %v4035 = vpop.f32.mrb[0].mxu0
  %v4036 = vadd.f32 0.0, %v4035
  %v4037 = vpop.f32.mrb[0].mxu0
  %4038 = vmatprep.mubr.bf16.mxu0 0
  %4039 = vmatmul.mubr.bf16.gmra.mrb[0].mxu0 %v3974
  %v4040 = vpop.f32.mrb[0].mxu0
  %v4041 = vadd.f32 0.0, %v4040
  %v4042 = vpop.f32.mrb[0].mxu0
  %v4043 = vpop.f32.mrb[0].mxu0
  %v4044 = vadd.f32 0.0, %v4043
  %v4045 = vpop.f32.mrb[0].mxu0
  %4046 = vmatprep.mubr.bf16.mxu0 0
  %4047 = vmatmul.mubr.bf16.gmra.mrb[0].mxu0 %v3977
  %v4048 = vpop.f32.mrb[0].mxu0
  %v4049 = vadd.f32 0.0, %v4048
  %v4050 = vpop.f32.mrb[0].mxu0
  %v4051 = vpop.f32.mrb[0].mxu0
  %v4052 = vadd.f32 0.0, %v4051
  %v4053 = vpop.f32.mrb[0].mxu0
  %4054 = vmatprep.mubr.bf16.mxu0 0
  %4055 = vmatmul.mubr.bf16.gmra.mrb[0].mxu0 %v3980
  %v4056 = vpop.f32.mrb[0].mxu0
  %v4057 = vadd.f32 0.0, %v4056
  %v4058 = vpop.f32.mrb[0].mxu0
  %v4059 = vpop.f32.mrb[0].mxu0
  %v4060 = vadd.f32 0.0, %v4059
  %v4061 = vpop.f32.mrb[0].mxu0
  %4062 = vdwg.mxu0
  %v4063 = vadd.f32 %v3517, %v4017
  %v4064 = vadd.f32 %v3518, %v4020
  %v4065 = vadd.f32 %v3519, %v4025
  %v4066 = vadd.f32 %v3520, %v4028
  %v4067 = vadd.f32 %v3521, %v4033
  %v4068 = vadd.f32 %v3522, %v4036
  %v4069 = vadd.f32 %v3523, %v4041
  %v4070 = vadd.f32 %v3524, %v4044
  %v4071 = vadd.f32 %v3525, %v4049
  %v4072 = vadd.f32 %v3526, %v4052
  %v4073 = vadd.f32 %v3527, %v4057
  %v4074 = vadd.f32 %v3528, %v4060
  %v4075 = vadd.f32 %v1528, %v4063
  %v4076 = vadd.f32 %v1529, %v4064
  %v4077 = vadd.f32 %v1530, %v4065
  %v4078 = vadd.f32 %v1531, %v4066
  %v4079 = vadd.f32 %v1532, %v4067
  %v4080 = vadd.f32 %v1533, %v4068
  %v4081 = vadd.f32 %v1534, %v4069
  %v4082 = vadd.f32 %v1535, %v4070
  %v4083 = vadd.f32 %v1524, %v4071
  %v4084 = vadd.f32 %v1525, %v4072
  %v4085 = vadd.f32 %v1526, %v4073
  %v4086 = vadd.f32 %v1527, %v4074
  %v4087 = vld [vmem:[%s39] sm:$0x1]
  %v4089 = vlaneseq
  %v4090 = vshrl.u32 %v4089, 7
  %v4091 = vsub.s32 0, %v4090
  %v4092 = vrot.slane %v4087, %v4091
  %v4094 = vadd.f32 %v4075, %v4092
  %v4095 = vadd.f32 %v4076, %v4092
  %v4096 = vadd.f32 %v4077, %v4092
  %v4097 = vadd.f32 %v4078, %v4092
  %v4098 = vadd.f32 %v4079, %v4092
  %v4099 = vadd.f32 %v4080, %v4092
  %v4100 = vadd.f32 %v4081, %v4092
  %v4101 = vadd.f32 %v4082, %v4092
  %v4102 = vadd.f32 %v4083, %v4092
  %v4103 = vadd.f32 %v4084, %v4092
  %v4104 = vadd.f32 %v4085, %v4092
  %v4105 = vadd.f32 %v4086, %v4092
  %v4106 = vld [vmem:[%s41] sm:$0x1]
  %v4107 = vld [vmem:[%s43] sm:$0x1]
  %v4108 = vsel %vm485, %v4094, 0.0
  %4109 = vadd.xlane.f32.xlu0 %v4108
  %v4110 = vpop.xlane.xlu0 %4109
  %v4111 = vsel %vm485, %v4095, 0.0
  %4112 = vadd.xlane.f32.xlu0 %v4111
  %v4113 = vpop.xlane.xlu0 %4112
  %v4114 = vsel %vm485, %v4096, 0.0
  %4115 = vadd.xlane.f32.xlu0 %v4114
  %v4116 = vpop.xlane.xlu0 %4115
  %v4117 = vsel %vm485, %v4097, 0.0
  %4118 = vadd.xlane.f32.xlu0 %v4117
  %v4119 = vpop.xlane.xlu0 %4118
  %v4120 = vsel %vm485, %v4098, 0.0
  %4121 = vadd.xlane.f32.xlu0 %v4120
  %v4122 = vpop.xlane.xlu0 %4121
  %v4123 = vsel %vm485, %v4099, 0.0
  %4124 = vadd.xlane.f32.xlu0 %v4123
  %v4125 = vpop.xlane.xlu0 %4124
  %v4126 = vsel %vm485, %v4100, 0.0
  %4127 = vadd.xlane.f32.xlu0 %v4126
  %v4128 = vpop.xlane.xlu0 %4127
  %v4129 = vsel %vm485, %v4101, 0.0
  %4130 = vadd.xlane.f32.xlu0 %v4129
  %v4131 = vpop.xlane.xlu0 %4130
  %v4132 = vsel %vm485, %v4102, 0.0
  %4133 = vadd.xlane.f32.xlu0 %v4132
  %v4134 = vpop.xlane.xlu0 %4133
  %v4135 = vsel %vm485, %v4103, 0.0
  %4136 = vadd.xlane.f32.xlu0 %v4135
  %v4137 = vpop.xlane.xlu0 %4136
  %v4138 = vsel %vm485, %v4104, 0.0
  %4139 = vadd.xlane.f32.xlu0 %v4138
  %v4140 = vpop.xlane.xlu0 %4139
  %v4141 = vsel %vm485, %v4105, 0.0
  %4142 = vadd.xlane.f32.xlu0 %v4141
  %v4143 = vpop.xlane.xlu0 %4142
  %v4144 = vmul.f32 %v4110, %v1586
  %v4145 = vmul.f32 %v4113, %v1586
  %v4146 = vmul.f32 %v4116, %v1586
  %v4147 = vmul.f32 %v4119, %v1586
  %v4148 = vmul.f32 %v4122, %v1586
  %v4149 = vmul.f32 %v4125, %v1586
  %v4150 = vmul.f32 %v4128, %v1586
  %v4151 = vmul.f32 %v4131, %v1586
  %v4152 = vmul.f32 %v4134, %v1586
  %v4153 = vmul.f32 %v4137, %v1586
  %v4154 = vmul.f32 %v4140, %v1586
  %v4155 = vmul.f32 %v4143, %v1586
  %v4156 = vsub.f32 %v4094, %v4144
  %v4157 = vsub.f32 %v4095, %v4145
  %v4158 = vsub.f32 %v4096, %v4146
  %v4159 = vsub.f32 %v4097, %v4147
  %v4160 = vsub.f32 %v4098, %v4148
  %v4161 = vsub.f32 %v4099, %v4149
  %v4162 = vsub.f32 %v4100, %v4150
  %v4163 = vsub.f32 %v4101, %v4151
  %v4164 = vsub.f32 %v4102, %v4152
  %v4165 = vsub.f32 %v4103, %v4153
  %v4166 = vsub.f32 %v4104, %v4154
  %v4167 = vsub.f32 %v4105, %v4155
  %v4168 = vmul.f32 %v4156, %v4156
  %v4169 = vmul.f32 %v4157, %v4157
  %v4170 = vmul.f32 %v4158, %v4158
  %v4171 = vmul.f32 %v4159, %v4159
  %v4172 = vmul.f32 %v4160, %v4160
  %v4173 = vmul.f32 %v4161, %v4161
  %v4174 = vmul.f32 %v4162, %v4162
  %v4175 = vmul.f32 %v4163, %v4163
  %v4176 = vmul.f32 %v4164, %v4164
  %v4177 = vmul.f32 %v4165, %v4165
  %v4178 = vmul.f32 %v4166, %v4166
  %v4179 = vmul.f32 %v4167, %v4167
  %v4180 = vsel %vm485, %v4168, 0.0
  %4181 = vadd.xlane.f32.xlu0 %v4180
  %v4182 = vpop.xlane.xlu0 %4181
  %v4183 = vsel %vm485, %v4169, 0.0
  %4184 = vadd.xlane.f32.xlu0 %v4183
  %v4185 = vpop.xlane.xlu0 %4184
  %v4186 = vsel %vm485, %v4170, 0.0
  %4187 = vadd.xlane.f32.xlu0 %v4186
  %v4188 = vpop.xlane.xlu0 %4187
  %v4189 = vsel %vm485, %v4171, 0.0
  %4190 = vadd.xlane.f32.xlu0 %v4189
  %v4191 = vpop.xlane.xlu0 %4190
  %v4192 = vsel %vm485, %v4172, 0.0
  %4193 = vadd.xlane.f32.xlu0 %v4192
  %v4194 = vpop.xlane.xlu0 %4193
  %v4195 = vsel %vm485, %v4173, 0.0
  %4196 = vadd.xlane.f32.xlu0 %v4195
  %v4197 = vpop.xlane.xlu0 %4196
  %v4198 = vsel %vm485, %v4174, 0.0
  %4199 = vadd.xlane.f32.xlu0 %v4198
  %v4200 = vpop.xlane.xlu0 %4199
  %v4201 = vsel %vm485, %v4175, 0.0
  %4202 = vadd.xlane.f32.xlu0 %v4201
  %v4203 = vpop.xlane.xlu0 %4202
  %v4204 = vsel %vm485, %v4176, 0.0
  %4205 = vadd.xlane.f32.xlu0 %v4204
  %v4206 = vpop.xlane.xlu0 %4205
  %v4207 = vsel %vm485, %v4177, 0.0
  %4208 = vadd.xlane.f32.xlu0 %v4207
  %v4209 = vpop.xlane.xlu0 %4208
  %v4210 = vsel %vm485, %v4178, 0.0
  %4211 = vadd.xlane.f32.xlu0 %v4210
  %v4212 = vpop.xlane.xlu0 %4211
  %v4213 = vsel %vm485, %v4179, 0.0
  %4214 = vadd.xlane.f32.xlu0 %v4213
  %v4215 = vpop.xlane.xlu0 %4214
  %v4216 = vmul.f32 %v4182, %v1586
  %v4217 = vmul.f32 %v4185, %v1586
  %v4218 = vmul.f32 %v4188, %v1586
  %v4219 = vmul.f32 %v4191, %v1586
  %v4220 = vmul.f32 %v4194, %v1586
  %v4221 = vmul.f32 %v4197, %v1586
  %v4222 = vmul.f32 %v4200, %v1586
  %v4223 = vmul.f32 %v4203, %v1586
  %v4224 = vmul.f32 %v4206, %v1586
  %v4225 = vmul.f32 %v4209, %v1586
  %v4226 = vmul.f32 %v4212, %v1586
  %v4227 = vmul.f32 %v4215, %v1586
  %v4228 = vadd.f32 %v4216, 1e-05
  %v4229 = vadd.f32 %v4217, 1e-05
  %v4230 = vadd.f32 %v4218, 1e-05
  %v4231 = vadd.f32 %v4219, 1e-05
  %v4232 = vadd.f32 %v4220, 1e-05
  %v4233 = vadd.f32 %v4221, 1e-05
  %v4234 = vadd.f32 %v4222, 1e-05
  %v4235 = vadd.f32 %v4223, 1e-05
  %v4236 = vadd.f32 %v4224, 1e-05
  %v4237 = vadd.f32 %v4225, 1e-05
  %v4238 = vadd.f32 %v4226, 1e-05
  %v4239 = vadd.f32 %v4227, 1e-05
  %v4240 = vrsqrt.pop %v4228
  %v4241 = vrsqrt.pop %v4229
  %v4242 = vrsqrt.pop %v4230
  %v4243 = vrsqrt.pop %v4231
  %v4244 = vrsqrt.pop %v4232
  %v4245 = vrsqrt.pop %v4233
  %v4246 = vrsqrt.pop %v4234
  %v4247 = vrsqrt.pop %v4235
  %v4248 = vrsqrt.pop %v4236
  %v4249 = vrsqrt.pop %v4237
  %v4250 = vrsqrt.pop %v4238
  %v4251 = vrsqrt.pop %v4239
  %v4252 = vmul.f32 %v4156, %v4240
  %v4253 = vmul.f32 %v4157, %v4241
  %v4254 = vmul.f32 %v4158, %v4242
  %v4255 = vmul.f32 %v4159, %v4243
  %v4256 = vmul.f32 %v4160, %v4244
  %v4257 = vmul.f32 %v4161, %v4245
  %v4258 = vmul.f32 %v4162, %v4246
  %v4259 = vmul.f32 %v4163, %v4247
  %v4260 = vmul.f32 %v4164, %v4248
  %v4261 = vmul.f32 %v4165, %v4249
  %v4262 = vmul.f32 %v4166, %v4250
  %v4263 = vmul.f32 %v4167, %v4251
  %v4265 = vlaneseq
  %v4266 = vshrl.u32 %v4265, 7
  %v4267 = vsub.s32 0, %v4266
  %v4268 = vrot.slane %v4106, %v4267
  %v4270 = vmul.f32 %v4252, %v4268
  %v4271 = vmul.f32 %v4253, %v4268
  %v4272 = vmul.f32 %v4254, %v4268
  %v4273 = vmul.f32 %v4255, %v4268
  %v4274 = vmul.f32 %v4256, %v4268
  %v4275 = vmul.f32 %v4257, %v4268
  %v4276 = vmul.f32 %v4258, %v4268
  %v4277 = vmul.f32 %v4259, %v4268
  %v4278 = vmul.f32 %v4260, %v4268
  %v4279 = vmul.f32 %v4261, %v4268
  %v4280 = vmul.f32 %v4262, %v4268
  %v4281 = vmul.f32 %v4263, %v4268
  %v4283 = vlaneseq
  %v4284 = vshrl.u32 %v4283, 7
  %v4285 = vsub.s32 0, %v4284
  %v4286 = vrot.slane %v4107, %v4285
  %v4288 = vadd.f32 %v4270, %v4286
  %v4289 = vadd.f32 %v4271, %v4286
  %v4290 = vadd.f32 %v4272, %v4286
  %v4291 = vadd.f32 %v4273, %v4286
  %v4292 = vadd.f32 %v4274, %v4286
  %v4293 = vadd.f32 %v4275, %v4286
  %v4294 = vadd.f32 %v4276, %v4286
  %v4295 = vadd.f32 %v4277, %v4286
  %v4296 = vadd.f32 %v4278, %v4286
  %v4297 = vadd.f32 %v4279, %v4286
  %v4298 = vadd.f32 %v4280, %v4286
  %v4299 = vadd.f32 %v4281, %v4286
  %v4300 = vpack.c.bf16 %v4289, %v4288
  %v4301 = vpack.c.bf16 %v4291, %v4290
  %v4302 = vpack.c.bf16 %v4293, %v4292
  %v4303 = vpack.c.bf16 %v4295, %v4294
  %v4304 = vpack.c.bf16 %v4297, %v4296
  %v4305 = vpack.c.bf16 %v4299, %v4298
  %v4306 = vld [vmem:[%s45] sm:$0xff]
  %v4307 = vld [vmem:[%s45 + $0x8] sm:$0xff]
  %v4308 = vld [vmem:[%s45 + $0x10] sm:$0xff]
  %v4309 = vld [vmem:[%s45 + $0x18] sm:$0xff]
  %v4310 = vld [vmem:[%s45 + $0x20] sm:$0xff]
  %v4311 = vld [vmem:[%s45 + $0x28] sm:$0xff]
  %v4312 = vld [vmem:[%s45 + $0x30] sm:$0xff]
  %v4313 = vld [vmem:[%s45 + $0x38] sm:$0xff]
  %v4314 = vld [vmem:[%s47] sm:$0x3]
  %v4316 = vlaneseq
  %v4317 = vshrl.u32 %v4316, 7
  %v4318 = vsub.s32 0, %v4317
  %v4319 = vrot.slane %v4314, %v4318
  %v4320 = vlaneseq
  %v4321 = vshrl.u32 %v4320, 7
  %v4322 = vsub.s32 1, %v4321
  %v4323 = vrot.slane %v4314, %v4322
  %v4334 = vunpack.c.l.b16 %v4306
  %v4335 = vunpack.c.h.b16 %v4306
  %v4336 = vunpack.c.l.b16 %v4307
  %v4337 = vunpack.c.h.b16 %v4307
  %v4338 = vunpack.c.l.b16 %v4308
  %v4339 = vunpack.c.h.b16 %v4308
  %v4340 = vunpack.c.l.b16 %v4309
  %v4341 = vunpack.c.h.b16 %v4309
  %v4342 = vunpack.c.l.b16 %v4310
  %v4343 = vunpack.c.h.b16 %v4310
  %v4344 = vunpack.c.l.b16 %v4311
  %v4345 = vunpack.c.h.b16 %v4311
  %v4346 = vunpack.c.l.b16 %v4312
  %v4347 = vunpack.c.h.b16 %v4312
  %v4348 = vunpack.c.l.b16 %v4313
  %v4349 = vunpack.c.h.b16 %v4313
  %v4350 = vpack.c.b16 %v4336, %v4334
  %v4351 = vpack.c.b16 %v4337, %v4335
  %v4352 = vpack.c.b16 %v4340, %v4338
  %v4353 = vpack.c.b16 %v4341, %v4339
  %v4354 = vpack.c.b16 %v4344, %v4342
  %v4355 = vpack.c.b16 %v4345, %v4343
  %v4356 = vpack.c.b16 %v4348, %v4346
  %v4357 = vpack.c.b16 %v4349, %v4347
  %v4367 = vsel %vm485, %v4300, 0
  %v4370 = vsel %vm485, %v4301, 0
  %v4373 = vsel %vm485, %v4302, 0
  %v4376 = vsel %vm485, %v4303, 0
  %v4379 = vsel %vm485, %v4304, 0
  %v4382 = vsel %vm485, %v4305, 0
  %4384 = vmatprep.subr.bf16.mxu0 %v4351
  %4385 = vmatpush1.bf16.msra.mxu0 %v4350
  %4386 = vmatprep.subr.bf16.mxu0 %v4353
  %4387 = vmatpush1.bf16.msra.mxu0 %v4352
  %4388 = vmatprep.subr.bf16.mxu0 %v4355
  %4389 = vmatpush1.bf16.msra.mxu0 %v4354
  %4390 = vmatprep.subr.bf16.mxu0 %v4357
  %4391 = vmatpush1.bf16.msra.mxu0 %v4356
  %4392 = vmatprep.subr.bf16.mxu0 0
  %4393 = vmatpush1.bf16.msra.mxu0 0
  %4394 = vmatprep.subr.bf16.mxu0 0
  %4395 = vmatpush1.bf16.msra.mxu0 0
  %4396 = vmatprep.subr.bf16.mxu0 0
  %4397 = vmatpush1.bf16.msra.mxu0 0
  %4398 = vmatprep.subr.bf16.mxu0 0
  %4399 = vmatpush1.bf16.msra.mxu0 0
  %4400 = vmatprep.subr.bf16.mxu0 0
  %4401 = vmatpush1.bf16.msra.mxu0 0
  %4402 = vmatprep.subr.bf16.mxu0 0
  %4403 = vmatpush1.bf16.msra.mxu0 0
  %4404 = vmatprep.subr.bf16.mxu0 0
  %4405 = vmatpush1.bf16.msra.mxu0 0
  %4406 = vmatprep.subr.bf16.mxu0 0
  %4407 = vmatpush1.bf16.msra.mxu0 0
  %4408 = vmatprep.subr.bf16.mxu0 0
  %4409 = vmatpush1.bf16.msra.mxu0 0
  %4410 = vmatprep.subr.bf16.mxu0 0
  %4411 = vmatpush1.bf16.msra.mxu0 0
  %4412 = vmatprep.subr.bf16.mxu0 0
  %4413 = vmatpush1.bf16.msra.mxu0 0
  %4414 = vmatprep.subr.bf16.mxu0 0
  %4415 = vmatpush1.bf16.msra.mxu0 0
  %4416 = vmatprep.mubr.bf16.mxu0 0
  %4417 = vmatmul.mubr.bf16.gmra.mrb[0].mxu0 %v4367
  %v4418 = vpop.f32.mrb[0].mxu0
  %v4419 = vadd.f32 %v4319, %v4418
  %v4420 = vpop.f32.mrb[0].mxu0
  %v4421 = vadd.f32 %v4323, %v4420
  %v4422 = vpop.f32.mrb[0].mxu0
  %v4423 = vadd.f32 %v4319, %v4422
  %v4424 = vpop.f32.mrb[0].mxu0
  %v4425 = vadd.f32 %v4323, %v4424
  %4426 = vmatprep.mubr.bf16.mxu0 0
  %4427 = vmatmul.mubr.bf16.gmra.mrb[0].mxu0 %v4370
  %v4428 = vpop.f32.mrb[0].mxu0
  %v4429 = vadd.f32 %v4319, %v4428
  %v4430 = vpop.f32.mrb[0].mxu0
  %v4431 = vadd.f32 %v4323, %v4430
  %v4432 = vpop.f32.mrb[0].mxu0
  %v4433 = vadd.f32 %v4319, %v4432
  %v4434 = vpop.f32.mrb[0].mxu0
  %v4435 = vadd.f32 %v4323, %v4434
  %4436 = vmatprep.mubr.bf16.mxu0 0
  %4437 = vmatmul.mubr.bf16.gmra.mrb[0].mxu0 %v4373
  %v4438 = vpop.f32.mrb[0].mxu0
  %v4439 = vadd.f32 %v4319, %v4438
  %v4440 = vpop.f32.mrb[0].mxu0
  %v4441 = vadd.f32 %v4323, %v4440
  %v4442 = vpop.f32.mrb[0].mxu0
  %v4443 = vadd.f32 %v4319, %v4442
  %v4444 = vpop.f32.mrb[0].mxu0
  %v4445 = vadd.f32 %v4323, %v4444
  %4446 = vmatprep.mubr.bf16.mxu0 0
  %4447 = vmatmul.mubr.bf16.gmra.mrb[0].mxu0 %v4376
  %v4448 = vpop.f32.mrb[0].mxu0
  %v4449 = vadd.f32 %v4319, %v4448
  %v4450 = vpop.f32.mrb[0].mxu0
  %v4451 = vadd.f32 %v4323, %v4450
  %v4452 = vpop.f32.mrb[0].mxu0
  %v4453 = vadd.f32 %v4319, %v4452
  %v4454 = vpop.f32.mrb[0].mxu0
  %v4455 = vadd.f32 %v4323, %v4454
  %4456 = vmatprep.mubr.bf16.mxu0 0
  %4457 = vmatmul.mubr.bf16.gmra.mrb[0].mxu0 %v4379
  %v4458 = vpop.f32.mrb[0].mxu0
  %v4459 = vadd.f32 %v4319, %v4458
  %v4460 = vpop.f32.mrb[0].mxu0
  %v4461 = vadd.f32 %v4323, %v4460
  %v4462 = vpop.f32.mrb[0].mxu0
  %v4463 = vadd.f32 %v4319, %v4462
  %v4464 = vpop.f32.mrb[0].mxu0
  %v4465 = vadd.f32 %v4323, %v4464
  %4466 = vmatprep.mubr.bf16.mxu0 0
  %4467 = vmatmul.mubr.bf16.gmra.mrb[0].mxu0 %v4382
  %v4468 = vpop.f32.mrb[0].mxu0
  %v4469 = vadd.f32 %v4319, %v4468
  %v4470 = vpop.f32.mrb[0].mxu0
  %v4471 = vadd.f32 %v4323, %v4470
  %v4472 = vpop.f32.mrb[0].mxu0
  %v4473 = vadd.f32 %v4319, %v4472
  %v4474 = vpop.f32.mrb[0].mxu0
  %v4475 = vadd.f32 %v4323, %v4474
  %4476 = vdwg.mxu0
  %v4477 = vmul.f32 %v4419, %v4419
  %v4478 = vmul.f32 %v4421, %v4421
  %v4479 = vmul.f32 %v4423, %v4423
  %v4480 = vmul.f32 %v4425, %v4425
  %v4481 = vmul.f32 %v4429, %v4429
  %v4482 = vmul.f32 %v4431, %v4431
  %v4483 = vmul.f32 %v4433, %v4433
  %v4484 = vmul.f32 %v4435, %v4435
  %v4485 = vmul.f32 %v4439, %v4439
  %v4486 = vmul.f32 %v4441, %v4441
  %v4487 = vmul.f32 %v4443, %v4443
  %v4488 = vmul.f32 %v4445, %v4445
  %v4489 = vmul.f32 %v4449, %v4449
  %v4490 = vmul.f32 %v4451, %v4451
  %v4491 = vmul.f32 %v4453, %v4453
  %v4492 = vmul.f32 %v4455, %v4455
  %v4493 = vmul.f32 %v4459, %v4459
  %v4494 = vmul.f32 %v4461, %v4461
  %v4495 = vmul.f32 %v4463, %v4463
  %v4496 = vmul.f32 %v4465, %v4465
  %v4497 = vmul.f32 %v4469, %v4469
  %v4498 = vmul.f32 %v4471, %v4471
  %v4499 = vmul.f32 %v4473, %v4473
  %v4500 = vmul.f32 %v4475, %v4475
  %v4501 = vmul.f32 %v4419, %v4477
  %v4502 = vmul.f32 %v4421, %v4478
  %v4503 = vmul.f32 %v4423, %v4479
  %v4504 = vmul.f32 %v4425, %v4480
  %v4505 = vmul.f32 %v4429, %v4481
  %v4506 = vmul.f32 %v4431, %v4482
  %v4507 = vmul.f32 %v4433, %v4483
  %v4508 = vmul.f32 %v4435, %v4484
  %v4509 = vmul.f32 %v4439, %v4485
  %v4510 = vmul.f32 %v4441, %v4486
  %v4511 = vmul.f32 %v4443, %v4487
  %v4512 = vmul.f32 %v4445, %v4488
  %v4513 = vmul.f32 %v4449, %v4489
  %v4514 = vmul.f32 %v4451, %v4490
  %v4515 = vmul.f32 %v4453, %v4491
  %v4516 = vmul.f32 %v4455, %v4492
  %v4517 = vmul.f32 %v4459, %v4493
  %v4518 = vmul.f32 %v4461, %v4494
  %v4519 = vmul.f32 %v4463, %v4495
  %v4520 = vmul.f32 %v4465, %v4496
  %v4521 = vmul.f32 %v4469, %v4497
  %v4522 = vmul.f32 %v4471, %v4498
  %v4523 = vmul.f32 %v4473, %v4499
  %v4524 = vmul.f32 %v4475, %v4500
  %v4525 = vmul.f32 %v4501, 0.044715
  %v4526 = vmul.f32 %v4502, 0.044715
  %v4527 = vmul.f32 %v4503, 0.044715
  %v4528 = vmul.f32 %v4504, 0.044715
  %v4529 = vmul.f32 %v4505, 0.044715
  %v4530 = vmul.f32 %v4506, 0.044715
  %v4531 = vmul.f32 %v4507, 0.044715
  %v4532 = vmul.f32 %v4508, 0.044715
  %v4533 = vmul.f32 %v4509, 0.044715
  %v4534 = vmul.f32 %v4510, 0.044715
  %v4535 = vmul.f32 %v4511, 0.044715
  %v4536 = vmul.f32 %v4512, 0.044715
  %v4537 = vmul.f32 %v4513, 0.044715
  %v4538 = vmul.f32 %v4514, 0.044715
  %v4539 = vmul.f32 %v4515, 0.044715
  %v4540 = vmul.f32 %v4516, 0.044715
  %v4541 = vmul.f32 %v4517, 0.044715
  %v4542 = vmul.f32 %v4518, 0.044715
  %v4543 = vmul.f32 %v4519, 0.044715
  %v4544 = vmul.f32 %v4520, 0.044715
  %v4545 = vmul.f32 %v4521, 0.044715
  %v4546 = vmul.f32 %v4522, 0.044715
  %v4547 = vmul.f32 %v4523, 0.044715
  %v4548 = vmul.f32 %v4524, 0.044715
  %v4549 = vadd.f32 %v4419, %v4525
  %v4550 = vadd.f32 %v4421, %v4526
  %v4551 = vadd.f32 %v4423, %v4527
  %v4552 = vadd.f32 %v4425, %v4528
  %v4553 = vadd.f32 %v4429, %v4529
  %v4554 = vadd.f32 %v4431, %v4530
  %v4555 = vadd.f32 %v4433, %v4531
  %v4556 = vadd.f32 %v4435, %v4532
  %v4557 = vadd.f32 %v4439, %v4533
  %v4558 = vadd.f32 %v4441, %v4534
  %v4559 = vadd.f32 %v4443, %v4535
  %v4560 = vadd.f32 %v4445, %v4536
  %v4561 = vadd.f32 %v4449, %v4537
  %v4562 = vadd.f32 %v4451, %v4538
  %v4563 = vadd.f32 %v4453, %v4539
  %v4564 = vadd.f32 %v4455, %v4540
  %v4565 = vadd.f32 %v4459, %v4541
  %v4566 = vadd.f32 %v4461, %v4542
  %v4567 = vadd.f32 %v4463, %v4543
  %v4568 = vadd.f32 %v4465, %v4544
  %v4569 = vadd.f32 %v4469, %v4545
  %v4570 = vadd.f32 %v4471, %v4546
  %v4571 = vadd.f32 %v4473, %v4547
  %v4572 = vadd.f32 %v4475, %v4548
  %v4573 = vmul.f32 %v4549, 0.7978846
  %v4574 = vmul.f32 %v4550, 0.7978846
  %v4575 = vmul.f32 %v4551, 0.7978846
  %v4576 = vmul.f32 %v4552, 0.7978846
  %v4577 = vmul.f32 %v4553, 0.7978846
  %v4578 = vmul.f32 %v4554, 0.7978846
  %v4579 = vmul.f32 %v4555, 0.7978846
  %v4580 = vmul.f32 %v4556, 0.7978846
  %v4581 = vmul.f32 %v4557, 0.7978846
  %v4582 = vmul.f32 %v4558, 0.7978846
  %v4583 = vmul.f32 %v4559, 0.7978846
  %v4584 = vmul.f32 %v4560, 0.7978846
  %v4585 = vmul.f32 %v4561, 0.7978846
  %v4586 = vmul.f32 %v4562, 0.7978846
  %v4587 = vmul.f32 %v4563, 0.7978846
  %v4588 = vmul.f32 %v4564, 0.7978846
  %v4589 = vmul.f32 %v4565, 0.7978846
  %v4590 = vmul.f32 %v4566, 0.7978846
  %v4591 = vmul.f32 %v4567, 0.7978846
  %v4592 = vmul.f32 %v4568, 0.7978846
  %v4593 = vmul.f32 %v4569, 0.7978846
  %v4594 = vmul.f32 %v4570, 0.7978846
  %v4595 = vmul.f32 %v4571, 0.7978846
  %v4596 = vmul.f32 %v4572, 0.7978846
  %v4597 = vtanh.pop %v4573
  %v4598 = vtanh.pop %v4574
  %v4599 = vtanh.pop %v4575
  %v4600 = vtanh.pop %v4576
  %v4601 = vtanh.pop %v4577
  %v4602 = vtanh.pop %v4578
  %v4603 = vtanh.pop %v4579
  %v4604 = vtanh.pop %v4580
  %v4605 = vtanh.pop %v4581
  %v4606 = vtanh.pop %v4582
  %v4607 = vtanh.pop %v4583
  %v4608 = vtanh.pop %v4584
  %v4609 = vtanh.pop %v4585
  %v4610 = vtanh.pop %v4586
  %v4611 = vtanh.pop %v4587
  %v4612 = vtanh.pop %v4588
  %v4613 = vtanh.pop %v4589
  %v4614 = vtanh.pop %v4590
  %v4615 = vtanh.pop %v4591
  %v4616 = vtanh.pop %v4592
  %v4617 = vtanh.pop %v4593
  %v4618 = vtanh.pop %v4594
  %v4619 = vtanh.pop %v4595
  %v4620 = vtanh.pop %v4596
  %v4621 = vadd.f32 %v4597, 1.0
  %v4622 = vadd.f32 %v4598, 1.0
  %v4623 = vadd.f32 %v4599, 1.0
  %v4624 = vadd.f32 %v4600, 1.0
  %v4625 = vadd.f32 %v4601, 1.0
  %v4626 = vadd.f32 %v4602, 1.0
  %v4627 = vadd.f32 %v4603, 1.0
  %v4628 = vadd.f32 %v4604, 1.0
  %v4629 = vadd.f32 %v4605, 1.0
  %v4630 = vadd.f32 %v4606, 1.0
  %v4631 = vadd.f32 %v4607, 1.0
  %v4632 = vadd.f32 %v4608, 1.0
  %v4633 = vadd.f32 %v4609, 1.0
  %v4634 = vadd.f32 %v4610, 1.0
  %v4635 = vadd.f32 %v4611, 1.0
  %v4636 = vadd.f32 %v4612, 1.0
  %v4637 = vadd.f32 %v4613, 1.0
  %v4638 = vadd.f32 %v4614, 1.0
  %v4639 = vadd.f32 %v4615, 1.0
  %v4640 = vadd.f32 %v4616, 1.0
  %v4641 = vadd.f32 %v4617, 1.0
  %v4642 = vadd.f32 %v4618, 1.0
  %v4643 = vadd.f32 %v4619, 1.0
  %v4644 = vadd.f32 %v4620, 1.0
  %v4645 = vmul.f32 %v4621, 0.5
  %v4646 = vmul.f32 %v4622, 0.5
  %v4647 = vmul.f32 %v4623, 0.5
  %v4648 = vmul.f32 %v4624, 0.5
  %v4649 = vmul.f32 %v4625, 0.5
  %v4650 = vmul.f32 %v4626, 0.5
  %v4651 = vmul.f32 %v4627, 0.5
  %v4652 = vmul.f32 %v4628, 0.5
  %v4653 = vmul.f32 %v4629, 0.5
  %v4654 = vmul.f32 %v4630, 0.5
  %v4655 = vmul.f32 %v4631, 0.5
  %v4656 = vmul.f32 %v4632, 0.5
  %v4657 = vmul.f32 %v4633, 0.5
  %v4658 = vmul.f32 %v4634, 0.5
  %v4659 = vmul.f32 %v4635, 0.5
  %v4660 = vmul.f32 %v4636, 0.5
  %v4661 = vmul.f32 %v4637, 0.5
  %v4662 = vmul.f32 %v4638, 0.5
  %v4663 = vmul.f32 %v4639, 0.5
  %v4664 = vmul.f32 %v4640, 0.5
  %v4665 = vmul.f32 %v4641, 0.5
  %v4666 = vmul.f32 %v4642, 0.5
  %v4667 = vmul.f32 %v4643, 0.5
  %v4668 = vmul.f32 %v4644, 0.5
  %v4669 = vmul.f32 %v4419, %v4645
  %v4670 = vmul.f32 %v4421, %v4646
  %v4671 = vmul.f32 %v4423, %v4647
  %v4672 = vmul.f32 %v4425, %v4648
  %v4673 = vmul.f32 %v4429, %v4649
  %v4674 = vmul.f32 %v4431, %v4650
  %v4675 = vmul.f32 %v4433, %v4651
  %v4676 = vmul.f32 %v4435, %v4652
  %v4677 = vmul.f32 %v4439, %v4653
  %v4678 = vmul.f32 %v4441, %v4654
  %v4679 = vmul.f32 %v4443, %v4655
  %v4680 = vmul.f32 %v4445, %v4656
  %v4681 = vmul.f32 %v4449, %v4657
  %v4682 = vmul.f32 %v4451, %v4658
  %v4683 = vmul.f32 %v4453, %v4659
  %v4684 = vmul.f32 %v4455, %v4660
  %v4685 = vmul.f32 %v4459, %v4661
  %v4686 = vmul.f32 %v4461, %v4662
  %v4687 = vmul.f32 %v4463, %v4663
  %v4688 = vmul.f32 %v4465, %v4664
  %v4689 = vmul.f32 %v4469, %v4665
  %v4690 = vmul.f32 %v4471, %v4666
  %v4691 = vmul.f32 %v4473, %v4667
  %v4692 = vmul.f32 %v4475, %v4668
  %v4693 = vpack.c.bf16 %v4671, %v4669
  %v4694 = vpack.c.bf16 %v4672, %v4670
  %v4695 = vpack.c.bf16 %v4675, %v4673
  %v4696 = vpack.c.bf16 %v4676, %v4674
  %v4697 = vpack.c.bf16 %v4679, %v4677
  %v4698 = vpack.c.bf16 %v4680, %v4678
  %v4699 = vpack.c.bf16 %v4683, %v4681
  %v4700 = vpack.c.bf16 %v4684, %v4682
  %v4701 = vpack.c.bf16 %v4687, %v4685
  %v4702 = vpack.c.bf16 %v4688, %v4686
  %v4703 = vpack.c.bf16 %v4691, %v4689
  %v4704 = vpack.c.bf16 %v4692, %v4690
  %v4705 = vld [vmem:[%s49] sm:$0xf]
  %v4706 = vld [vmem:[%s49 + $0x4] sm:$0xf]
  %v4707 = vld [vmem:[%s49 + $0x8] sm:$0xf]
  %v4708 = vld [vmem:[%s49 + $0xc] sm:$0xf]
  %v4709 = vld [vmem:[%s49 + $0x10] sm:$0xf]
  %v4710 = vld [vmem:[%s49 + $0x14] sm:$0xf]
  %v4711 = vld [vmem:[%s49 + $0x18] sm:$0xf]
  %v4712 = vld [vmem:[%s49 + $0x1c] sm:$0xf]
  %v4713 = vld [vmem:[%s49 + $0x20] sm:$0xf]
  %v4714 = vld [vmem:[%s49 + $0x24] sm:$0xf]
  %v4715 = vld [vmem:[%s49 + $0x28] sm:$0xf]
  %v4716 = vld [vmem:[%s49 + $0x2c] sm:$0xf]
  %v4717 = vld [vmem:[%s49 + $0x30] sm:$0xf]
  %v4718 = vld [vmem:[%s49 + $0x34] sm:$0xf]
  %v4719 = vld [vmem:[%s49 + $0x38] sm:$0xf]
  %v4720 = vld [vmem:[%s49 + $0x3c] sm:$0xf]
  %v4721 = vld [vmem:[%s49 + $0x40] sm:$0xf]
  %v4722 = vld [vmem:[%s49 + $0x44] sm:$0xf]
  %v4723 = vld [vmem:[%s49 + $0x48] sm:$0xf]
  %v4724 = vld [vmem:[%s49 + $0x4c] sm:$0xf]
  %v4725 = vld [vmem:[%s49 + $0x50] sm:$0xf]
  %v4726 = vld [vmem:[%s49 + $0x54] sm:$0xf]
  %v4727 = vld [vmem:[%s49 + $0x58] sm:$0xf]
  %v4728 = vld [vmem:[%s49 + $0x5c] sm:$0xf]
  %v4729 = vld [vmem:[%s49 + $0x60] sm:$0xf]
  %v4730 = vld [vmem:[%s49 + $0x64] sm:$0xf]
  %v4731 = vld [vmem:[%s49 + $0x68] sm:$0xf]
  %v4732 = vld [vmem:[%s49 + $0x6c] sm:$0xf]
  %v4733 = vld [vmem:[%s49 + $0x70] sm:$0xf]
  %v4734 = vld [vmem:[%s49 + $0x74] sm:$0xf]
  %v4735 = vld [vmem:[%s49 + $0x78] sm:$0xf]
  %v4736 = vld [vmem:[%s49 + $0x7c] sm:$0xf]
  %v4769 = vunpack.c.l.b16 %v4705
  %v4770 = vunpack.c.l.b16 %v4706
  %v4771 = vunpack.c.l.b16 %v4707
  %v4772 = vunpack.c.l.b16 %v4708
  %v4773 = vunpack.c.l.b16 %v4709
  %v4774 = vunpack.c.l.b16 %v4710
  %v4775 = vunpack.c.l.b16 %v4711
  %v4776 = vunpack.c.l.b16 %v4712
  %v4777 = vunpack.c.l.b16 %v4713
  %v4778 = vunpack.c.l.b16 %v4714
  %v4779 = vunpack.c.l.b16 %v4715
  %v4780 = vunpack.c.l.b16 %v4716
  %v4781 = vunpack.c.l.b16 %v4717
  %v4782 = vunpack.c.l.b16 %v4718
  %v4783 = vunpack.c.l.b16 %v4719
  %v4784 = vunpack.c.l.b16 %v4720
  %v4785 = vunpack.c.l.b16 %v4721
  %v4786 = vunpack.c.l.b16 %v4722
  %v4787 = vunpack.c.l.b16 %v4723
  %v4788 = vunpack.c.l.b16 %v4724
  %v4789 = vunpack.c.l.b16 %v4725
  %v4790 = vunpack.c.l.b16 %v4726
  %v4791 = vunpack.c.l.b16 %v4727
  %v4792 = vunpack.c.l.b16 %v4728
  %v4793 = vunpack.c.l.b16 %v4729
  %v4794 = vunpack.c.l.b16 %v4730
  %v4795 = vunpack.c.l.b16 %v4731
  %v4796 = vunpack.c.l.b16 %v4732
  %v4797 = vunpack.c.l.b16 %v4733
  %v4798 = vunpack.c.l.b16 %v4734
  %v4799 = vunpack.c.l.b16 %v4735
  %v4800 = vunpack.c.l.b16 %v4736
  %v4801 = vpack.c.b16 %v4770, %v4769
  %v4802 = vpack.c.b16 %v4772, %v4771
  %v4803 = vpack.c.b16 %v4774, %v4773
  %v4804 = vpack.c.b16 %v4776, %v4775
  %v4805 = vpack.c.b16 %v4778, %v4777
  %v4806 = vpack.c.b16 %v4780, %v4779
  %v4807 = vpack.c.b16 %v4782, %v4781
  %v4808 = vpack.c.b16 %v4784, %v4783
  %v4809 = vpack.c.b16 %v4786, %v4785
  %v4810 = vpack.c.b16 %v4788, %v4787
  %v4811 = vpack.c.b16 %v4790, %v4789
  %v4812 = vpack.c.b16 %v4792, %v4791
  %v4813 = vpack.c.b16 %v4794, %v4793
  %v4814 = vpack.c.b16 %v4796, %v4795
  %v4815 = vpack.c.b16 %v4798, %v4797
  %v4816 = vpack.c.b16 %v4800, %v4799
  %4833 = vmatprep.subr.bf16.mxu0 0
  %4834 = vmatpush1.bf16.msra.mxu0 %v4801
  %4835 = vmatprep.subr.bf16.mxu0 0
  %4836 = vmatpush1.bf16.msra.mxu0 %v4802
  %4837 = vmatprep.subr.bf16.mxu0 0
  %4838 = vmatpush1.bf16.msra.mxu0 %v4803
  %4839 = vmatprep.subr.bf16.mxu0 0
  %4840 = vmatpush1.bf16.msra.mxu0 %v4804
  %4841 = vmatprep.subr.bf16.mxu0 0
  %4842 = vmatpush1.bf16.msra.mxu0 %v4805
  %4843 = vmatprep.subr.bf16.mxu0 0
  %4844 = vmatpush1.bf16.msra.mxu0 %v4806
  %4845 = vmatprep.subr.bf16.mxu0 0
  %4846 = vmatpush1.bf16.msra.mxu0 %v4807
  %4847 = vmatprep.subr.bf16.mxu0 0
  %4848 = vmatpush1.bf16.msra.mxu0 %v4808
  %4849 = vmatprep.subr.bf16.mxu0 0
  %4850 = vmatpush1.bf16.msra.mxu0 %v4809
  %4851 = vmatprep.subr.bf16.mxu0 0
  %4852 = vmatpush1.bf16.msra.mxu0 %v4810
  %4853 = vmatprep.subr.bf16.mxu0 0
  %4854 = vmatpush1.bf16.msra.mxu0 %v4811
  %4855 = vmatprep.subr.bf16.mxu0 0
  %4856 = vmatpush1.bf16.msra.mxu0 %v4812
  %4857 = vmatprep.subr.bf16.mxu0 0
  %4858 = vmatpush1.bf16.msra.mxu0 %v4813
  %4859 = vmatprep.subr.bf16.mxu0 0
  %4860 = vmatpush1.bf16.msra.mxu0 %v4814
  %4861 = vmatprep.subr.bf16.mxu0 0
  %4862 = vmatpush1.bf16.msra.mxu0 %v4815
  %4863 = vmatprep.subr.bf16.mxu0 0
  %4864 = vmatpush1.bf16.msra.mxu0 %v4816
  %4865 = vmatprep.mubr.bf16.mxu0 %v4694
  %4866 = vmatmul.mubr.bf16.gmra.mrb[0].mxu0 %v4693
  %v4867 = vpop.f32.mrb[0].mxu0
  %v4868 = vadd.f32 0.0, %v4867
  %v4869 = vpop.f32.mrb[0].mxu0
  %v4870 = vpop.f32.mrb[0].mxu0
  %v4871 = vadd.f32 0.0, %v4870
  %v4872 = vpop.f32.mrb[0].mxu0
  %4873 = vmatprep.mubr.bf16.mxu0 %v4696
  %4874 = vmatmul.mubr.bf16.gmra.mrb[0].mxu0 %v4695
  %v4875 = vpop.f32.mrb[0].mxu0
  %v4876 = vadd.f32 0.0, %v4875
  %v4877 = vpop.f32.mrb[0].mxu0
  %v4878 = vpop.f32.mrb[0].mxu0
  %v4879 = vadd.f32 0.0, %v4878
  %v4880 = vpop.f32.mrb[0].mxu0
  %4881 = vmatprep.mubr.bf16.mxu0 %v4698
  %4882 = vmatmul.mubr.bf16.gmra.mrb[0].mxu0 %v4697
  %v4883 = vpop.f32.mrb[0].mxu0
  %v4884 = vadd.f32 0.0, %v4883
  %v4885 = vpop.f32.mrb[0].mxu0
  %v4886 = vpop.f32.mrb[0].mxu0
  %v4887 = vadd.f32 0.0, %v4886
  %v4888 = vpop.f32.mrb[0].mxu0
  %4889 = vmatprep.mubr.bf16.mxu0 %v4700
  %4890 = vmatmul.mubr.bf16.gmra.mrb[0].mxu0 %v4699
  %v4891 = vpop.f32.mrb[0].mxu0
  %v4892 = vadd.f32 0.0, %v4891
  %v4893 = vpop.f32.mrb[0].mxu0
  %v4894 = vpop.f32.mrb[0].mxu0
  %v4895 = vadd.f32 0.0, %v4894
  %v4896 = vpop.f32.mrb[0].mxu0
  %4897 = vmatprep.mubr.bf16.mxu0 %v4702
  %4898 = vmatmul.mubr.bf16.gmra.mrb[0].mxu0 %v4701
  %v4899 = vpop.f32.mrb[0].mxu0
  %v4900 = vadd.f32 0.0, %v4899
  %v4901 = vpop.f32.mrb[0].mxu0
  %v4902 = vpop.f32.mrb[0].mxu0
  %v4903 = vadd.f32 0.0, %v4902
  %v4904 = vpop.f32.mrb[0].mxu0
  %4905 = vmatprep.mubr.bf16.mxu0 %v4704
  %4906 = vmatmul.mubr.bf16.gmra.mrb[0].mxu0 %v4703
  %v4907 = vpop.f32.mrb[0].mxu0
  %v4908 = vadd.f32 0.0, %v4907
  %v4909 = vpop.f32.mrb[0].mxu0
  %v4910 = vpop.f32.mrb[0].mxu0
  %v4911 = vadd.f32 0.0, %v4910
  %v4912 = vpop.f32.mrb[0].mxu0
  %4913 = vdwg.mxu0
  %v4914 = vadd.f32 %v4094, %v4868
  %v4915 = vadd.f32 %v4095, %v4871
  %v4916 = vadd.f32 %v4096, %v4876
  %v4917 = vadd.f32 %v4097, %v4879
  %v4918 = vadd.f32 %v4098, %v4884
  %v4919 = vadd.f32 %v4099, %v4887
  %v4920 = vadd.f32 %v4100, %v4892
  %v4921 = vadd.f32 %v4101, %v4895
  %v4922 = vadd.f32 %v4102, %v4900
  %v4923 = vadd.f32 %v4103, %v4903
  %v4924 = vadd.f32 %v4104, %v4908
  %v4925 = vadd.f32 %v4105, %v4911
  %v4926 = vld [vmem:[%s51] sm:$0x1]
  %v4928 = vlaneseq
  %v4929 = vshrl.u32 %v4928, 7
  %v4930 = vsub.s32 0, %v4929
  %v4931 = vrot.slane %v4926, %v4930
  %v4933 = vadd.f32 %v4914, %v4931
  %v4934 = vadd.f32 %v4915, %v4931
  %v4935 = vadd.f32 %v4916, %v4931
  %v4936 = vadd.f32 %v4917, %v4931
  %v4937 = vadd.f32 %v4918, %v4931
  %v4938 = vadd.f32 %v4919, %v4931
  %v4939 = vadd.f32 %v4920, %v4931
  %v4940 = vadd.f32 %v4921, %v4931
  %v4941 = vadd.f32 %v4922, %v4931
  %v4942 = vadd.f32 %v4923, %v4931
  %v4943 = vadd.f32 %v4924, %v4931
  %v4944 = vadd.f32 %v4925, %v4931
  %s4945 = scalar_lea.vmem %s29, 1
  %v4946 = vld [vmem:[%s4945] sm:$0x1]
  %s4947 = scalar_lea.vmem %s31, 1
  %v4948 = vld [vmem:[%s4947] sm:$0x1]
  %v4949 = vsel %vm485, %v4933, 0.0
  %4950 = vadd.xlane.f32.xlu0 %v4949
  %v4951 = vpop.xlane.xlu0 %4950
  %v4952 = vsel %vm485, %v4934, 0.0
  %4953 = vadd.xlane.f32.xlu0 %v4952
  %v4954 = vpop.xlane.xlu0 %4953
  %v4955 = vsel %vm485, %v4935, 0.0
  %4956 = vadd.xlane.f32.xlu0 %v4955
  %v4957 = vpop.xlane.xlu0 %4956
  %v4958 = vsel %vm485, %v4936, 0.0
  %4959 = vadd.xlane.f32.xlu0 %v4958
  %v4960 = vpop.xlane.xlu0 %4959
  %v4961 = vsel %vm485, %v4937, 0.0
  %4962 = vadd.xlane.f32.xlu0 %v4961
  %v4963 = vpop.xlane.xlu0 %4962
  %v4964 = vsel %vm485, %v4938, 0.0
  %4965 = vadd.xlane.f32.xlu0 %v4964
  %v4966 = vpop.xlane.xlu0 %4965
  %v4967 = vsel %vm485, %v4939, 0.0
  %4968 = vadd.xlane.f32.xlu0 %v4967
  %v4969 = vpop.xlane.xlu0 %4968
  %v4970 = vsel %vm485, %v4940, 0.0
  %4971 = vadd.xlane.f32.xlu0 %v4970
  %v4972 = vpop.xlane.xlu0 %4971
  %v4973 = vsel %vm485, %v4941, 0.0
  %4974 = vadd.xlane.f32.xlu0 %v4973
  %v4975 = vpop.xlane.xlu0 %4974
  %v4976 = vsel %vm485, %v4942, 0.0
  %4977 = vadd.xlane.f32.xlu0 %v4976
  %v4978 = vpop.xlane.xlu0 %4977
  %v4979 = vsel %vm485, %v4943, 0.0
  %4980 = vadd.xlane.f32.xlu0 %v4979
  %v4981 = vpop.xlane.xlu0 %4980
  %v4982 = vsel %vm485, %v4944, 0.0
  %4983 = vadd.xlane.f32.xlu0 %v4982
  %v4984 = vpop.xlane.xlu0 %4983
  %v4985 = vmul.f32 %v4951, %v1586
  %v4986 = vmul.f32 %v4954, %v1586
  %v4987 = vmul.f32 %v4957, %v1586
  %v4988 = vmul.f32 %v4960, %v1586
  %v4989 = vmul.f32 %v4963, %v1586
  %v4990 = vmul.f32 %v4966, %v1586
  %v4991 = vmul.f32 %v4969, %v1586
  %v4992 = vmul.f32 %v4972, %v1586
  %v4993 = vmul.f32 %v4975, %v1586
  %v4994 = vmul.f32 %v4978, %v1586
  %v4995 = vmul.f32 %v4981, %v1586
  %v4996 = vmul.f32 %v4984, %v1586
  %v4997 = vsub.f32 %v4933, %v4985
  %v4998 = vsub.f32 %v4934, %v4986
  %v4999 = vsub.f32 %v4935, %v4987
  %v5000 = vsub.f32 %v4936, %v4988
  %v5001 = vsub.f32 %v4937, %v4989
  %v5002 = vsub.f32 %v4938, %v4990
  %v5003 = vsub.f32 %v4939, %v4991
  %v5004 = vsub.f32 %v4940, %v4992
  %v5005 = vsub.f32 %v4941, %v4993
  %v5006 = vsub.f32 %v4942, %v4994
  %v5007 = vsub.f32 %v4943, %v4995
  %v5008 = vsub.f32 %v4944, %v4996
  %v5009 = vmul.f32 %v4997, %v4997
  %v5010 = vmul.f32 %v4998, %v4998
  %v5011 = vmul.f32 %v4999, %v4999
  %v5012 = vmul.f32 %v5000, %v5000
  %v5013 = vmul.f32 %v5001, %v5001
  %v5014 = vmul.f32 %v5002, %v5002
  %v5015 = vmul.f32 %v5003, %v5003
  %v5016 = vmul.f32 %v5004, %v5004
  %v5017 = vmul.f32 %v5005, %v5005
  %v5018 = vmul.f32 %v5006, %v5006
  %v5019 = vmul.f32 %v5007, %v5007
  %v5020 = vmul.f32 %v5008, %v5008
  %v5021 = vsel %vm485, %v5009, 0.0
  %5022 = vadd.xlane.f32.xlu0 %v5021
  %v5023 = vpop.xlane.xlu0 %5022
  %v5024 = vsel %vm485, %v5010, 0.0
  %5025 = vadd.xlane.f32.xlu0 %v5024
  %v5026 = vpop.xlane.xlu0 %5025
  %v5027 = vsel %vm485, %v5011, 0.0
  %5028 = vadd.xlane.f32.xlu0 %v5027
  %v5029 = vpop.xlane.xlu0 %5028
  %v5030 = vsel %vm485, %v5012, 0.0
  %5031 = vadd.xlane.f32.xlu0 %v5030
  %v5032 = vpop.xlane.xlu0 %5031
  %v5033 = vsel %vm485, %v5013, 0.0
  %5034 = vadd.xlane.f32.xlu0 %v5033
  %v5035 = vpop.xlane.xlu0 %5034
  %v5036 = vsel %vm485, %v5014, 0.0
  %5037 = vadd.xlane.f32.xlu0 %v5036
  %v5038 = vpop.xlane.xlu0 %5037
  %v5039 = vsel %vm485, %v5015, 0.0
  %5040 = vadd.xlane.f32.xlu0 %v5039
  %v5041 = vpop.xlane.xlu0 %5040
  %v5042 = vsel %vm485, %v5016, 0.0
  %5043 = vadd.xlane.f32.xlu0 %v5042
  %v5044 = vpop.xlane.xlu0 %5043
  %v5045 = vsel %vm485, %v5017, 0.0
  %5046 = vadd.xlane.f32.xlu0 %v5045
  %v5047 = vpop.xlane.xlu0 %5046
  %v5048 = vsel %vm485, %v5018, 0.0
  %5049 = vadd.xlane.f32.xlu0 %v5048
  %v5050 = vpop.xlane.xlu0 %5049
  %v5051 = vsel %vm485, %v5019, 0.0
  %5052 = vadd.xlane.f32.xlu0 %v5051
  %v5053 = vpop.xlane.xlu0 %5052
  %v5054 = vsel %vm485, %v5020, 0.0
  %5055 = vadd.xlane.f32.xlu0 %v5054
  %v5056 = vpop.xlane.xlu0 %5055
  %v5057 = vmul.f32 %v5023, %v1586
  %v5058 = vmul.f32 %v5026, %v1586
  %v5059 = vmul.f32 %v5029, %v1586
  %v5060 = vmul.f32 %v5032, %v1586
  %v5061 = vmul.f32 %v5035, %v1586
  %v5062 = vmul.f32 %v5038, %v1586
  %v5063 = vmul.f32 %v5041, %v1586
  %v5064 = vmul.f32 %v5044, %v1586
  %v5065 = vmul.f32 %v5047, %v1586
  %v5066 = vmul.f32 %v5050, %v1586
  %v5067 = vmul.f32 %v5053, %v1586
  %v5068 = vmul.f32 %v5056, %v1586
  %v5069 = vadd.f32 %v5057, 1e-05
  %v5070 = vadd.f32 %v5058, 1e-05
  %v5071 = vadd.f32 %v5059, 1e-05
  %v5072 = vadd.f32 %v5060, 1e-05
  %v5073 = vadd.f32 %v5061, 1e-05
  %v5074 = vadd.f32 %v5062, 1e-05
  %v5075 = vadd.f32 %v5063, 1e-05
  %v5076 = vadd.f32 %v5064, 1e-05
  %v5077 = vadd.f32 %v5065, 1e-05
  %v5078 = vadd.f32 %v5066, 1e-05
  %v5079 = vadd.f32 %v5067, 1e-05
  %v5080 = vadd.f32 %v5068, 1e-05
  %v5081 = vrsqrt.pop %v5069
  %v5082 = vrsqrt.pop %v5070
  %v5083 = vrsqrt.pop %v5071
  %v5084 = vrsqrt.pop %v5072
  %v5085 = vrsqrt.pop %v5073
  %v5086 = vrsqrt.pop %v5074
  %v5087 = vrsqrt.pop %v5075
  %v5088 = vrsqrt.pop %v5076
  %v5089 = vrsqrt.pop %v5077
  %v5090 = vrsqrt.pop %v5078
  %v5091 = vrsqrt.pop %v5079
  %v5092 = vrsqrt.pop %v5080
  %v5093 = vmul.f32 %v4997, %v5081
  %v5094 = vmul.f32 %v4998, %v5082
  %v5095 = vmul.f32 %v4999, %v5083
  %v5096 = vmul.f32 %v5000, %v5084
  %v5097 = vmul.f32 %v5001, %v5085
  %v5098 = vmul.f32 %v5002, %v5086
  %v5099 = vmul.f32 %v5003, %v5087
  %v5100 = vmul.f32 %v5004, %v5088
  %v5101 = vmul.f32 %v5005, %v5089
  %v5102 = vmul.f32 %v5006, %v5090
  %v5103 = vmul.f32 %v5007, %v5091
  %v5104 = vmul.f32 %v5008, %v5092
  %v5106 = vlaneseq
  %v5107 = vshrl.u32 %v5106, 7
  %v5108 = vsub.s32 0, %v5107
  %v5109 = vrot.slane %v4946, %v5108
  %v5111 = vmul.f32 %v5093, %v5109
  %v5112 = vmul.f32 %v5094, %v5109
  %v5113 = vmul.f32 %v5095, %v5109
  %v5114 = vmul.f32 %v5096, %v5109
  %v5115 = vmul.f32 %v5097, %v5109
  %v5116 = vmul.f32 %v5098, %v5109
  %v5117 = vmul.f32 %v5099, %v5109
  %v5118 = vmul.f32 %v5100, %v5109
  %v5119 = vmul.f32 %v5101, %v5109
  %v5120 = vmul.f32 %v5102, %v5109
  %v5121 = vmul.f32 %v5103, %v5109
  %v5122 = vmul.f32 %v5104, %v5109
  %v5124 = vlaneseq
  %v5125 = vshrl.u32 %v5124, 7
  %v5126 = vsub.s32 0, %v5125
  %v5127 = vrot.slane %v4948, %v5126
  %v5129 = vadd.f32 %v5111, %v5127
  %v5130 = vadd.f32 %v5112, %v5127
  %v5131 = vadd.f32 %v5113, %v5127
  %v5132 = vadd.f32 %v5114, %v5127
  %v5133 = vadd.f32 %v5115, %v5127
  %v5134 = vadd.f32 %v5116, %v5127
  %v5135 = vadd.f32 %v5117, %v5127
  %v5136 = vadd.f32 %v5118, %v5127
  %v5137 = vadd.f32 %v5119, %v5127
  %v5138 = vadd.f32 %v5120, %v5127
  %v5139 = vadd.f32 %v5121, %v5127
  %v5140 = vadd.f32 %v5122, %v5127
  %v5141 = vpack.c.bf16 %v5130, %v5129
  %v5142 = vpack.c.bf16 %v5132, %v5131
  %v5143 = vpack.c.bf16 %v5134, %v5133
  %v5144 = vpack.c.bf16 %v5136, %v5135
  %v5145 = vpack.c.bf16 %v5138, %v5137
  %v5146 = vpack.c.bf16 %v5140, %v5139
  %s5147 = scalar_lea.vmem %s33, 64
  %v5148 = vld [vmem:[%s5147] sm:$0xff]
  %v5149 = vld [vmem:[%s5147 + $0x8] sm:$0xff]
  %v5150 = vld [vmem:[%s5147 + $0x10] sm:$0xff]
  %v5151 = vld [vmem:[%s5147 + $0x18] sm:$0xff]
  %v5152 = vld [vmem:[%s5147 + $0x20] sm:$0xff]
  %v5153 = vld [vmem:[%s5147 + $0x28] sm:$0xff]
  %v5154 = vld [vmem:[%s5147 + $0x30] sm:$0xff]
  %v5155 = vld [vmem:[%s5147 + $0x38] sm:$0xff]
  %s5156 = scalar_lea.vmem %s35, 2
  %v5157 = vld [vmem:[%s5156] sm:$0x3]
  %v5159 = vlaneseq
  %v5160 = vshrl.u32 %v5159, 7
  %v5161 = vsub.s32 0, %v5160
  %v5162 = vrot.slane %v5157, %v5161
  %v5163 = vlaneseq
  %v5164 = vshrl.u32 %v5163, 7
  %v5165 = vsub.s32 1, %v5164
  %v5166 = vrot.slane %v5157, %v5165
  %v5177 = vunpack.c.l.b16 %v5148
  %v5178 = vunpack.c.h.b16 %v5148
  %v5179 = vunpack.c.l.b16 %v5149
  %v5180 = vunpack.c.h.b16 %v5149
  %v5181 = vunpack.c.l.b16 %v5150
  %v5182 = vunpack.c.h.b16 %v5150
  %v5183 = vunpack.c.l.b16 %v5151
  %v5184 = vunpack.c.h.b16 %v5151
  %v5185 = vunpack.c.l.b16 %v5152
  %v5186 = vunpack.c.h.b16 %v5152
  %v5187 = vunpack.c.l.b16 %v5153
  %v5188 = vunpack.c.h.b16 %v5153
  %v5189 = vunpack.c.l.b16 %v5154
  %v5190 = vunpack.c.h.b16 %v5154
  %v5191 = vunpack.c.l.b16 %v5155
  %v5192 = vunpack.c.h.b16 %v5155
  %v5193 = vpack.c.b16 %v5179, %v5177
  %v5194 = vpack.c.b16 %v5180, %v5178
  %v5195 = vpack.c.b16 %v5183, %v5181
  %v5196 = vpack.c.b16 %v5184, %v5182
  %v5197 = vpack.c.b16 %v5187, %v5185
  %v5198 = vpack.c.b16 %v5188, %v5186
  %v5199 = vpack.c.b16 %v5191, %v5189
  %v5200 = vpack.c.b16 %v5192, %v5190
  %v5210 = vsel %vm485, %v5141, 0
  %v5213 = vsel %vm485, %v5142, 0
  %v5216 = vsel %vm485, %v5143, 0
  %v5219 = vsel %vm485, %v5144, 0
  %v5222 = vsel %vm485, %v5145, 0
  %v5225 = vsel %vm485, %v5146, 0
  %5227 = vmatprep.subr.bf16.mxu0 %v5194
  %5228 = vmatpush1.bf16.msra.mxu0 %v5193
  %5229 = vmatprep.subr.bf16.mxu0 %v5196
  %5230 = vmatpush1.bf16.msra.mxu0 %v5195
  %5231 = vmatprep.subr.bf16.mxu0 %v5198
  %5232 = vmatpush1.bf16.msra.mxu0 %v5197
  %5233 = vmatprep.subr.bf16.mxu0 %v5200
  %5234 = vmatpush1.bf16.msra.mxu0 %v5199
  %5235 = vmatprep.subr.bf16.mxu0 0
  %5236 = vmatpush1.bf16.msra.mxu0 0
  %5237 = vmatprep.subr.bf16.mxu0 0
  %5238 = vmatpush1.bf16.msra.mxu0 0
  %5239 = vmatprep.subr.bf16.mxu0 0
  %5240 = vmatpush1.bf16.msra.mxu0 0
  %5241 = vmatprep.subr.bf16.mxu0 0
  %5242 = vmatpush1.bf16.msra.mxu0 0
  %5243 = vmatprep.subr.bf16.mxu0 0
  %5244 = vmatpush1.bf16.msra.mxu0 0
  %5245 = vmatprep.subr.bf16.mxu0 0
  %5246 = vmatpush1.bf16.msra.mxu0 0
  %5247 = vmatprep.subr.bf16.mxu0 0
  %5248 = vmatpush1.bf16.msra.mxu0 0
  %5249 = vmatprep.subr.bf16.mxu0 0
  %5250 = vmatpush1.bf16.msra.mxu0 0
  %5251 = vmatprep.subr.bf16.mxu0 0
  %5252 = vmatpush1.bf16.msra.mxu0 0
  %5253 = vmatprep.subr.bf16.mxu0 0
  %5254 = vmatpush1.bf16.msra.mxu0 0
  %5255 = vmatprep.subr.bf16.mxu0 0
  %5256 = vmatpush1.bf16.msra.mxu0 0
  %5257 = vmatprep.subr.bf16.mxu0 0
  %5258 = vmatpush1.bf16.msra.mxu0 0
  %5259 = vmatprep.mubr.bf16.mxu0 0
  %5260 = vmatmul.mubr.bf16.gmra.mrb[0].mxu0 %v5210
  %v5261 = vpop.f32.mrb[0].mxu0
  %v5262 = vadd.f32 %v5162, %v5261
  %v5263 = vpop.f32.mrb[0].mxu0
  %v5264 = vadd.f32 %v5166, %v5263
  %v5265 = vpop.f32.mrb[0].mxu0
  %v5266 = vadd.f32 %v5162, %v5265
  %v5267 = vpop.f32.mrb[0].mxu0
  %v5268 = vadd.f32 %v5166, %v5267
  %5269 = vmatprep.mubr.bf16.mxu0 0
  %5270 = vmatmul.mubr.bf16.gmra.mrb[0].mxu0 %v5213
  %v5271 = vpop.f32.mrb[0].mxu0
  %v5272 = vadd.f32 %v5162, %v5271
  %v5273 = vpop.f32.mrb[0].mxu0
  %v5274 = vadd.f32 %v5166, %v5273
  %v5275 = vpop.f32.mrb[0].mxu0
  %v5276 = vadd.f32 %v5162, %v5275
  %v5277 = vpop.f32.mrb[0].mxu0
  %v5278 = vadd.f32 %v5166, %v5277
  %5279 = vmatprep.mubr.bf16.mxu0 0
  %5280 = vmatmul.mubr.bf16.gmra.mrb[0].mxu0 %v5216
  %v5281 = vpop.f32.mrb[0].mxu0
  %v5282 = vadd.f32 %v5162, %v5281
  %v5283 = vpop.f32.mrb[0].mxu0
  %v5284 = vadd.f32 %v5166, %v5283
  %v5285 = vpop.f32.mrb[0].mxu0
  %v5286 = vadd.f32 %v5162, %v5285
  %v5287 = vpop.f32.mrb[0].mxu0
  %v5288 = vadd.f32 %v5166, %v5287
  %5289 = vmatprep.mubr.bf16.mxu0 0
  %5290 = vmatmul.mubr.bf16.gmra.mrb[0].mxu0 %v5219
  %v5291 = vpop.f32.mrb[0].mxu0
  %v5292 = vadd.f32 %v5162, %v5291
  %v5293 = vpop.f32.mrb[0].mxu0
  %v5294 = vadd.f32 %v5166, %v5293
  %v5295 = vpop.f32.mrb[0].mxu0
  %v5296 = vadd.f32 %v5162, %v5295
  %v5297 = vpop.f32.mrb[0].mxu0
  %v5298 = vadd.f32 %v5166, %v5297
  %5299 = vmatprep.mubr.bf16.mxu0 0
  %5300 = vmatmul.mubr.bf16.gmra.mrb[0].mxu0 %v5222
  %v5301 = vpop.f32.mrb[0].mxu0
  %v5302 = vadd.f32 %v5162, %v5301
  %v5303 = vpop.f32.mrb[0].mxu0
  %v5304 = vadd.f32 %v5166, %v5303
  %v5305 = vpop.f32.mrb[0].mxu0
  %v5306 = vadd.f32 %v5162, %v5305
  %v5307 = vpop.f32.mrb[0].mxu0
  %v5308 = vadd.f32 %v5166, %v5307
  %5309 = vmatprep.mubr.bf16.mxu0 0
  %5310 = vmatmul.mubr.bf16.gmra.mrb[0].mxu0 %v5225
  %v5311 = vpop.f32.mrb[0].mxu0
  %v5312 = vadd.f32 %v5162, %v5311
  %v5313 = vpop.f32.mrb[0].mxu0
  %v5314 = vadd.f32 %v5166, %v5313
  %v5315 = vpop.f32.mrb[0].mxu0
  %v5316 = vadd.f32 %v5162, %v5315
  %v5317 = vpop.f32.mrb[0].mxu0
  %v5318 = vadd.f32 %v5166, %v5317
  %5319 = vdwg.mxu0
  %v5320 = vpack.c.bf16 %v5266, %v5262
  %v5321 = vpack.c.bf16 %v5276, %v5272
  %v5322 = vpack.c.bf16 %v5286, %v5282
  %v5323 = vpack.c.bf16 %v5296, %v5292
  %v5324 = vpack.c.bf16 %v5306, %v5302
  %v5325 = vpack.c.bf16 %v5316, %v5312
  %v5326 = vpack.c.bf16 %v5268, %v5264
  %v5327 = vpack.c.bf16 %v5278, %v5274
  %v5328 = vpack.c.bf16 %v5288, %v5284
  %v5329 = vpack.c.bf16 %v5298, %v5294
  %v5330 = vpack.c.bf16 %v5308, %v5304
  %v5331 = vpack.c.bf16 %v5318, %v5314
  %5338 = vrot.lane.b32.xlu0 %v5320, 64
  %v5339 = vpop.permute.xlu0 %5338
  %5340 = vrot.lane.b32.xlu0 %v5321, 64
  %v5341 = vpop.permute.xlu0 %5340
  %5342 = vrot.lane.b32.xlu0 %v5322, 64
  %v5343 = vpop.permute.xlu0 %5342
  %5344 = vrot.lane.b32.xlu0 %v5323, 64
  %v5345 = vpop.permute.xlu0 %5344
  %5346 = vrot.lane.b32.xlu0 %v5324, 64
  %v5347 = vpop.permute.xlu0 %5346
  %5348 = vrot.lane.b32.xlu0 %v5325, 64
  %v5349 = vpop.permute.xlu0 %5348
  %v5351 = vsel %vm1950, %v5320, 0
  %v5354 = vsel %vm1950, %v5321, 0
  %v5357 = vsel %vm1950, %v5322, 0
  %v5360 = vsel %vm1950, %v5323, 0
  %v5363 = vsel %vm1950, %v5324, 0
  %v5366 = vsel %vm1950, %v5325, 0
  %v5369 = vsel %vm1950, %v5339, 0
  %v5372 = vsel %vm1950, %v5341, 0
  %v5375 = vsel %vm1950, %v5343, 0
  %v5378 = vsel %vm1950, %v5345, 0
  %v5381 = vsel %vm1950, %v5347, 0
  %v5384 = vsel %vm1950, %v5349, 0
  %5386 = vmatprep.subr.bf16.mxu0 0
  %5387 = vmatpush1.bf16.xpose.msra.mxu0 %v5369
  %5388 = vmatprep.subr.bf16.mxu0 0
  %5389 = vmatpush1.bf16.xpose.msra.mxu0 %v5372
  %5390 = vmatprep.subr.bf16.mxu0 0
  %5391 = vmatpush1.bf16.xpose.msra.mxu0 %v5375
  %5392 = vmatprep.subr.bf16.mxu0 0
  %5393 = vmatpush1.bf16.xpose.msra.mxu0 %v5378
  %5394 = vmatprep.subr.bf16.mxu0 0
  %5395 = vmatpush1.bf16.xpose.msra.mxu0 %v5381
  %5396 = vmatprep.subr.bf16.mxu0 0
  %5397 = vmatpush1.bf16.xpose.msra.mxu0 %v5384
  %5398 = vmatprep.subr.bf16.mxu0 0
  %5399 = vmatpush1.bf16.xpose.msra.mxu0 0
  %5400 = vmatprep.subr.bf16.mxu0 0
  %5401 = vmatpush1.bf16.xpose.msra.mxu0 0
  %5402 = vmatprep.subr.bf16.mxu0 0
  %5403 = vmatpush1.bf16.xpose.msra.mxu0 0
  %5404 = vmatprep.subr.bf16.mxu0 0
  %5405 = vmatpush1.bf16.xpose.msra.mxu0 0
  %5406 = vmatprep.subr.bf16.mxu0 0
  %5407 = vmatpush1.bf16.xpose.msra.mxu0 0
  %5408 = vmatprep.subr.bf16.mxu0 0
  %5409 = vmatpush1.bf16.xpose.msra.mxu0 0
  %5410 = vmatprep.subr.bf16.mxu0 0
  %5411 = vmatpush1.bf16.xpose.msra.mxu0 0
  %5412 = vmatprep.subr.bf16.mxu0 0
  %5413 = vmatpush1.bf16.xpose.msra.mxu0 0
  %5414 = vmatprep.subr.bf16.mxu0 0
  %5415 = vmatpush1.bf16.xpose.msra.mxu0 0
  %5416 = vmatprep.subr.bf16.mxu0 0
  %5417 = vmatpush1.bf16.xpose.msra.mxu0 0
  %5418 = vmatprep.mubr.bf16.mxu0 0
  %5419 = vmatmul.mubr.bf16.gmra.mrb[0].mxu0 %v5351
  %v5420 = vpop.f32.mrb[0].mxu0
  %v5421 = vadd.f32 0.0, %v5420
  %v5422 = vpop.f32.mrb[0].mxu0
  %v5423 = vpop.f32.mrb[0].mxu0
  %v5424 = vadd.f32 0.0, %v5423
  %v5425 = vpop.f32.mrb[0].mxu0
  %5426 = vmatprep.mubr.bf16.mxu0 0
  %5427 = vmatmul.mubr.bf16.gmra.mrb[0].mxu0 %v5354
  %v5428 = vpop.f32.mrb[0].mxu0
  %v5429 = vadd.f32 0.0, %v5428
  %v5430 = vpop.f32.mrb[0].mxu0
  %v5431 = vpop.f32.mrb[0].mxu0
  %v5432 = vadd.f32 0.0, %v5431
  %v5433 = vpop.f32.mrb[0].mxu0
  %5434 = vmatprep.mubr.bf16.mxu0 0
  %5435 = vmatmul.mubr.bf16.gmra.mrb[0].mxu0 %v5357
  %v5436 = vpop.f32.mrb[0].mxu0
  %v5437 = vadd.f32 0.0, %v5436
  %v5438 = vpop.f32.mrb[0].mxu0
  %v5439 = vpop.f32.mrb[0].mxu0
  %v5440 = vadd.f32 0.0, %v5439
  %v5441 = vpop.f32.mrb[0].mxu0
  %5442 = vmatprep.mubr.bf16.mxu0 0
  %5443 = vmatmul.mubr.bf16.gmra.mrb[0].mxu0 %v5360
  %v5444 = vpop.f32.mrb[0].mxu0
  %v5445 = vadd.f32 0.0, %v5444
  %v5446 = vpop.f32.mrb[0].mxu0
  %v5447 = vpop.f32.mrb[0].mxu0
  %v5448 = vadd.f32 0.0, %v5447
  %v5449 = vpop.f32.mrb[0].mxu0
  %5450 = vmatprep.mubr.bf16.mxu0 0
  %5451 = vmatmul.mubr.bf16.gmra.mrb[0].mxu0 %v5363
  %v5452 = vpop.f32.mrb[0].mxu0
  %v5453 = vadd.f32 0.0, %v5452
  %v5454 = vpop.f32.mrb[0].mxu0
  %v5455 = vpop.f32.mrb[0].mxu0
  %v5456 = vadd.f32 0.0, %v5455
  %v5457 = vpop.f32.mrb[0].mxu0
  %5458 = vmatprep.mubr.bf16.mxu0 0
  %5459 = vmatmul.mubr.bf16.gmra.mrb[0].mxu0 %v5366
  %v5460 = vpop.f32.mrb[0].mxu0
  %v5461 = vadd.f32 0.0, %v5460
  %v5462 = vpop.f32.mrb[0].mxu0
  %v5463 = vpop.f32.mrb[0].mxu0
  %v5464 = vadd.f32 0.0, %v5463
  %v5465 = vpop.f32.mrb[0].mxu0
  %5466 = vdwg.mxu0
  %v5467 = vmul.f32 %v5421, 0.25
  %v5468 = vmul.f32 %v5424, 0.25
  %v5469 = vmul.f32 %v5429, 0.25
  %v5470 = vmul.f32 %v5432, 0.25
  %v5471 = vmul.f32 %v5437, 0.25
  %v5472 = vmul.f32 %v5440, 0.25
  %v5473 = vmul.f32 %v5445, 0.25
  %v5474 = vmul.f32 %v5448, 0.25
  %v5475 = vmul.f32 %v5453, 0.25
  %v5476 = vmul.f32 %v5456, 0.25
  %v5477 = vmul.f32 %v5461, 0.25
  %v5478 = vmul.f32 %v5464, 0.25
  %v5479 = vadd.f32 %v5467, %v1536
  %v5480 = vadd.f32 %v5468, %v1537
  %v5481 = vadd.f32 %v5469, %v1538
  %v5482 = vadd.f32 %v5470, %v1539
  %v5483 = vadd.f32 %v5471, %v1540
  %v5484 = vadd.f32 %v5472, %v1541
  %v5485 = vadd.f32 %v5473, %v1542
  %v5486 = vadd.f32 %v5474, %v1543
  %v5487 = vadd.f32 %v5475, %v1544
  %v5488 = vadd.f32 %v5476, %v1545
  %v5489 = vadd.f32 %v5477, %v1546
  %v5490 = vadd.f32 %v5478, %v1547
  %v5491 = vsel %vm2092, %v5479, -inf
  %5492 = vmax.xlane.f32.xlu0 %v5491
  %v5493 = vpop.xlane.xlu0 %5492
  %v5494 = vsel %vm2092, %v5480, -inf
  %5495 = vmax.xlane.f32.xlu0 %v5494
  %v5496 = vpop.xlane.xlu0 %5495
  %v5497 = vsel %vm2092, %v5481, -inf
  %5498 = vmax.xlane.f32.xlu0 %v5497
  %v5499 = vpop.xlane.xlu0 %5498
  %v5500 = vsel %vm2092, %v5482, -inf
  %5501 = vmax.xlane.f32.xlu0 %v5500
  %v5502 = vpop.xlane.xlu0 %5501
  %v5503 = vsel %vm2092, %v5483, -inf
  %5504 = vmax.xlane.f32.xlu0 %v5503
  %v5505 = vpop.xlane.xlu0 %5504
  %v5506 = vsel %vm2092, %v5484, -inf
  %5507 = vmax.xlane.f32.xlu0 %v5506
  %v5508 = vpop.xlane.xlu0 %5507
  %v5509 = vsel %vm2092, %v5485, -inf
  %5510 = vmax.xlane.f32.xlu0 %v5509
  %v5511 = vpop.xlane.xlu0 %5510
  %v5512 = vsel %vm2092, %v5486, -inf
  %5513 = vmax.xlane.f32.xlu0 %v5512
  %v5514 = vpop.xlane.xlu0 %5513
  %v5515 = vsel %vm2092, %v5487, -inf
  %5516 = vmax.xlane.f32.xlu0 %v5515
  %v5517 = vpop.xlane.xlu0 %5516
  %v5518 = vsel %vm2092, %v5488, -inf
  %5519 = vmax.xlane.f32.xlu0 %v5518
  %v5520 = vpop.xlane.xlu0 %5519
  %v5521 = vsel %vm2092, %v5489, -inf
  %5522 = vmax.xlane.f32.xlu0 %v5521
  %v5523 = vpop.xlane.xlu0 %5522
  %v5524 = vsel %vm2092, %v5490, -inf
  %5525 = vmax.xlane.f32.xlu0 %v5524
  %v5526 = vpop.xlane.xlu0 %5525
  %v5527 = vsub.f32 %v5479, %v5493
  %v5528 = vsub.f32 %v5480, %v5496
  %v5529 = vsub.f32 %v5481, %v5499
  %v5530 = vsub.f32 %v5482, %v5502
  %v5531 = vsub.f32 %v5483, %v5505
  %v5532 = vsub.f32 %v5484, %v5508
  %v5533 = vsub.f32 %v5485, %v5511
  %v5534 = vsub.f32 %v5486, %v5514
  %v5535 = vsub.f32 %v5487, %v5517
  %v5536 = vsub.f32 %v5488, %v5520
  %v5537 = vsub.f32 %v5489, %v5523
  %v5538 = vsub.f32 %v5490, %v5526
  %v5539 = vmul.f32 %v5527, 1.442695
  %v5540 = vpow.pop %v5539
  %v5541 = vmul.f32 %v5528, 1.442695
  %v5542 = vpow.pop %v5541
  %v5543 = vmul.f32 %v5529, 1.442695
  %v5544 = vpow.pop %v5543
  %v5545 = vmul.f32 %v5530, 1.442695
  %v5546 = vpow.pop %v5545
  %v5547 = vmul.f32 %v5531, 1.442695
  %v5548 = vpow.pop %v5547
  %v5549 = vmul.f32 %v5532, 1.442695
  %v5550 = vpow.pop %v5549
  %v5551 = vmul.f32 %v5533, 1.442695
  %v5552 = vpow.pop %v5551
  %v5553 = vmul.f32 %v5534, 1.442695
  %v5554 = vpow.pop %v5553
  %v5555 = vmul.f32 %v5535, 1.442695
  %v5556 = vpow.pop %v5555
  %v5557 = vmul.f32 %v5536, 1.442695
  %v5558 = vpow.pop %v5557
  %v5559 = vmul.f32 %v5537, 1.442695
  %v5560 = vpow.pop %v5559
  %v5561 = vmul.f32 %v5538, 1.442695
  %v5562 = vpow.pop %v5561
  %v5563 = vsel %vm2092, %v5540, 0.0
  %5564 = vadd.xlane.f32.xlu0 %v5563
  %v5565 = vpop.xlane.xlu0 %5564
  %v5566 = vsel %vm2092, %v5542, 0.0
  %5567 = vadd.xlane.f32.xlu0 %v5566
  %v5568 = vpop.xlane.xlu0 %5567
  %v5569 = vsel %vm2092, %v5544, 0.0
  %5570 = vadd.xlane.f32.xlu0 %v5569
  %v5571 = vpop.xlane.xlu0 %5570
  %v5572 = vsel %vm2092, %v5546, 0.0
  %5573 = vadd.xlane.f32.xlu0 %v5572
  %v5574 = vpop.xlane.xlu0 %5573
  %v5575 = vsel %vm2092, %v5548, 0.0
  %5576 = vadd.xlane.f32.xlu0 %v5575
  %v5577 = vpop.xlane.xlu0 %5576
  %v5578 = vsel %vm2092, %v5550, 0.0
  %5579 = vadd.xlane.f32.xlu0 %v5578
  %v5580 = vpop.xlane.xlu0 %5579
  %v5581 = vsel %vm2092, %v5552, 0.0
  %5582 = vadd.xlane.f32.xlu0 %v5581
  %v5583 = vpop.xlane.xlu0 %5582
  %v5584 = vsel %vm2092, %v5554, 0.0
  %5585 = vadd.xlane.f32.xlu0 %v5584
  %v5586 = vpop.xlane.xlu0 %5585
  %v5587 = vsel %vm2092, %v5556, 0.0
  %5588 = vadd.xlane.f32.xlu0 %v5587
  %v5589 = vpop.xlane.xlu0 %5588
  %v5590 = vsel %vm2092, %v5558, 0.0
  %5591 = vadd.xlane.f32.xlu0 %v5590
  %v5592 = vpop.xlane.xlu0 %5591
  %v5593 = vsel %vm2092, %v5560, 0.0
  %5594 = vadd.xlane.f32.xlu0 %v5593
  %v5595 = vpop.xlane.xlu0 %5594
  %v5596 = vsel %vm2092, %v5562, 0.0
  %5597 = vadd.xlane.f32.xlu0 %v5596
  %v5598 = vpop.xlane.xlu0 %5597
  %v5599 = vrcp.pop %v5565
  %v5600 = vrcp.pop %v5568
  %v5601 = vrcp.pop %v5571
  %v5602 = vrcp.pop %v5574
  %v5603 = vrcp.pop %v5577
  %v5604 = vrcp.pop %v5580
  %v5605 = vrcp.pop %v5583
  %v5606 = vrcp.pop %v5586
  %v5607 = vrcp.pop %v5589
  %v5608 = vrcp.pop %v5592
  %v5609 = vrcp.pop %v5595
  %v5610 = vrcp.pop %v5598
  %v5611 = vmul.f32 %v5540, %v5599
  %v5612 = vmul.f32 %v5542, %v5600
  %v5613 = vmul.f32 %v5544, %v5601
  %v5614 = vmul.f32 %v5546, %v5602
  %v5615 = vmul.f32 %v5548, %v5603
  %v5616 = vmul.f32 %v5550, %v5604
  %v5617 = vmul.f32 %v5552, %v5605
  %v5618 = vmul.f32 %v5554, %v5606
  %v5619 = vmul.f32 %v5556, %v5607
  %v5620 = vmul.f32 %v5558, %v5608
  %v5621 = vmul.f32 %v5560, %v5609
  %v5622 = vmul.f32 %v5562, %v5610
  %v5623 = vpack.c.bf16 %v5612, %v5611
  %v5624 = vpack.c.bf16 %v5614, %v5613
  %v5625 = vpack.c.bf16 %v5616, %v5615
  %v5626 = vpack.c.bf16 %v5618, %v5617
  %v5627 = vpack.c.bf16 %v5620, %v5619
  %v5628 = vpack.c.bf16 %v5622, %v5621
  %v5630 = vsel %vm2092, %v5623, 0
  %v5633 = vsel %vm2092, %v5624, 0
  %v5636 = vsel %vm2092, %v5625, 0
  %v5639 = vsel %vm2092, %v5626, 0
  %v5642 = vsel %vm2092, %v5627, 0
  %v5645 = vsel %vm2092, %v5628, 0
  %5647 = vmatprep.subr.bf16.mxu0 0
  %5648 = vmatpush1.bf16.msra.mxu0 %v5326
  %5649 = vmatprep.subr.bf16.mxu0 0
  %5650 = vmatpush1.bf16.msra.mxu0 %v5327
  %5651 = vmatprep.subr.bf16.mxu0 0
  %5652 = vmatpush1.bf16.msra.mxu0 %v5328
  %5653 = vmatprep.subr.bf16.mxu0 0
  %5654 = vmatpush1.bf16.msra.mxu0 %v5329
  %5655 = vmatprep.subr.bf16.mxu0 0
  %5656 = vmatpush1.bf16.msra.mxu0 %v5330
  %5657 = vmatprep.subr.bf16.mxu0 0
  %5658 = vmatpush1.bf16.msra.mxu0 %v5331
  %5659 = vmatprep.subr.bf16.mxu0 0
  %5660 = vmatpush1.bf16.msra.mxu0 0
  %5661 = vmatprep.subr.bf16.mxu0 0
  %5662 = vmatpush1.bf16.msra.mxu0 0
  %5663 = vmatprep.subr.bf16.mxu0 0
  %5664 = vmatpush1.bf16.msra.mxu0 0
  %5665 = vmatprep.subr.bf16.mxu0 0
  %5666 = vmatpush1.bf16.msra.mxu0 0
  %5667 = vmatprep.subr.bf16.mxu0 0
  %5668 = vmatpush1.bf16.msra.mxu0 0
  %5669 = vmatprep.subr.bf16.mxu0 0
  %5670 = vmatpush1.bf16.msra.mxu0 0
  %5671 = vmatprep.subr.bf16.mxu0 0
  %5672 = vmatpush1.bf16.msra.mxu0 0
  %5673 = vmatprep.subr.bf16.mxu0 0
  %5674 = vmatpush1.bf16.msra.mxu0 0
  %5675 = vmatprep.subr.bf16.mxu0 0
  %5676 = vmatpush1.bf16.msra.mxu0 0
  %5677 = vmatprep.subr.bf16.mxu0 0
  %5678 = vmatpush1.bf16.msra.mxu0 0
  %5679 = vmatprep.mubr.bf16.mxu0 0
  %5680 = vmatmul.mubr.bf16.gmra.mrb[0].mxu0 %v5630
  %v5681 = vpop.f32.mrb[0].mxu0
  %v5682 = vadd.f32 0.0, %v5681
  %v5683 = vpop.f32.mrb[0].mxu0
  %v5684 = vpop.f32.mrb[0].mxu0
  %v5685 = vadd.f32 0.0, %v5684
  %v5686 = vpop.f32.mrb[0].mxu0
  %5687 = vmatprep.mubr.bf16.mxu0 0
  %5688 = vmatmul.mubr.bf16.gmra.mrb[0].mxu0 %v5633
  %v5689 = vpop.f32.mrb[0].mxu0
  %v5690 = vadd.f32 0.0, %v5689
  %v5691 = vpop.f32.mrb[0].mxu0
  %v5692 = vpop.f32.mrb[0].mxu0
  %v5693 = vadd.f32 0.0, %v5692
  %v5694 = vpop.f32.mrb[0].mxu0
  %5695 = vmatprep.mubr.bf16.mxu0 0
  %5696 = vmatmul.mubr.bf16.gmra.mrb[0].mxu0 %v5636
  %v5697 = vpop.f32.mrb[0].mxu0
  %v5698 = vadd.f32 0.0, %v5697
  %v5699 = vpop.f32.mrb[0].mxu0
  %v5700 = vpop.f32.mrb[0].mxu0
  %v5701 = vadd.f32 0.0, %v5700
  %v5702 = vpop.f32.mrb[0].mxu0
  %5703 = vmatprep.mubr.bf16.mxu0 0
  %5704 = vmatmul.mubr.bf16.gmra.mrb[0].mxu0 %v5639
  %v5705 = vpop.f32.mrb[0].mxu0
  %v5706 = vadd.f32 0.0, %v5705
  %v5707 = vpop.f32.mrb[0].mxu0
  %v5708 = vpop.f32.mrb[0].mxu0
  %v5709 = vadd.f32 0.0, %v5708
  %v5710 = vpop.f32.mrb[0].mxu0
  %5711 = vmatprep.mubr.bf16.mxu0 0
  %5712 = vmatmul.mubr.bf16.gmra.mrb[0].mxu0 %v5642
  %v5713 = vpop.f32.mrb[0].mxu0
  %v5714 = vadd.f32 0.0, %v5713
  %v5715 = vpop.f32.mrb[0].mxu0
  %v5716 = vpop.f32.mrb[0].mxu0
  %v5717 = vadd.f32 0.0, %v5716
  %v5718 = vpop.f32.mrb[0].mxu0
  %5719 = vmatprep.mubr.bf16.mxu0 0
  %5720 = vmatmul.mubr.bf16.gmra.mrb[0].mxu0 %v5645
  %v5721 = vpop.f32.mrb[0].mxu0
  %v5722 = vadd.f32 0.0, %v5721
  %v5723 = vpop.f32.mrb[0].mxu0
  %v5724 = vpop.f32.mrb[0].mxu0
  %v5725 = vadd.f32 0.0, %v5724
  %v5726 = vpop.f32.mrb[0].mxu0
  %5727 = vdwg.mxu0
  %v5728 = vpack.c.bf16 %v5685, %v5682
  %v5729 = vpack.c.bf16 %v5693, %v5690
  %v5730 = vpack.c.bf16 %v5701, %v5698
  %v5731 = vpack.c.bf16 %v5709, %v5706
  %v5732 = vpack.c.bf16 %v5717, %v5714
  %v5733 = vpack.c.bf16 %v5725, %v5722
  %s5734 = scalar_lea.vmem %s37, 32
  %v5735 = vld [vmem:[%s5734] sm:$0xf]
  %v5736 = vld [vmem:[%s5734 + $0x4] sm:$0xf]
  %5737 = vrot.lane.b32.xlu0 %v5320, 112
  %v5738 = vpop.permute.xlu0 %5737
  %5739 = vrot.lane.b32.xlu0 %v5321, 112
  %v5740 = vpop.permute.xlu0 %5739
  %5741 = vrot.lane.b32.xlu0 %v5322, 112
  %v5742 = vpop.permute.xlu0 %5741
  %5743 = vrot.lane.b32.xlu0 %v5323, 112
  %v5744 = vpop.permute.xlu0 %5743
  %5745 = vrot.lane.b32.xlu0 %v5324, 112
  %v5746 = vpop.permute.xlu0 %5745
  %5747 = vrot.lane.b32.xlu0 %v5325, 112
  %v5748 = vpop.permute.xlu0 %5747
  %5749 = vrot.lane.b32.xlu0 %v5320, 48
  %v5750 = vpop.permute.xlu0 %5749
  %5751 = vrot.lane.b32.xlu0 %v5321, 48
  %v5752 = vpop.permute.xlu0 %5751
  %5753 = vrot.lane.b32.xlu0 %v5322, 48
  %v5754 = vpop.permute.xlu0 %5753
  %5755 = vrot.lane.b32.xlu0 %v5323, 48
  %v5756 = vpop.permute.xlu0 %5755
  %5757 = vrot.lane.b32.xlu0 %v5324, 48
  %v5758 = vpop.permute.xlu0 %5757
  %5759 = vrot.lane.b32.xlu0 %v5325, 48
  %v5760 = vpop.permute.xlu0 %5759
  %v5762 = vsel %vm1950, %v5738, 0
  %v5765 = vsel %vm1950, %v5740, 0
  %v5768 = vsel %vm1950, %v5742, 0
  %v5771 = vsel %vm1950, %v5744, 0
  %v5774 = vsel %vm1950, %v5746, 0
  %v5777 = vsel %vm1950, %v5748, 0
  %v5780 = vsel %vm1950, %v5750, 0
  %v5783 = vsel %vm1950, %v5752, 0
  %v5786 = vsel %vm1950, %v5754, 0
  %v5789 = vsel %vm1950, %v5756, 0
  %v5792 = vsel %vm1950, %v5758, 0
  %v5795 = vsel %vm1950, %v5760, 0
  %5797 = vmatprep.subr.bf16.mxu0 0
  %5798 = vmatpush1.bf16.xpose.msra.mxu0 %v5780
  %5799 = vmatprep.subr.bf16.mxu0 0
  %5800 = vmatpush1.bf16.xpose.msra.mxu0 %v5783
  %5801 = vmatprep.subr.bf16.mxu0 0
  %5802 = vmatpush1.bf16.xpose.msra.mxu0 %v5786
  %5803 = vmatprep.subr.bf16.mxu0 0
  %5804 = vmatpush1.bf16.xpose.msra.mxu0 %v5789
  %5805 = vmatprep.subr.bf16.mxu0 0
  %5806 = vmatpush1.bf16.xpose.msra.mxu0 %v5792
  %5807 = vmatprep.subr.bf16.mxu0 0
  %5808 = vmatpush1.bf16.xpose.msra.mxu0 %v5795
  %5809 = vmatprep.subr.bf16.mxu0 0
  %5810 = vmatpush1.bf16.xpose.msra.mxu0 0
  %5811 = vmatprep.subr.bf16.mxu0 0
  %5812 = vmatpush1.bf16.xpose.msra.mxu0 0
  %5813 = vmatprep.subr.bf16.mxu0 0
  %5814 = vmatpush1.bf16.xpose.msra.mxu0 0
  %5815 = vmatprep.subr.bf16.mxu0 0
  %5816 = vmatpush1.bf16.xpose.msra.mxu0 0
  %5817 = vmatprep.subr.bf16.mxu0 0
  %5818 = vmatpush1.bf16.xpose.msra.mxu0 0
  %5819 = vmatprep.subr.bf16.mxu0 0
  %5820 = vmatpush1.bf16.xpose.msra.mxu0 0
  %5821 = vmatprep.subr.bf16.mxu0 0
  %5822 = vmatpush1.bf16.xpose.msra.mxu0 0
  %5823 = vmatprep.subr.bf16.mxu0 0
  %5824 = vmatpush1.bf16.xpose.msra.mxu0 0
  %5825 = vmatprep.subr.bf16.mxu0 0
  %5826 = vmatpush1.bf16.xpose.msra.mxu0 0
  %5827 = vmatprep.subr.bf16.mxu0 0
  %5828 = vmatpush1.bf16.xpose.msra.mxu0 0
  %5829 = vmatprep.mubr.bf16.mxu0 0
  %5830 = vmatmul.mubr.bf16.gmra.mrb[0].mxu0 %v5762
  %v5831 = vpop.f32.mrb[0].mxu0
  %v5832 = vadd.f32 0.0, %v5831
  %v5833 = vpop.f32.mrb[0].mxu0
  %v5834 = vpop.f32.mrb[0].mxu0
  %v5835 = vadd.f32 0.0, %v5834
  %v5836 = vpop.f32.mrb[0].mxu0
  %5837 = vmatprep.mubr.bf16.mxu0 0
  %5838 = vmatmul.mubr.bf16.gmra.mrb[0].mxu0 %v5765
  %v5839 = vpop.f32.mrb[0].mxu0
  %v5840 = vadd.f32 0.0, %v5839
  %v5841 = vpop.f32.mrb[0].mxu0
  %v5842 = vpop.f32.mrb[0].mxu0
  %v5843 = vadd.f32 0.0, %v5842
  %v5844 = vpop.f32.mrb[0].mxu0
  %5845 = vmatprep.mubr.bf16.mxu0 0
  %5846 = vmatmul.mubr.bf16.gmra.mrb[0].mxu0 %v5768
  %v5847 = vpop.f32.mrb[0].mxu0
  %v5848 = vadd.f32 0.0, %v5847
  %v5849 = vpop.f32.mrb[0].mxu0
  %v5850 = vpop.f32.mrb[0].mxu0
  %v5851 = vadd.f32 0.0, %v5850
  %v5852 = vpop.f32.mrb[0].mxu0
  %5853 = vmatprep.mubr.bf16.mxu0 0
  %5854 = vmatmul.mubr.bf16.gmra.mrb[0].mxu0 %v5771
  %v5855 = vpop.f32.mrb[0].mxu0
  %v5856 = vadd.f32 0.0, %v5855
  %v5857 = vpop.f32.mrb[0].mxu0
  %v5858 = vpop.f32.mrb[0].mxu0
  %v5859 = vadd.f32 0.0, %v5858
  %v5860 = vpop.f32.mrb[0].mxu0
  %5861 = vmatprep.mubr.bf16.mxu0 0
  %5862 = vmatmul.mubr.bf16.gmra.mrb[0].mxu0 %v5774
  %v5863 = vpop.f32.mrb[0].mxu0
  %v5864 = vadd.f32 0.0, %v5863
  %v5865 = vpop.f32.mrb[0].mxu0
  %v5866 = vpop.f32.mrb[0].mxu0
  %v5867 = vadd.f32 0.0, %v5866
  %v5868 = vpop.f32.mrb[0].mxu0
  %5869 = vmatprep.mubr.bf16.mxu0 0
  %5870 = vmatmul.mubr.bf16.gmra.mrb[0].mxu0 %v5777
  %v5871 = vpop.f32.mrb[0].mxu0
  %v5872 = vadd.f32 0.0, %v5871
  %v5873 = vpop.f32.mrb[0].mxu0
  %v5874 = vpop.f32.mrb[0].mxu0
  %v5875 = vadd.f32 0.0, %v5874
  %v5876 = vpop.f32.mrb[0].mxu0
  %5877 = vdwg.mxu0
  %v5878 = vmul.f32 %v5832, 0.25
  %v5879 = vmul.f32 %v5835, 0.25
  %v5880 = vmul.f32 %v5840, 0.25
  %v5881 = vmul.f32 %v5843, 0.25
  %v5882 = vmul.f32 %v5848, 0.25
  %v5883 = vmul.f32 %v5851, 0.25
  %v5884 = vmul.f32 %v5856, 0.25
  %v5885 = vmul.f32 %v5859, 0.25
  %v5886 = vmul.f32 %v5864, 0.25
  %v5887 = vmul.f32 %v5867, 0.25
  %v5888 = vmul.f32 %v5872, 0.25
  %v5889 = vmul.f32 %v5875, 0.25
  %v5890 = vadd.f32 %v5878, %v1536
  %v5891 = vadd.f32 %v5879, %v1537
  %v5892 = vadd.f32 %v5880, %v1538
  %v5893 = vadd.f32 %v5881, %v1539
  %v5894 = vadd.f32 %v5882, %v1540
  %v5895 = vadd.f32 %v5883, %v1541
  %v5896 = vadd.f32 %v5884, %v1542
  %v5897 = vadd.f32 %v5885, %v1543
  %v5898 = vadd.f32 %v5886, %v1544
  %v5899 = vadd.f32 %v5887, %v1545
  %v5900 = vadd.f32 %v5888, %v1546
  %v5901 = vadd.f32 %v5889, %v1547
  %v5902 = vsel %vm2092, %v5890, -inf
  %5903 = vmax.xlane.f32.xlu0 %v5902
  %v5904 = vpop.xlane.xlu0 %5903
  %v5905 = vsel %vm2092, %v5891, -inf
  %5906 = vmax.xlane.f32.xlu0 %v5905
  %v5907 = vpop.xlane.xlu0 %5906
  %v5908 = vsel %vm2092, %v5892, -inf
  %5909 = vmax.xlane.f32.xlu0 %v5908
  %v5910 = vpop.xlane.xlu0 %5909
  %v5911 = vsel %vm2092, %v5893, -inf
  %5912 = vmax.xlane.f32.xlu0 %v5911
  %v5913 = vpop.xlane.xlu0 %5912
  %v5914 = vsel %vm2092, %v5894, -inf
  %5915 = vmax.xlane.f32.xlu0 %v5914
  %v5916 = vpop.xlane.xlu0 %5915
  %v5917 = vsel %vm2092, %v5895, -inf
  %5918 = vmax.xlane.f32.xlu0 %v5917
  %v5919 = vpop.xlane.xlu0 %5918
  %v5920 = vsel %vm2092, %v5896, -inf
  %5921 = vmax.xlane.f32.xlu0 %v5920
  %v5922 = vpop.xlane.xlu0 %5921
  %v5923 = vsel %vm2092, %v5897, -inf
  %5924 = vmax.xlane.f32.xlu0 %v5923
  %v5925 = vpop.xlane.xlu0 %5924
  %v5926 = vsel %vm2092, %v5898, -inf
  %5927 = vmax.xlane.f32.xlu0 %v5926
  %v5928 = vpop.xlane.xlu0 %5927
  %v5929 = vsel %vm2092, %v5899, -inf
  %5930 = vmax.xlane.f32.xlu0 %v5929
  %v5931 = vpop.xlane.xlu0 %5930
  %v5932 = vsel %vm2092, %v5900, -inf
  %5933 = vmax.xlane.f32.xlu0 %v5932
  %v5934 = vpop.xlane.xlu0 %5933
  %v5935 = vsel %vm2092, %v5901, -inf
  %5936 = vmax.xlane.f32.xlu0 %v5935
  %v5937 = vpop.xlane.xlu0 %5936
  %v5938 = vsub.f32 %v5890, %v5904
  %v5939 = vsub.f32 %v5891, %v5907
  %v5940 = vsub.f32 %v5892, %v5910
  %v5941 = vsub.f32 %v5893, %v5913
  %v5942 = vsub.f32 %v5894, %v5916
  %v5943 = vsub.f32 %v5895, %v5919
  %v5944 = vsub.f32 %v5896, %v5922
  %v5945 = vsub.f32 %v5897, %v5925
  %v5946 = vsub.f32 %v5898, %v5928
  %v5947 = vsub.f32 %v5899, %v5931
  %v5948 = vsub.f32 %v5900, %v5934
  %v5949 = vsub.f32 %v5901, %v5937
  %v5950 = vmul.f32 %v5938, 1.442695
  %v5951 = vpow.pop %v5950
  %v5952 = vmul.f32 %v5939, 1.442695
  %v5953 = vpow.pop %v5952
  %v5954 = vmul.f32 %v5940, 1.442695
  %v5955 = vpow.pop %v5954
  %v5956 = vmul.f32 %v5941, 1.442695
  %v5957 = vpow.pop %v5956
  %v5958 = vmul.f32 %v5942, 1.442695
  %v5959 = vpow.pop %v5958
  %v5960 = vmul.f32 %v5943, 1.442695
  %v5961 = vpow.pop %v5960
  %v5962 = vmul.f32 %v5944, 1.442695
  %v5963 = vpow.pop %v5962
  %v5964 = vmul.f32 %v5945, 1.442695
  %v5965 = vpow.pop %v5964
  %v5966 = vmul.f32 %v5946, 1.442695
  %v5967 = vpow.pop %v5966
  %v5968 = vmul.f32 %v5947, 1.442695
  %v5969 = vpow.pop %v5968
  %v5970 = vmul.f32 %v5948, 1.442695
  %v5971 = vpow.pop %v5970
  %v5972 = vmul.f32 %v5949, 1.442695
  %v5973 = vpow.pop %v5972
  %v5974 = vsel %vm2092, %v5951, 0.0
  %5975 = vadd.xlane.f32.xlu0 %v5974
  %v5976 = vpop.xlane.xlu0 %5975
  %v5977 = vsel %vm2092, %v5953, 0.0
  %5978 = vadd.xlane.f32.xlu0 %v5977
  %v5979 = vpop.xlane.xlu0 %5978
  %v5980 = vsel %vm2092, %v5955, 0.0
  %5981 = vadd.xlane.f32.xlu0 %v5980
  %v5982 = vpop.xlane.xlu0 %5981
  %v5983 = vsel %vm2092, %v5957, 0.0
  %5984 = vadd.xlane.f32.xlu0 %v5983
  %v5985 = vpop.xlane.xlu0 %5984
  %v5986 = vsel %vm2092, %v5959, 0.0
  %5987 = vadd.xlane.f32.xlu0 %v5986
  %v5988 = vpop.xlane.xlu0 %5987
  %v5989 = vsel %vm2092, %v5961, 0.0
  %5990 = vadd.xlane.f32.xlu0 %v5989
  %v5991 = vpop.xlane.xlu0 %5990
  %v5992 = vsel %vm2092, %v5963, 0.0
  %5993 = vadd.xlane.f32.xlu0 %v5992
  %v5994 = vpop.xlane.xlu0 %5993
  %v5995 = vsel %vm2092, %v5965, 0.0
  %5996 = vadd.xlane.f32.xlu0 %v5995
  %v5997 = vpop.xlane.xlu0 %5996
  %v5998 = vsel %vm2092, %v5967, 0.0
  %5999 = vadd.xlane.f32.xlu0 %v5998
  %v6000 = vpop.xlane.xlu0 %5999
  %v6001 = vsel %vm2092, %v5969, 0.0
  %6002 = vadd.xlane.f32.xlu0 %v6001
  %v6003 = vpop.xlane.xlu0 %6002
  %v6004 = vsel %vm2092, %v5971, 0.0
  %6005 = vadd.xlane.f32.xlu0 %v6004
  %v6006 = vpop.xlane.xlu0 %6005
  %v6007 = vsel %vm2092, %v5973, 0.0
  %6008 = vadd.xlane.f32.xlu0 %v6007
  %v6009 = vpop.xlane.xlu0 %6008
  %v6010 = vrcp.pop %v5976
  %v6011 = vrcp.pop %v5979
  %v6012 = vrcp.pop %v5982
  %v6013 = vrcp.pop %v5985
  %v6014 = vrcp.pop %v5988
  %v6015 = vrcp.pop %v5991
  %v6016 = vrcp.pop %v5994
  %v6017 = vrcp.pop %v5997
  %v6018 = vrcp.pop %v6000
  %v6019 = vrcp.pop %v6003
  %v6020 = vrcp.pop %v6006
  %v6021 = vrcp.pop %v6009
  %v6022 = vmul.f32 %v5951, %v6010
  %v6023 = vmul.f32 %v5953, %v6011
  %v6024 = vmul.f32 %v5955, %v6012
  %v6025 = vmul.f32 %v5957, %v6013
  %v6026 = vmul.f32 %v5959, %v6014
  %v6027 = vmul.f32 %v5961, %v6015
  %v6028 = vmul.f32 %v5963, %v6016
  %v6029 = vmul.f32 %v5965, %v6017
  %v6030 = vmul.f32 %v5967, %v6018
  %v6031 = vmul.f32 %v5969, %v6019
  %v6032 = vmul.f32 %v5971, %v6020
  %v6033 = vmul.f32 %v5973, %v6021
  %v6034 = vpack.c.bf16 %v6023, %v6022
  %v6035 = vpack.c.bf16 %v6025, %v6024
  %v6036 = vpack.c.bf16 %v6027, %v6026
  %v6037 = vpack.c.bf16 %v6029, %v6028
  %v6038 = vpack.c.bf16 %v6031, %v6030
  %v6039 = vpack.c.bf16 %v6033, %v6032
  %6046 = vrot.lane.b32.xlu0 %v5326, 112
  %v6047 = vpop.permute.xlu0 %6046
  %6048 = vrot.lane.b32.xlu0 %v5327, 112
  %v6049 = vpop.permute.xlu0 %6048
  %6050 = vrot.lane.b32.xlu0 %v5328, 112
  %v6051 = vpop.permute.xlu0 %6050
  %6052 = vrot.lane.b32.xlu0 %v5329, 112
  %v6053 = vpop.permute.xlu0 %6052
  %6054 = vrot.lane.b32.xlu0 %v5330, 112
  %v6055 = vpop.permute.xlu0 %6054
  %6056 = vrot.lane.b32.xlu0 %v5331, 112
  %v6057 = vpop.permute.xlu0 %6056
  %v6065 = vsel %vm2092, %v6034, 0
  %v6068 = vsel %vm2092, %v6035, 0
  %v6071 = vsel %vm2092, %v6036, 0
  %v6074 = vsel %vm2092, %v6037, 0
  %v6077 = vsel %vm2092, %v6038, 0
  %v6080 = vsel %vm2092, %v6039, 0
  %6082 = vmatprep.subr.bf16.mxu0 0
  %6083 = vmatpush1.bf16.msra.mxu0 %v6047
  %6084 = vmatprep.subr.bf16.mxu0 0
  %6085 = vmatpush1.bf16.msra.mxu0 %v6049
  %6086 = vmatprep.subr.bf16.mxu0 0
  %6087 = vmatpush1.bf16.msra.mxu0 %v6051
  %6088 = vmatprep.subr.bf16.mxu0 0
  %6089 = vmatpush1.bf16.msra.mxu0 %v6053
  %6090 = vmatprep.subr.bf16.mxu0 0
  %6091 = vmatpush1.bf16.msra.mxu0 %v6055
  %6092 = vmatprep.subr.bf16.mxu0 0
  %6093 = vmatpush1.bf16.msra.mxu0 %v6057
  %6094 = vmatprep.subr.bf16.mxu0 0
  %6095 = vmatpush1.bf16.msra.mxu0 0
  %6096 = vmatprep.subr.bf16.mxu0 0
  %6097 = vmatpush1.bf16.msra.mxu0 0
  %6098 = vmatprep.subr.bf16.mxu0 0
  %6099 = vmatpush1.bf16.msra.mxu0 0
  %6100 = vmatprep.subr.bf16.mxu0 0
  %6101 = vmatpush1.bf16.msra.mxu0 0
  %6102 = vmatprep.subr.bf16.mxu0 0
  %6103 = vmatpush1.bf16.msra.mxu0 0
  %6104 = vmatprep.subr.bf16.mxu0 0
  %6105 = vmatpush1.bf16.msra.mxu0 0
  %6106 = vmatprep.subr.bf16.mxu0 0
  %6107 = vmatpush1.bf16.msra.mxu0 0
  %6108 = vmatprep.subr.bf16.mxu0 0
  %6109 = vmatpush1.bf16.msra.mxu0 0
  %6110 = vmatprep.subr.bf16.mxu0 0
  %6111 = vmatpush1.bf16.msra.mxu0 0
  %6112 = vmatprep.subr.bf16.mxu0 0
  %6113 = vmatpush1.bf16.msra.mxu0 0
  %6114 = vmatprep.mubr.bf16.mxu0 0
  %6115 = vmatmul.mubr.bf16.gmra.mrb[0].mxu0 %v6065
  %v6116 = vpop.f32.mrb[0].mxu0
  %v6117 = vadd.f32 0.0, %v6116
  %v6118 = vpop.f32.mrb[0].mxu0
  %v6119 = vpop.f32.mrb[0].mxu0
  %v6120 = vadd.f32 0.0, %v6119
  %v6121 = vpop.f32.mrb[0].mxu0
  %6122 = vmatprep.mubr.bf16.mxu0 0
  %6123 = vmatmul.mubr.bf16.gmra.mrb[0].mxu0 %v6068
  %v6124 = vpop.f32.mrb[0].mxu0
  %v6125 = vadd.f32 0.0, %v6124
  %v6126 = vpop.f32.mrb[0].mxu0
  %v6127 = vpop.f32.mrb[0].mxu0
  %v6128 = vadd.f32 0.0, %v6127
  %v6129 = vpop.f32.mrb[0].mxu0
  %6130 = vmatprep.mubr.bf16.mxu0 0
  %6131 = vmatmul.mubr.bf16.gmra.mrb[0].mxu0 %v6071
  %v6132 = vpop.f32.mrb[0].mxu0
  %v6133 = vadd.f32 0.0, %v6132
  %v6134 = vpop.f32.mrb[0].mxu0
  %v6135 = vpop.f32.mrb[0].mxu0
  %v6136 = vadd.f32 0.0, %v6135
  %v6137 = vpop.f32.mrb[0].mxu0
  %6138 = vmatprep.mubr.bf16.mxu0 0
  %6139 = vmatmul.mubr.bf16.gmra.mrb[0].mxu0 %v6074
  %v6140 = vpop.f32.mrb[0].mxu0
  %v6141 = vadd.f32 0.0, %v6140
  %v6142 = vpop.f32.mrb[0].mxu0
  %v6143 = vpop.f32.mrb[0].mxu0
  %v6144 = vadd.f32 0.0, %v6143
  %v6145 = vpop.f32.mrb[0].mxu0
  %6146 = vmatprep.mubr.bf16.mxu0 0
  %6147 = vmatmul.mubr.bf16.gmra.mrb[0].mxu0 %v6077
  %v6148 = vpop.f32.mrb[0].mxu0
  %v6149 = vadd.f32 0.0, %v6148
  %v6150 = vpop.f32.mrb[0].mxu0
  %v6151 = vpop.f32.mrb[0].mxu0
  %v6152 = vadd.f32 0.0, %v6151
  %v6153 = vpop.f32.mrb[0].mxu0
  %6154 = vmatprep.mubr.bf16.mxu0 0
  %6155 = vmatmul.mubr.bf16.gmra.mrb[0].mxu0 %v6080
  %v6156 = vpop.f32.mrb[0].mxu0
  %v6157 = vadd.f32 0.0, %v6156
  %v6158 = vpop.f32.mrb[0].mxu0
  %v6159 = vpop.f32.mrb[0].mxu0
  %v6160 = vadd.f32 0.0, %v6159
  %v6161 = vpop.f32.mrb[0].mxu0
  %6162 = vdwg.mxu0
  %v6163 = vpack.c.bf16 %v6120, %v6117
  %v6164 = vpack.c.bf16 %v6128, %v6125
  %v6165 = vpack.c.bf16 %v6136, %v6133
  %v6166 = vpack.c.bf16 %v6144, %v6141
  %v6167 = vpack.c.bf16 %v6152, %v6149
  %v6168 = vpack.c.bf16 %v6160, %v6157
  %s6169 = scalar_lea.vmem %s37, 40
  %v6170 = vld [vmem:[%s6169] sm:$0xf]
  %v6171 = vld [vmem:[%s6169 + $0x4] sm:$0xf]
  %v6174 = vunpack.c.l.b16 %v6170
  %v6175 = vunpack.c.l.b16 %v6171
  %v6176 = vpack.c.b16 %v6175, %v6174
  %v6179 = vsel %vm1950, %v6163, 0
  %v6182 = vsel %vm1950, %v6164, 0
  %v6185 = vsel %vm1950, %v6165, 0
  %v6188 = vsel %vm1950, %v6166, 0
  %v6191 = vsel %vm1950, %v6167, 0
  %v6194 = vsel %vm1950, %v6168, 0
  %6196 = vmatprep.subr.bf16.mxu0 0
  %6197 = vmatpush1.bf16.msra.mxu0 %v6176
  %6198 = vmatprep.subr.bf16.mxu0 0
  %6199 = vmatpush1.bf16.msra.mxu0 0
  %6200 = vmatprep.subr.bf16.mxu0 0
  %6201 = vmatpush1.bf16.msra.mxu0 0
  %6202 = vmatprep.subr.bf16.mxu0 0
  %6203 = vmatpush1.bf16.msra.mxu0 0
  %6204 = vmatprep.subr.bf16.mxu0 0
  %6205 = vmatpush1.bf16.msra.mxu0 0
  %6206 = vmatprep.subr.bf16.mxu0 0
  %6207 = vmatpush1.bf16.msra.mxu0 0
  %6208 = vmatprep.subr.bf16.mxu0 0
  %6209 = vmatpush1.bf16.msra.mxu0 0
  %6210 = vmatprep.subr.bf16.mxu0 0
  %6211 = vmatpush1.bf16.msra.mxu0 0
  %6212 = vmatprep.subr.bf16.mxu0 0
  %6213 = vmatpush1.bf16.msra.mxu0 0
  %6214 = vmatprep.subr.bf16.mxu0 0
  %6215 = vmatpush1.bf16.msra.mxu0 0
  %6216 = vmatprep.subr.bf16.mxu0 0
  %6217 = vmatpush1.bf16.msra.mxu0 0
  %6218 = vmatprep.subr.bf16.mxu0 0
  %6219 = vmatpush1.bf16.msra.mxu0 0
  %6220 = vmatprep.subr.bf16.mxu0 0
  %6221 = vmatpush1.bf16.msra.mxu0 0
  %6222 = vmatprep.subr.bf16.mxu0 0
  %6223 = vmatpush1.bf16.msra.mxu0 0
  %6224 = vmatprep.subr.bf16.mxu0 0
  %6225 = vmatpush1.bf16.msra.mxu0 0
  %6226 = vmatprep.subr.bf16.mxu0 0
  %6227 = vmatpush1.bf16.msra.mxu0 0
  %6228 = vmatprep.mubr.bf16.mxu0 0
  %6229 = vmatmul.mubr.bf16.gmra.mrb[0].mxu0 %v6179
  %v6230 = vpop.f32.mrb[0].mxu0
  %v6231 = vadd.f32 0.0, %v6230
  %v6232 = vpop.f32.mrb[0].mxu0
  %v6233 = vpop.f32.mrb[0].mxu0
  %v6234 = vadd.f32 0.0, %v6233
  %v6235 = vpop.f32.mrb[0].mxu0
  %6236 = vmatprep.mubr.bf16.mxu0 0
  %6237 = vmatmul.mubr.bf16.gmra.mrb[0].mxu0 %v6182
  %v6238 = vpop.f32.mrb[0].mxu0
  %v6239 = vadd.f32 0.0, %v6238
  %v6240 = vpop.f32.mrb[0].mxu0
  %v6241 = vpop.f32.mrb[0].mxu0
  %v6242 = vadd.f32 0.0, %v6241
  %v6243 = vpop.f32.mrb[0].mxu0
  %6244 = vmatprep.mubr.bf16.mxu0 0
  %6245 = vmatmul.mubr.bf16.gmra.mrb[0].mxu0 %v6185
  %v6246 = vpop.f32.mrb[0].mxu0
  %v6247 = vadd.f32 0.0, %v6246
  %v6248 = vpop.f32.mrb[0].mxu0
  %v6249 = vpop.f32.mrb[0].mxu0
  %v6250 = vadd.f32 0.0, %v6249
  %v6251 = vpop.f32.mrb[0].mxu0
  %6252 = vmatprep.mubr.bf16.mxu0 0
  %6253 = vmatmul.mubr.bf16.gmra.mrb[0].mxu0 %v6188
  %v6254 = vpop.f32.mrb[0].mxu0
  %v6255 = vadd.f32 0.0, %v6254
  %v6256 = vpop.f32.mrb[0].mxu0
  %v6257 = vpop.f32.mrb[0].mxu0
  %v6258 = vadd.f32 0.0, %v6257
  %v6259 = vpop.f32.mrb[0].mxu0
  %6260 = vmatprep.mubr.bf16.mxu0 0
  %6261 = vmatmul.mubr.bf16.gmra.mrb[0].mxu0 %v6191
  %v6262 = vpop.f32.mrb[0].mxu0
  %v6263 = vadd.f32 0.0, %v6262
  %v6264 = vpop.f32.mrb[0].mxu0
  %v6265 = vpop.f32.mrb[0].mxu0
  %v6266 = vadd.f32 0.0, %v6265
  %v6267 = vpop.f32.mrb[0].mxu0
  %6268 = vmatprep.mubr.bf16.mxu0 0
  %6269 = vmatmul.mubr.bf16.gmra.mrb[0].mxu0 %v6194
  %v6270 = vpop.f32.mrb[0].mxu0
  %v6271 = vadd.f32 0.0, %v6270
  %v6272 = vpop.f32.mrb[0].mxu0
  %v6273 = vpop.f32.mrb[0].mxu0
  %v6274 = vadd.f32 0.0, %v6273
  %v6275 = vpop.f32.mrb[0].mxu0
  %6276 = vdwg.mxu0
  %v6279 = vunpack.c.l.b16 %v5735
  %v6280 = vunpack.c.l.b16 %v5736
  %v6281 = vpack.c.b16 %v6280, %v6279
  %v6284 = vsel %vm1950, %v5728, 0
  %v6287 = vsel %vm1950, %v5729, 0
  %v6290 = vsel %vm1950, %v5730, 0
  %v6293 = vsel %vm1950, %v5731, 0
  %v6296 = vsel %vm1950, %v5732, 0
  %v6299 = vsel %vm1950, %v5733, 0
  %6301 = vmatprep.subr.bf16.mxu0 0
  %6302 = vmatpush1.bf16.msra.mxu0 %v6281
  %6303 = vmatprep.subr.bf16.mxu0 0
  %6304 = vmatpush1.bf16.msra.mxu0 0
  %6305 = vmatprep.subr.bf16.mxu0 0
  %6306 = vmatpush1.bf16.msra.mxu0 0
  %6307 = vmatprep.subr.bf16.mxu0 0
  %6308 = vmatpush1.bf16.msra.mxu0 0
  %6309 = vmatprep.subr.bf16.mxu0 0
  %6310 = vmatpush1.bf16.msra.mxu0 0
  %6311 = vmatprep.subr.bf16.mxu0 0
  %6312 = vmatpush1.bf16.msra.mxu0 0
  %6313 = vmatprep.subr.bf16.mxu0 0
  %6314 = vmatpush1.bf16.msra.mxu0 0
  %6315 = vmatprep.subr.bf16.mxu0 0
  %6316 = vmatpush1.bf16.msra.mxu0 0
  %6317 = vmatprep.subr.bf16.mxu0 0
  %6318 = vmatpush1.bf16.msra.mxu0 0
  %6319 = vmatprep.subr.bf16.mxu0 0
  %6320 = vmatpush1.bf16.msra.mxu0 0
  %6321 = vmatprep.subr.bf16.mxu0 0
  %6322 = vmatpush1.bf16.msra.mxu0 0
  %6323 = vmatprep.subr.bf16.mxu0 0
  %6324 = vmatpush1.bf16.msra.mxu0 0
  %6325 = vmatprep.subr.bf16.mxu0 0
  %6326 = vmatpush1.bf16.msra.mxu0 0
  %6327 = vmatprep.subr.bf16.mxu0 0
  %6328 = vmatpush1.bf16.msra.mxu0 0
  %6329 = vmatprep.subr.bf16.mxu0 0
  %6330 = vmatpush1.bf16.msra.mxu0 0
  %6331 = vmatprep.subr.bf16.mxu0 0
  %6332 = vmatpush1.bf16.msra.mxu0 0
  %6333 = vmatprep.mubr.bf16.mxu0 0
  %6334 = vmatmul.mubr.bf16.gmra.mrb[0].mxu0 %v6284
  %v6335 = vpop.f32.mrb[0].mxu0
  %v6336 = vadd.f32 %v6231, %v6335
  %v6337 = vpop.f32.mrb[0].mxu0
  %v6338 = vpop.f32.mrb[0].mxu0
  %v6339 = vadd.f32 %v6234, %v6338
  %v6340 = vpop.f32.mrb[0].mxu0
  %6341 = vmatprep.mubr.bf16.mxu0 0
  %6342 = vmatmul.mubr.bf16.gmra.mrb[0].mxu0 %v6287
  %v6343 = vpop.f32.mrb[0].mxu0
  %v6344 = vadd.f32 %v6239, %v6343
  %v6345 = vpop.f32.mrb[0].mxu0
  %v6346 = vpop.f32.mrb[0].mxu0
  %v6347 = vadd.f32 %v6242, %v6346
  %v6348 = vpop.f32.mrb[0].mxu0
  %6349 = vmatprep.mubr.bf16.mxu0 0
  %6350 = vmatmul.mubr.bf16.gmra.mrb[0].mxu0 %v6290
  %v6351 = vpop.f32.mrb[0].mxu0
  %v6352 = vadd.f32 %v6247, %v6351
  %v6353 = vpop.f32.mrb[0].mxu0
  %v6354 = vpop.f32.mrb[0].mxu0
  %v6355 = vadd.f32 %v6250, %v6354
  %v6356 = vpop.f32.mrb[0].mxu0
  %6357 = vmatprep.mubr.bf16.mxu0 0
  %6358 = vmatmul.mubr.bf16.gmra.mrb[0].mxu0 %v6293
  %v6359 = vpop.f32.mrb[0].mxu0
  %v6360 = vadd.f32 %v6255, %v6359
  %v6361 = vpop.f32.mrb[0].mxu0
  %v6362 = vpop.f32.mrb[0].mxu0
  %v6363 = vadd.f32 %v6258, %v6362
  %v6364 = vpop.f32.mrb[0].mxu0
  %6365 = vmatprep.mubr.bf16.mxu0 0
  %6366 = vmatmul.mubr.bf16.gmra.mrb[0].mxu0 %v6296
  %v6367 = vpop.f32.mrb[0].mxu0
  %v6368 = vadd.f32 %v6263, %v6367
  %v6369 = vpop.f32.mrb[0].mxu0
  %v6370 = vpop.f32.mrb[0].mxu0
  %v6371 = vadd.f32 %v6266, %v6370
  %v6372 = vpop.f32.mrb[0].mxu0
  %6373 = vmatprep.mubr.bf16.mxu0 0
  %6374 = vmatmul.mubr.bf16.gmra.mrb[0].mxu0 %v6299
  %v6375 = vpop.f32.mrb[0].mxu0
  %v6376 = vadd.f32 %v6271, %v6375
  %v6377 = vpop.f32.mrb[0].mxu0
  %v6378 = vpop.f32.mrb[0].mxu0
  %v6379 = vadd.f32 %v6274, %v6378
  %v6380 = vpop.f32.mrb[0].mxu0
  %6381 = vdwg.mxu0
  %6382 = vrot.lane.b32.xlu0 %v5320, 96
  %v6383 = vpop.permute.xlu0 %6382
  %6384 = vrot.lane.b32.xlu0 %v5321, 96
  %v6385 = vpop.permute.xlu0 %6384
  %6386 = vrot.lane.b32.xlu0 %v5322, 96
  %v6387 = vpop.permute.xlu0 %6386
  %6388 = vrot.lane.b32.xlu0 %v5323, 96
  %v6389 = vpop.permute.xlu0 %6388
  %6390 = vrot.lane.b32.xlu0 %v5324, 96
  %v6391 = vpop.permute.xlu0 %6390
  %6392 = vrot.lane.b32.xlu0 %v5325, 96
  %v6393 = vpop.permute.xlu0 %6392
  %6394 = vrot.lane.b32.xlu0 %v5320, 32
  %v6395 = vpop.permute.xlu0 %6394
  %6396 = vrot.lane.b32.xlu0 %v5321, 32
  %v6397 = vpop.permute.xlu0 %6396
  %6398 = vrot.lane.b32.xlu0 %v5322, 32
  %v6399 = vpop.permute.xlu0 %6398
  %6400 = vrot.lane.b32.xlu0 %v5323, 32
  %v6401 = vpop.permute.xlu0 %6400
  %6402 = vrot.lane.b32.xlu0 %v5324, 32
  %v6403 = vpop.permute.xlu0 %6402
  %6404 = vrot.lane.b32.xlu0 %v5325, 32
  %v6405 = vpop.permute.xlu0 %6404
  %v6407 = vsel %vm1950, %v6383, 0
  %v6410 = vsel %vm1950, %v6385, 0
  %v6413 = vsel %vm1950, %v6387, 0
  %v6416 = vsel %vm1950, %v6389, 0
  %v6419 = vsel %vm1950, %v6391, 0
  %v6422 = vsel %vm1950, %v6393, 0
  %v6425 = vsel %vm1950, %v6395, 0
  %v6428 = vsel %vm1950, %v6397, 0
  %v6431 = vsel %vm1950, %v6399, 0
  %v6434 = vsel %vm1950, %v6401, 0
  %v6437 = vsel %vm1950, %v6403, 0
  %v6440 = vsel %vm1950, %v6405, 0
  %6442 = vmatprep.subr.bf16.mxu0 0
  %6443 = vmatpush1.bf16.xpose.msra.mxu0 %v6425
  %6444 = vmatprep.subr.bf16.mxu0 0
  %6445 = vmatpush1.bf16.xpose.msra.mxu0 %v6428
  %6446 = vmatprep.subr.bf16.mxu0 0
  %6447 = vmatpush1.bf16.xpose.msra.mxu0 %v6431
  %6448 = vmatprep.subr.bf16.mxu0 0
  %6449 = vmatpush1.bf16.xpose.msra.mxu0 %v6434
  %6450 = vmatprep.subr.bf16.mxu0 0
  %6451 = vmatpush1.bf16.xpose.msra.mxu0 %v6437
  %6452 = vmatprep.subr.bf16.mxu0 0
  %6453 = vmatpush1.bf16.xpose.msra.mxu0 %v6440
  %6454 = vmatprep.subr.bf16.mxu0 0
  %6455 = vmatpush1.bf16.xpose.msra.mxu0 0
  %6456 = vmatprep.subr.bf16.mxu0 0
  %6457 = vmatpush1.bf16.xpose.msra.mxu0 0
  %6458 = vmatprep.subr.bf16.mxu0 0
  %6459 = vmatpush1.bf16.xpose.msra.mxu0 0
  %6460 = vmatprep.subr.bf16.mxu0 0
  %6461 = vmatpush1.bf16.xpose.msra.mxu0 0
  %6462 = vmatprep.subr.bf16.mxu0 0
  %6463 = vmatpush1.bf16.xpose.msra.mxu0 0
  %6464 = vmatprep.subr.bf16.mxu0 0
  %6465 = vmatpush1.bf16.xpose.msra.mxu0 0
  %6466 = vmatprep.subr.bf16.mxu0 0
  %6467 = vmatpush1.bf16.xpose.msra.mxu0 0
  %6468 = vmatprep.subr.bf16.mxu0 0
  %6469 = vmatpush1.bf16.xpose.msra.mxu0 0
  %6470 = vmatprep.subr.bf16.mxu0 0
  %6471 = vmatpush1.bf16.xpose.msra.mxu0 0
  %6472 = vmatprep.subr.bf16.mxu0 0
  %6473 = vmatpush1.bf16.xpose.msra.mxu0 0
  %6474 = vmatprep.mubr.bf16.mxu0 0
  %6475 = vmatmul.mubr.bf16.gmra.mrb[0].mxu0 %v6407
  %v6476 = vpop.f32.mrb[0].mxu0
  %v6477 = vadd.f32 0.0, %v6476
  %v6478 = vpop.f32.mrb[0].mxu0
  %v6479 = vpop.f32.mrb[0].mxu0
  %v6480 = vadd.f32 0.0, %v6479
  %v6481 = vpop.f32.mrb[0].mxu0
  %6482 = vmatprep.mubr.bf16.mxu0 0
  %6483 = vmatmul.mubr.bf16.gmra.mrb[0].mxu0 %v6410
  %v6484 = vpop.f32.mrb[0].mxu0
  %v6485 = vadd.f32 0.0, %v6484
  %v6486 = vpop.f32.mrb[0].mxu0
  %v6487 = vpop.f32.mrb[0].mxu0
  %v6488 = vadd.f32 0.0, %v6487
  %v6489 = vpop.f32.mrb[0].mxu0
  %6490 = vmatprep.mubr.bf16.mxu0 0
  %6491 = vmatmul.mubr.bf16.gmra.mrb[0].mxu0 %v6413
  %v6492 = vpop.f32.mrb[0].mxu0
  %v6493 = vadd.f32 0.0, %v6492
  %v6494 = vpop.f32.mrb[0].mxu0
  %v6495 = vpop.f32.mrb[0].mxu0
  %v6496 = vadd.f32 0.0, %v6495
  %v6497 = vpop.f32.mrb[0].mxu0
  %6498 = vmatprep.mubr.bf16.mxu0 0
  %6499 = vmatmul.mubr.bf16.gmra.mrb[0].mxu0 %v6416
  %v6500 = vpop.f32.mrb[0].mxu0
  %v6501 = vadd.f32 0.0, %v6500
  %v6502 = vpop.f32.mrb[0].mxu0
  %v6503 = vpop.f32.mrb[0].mxu0
  %v6504 = vadd.f32 0.0, %v6503
  %v6505 = vpop.f32.mrb[0].mxu0
  %6506 = vmatprep.mubr.bf16.mxu0 0
  %6507 = vmatmul.mubr.bf16.gmra.mrb[0].mxu0 %v6419
  %v6508 = vpop.f32.mrb[0].mxu0
  %v6509 = vadd.f32 0.0, %v6508
  %v6510 = vpop.f32.mrb[0].mxu0
  %v6511 = vpop.f32.mrb[0].mxu0
  %v6512 = vadd.f32 0.0, %v6511
  %v6513 = vpop.f32.mrb[0].mxu0
  %6514 = vmatprep.mubr.bf16.mxu0 0
  %6515 = vmatmul.mubr.bf16.gmra.mrb[0].mxu0 %v6422
  %v6516 = vpop.f32.mrb[0].mxu0
  %v6517 = vadd.f32 0.0, %v6516
  %v6518 = vpop.f32.mrb[0].mxu0
  %v6519 = vpop.f32.mrb[0].mxu0
  %v6520 = vadd.f32 0.0, %v6519
  %v6521 = vpop.f32.mrb[0].mxu0
  %6522 = vdwg.mxu0
  %v6523 = vmul.f32 %v6477, 0.25
  %v6524 = vmul.f32 %v6480, 0.25
  %v6525 = vmul.f32 %v6485, 0.25
  %v6526 = vmul.f32 %v6488, 0.25
  %v6527 = vmul.f32 %v6493, 0.25
  %v6528 = vmul.f32 %v6496, 0.25
  %v6529 = vmul.f32 %v6501, 0.25
  %v6530 = vmul.f32 %v6504, 0.25
  %v6531 = vmul.f32 %v6509, 0.25
  %v6532 = vmul.f32 %v6512, 0.25
  %v6533 = vmul.f32 %v6517, 0.25
  %v6534 = vmul.f32 %v6520, 0.25
  %v6535 = vadd.f32 %v6523, %v1536
  %v6536 = vadd.f32 %v6524, %v1537
  %v6537 = vadd.f32 %v6525, %v1538
  %v6538 = vadd.f32 %v6526, %v1539
  %v6539 = vadd.f32 %v6527, %v1540
  %v6540 = vadd.f32 %v6528, %v1541
  %v6541 = vadd.f32 %v6529, %v1542
  %v6542 = vadd.f32 %v6530, %v1543
  %v6543 = vadd.f32 %v6531, %v1544
  %v6544 = vadd.f32 %v6532, %v1545
  %v6545 = vadd.f32 %v6533, %v1546
  %v6546 = vadd.f32 %v6534, %v1547
  %v6547 = vsel %vm2092, %v6535, -inf
  %6548 = vmax.xlane.f32.xlu0 %v6547
  %v6549 = vpop.xlane.xlu0 %6548
  %v6550 = vsel %vm2092, %v6536, -inf
  %6551 = vmax.xlane.f32.xlu0 %v6550
  %v6552 = vpop.xlane.xlu0 %6551
  %v6553 = vsel %vm2092, %v6537, -inf
  %6554 = vmax.xlane.f32.xlu0 %v6553
  %v6555 = vpop.xlane.xlu0 %6554
  %v6556 = vsel %vm2092, %v6538, -inf
  %6557 = vmax.xlane.f32.xlu0 %v6556
  %v6558 = vpop.xlane.xlu0 %6557
  %v6559 = vsel %vm2092, %v6539, -inf
  %6560 = vmax.xlane.f32.xlu0 %v6559
  %v6561 = vpop.xlane.xlu0 %6560
  %v6562 = vsel %vm2092, %v6540, -inf
  %6563 = vmax.xlane.f32.xlu0 %v6562
  %v6564 = vpop.xlane.xlu0 %6563
  %v6565 = vsel %vm2092, %v6541, -inf
  %6566 = vmax.xlane.f32.xlu0 %v6565
  %v6567 = vpop.xlane.xlu0 %6566
  %v6568 = vsel %vm2092, %v6542, -inf
  %6569 = vmax.xlane.f32.xlu0 %v6568
  %v6570 = vpop.xlane.xlu0 %6569
  %v6571 = vsel %vm2092, %v6543, -inf
  %6572 = vmax.xlane.f32.xlu0 %v6571
  %v6573 = vpop.xlane.xlu0 %6572
  %v6574 = vsel %vm2092, %v6544, -inf
  %6575 = vmax.xlane.f32.xlu0 %v6574
  %v6576 = vpop.xlane.xlu0 %6575
  %v6577 = vsel %vm2092, %v6545, -inf
  %6578 = vmax.xlane.f32.xlu0 %v6577
  %v6579 = vpop.xlane.xlu0 %6578
  %v6580 = vsel %vm2092, %v6546, -inf
  %6581 = vmax.xlane.f32.xlu0 %v6580
  %v6582 = vpop.xlane.xlu0 %6581
  %v6583 = vsub.f32 %v6535, %v6549
  %v6584 = vsub.f32 %v6536, %v6552
  %v6585 = vsub.f32 %v6537, %v6555
  %v6586 = vsub.f32 %v6538, %v6558
  %v6587 = vsub.f32 %v6539, %v6561
  %v6588 = vsub.f32 %v6540, %v6564
  %v6589 = vsub.f32 %v6541, %v6567
  %v6590 = vsub.f32 %v6542, %v6570
  %v6591 = vsub.f32 %v6543, %v6573
  %v6592 = vsub.f32 %v6544, %v6576
  %v6593 = vsub.f32 %v6545, %v6579
  %v6594 = vsub.f32 %v6546, %v6582
  %v6595 = vmul.f32 %v6583, 1.442695
  %v6596 = vpow.pop %v6595
  %v6597 = vmul.f32 %v6584, 1.442695
  %v6598 = vpow.pop %v6597
  %v6599 = vmul.f32 %v6585, 1.442695
  %v6600 = vpow.pop %v6599
  %v6601 = vmul.f32 %v6586, 1.442695
  %v6602 = vpow.pop %v6601
  %v6603 = vmul.f32 %v6587, 1.442695
  %v6604 = vpow.pop %v6603
  %v6605 = vmul.f32 %v6588, 1.442695
  %v6606 = vpow.pop %v6605
  %v6607 = vmul.f32 %v6589, 1.442695
  %v6608 = vpow.pop %v6607
  %v6609 = vmul.f32 %v6590, 1.442695
  %v6610 = vpow.pop %v6609
  %v6611 = vmul.f32 %v6591, 1.442695
  %v6612 = vpow.pop %v6611
  %v6613 = vmul.f32 %v6592, 1.442695
  %v6614 = vpow.pop %v6613
  %v6615 = vmul.f32 %v6593, 1.442695
  %v6616 = vpow.pop %v6615
  %v6617 = vmul.f32 %v6594, 1.442695
  %v6618 = vpow.pop %v6617
  %v6619 = vsel %vm2092, %v6596, 0.0
  %6620 = vadd.xlane.f32.xlu0 %v6619
  %v6621 = vpop.xlane.xlu0 %6620
  %v6622 = vsel %vm2092, %v6598, 0.0
  %6623 = vadd.xlane.f32.xlu0 %v6622
  %v6624 = vpop.xlane.xlu0 %6623
  %v6625 = vsel %vm2092, %v6600, 0.0
  %6626 = vadd.xlane.f32.xlu0 %v6625
  %v6627 = vpop.xlane.xlu0 %6626
  %v6628 = vsel %vm2092, %v6602, 0.0
  %6629 = vadd.xlane.f32.xlu0 %v6628
  %v6630 = vpop.xlane.xlu0 %6629
  %v6631 = vsel %vm2092, %v6604, 0.0
  %6632 = vadd.xlane.f32.xlu0 %v6631
  %v6633 = vpop.xlane.xlu0 %6632
  %v6634 = vsel %vm2092, %v6606, 0.0
  %6635 = vadd.xlane.f32.xlu0 %v6634
  %v6636 = vpop.xlane.xlu0 %6635
  %v6637 = vsel %vm2092, %v6608, 0.0
  %6638 = vadd.xlane.f32.xlu0 %v6637
  %v6639 = vpop.xlane.xlu0 %6638
  %v6640 = vsel %vm2092, %v6610, 0.0
  %6641 = vadd.xlane.f32.xlu0 %v6640
  %v6642 = vpop.xlane.xlu0 %6641
  %v6643 = vsel %vm2092, %v6612, 0.0
  %6644 = vadd.xlane.f32.xlu0 %v6643
  %v6645 = vpop.xlane.xlu0 %6644
  %v6646 = vsel %vm2092, %v6614, 0.0
  %6647 = vadd.xlane.f32.xlu0 %v6646
  %v6648 = vpop.xlane.xlu0 %6647
  %v6649 = vsel %vm2092, %v6616, 0.0
  %6650 = vadd.xlane.f32.xlu0 %v6649
  %v6651 = vpop.xlane.xlu0 %6650
  %v6652 = vsel %vm2092, %v6618, 0.0
  %6653 = vadd.xlane.f32.xlu0 %v6652
  %v6654 = vpop.xlane.xlu0 %6653
  %v6655 = vrcp.pop %v6621
  %v6656 = vrcp.pop %v6624
  %v6657 = vrcp.pop %v6627
  %v6658 = vrcp.pop %v6630
  %v6659 = vrcp.pop %v6633
  %v6660 = vrcp.pop %v6636
  %v6661 = vrcp.pop %v6639
  %v6662 = vrcp.pop %v6642
  %v6663 = vrcp.pop %v6645
  %v6664 = vrcp.pop %v6648
  %v6665 = vrcp.pop %v6651
  %v6666 = vrcp.pop %v6654
  %v6667 = vmul.f32 %v6596, %v6655
  %v6668 = vmul.f32 %v6598, %v6656
  %v6669 = vmul.f32 %v6600, %v6657
  %v6670 = vmul.f32 %v6602, %v6658
  %v6671 = vmul.f32 %v6604, %v6659
  %v6672 = vmul.f32 %v6606, %v6660
  %v6673 = vmul.f32 %v6608, %v6661
  %v6674 = vmul.f32 %v6610, %v6662
  %v6675 = vmul.f32 %v6612, %v6663
  %v6676 = vmul.f32 %v6614, %v6664
  %v6677 = vmul.f32 %v6616, %v6665
  %v6678 = vmul.f32 %v6618, %v6666
  %v6679 = vpack.c.bf16 %v6668, %v6667
  %v6680 = vpack.c.bf16 %v6670, %v6669
  %v6681 = vpack.c.bf16 %v6672, %v6671
  %v6682 = vpack.c.bf16 %v6674, %v6673
  %v6683 = vpack.c.bf16 %v6676, %v6675
  %v6684 = vpack.c.bf16 %v6678, %v6677
  %6685 = vrot.lane.b32.xlu0 %v5326, 96
  %v6686 = vpop.permute.xlu0 %6685
  %6687 = vrot.lane.b32.xlu0 %v5327, 96
  %v6688 = vpop.permute.xlu0 %6687
  %6689 = vrot.lane.b32.xlu0 %v5328, 96
  %v6690 = vpop.permute.xlu0 %6689
  %6691 = vrot.lane.b32.xlu0 %v5329, 96
  %v6692 = vpop.permute.xlu0 %6691
  %6693 = vrot.lane.b32.xlu0 %v5330, 96
  %v6694 = vpop.permute.xlu0 %6693
  %6695 = vrot.lane.b32.xlu0 %v5331, 96
  %v6696 = vpop.permute.xlu0 %6695
  %v6704 = vsel %vm2092, %v6679, 0
  %v6707 = vsel %vm2092, %v6680, 0
  %v6710 = vsel %vm2092, %v6681, 0
  %v6713 = vsel %vm2092, %v6682, 0
  %v6716 = vsel %vm2092, %v6683, 0
  %v6719 = vsel %vm2092, %v6684, 0
  %6721 = vmatprep.subr.bf16.mxu0 0
  %6722 = vmatpush1.bf16.msra.mxu0 %v6686
  %6723 = vmatprep.subr.bf16.mxu0 0
  %6724 = vmatpush1.bf16.msra.mxu0 %v6688
  %6725 = vmatprep.subr.bf16.mxu0 0
  %6726 = vmatpush1.bf16.msra.mxu0 %v6690
  %6727 = vmatprep.subr.bf16.mxu0 0
  %6728 = vmatpush1.bf16.msra.mxu0 %v6692
  %6729 = vmatprep.subr.bf16.mxu0 0
  %6730 = vmatpush1.bf16.msra.mxu0 %v6694
  %6731 = vmatprep.subr.bf16.mxu0 0
  %6732 = vmatpush1.bf16.msra.mxu0 %v6696
  %6733 = vmatprep.subr.bf16.mxu0 0
  %6734 = vmatpush1.bf16.msra.mxu0 0
  %6735 = vmatprep.subr.bf16.mxu0 0
  %6736 = vmatpush1.bf16.msra.mxu0 0
  %6737 = vmatprep.subr.bf16.mxu0 0
  %6738 = vmatpush1.bf16.msra.mxu0 0
  %6739 = vmatprep.subr.bf16.mxu0 0
  %6740 = vmatpush1.bf16.msra.mxu0 0
  %6741 = vmatprep.subr.bf16.mxu0 0
  %6742 = vmatpush1.bf16.msra.mxu0 0
  %6743 = vmatprep.subr.bf16.mxu0 0
  %6744 = vmatpush1.bf16.msra.mxu0 0
  %6745 = vmatprep.subr.bf16.mxu0 0
  %6746 = vmatpush1.bf16.msra.mxu0 0
  %6747 = vmatprep.subr.bf16.mxu0 0
  %6748 = vmatpush1.bf16.msra.mxu0 0
  %6749 = vmatprep.subr.bf16.mxu0 0
  %6750 = vmatpush1.bf16.msra.mxu0 0
  %6751 = vmatprep.subr.bf16.mxu0 0
  %6752 = vmatpush1.bf16.msra.mxu0 0
  %6753 = vmatprep.mubr.bf16.mxu0 0
  %6754 = vmatmul.mubr.bf16.gmra.mrb[0].mxu0 %v6704
  %v6755 = vpop.f32.mrb[0].mxu0
  %v6756 = vadd.f32 0.0, %v6755
  %v6757 = vpop.f32.mrb[0].mxu0
  %v6758 = vpop.f32.mrb[0].mxu0
  %v6759 = vadd.f32 0.0, %v6758
  %v6760 = vpop.f32.mrb[0].mxu0
  %6761 = vmatprep.mubr.bf16.mxu0 0
  %6762 = vmatmul.mubr.bf16.gmra.mrb[0].mxu0 %v6707
  %v6763 = vpop.f32.mrb[0].mxu0
  %v6764 = vadd.f32 0.0, %v6763
  %v6765 = vpop.f32.mrb[0].mxu0
  %v6766 = vpop.f32.mrb[0].mxu0
  %v6767 = vadd.f32 0.0, %v6766
  %v6768 = vpop.f32.mrb[0].mxu0
  %6769 = vmatprep.mubr.bf16.mxu0 0
  %6770 = vmatmul.mubr.bf16.gmra.mrb[0].mxu0 %v6710
  %v6771 = vpop.f32.mrb[0].mxu0
  %v6772 = vadd.f32 0.0, %v6771
  %v6773 = vpop.f32.mrb[0].mxu0
  %v6774 = vpop.f32.mrb[0].mxu0
  %v6775 = vadd.f32 0.0, %v6774
  %v6776 = vpop.f32.mrb[0].mxu0
  %6777 = vmatprep.mubr.bf16.mxu0 0
  %6778 = vmatmul.mubr.bf16.gmra.mrb[0].mxu0 %v6713
  %v6779 = vpop.f32.mrb[0].mxu0
  %v6780 = vadd.f32 0.0, %v6779
  %v6781 = vpop.f32.mrb[0].mxu0
  %v6782 = vpop.f32.mrb[0].mxu0
  %v6783 = vadd.f32 0.0, %v6782
  %v6784 = vpop.f32.mrb[0].mxu0
  %6785 = vmatprep.mubr.bf16.mxu0 0
  %6786 = vmatmul.mubr.bf16.gmra.mrb[0].mxu0 %v6716
  %v6787 = vpop.f32.mrb[0].mxu0
  %v6788 = vadd.f32 0.0, %v6787
  %v6789 = vpop.f32.mrb[0].mxu0
  %v6790 = vpop.f32.mrb[0].mxu0
  %v6791 = vadd.f32 0.0, %v6790
  %v6792 = vpop.f32.mrb[0].mxu0
  %6793 = vmatprep.mubr.bf16.mxu0 0
  %6794 = vmatmul.mubr.bf16.gmra.mrb[0].mxu0 %v6719
  %v6795 = vpop.f32.mrb[0].mxu0
  %v6796 = vadd.f32 0.0, %v6795
  %v6797 = vpop.f32.mrb[0].mxu0
  %v6798 = vpop.f32.mrb[0].mxu0
  %v6799 = vadd.f32 0.0, %v6798
  %v6800 = vpop.f32.mrb[0].mxu0
  %6801 = vdwg.mxu0
  %v6802 = vpack.c.bf16 %v6759, %v6756
  %v6803 = vpack.c.bf16 %v6767, %v6764
  %v6804 = vpack.c.bf16 %v6775, %v6772
  %v6805 = vpack.c.bf16 %v6783, %v6780
  %v6806 = vpack.c.bf16 %v6791, %v6788
  %v6807 = vpack.c.bf16 %v6799, %v6796
  %s6808 = scalar_lea.vmem %s37, 48
  %v6809 = vld [vmem:[%s6808] sm:$0xf]
  %v6810 = vld [vmem:[%s6808 + $0x4] sm:$0xf]
  %v6813 = vunpack.c.l.b16 %v6809
  %v6814 = vunpack.c.l.b16 %v6810
  %v6815 = vpack.c.b16 %v6814, %v6813
  %v6818 = vsel %vm1950, %v6802, 0
  %v6821 = vsel %vm1950, %v6803, 0
  %v6824 = vsel %vm1950, %v6804, 0
  %v6827 = vsel %vm1950, %v6805, 0
  %v6830 = vsel %vm1950, %v6806, 0
  %v6833 = vsel %vm1950, %v6807, 0
  %6835 = vmatprep.subr.bf16.mxu0 0
  %6836 = vmatpush1.bf16.msra.mxu0 %v6815
  %6837 = vmatprep.subr.bf16.mxu0 0
  %6838 = vmatpush1.bf16.msra.mxu0 0
  %6839 = vmatprep.subr.bf16.mxu0 0
  %6840 = vmatpush1.bf16.msra.mxu0 0
  %6841 = vmatprep.subr.bf16.mxu0 0
  %6842 = vmatpush1.bf16.msra.mxu0 0
  %6843 = vmatprep.subr.bf16.mxu0 0
  %6844 = vmatpush1.bf16.msra.mxu0 0
  %6845 = vmatprep.subr.bf16.mxu0 0
  %6846 = vmatpush1.bf16.msra.mxu0 0
  %6847 = vmatprep.subr.bf16.mxu0 0
  %6848 = vmatpush1.bf16.msra.mxu0 0
  %6849 = vmatprep.subr.bf16.mxu0 0
  %6850 = vmatpush1.bf16.msra.mxu0 0
  %6851 = vmatprep.subr.bf16.mxu0 0
  %6852 = vmatpush1.bf16.msra.mxu0 0
  %6853 = vmatprep.subr.bf16.mxu0 0
  %6854 = vmatpush1.bf16.msra.mxu0 0
  %6855 = vmatprep.subr.bf16.mxu0 0
  %6856 = vmatpush1.bf16.msra.mxu0 0
  %6857 = vmatprep.subr.bf16.mxu0 0
  %6858 = vmatpush1.bf16.msra.mxu0 0
  %6859 = vmatprep.subr.bf16.mxu0 0
  %6860 = vmatpush1.bf16.msra.mxu0 0
  %6861 = vmatprep.subr.bf16.mxu0 0
  %6862 = vmatpush1.bf16.msra.mxu0 0
  %6863 = vmatprep.subr.bf16.mxu0 0
  %6864 = vmatpush1.bf16.msra.mxu0 0
  %6865 = vmatprep.subr.bf16.mxu0 0
  %6866 = vmatpush1.bf16.msra.mxu0 0
  %6867 = vmatprep.mubr.bf16.mxu0 0
  %6868 = vmatmul.mubr.bf16.gmra.mrb[0].mxu0 %v6818
  %v6869 = vpop.f32.mrb[0].mxu0
  %v6870 = vadd.f32 0.0, %v6869
  %v6871 = vpop.f32.mrb[0].mxu0
  %v6872 = vpop.f32.mrb[0].mxu0
  %v6873 = vadd.f32 0.0, %v6872
  %v6874 = vpop.f32.mrb[0].mxu0
  %6875 = vmatprep.mubr.bf16.mxu0 0
  %6876 = vmatmul.mubr.bf16.gmra.mrb[0].mxu0 %v6821
  %v6877 = vpop.f32.mrb[0].mxu0
  %v6878 = vadd.f32 0.0, %v6877
  %v6879 = vpop.f32.mrb[0].mxu0
  %v6880 = vpop.f32.mrb[0].mxu0
  %v6881 = vadd.f32 0.0, %v6880
  %v6882 = vpop.f32.mrb[0].mxu0
  %6883 = vmatprep.mubr.bf16.mxu0 0
  %6884 = vmatmul.mubr.bf16.gmra.mrb[0].mxu0 %v6824
  %v6885 = vpop.f32.mrb[0].mxu0
  %v6886 = vadd.f32 0.0, %v6885
  %v6887 = vpop.f32.mrb[0].mxu0
  %v6888 = vpop.f32.mrb[0].mxu0
  %v6889 = vadd.f32 0.0, %v6888
  %v6890 = vpop.f32.mrb[0].mxu0
  %6891 = vmatprep.mubr.bf16.mxu0 0
  %6892 = vmatmul.mubr.bf16.gmra.mrb[0].mxu0 %v6827
  %v6893 = vpop.f32.mrb[0].mxu0
  %v6894 = vadd.f32 0.0, %v6893
  %v6895 = vpop.f32.mrb[0].mxu0
  %v6896 = vpop.f32.mrb[0].mxu0
  %v6897 = vadd.f32 0.0, %v6896
  %v6898 = vpop.f32.mrb[0].mxu0
  %6899 = vmatprep.mubr.bf16.mxu0 0
  %6900 = vmatmul.mubr.bf16.gmra.mrb[0].mxu0 %v6830
  %v6901 = vpop.f32.mrb[0].mxu0
  %v6902 = vadd.f32 0.0, %v6901
  %v6903 = vpop.f32.mrb[0].mxu0
  %v6904 = vpop.f32.mrb[0].mxu0
  %v6905 = vadd.f32 0.0, %v6904
  %v6906 = vpop.f32.mrb[0].mxu0
  %6907 = vmatprep.mubr.bf16.mxu0 0
  %6908 = vmatmul.mubr.bf16.gmra.mrb[0].mxu0 %v6833
  %v6909 = vpop.f32.mrb[0].mxu0
  %v6910 = vadd.f32 0.0, %v6909
  %v6911 = vpop.f32.mrb[0].mxu0
  %v6912 = vpop.f32.mrb[0].mxu0
  %v6913 = vadd.f32 0.0, %v6912
  %v6914 = vpop.f32.mrb[0].mxu0
  %6915 = vdwg.mxu0
  %v6916 = vadd.f32 %v6336, %v6870
  %v6917 = vadd.f32 %v6339, %v6873
  %v6918 = vadd.f32 %v6344, %v6878
  %v6919 = vadd.f32 %v6347, %v6881
  %v6920 = vadd.f32 %v6352, %v6886
  %v6921 = vadd.f32 %v6355, %v6889
  %v6922 = vadd.f32 %v6360, %v6894
  %v6923 = vadd.f32 %v6363, %v6897
  %v6924 = vadd.f32 %v6368, %v6902
  %v6925 = vadd.f32 %v6371, %v6905
  %v6926 = vadd.f32 %v6376, %v6910
  %v6927 = vadd.f32 %v6379, %v6913
  %6928 = vrot.lane.b32.xlu0 %v5320, 80
  %v6929 = vpop.permute.xlu0 %6928
  %6930 = vrot.lane.b32.xlu0 %v5321, 80
  %v6931 = vpop.permute.xlu0 %6930
  %6932 = vrot.lane.b32.xlu0 %v5322, 80
  %v6933 = vpop.permute.xlu0 %6932
  %6934 = vrot.lane.b32.xlu0 %v5323, 80
  %v6935 = vpop.permute.xlu0 %6934
  %6936 = vrot.lane.b32.xlu0 %v5324, 80
  %v6937 = vpop.permute.xlu0 %6936
  %6938 = vrot.lane.b32.xlu0 %v5325, 80
  %v6939 = vpop.permute.xlu0 %6938
  %6940 = vrot.lane.b32.xlu0 %v5320, 16
  %v6941 = vpop.permute.xlu0 %6940
  %6942 = vrot.lane.b32.xlu0 %v5321, 16
  %v6943 = vpop.permute.xlu0 %6942
  %6944 = vrot.lane.b32.xlu0 %v5322, 16
  %v6945 = vpop.permute.xlu0 %6944
  %6946 = vrot.lane.b32.xlu0 %v5323, 16
  %v6947 = vpop.permute.xlu0 %6946
  %6948 = vrot.lane.b32.xlu0 %v5324, 16
  %v6949 = vpop.permute.xlu0 %6948
  %6950 = vrot.lane.b32.xlu0 %v5325, 16
  %v6951 = vpop.permute.xlu0 %6950
  %v6953 = vsel %vm1950, %v6929, 0
  %v6956 = vsel %vm1950, %v6931, 0
  %v6959 = vsel %vm1950, %v6933, 0
  %v6962 = vsel %vm1950, %v6935, 0
  %v6965 = vsel %vm1950, %v6937, 0
  %v6968 = vsel %vm1950, %v6939, 0
  %v6971 = vsel %vm1950, %v6941, 0
  %v6974 = vsel %vm1950, %v6943, 0
  %v6977 = vsel %vm1950, %v6945, 0
  %v6980 = vsel %vm1950, %v6947, 0
  %v6983 = vsel %vm1950, %v6949, 0
  %v6986 = vsel %vm1950, %v6951, 0
  %6988 = vmatprep.subr.bf16.mxu0 0
  %6989 = vmatpush1.bf16.xpose.msra.mxu0 %v6971
  %6990 = vmatprep.subr.bf16.mxu0 0
  %6991 = vmatpush1.bf16.xpose.msra.mxu0 %v6974
  %6992 = vmatprep.subr.bf16.mxu0 0
  %6993 = vmatpush1.bf16.xpose.msra.mxu0 %v6977
  %6994 = vmatprep.subr.bf16.mxu0 0
  %6995 = vmatpush1.bf16.xpose.msra.mxu0 %v6980
  %6996 = vmatprep.subr.bf16.mxu0 0
  %6997 = vmatpush1.bf16.xpose.msra.mxu0 %v6983
  %6998 = vmatprep.subr.bf16.mxu0 0
  %6999 = vmatpush1.bf16.xpose.msra.mxu0 %v6986
  %7000 = vmatprep.subr.bf16.mxu0 0
  %7001 = vmatpush1.bf16.xpose.msra.mxu0 0
  %7002 = vmatprep.subr.bf16.mxu0 0
  %7003 = vmatpush1.bf16.xpose.msra.mxu0 0
  %7004 = vmatprep.subr.bf16.mxu0 0
  %7005 = vmatpush1.bf16.xpose.msra.mxu0 0
  %7006 = vmatprep.subr.bf16.mxu0 0
  %7007 = vmatpush1.bf16.xpose.msra.mxu0 0
  %7008 = vmatprep.subr.bf16.mxu0 0
  %7009 = vmatpush1.bf16.xpose.msra.mxu0 0
  %7010 = vmatprep.subr.bf16.mxu0 0
  %7011 = vmatpush1.bf16.xpose.msra.mxu0 0
  %7012 = vmatprep.subr.bf16.mxu0 0
  %7013 = vmatpush1.bf16.xpose.msra.mxu0 0
  %7014 = vmatprep.subr.bf16.mxu0 0
  %7015 = vmatpush1.bf16.xpose.msra.mxu0 0
  %7016 = vmatprep.subr.bf16.mxu0 0
  %7017 = vmatpush1.bf16.xpose.msra.mxu0 0
  %7018 = vmatprep.subr.bf16.mxu0 0
  %7019 = vmatpush1.bf16.xpose.msra.mxu0 0
  %7020 = vmatprep.mubr.bf16.mxu0 0
  %7021 = vmatmul.mubr.bf16.gmra.mrb[0].mxu0 %v6953
  %v7022 = vpop.f32.mrb[0].mxu0
  %v7023 = vadd.f32 0.0, %v7022
  %v7024 = vpop.f32.mrb[0].mxu0
  %v7025 = vpop.f32.mrb[0].mxu0
  %v7026 = vadd.f32 0.0, %v7025
  %v7027 = vpop.f32.mrb[0].mxu0
  %7028 = vmatprep.mubr.bf16.mxu0 0
  %7029 = vmatmul.mubr.bf16.gmra.mrb[0].mxu0 %v6956
  %v7030 = vpop.f32.mrb[0].mxu0
  %v7031 = vadd.f32 0.0, %v7030
  %v7032 = vpop.f32.mrb[0].mxu0
  %v7033 = vpop.f32.mrb[0].mxu0
  %v7034 = vadd.f32 0.0, %v7033
  %v7035 = vpop.f32.mrb[0].mxu0
  %7036 = vmatprep.mubr.bf16.mxu0 0
  %7037 = vmatmul.mubr.bf16.gmra.mrb[0].mxu0 %v6959
  %v7038 = vpop.f32.mrb[0].mxu0
  %v7039 = vadd.f32 0.0, %v7038
  %v7040 = vpop.f32.mrb[0].mxu0
  %v7041 = vpop.f32.mrb[0].mxu0
  %v7042 = vadd.f32 0.0, %v7041
  %v7043 = vpop.f32.mrb[0].mxu0
  %7044 = vmatprep.mubr.bf16.mxu0 0
  %7045 = vmatmul.mubr.bf16.gmra.mrb[0].mxu0 %v6962
  %v7046 = vpop.f32.mrb[0].mxu0
  %v7047 = vadd.f32 0.0, %v7046
  %v7048 = vpop.f32.mrb[0].mxu0
  %v7049 = vpop.f32.mrb[0].mxu0
  %v7050 = vadd.f32 0.0, %v7049
  %v7051 = vpop.f32.mrb[0].mxu0
  %7052 = vmatprep.mubr.bf16.mxu0 0
  %7053 = vmatmul.mubr.bf16.gmra.mrb[0].mxu0 %v6965
  %v7054 = vpop.f32.mrb[0].mxu0
  %v7055 = vadd.f32 0.0, %v7054
  %v7056 = vpop.f32.mrb[0].mxu0
  %v7057 = vpop.f32.mrb[0].mxu0
  %v7058 = vadd.f32 0.0, %v7057
  %v7059 = vpop.f32.mrb[0].mxu0
  %7060 = vmatprep.mubr.bf16.mxu0 0
  %7061 = vmatmul.mubr.bf16.gmra.mrb[0].mxu0 %v6968
  %v7062 = vpop.f32.mrb[0].mxu0
  %v7063 = vadd.f32 0.0, %v7062
  %v7064 = vpop.f32.mrb[0].mxu0
  %v7065 = vpop.f32.mrb[0].mxu0
  %v7066 = vadd.f32 0.0, %v7065
  %v7067 = vpop.f32.mrb[0].mxu0
  %7068 = vdwg.mxu0
  %v7069 = vmul.f32 %v7023, 0.25
  %v7070 = vmul.f32 %v7026, 0.25
  %v7071 = vmul.f32 %v7031, 0.25
  %v7072 = vmul.f32 %v7034, 0.25
  %v7073 = vmul.f32 %v7039, 0.25
  %v7074 = vmul.f32 %v7042, 0.25
  %v7075 = vmul.f32 %v7047, 0.25
  %v7076 = vmul.f32 %v7050, 0.25
  %v7077 = vmul.f32 %v7055, 0.25
  %v7078 = vmul.f32 %v7058, 0.25
  %v7079 = vmul.f32 %v7063, 0.25
  %v7080 = vmul.f32 %v7066, 0.25
  %v7081 = vadd.f32 %v7069, %v1536
  %v7082 = vadd.f32 %v7070, %v1537
  %v7083 = vadd.f32 %v7071, %v1538
  %v7084 = vadd.f32 %v7072, %v1539
  %v7085 = vadd.f32 %v7073, %v1540
  %v7086 = vadd.f32 %v7074, %v1541
  %v7087 = vadd.f32 %v7075, %v1542
  %v7088 = vadd.f32 %v7076, %v1543
  %v7089 = vadd.f32 %v7077, %v1544
  %v7090 = vadd.f32 %v7078, %v1545
  %v7091 = vadd.f32 %v7079, %v1546
  %v7092 = vadd.f32 %v7080, %v1547
  %v7093 = vsel %vm2092, %v7081, -inf
  %7094 = vmax.xlane.f32.xlu0 %v7093
  %v7095 = vpop.xlane.xlu0 %7094
  %v7096 = vsel %vm2092, %v7082, -inf
  %7097 = vmax.xlane.f32.xlu0 %v7096
  %v7098 = vpop.xlane.xlu0 %7097
  %v7099 = vsel %vm2092, %v7083, -inf
  %7100 = vmax.xlane.f32.xlu0 %v7099
  %v7101 = vpop.xlane.xlu0 %7100
  %v7102 = vsel %vm2092, %v7084, -inf
  %7103 = vmax.xlane.f32.xlu0 %v7102
  %v7104 = vpop.xlane.xlu0 %7103
  %v7105 = vsel %vm2092, %v7085, -inf
  %7106 = vmax.xlane.f32.xlu0 %v7105
  %v7107 = vpop.xlane.xlu0 %7106
  %v7108 = vsel %vm2092, %v7086, -inf
  %7109 = vmax.xlane.f32.xlu0 %v7108
  %v7110 = vpop.xlane.xlu0 %7109
  %v7111 = vsel %vm2092, %v7087, -inf
  %7112 = vmax.xlane.f32.xlu0 %v7111
  %v7113 = vpop.xlane.xlu0 %7112
  %v7114 = vsel %vm2092, %v7088, -inf
  %7115 = vmax.xlane.f32.xlu0 %v7114
  %v7116 = vpop.xlane.xlu0 %7115
  %v7117 = vsel %vm2092, %v7089, -inf
  %7118 = vmax.xlane.f32.xlu0 %v7117
  %v7119 = vpop.xlane.xlu0 %7118
  %v7120 = vsel %vm2092, %v7090, -inf
  %7121 = vmax.xlane.f32.xlu0 %v7120
  %v7122 = vpop.xlane.xlu0 %7121
  %v7123 = vsel %vm2092, %v7091, -inf
  %7124 = vmax.xlane.f32.xlu0 %v7123
  %v7125 = vpop.xlane.xlu0 %7124
  %v7126 = vsel %vm2092, %v7092, -inf
  %7127 = vmax.xlane.f32.xlu0 %v7126
  %v7128 = vpop.xlane.xlu0 %7127
  %v7129 = vsub.f32 %v7081, %v7095
  %v7130 = vsub.f32 %v7082, %v7098
  %v7131 = vsub.f32 %v7083, %v7101
  %v7132 = vsub.f32 %v7084, %v7104
  %v7133 = vsub.f32 %v7085, %v7107
  %v7134 = vsub.f32 %v7086, %v7110
  %v7135 = vsub.f32 %v7087, %v7113
  %v7136 = vsub.f32 %v7088, %v7116
  %v7137 = vsub.f32 %v7089, %v7119
  %v7138 = vsub.f32 %v7090, %v7122
  %v7139 = vsub.f32 %v7091, %v7125
  %v7140 = vsub.f32 %v7092, %v7128
  %v7141 = vmul.f32 %v7129, 1.442695
  %v7142 = vpow.pop %v7141
  %v7143 = vmul.f32 %v7130, 1.442695
  %v7144 = vpow.pop %v7143
  %v7145 = vmul.f32 %v7131, 1.442695
  %v7146 = vpow.pop %v7145
  %v7147 = vmul.f32 %v7132, 1.442695
  %v7148 = vpow.pop %v7147
  %v7149 = vmul.f32 %v7133, 1.442695
  %v7150 = vpow.pop %v7149
  %v7151 = vmul.f32 %v7134, 1.442695
  %v7152 = vpow.pop %v7151
  %v7153 = vmul.f32 %v7135, 1.442695
  %v7154 = vpow.pop %v7153
  %v7155 = vmul.f32 %v7136, 1.442695
  %v7156 = vpow.pop %v7155
  %v7157 = vmul.f32 %v7137, 1.442695
  %v7158 = vpow.pop %v7157
  %v7159 = vmul.f32 %v7138, 1.442695
  %v7160 = vpow.pop %v7159
  %v7161 = vmul.f32 %v7139, 1.442695
  %v7162 = vpow.pop %v7161
  %v7163 = vmul.f32 %v7140, 1.442695
  %v7164 = vpow.pop %v7163
  %v7165 = vsel %vm2092, %v7142, 0.0
  %7166 = vadd.xlane.f32.xlu0 %v7165
  %v7167 = vpop.xlane.xlu0 %7166
  %v7168 = vsel %vm2092, %v7144, 0.0
  %7169 = vadd.xlane.f32.xlu0 %v7168
  %v7170 = vpop.xlane.xlu0 %7169
  %v7171 = vsel %vm2092, %v7146, 0.0
  %7172 = vadd.xlane.f32.xlu0 %v7171
  %v7173 = vpop.xlane.xlu0 %7172
  %v7174 = vsel %vm2092, %v7148, 0.0
  %7175 = vadd.xlane.f32.xlu0 %v7174
  %v7176 = vpop.xlane.xlu0 %7175
  %v7177 = vsel %vm2092, %v7150, 0.0
  %7178 = vadd.xlane.f32.xlu0 %v7177
  %v7179 = vpop.xlane.xlu0 %7178
  %v7180 = vsel %vm2092, %v7152, 0.0
  %7181 = vadd.xlane.f32.xlu0 %v7180
  %v7182 = vpop.xlane.xlu0 %7181
  %v7183 = vsel %vm2092, %v7154, 0.0
  %7184 = vadd.xlane.f32.xlu0 %v7183
  %v7185 = vpop.xlane.xlu0 %7184
  %v7186 = vsel %vm2092, %v7156, 0.0
  %7187 = vadd.xlane.f32.xlu0 %v7186
  %v7188 = vpop.xlane.xlu0 %7187
  %v7189 = vsel %vm2092, %v7158, 0.0
  %7190 = vadd.xlane.f32.xlu0 %v7189
  %v7191 = vpop.xlane.xlu0 %7190
  %v7192 = vsel %vm2092, %v7160, 0.0
  %7193 = vadd.xlane.f32.xlu0 %v7192
  %v7194 = vpop.xlane.xlu0 %7193
  %v7195 = vsel %vm2092, %v7162, 0.0
  %7196 = vadd.xlane.f32.xlu0 %v7195
  %v7197 = vpop.xlane.xlu0 %7196
  %v7198 = vsel %vm2092, %v7164, 0.0
  %7199 = vadd.xlane.f32.xlu0 %v7198
  %v7200 = vpop.xlane.xlu0 %7199
  %v7201 = vrcp.pop %v7167
  %v7202 = vrcp.pop %v7170
  %v7203 = vrcp.pop %v7173
  %v7204 = vrcp.pop %v7176
  %v7205 = vrcp.pop %v7179
  %v7206 = vrcp.pop %v7182
  %v7207 = vrcp.pop %v7185
  %v7208 = vrcp.pop %v7188
  %v7209 = vrcp.pop %v7191
  %v7210 = vrcp.pop %v7194
  %v7211 = vrcp.pop %v7197
  %v7212 = vrcp.pop %v7200
  %v7213 = vmul.f32 %v7142, %v7201
  %v7214 = vmul.f32 %v7144, %v7202
  %v7215 = vmul.f32 %v7146, %v7203
  %v7216 = vmul.f32 %v7148, %v7204
  %v7217 = vmul.f32 %v7150, %v7205
  %v7218 = vmul.f32 %v7152, %v7206
  %v7219 = vmul.f32 %v7154, %v7207
  %v7220 = vmul.f32 %v7156, %v7208
  %v7221 = vmul.f32 %v7158, %v7209
  %v7222 = vmul.f32 %v7160, %v7210
  %v7223 = vmul.f32 %v7162, %v7211
  %v7224 = vmul.f32 %v7164, %v7212
  %v7225 = vpack.c.bf16 %v7214, %v7213
  %v7226 = vpack.c.bf16 %v7216, %v7215
  %v7227 = vpack.c.bf16 %v7218, %v7217
  %v7228 = vpack.c.bf16 %v7220, %v7219
  %v7229 = vpack.c.bf16 %v7222, %v7221
  %v7230 = vpack.c.bf16 %v7224, %v7223
  %7231 = vrot.lane.b32.xlu0 %v5326, 80
  %v7232 = vpop.permute.xlu0 %7231
  %7233 = vrot.lane.b32.xlu0 %v5327, 80
  %v7234 = vpop.permute.xlu0 %7233
  %7235 = vrot.lane.b32.xlu0 %v5328, 80
  %v7236 = vpop.permute.xlu0 %7235
  %7237 = vrot.lane.b32.xlu0 %v5329, 80
  %v7238 = vpop.permute.xlu0 %7237
  %7239 = vrot.lane.b32.xlu0 %v5330, 80
  %v7240 = vpop.permute.xlu0 %7239
  %7241 = vrot.lane.b32.xlu0 %v5331, 80
  %v7242 = vpop.permute.xlu0 %7241
  %v7250 = vsel %vm2092, %v7225, 0
  %v7253 = vsel %vm2092, %v7226, 0
  %v7256 = vsel %vm2092, %v7227, 0
  %v7259 = vsel %vm2092, %v7228, 0
  %v7262 = vsel %vm2092, %v7229, 0
  %v7265 = vsel %vm2092, %v7230, 0
  %7267 = vmatprep.subr.bf16.mxu0 0
  %7268 = vmatpush1.bf16.msra.mxu0 %v7232
  %7269 = vmatprep.subr.bf16.mxu0 0
  %7270 = vmatpush1.bf16.msra.mxu0 %v7234
  %7271 = vmatprep.subr.bf16.mxu0 0
  %7272 = vmatpush1.bf16.msra.mxu0 %v7236
  %7273 = vmatprep.subr.bf16.mxu0 0
  %7274 = vmatpush1.bf16.msra.mxu0 %v7238
  %7275 = vmatprep.subr.bf16.mxu0 0
  %7276 = vmatpush1.bf16.msra.mxu0 %v7240
  %7277 = vmatprep.subr.bf16.mxu0 0
  %7278 = vmatpush1.bf16.msra.mxu0 %v7242
  %7279 = vmatprep.subr.bf16.mxu0 0
  %7280 = vmatpush1.bf16.msra.mxu0 0
  %7281 = vmatprep.subr.bf16.mxu0 0
  %7282 = vmatpush1.bf16.msra.mxu0 0
  %7283 = vmatprep.subr.bf16.mxu0 0
  %7284 = vmatpush1.bf16.msra.mxu0 0
  %7285 = vmatprep.subr.bf16.mxu0 0
  %7286 = vmatpush1.bf16.msra.mxu0 0
  %7287 = vmatprep.subr.bf16.mxu0 0
  %7288 = vmatpush1.bf16.msra.mxu0 0
  %7289 = vmatprep.subr.bf16.mxu0 0
  %7290 = vmatpush1.bf16.msra.mxu0 0
  %7291 = vmatprep.subr.bf16.mxu0 0
  %7292 = vmatpush1.bf16.msra.mxu0 0
  %7293 = vmatprep.subr.bf16.mxu0 0
  %7294 = vmatpush1.bf16.msra.mxu0 0
  %7295 = vmatprep.subr.bf16.mxu0 0
  %7296 = vmatpush1.bf16.msra.mxu0 0
  %7297 = vmatprep.subr.bf16.mxu0 0
  %7298 = vmatpush1.bf16.msra.mxu0 0
  %7299 = vmatprep.mubr.bf16.mxu0 0
  %7300 = vmatmul.mubr.bf16.gmra.mrb[0].mxu0 %v7250
  %v7301 = vpop.f32.mrb[0].mxu0
  %v7302 = vadd.f32 0.0, %v7301
  %v7303 = vpop.f32.mrb[0].mxu0
  %v7304 = vpop.f32.mrb[0].mxu0
  %v7305 = vadd.f32 0.0, %v7304
  %v7306 = vpop.f32.mrb[0].mxu0
  %7307 = vmatprep.mubr.bf16.mxu0 0
  %7308 = vmatmul.mubr.bf16.gmra.mrb[0].mxu0 %v7253
  %v7309 = vpop.f32.mrb[0].mxu0
  %v7310 = vadd.f32 0.0, %v7309
  %v7311 = vpop.f32.mrb[0].mxu0
  %v7312 = vpop.f32.mrb[0].mxu0
  %v7313 = vadd.f32 0.0, %v7312
  %v7314 = vpop.f32.mrb[0].mxu0
  %7315 = vmatprep.mubr.bf16.mxu0 0
  %7316 = vmatmul.mubr.bf16.gmra.mrb[0].mxu0 %v7256
  %v7317 = vpop.f32.mrb[0].mxu0
  %v7318 = vadd.f32 0.0, %v7317
  %v7319 = vpop.f32.mrb[0].mxu0
  %v7320 = vpop.f32.mrb[0].mxu0
  %v7321 = vadd.f32 0.0, %v7320
  %v7322 = vpop.f32.mrb[0].mxu0
  %7323 = vmatprep.mubr.bf16.mxu0 0
  %7324 = vmatmul.mubr.bf16.gmra.mrb[0].mxu0 %v7259
  %v7325 = vpop.f32.mrb[0].mxu0
  %v7326 = vadd.f32 0.0, %v7325
  %v7327 = vpop.f32.mrb[0].mxu0
  %v7328 = vpop.f32.mrb[0].mxu0
  %v7329 = vadd.f32 0.0, %v7328
  %v7330 = vpop.f32.mrb[0].mxu0
  %7331 = vmatprep.mubr.bf16.mxu0 0
  %7332 = vmatmul.mubr.bf16.gmra.mrb[0].mxu0 %v7262
  %v7333 = vpop.f32.mrb[0].mxu0
  %v7334 = vadd.f32 0.0, %v7333
  %v7335 = vpop.f32.mrb[0].mxu0
  %v7336 = vpop.f32.mrb[0].mxu0
  %v7337 = vadd.f32 0.0, %v7336
  %v7338 = vpop.f32.mrb[0].mxu0
  %7339 = vmatprep.mubr.bf16.mxu0 0
  %7340 = vmatmul.mubr.bf16.gmra.mrb[0].mxu0 %v7265
  %v7341 = vpop.f32.mrb[0].mxu0
  %v7342 = vadd.f32 0.0, %v7341
  %v7343 = vpop.f32.mrb[0].mxu0
  %v7344 = vpop.f32.mrb[0].mxu0
  %v7345 = vadd.f32 0.0, %v7344
  %v7346 = vpop.f32.mrb[0].mxu0
  %7347 = vdwg.mxu0
  %v7348 = vpack.c.bf16 %v7305, %v7302
  %v7349 = vpack.c.bf16 %v7313, %v7310
  %v7350 = vpack.c.bf16 %v7321, %v7318
  %v7351 = vpack.c.bf16 %v7329, %v7326
  %v7352 = vpack.c.bf16 %v7337, %v7334
  %v7353 = vpack.c.bf16 %v7345, %v7342
  %s7354 = scalar_lea.vmem %s37, 56
  %v7355 = vld [vmem:[%s7354] sm:$0xf]
  %v7356 = vld [vmem:[%s7354 + $0x4] sm:$0xf]
  %v7359 = vunpack.c.l.b16 %v7355
  %v7360 = vunpack.c.l.b16 %v7356
  %v7361 = vpack.c.b16 %v7360, %v7359
  %v7364 = vsel %vm1950, %v7348, 0
  %v7367 = vsel %vm1950, %v7349, 0
  %v7370 = vsel %vm1950, %v7350, 0
  %v7373 = vsel %vm1950, %v7351, 0
  %v7376 = vsel %vm1950, %v7352, 0
  %v7379 = vsel %vm1950, %v7353, 0
  %7381 = vmatprep.subr.bf16.mxu0 0
  %7382 = vmatpush1.bf16.msra.mxu0 %v7361
  %7383 = vmatprep.subr.bf16.mxu0 0
  %7384 = vmatpush1.bf16.msra.mxu0 0
  %7385 = vmatprep.subr.bf16.mxu0 0
  %7386 = vmatpush1.bf16.msra.mxu0 0
  %7387 = vmatprep.subr.bf16.mxu0 0
  %7388 = vmatpush1.bf16.msra.mxu0 0
  %7389 = vmatprep.subr.bf16.mxu0 0
  %7390 = vmatpush1.bf16.msra.mxu0 0
  %7391 = vmatprep.subr.bf16.mxu0 0
  %7392 = vmatpush1.bf16.msra.mxu0 0
  %7393 = vmatprep.subr.bf16.mxu0 0
  %7394 = vmatpush1.bf16.msra.mxu0 0
  %7395 = vmatprep.subr.bf16.mxu0 0
  %7396 = vmatpush1.bf16.msra.mxu0 0
  %7397 = vmatprep.subr.bf16.mxu0 0
  %7398 = vmatpush1.bf16.msra.mxu0 0
  %7399 = vmatprep.subr.bf16.mxu0 0
  %7400 = vmatpush1.bf16.msra.mxu0 0
  %7401 = vmatprep.subr.bf16.mxu0 0
  %7402 = vmatpush1.bf16.msra.mxu0 0
  %7403 = vmatprep.subr.bf16.mxu0 0
  %7404 = vmatpush1.bf16.msra.mxu0 0
  %7405 = vmatprep.subr.bf16.mxu0 0
  %7406 = vmatpush1.bf16.msra.mxu0 0
  %7407 = vmatprep.subr.bf16.mxu0 0
  %7408 = vmatpush1.bf16.msra.mxu0 0
  %7409 = vmatprep.subr.bf16.mxu0 0
  %7410 = vmatpush1.bf16.msra.mxu0 0
  %7411 = vmatprep.subr.bf16.mxu0 0
  %7412 = vmatpush1.bf16.msra.mxu0 0
  %7413 = vmatprep.mubr.bf16.mxu0 0
  %7414 = vmatmul.mubr.bf16.gmra.mrb[0].mxu0 %v7364
  %v7415 = vpop.f32.mrb[0].mxu0
  %v7416 = vadd.f32 0.0, %v7415
  %v7417 = vpop.f32.mrb[0].mxu0
  %v7418 = vpop.f32.mrb[0].mxu0
  %v7419 = vadd.f32 0.0, %v7418
  %v7420 = vpop.f32.mrb[0].mxu0
  %7421 = vmatprep.mubr.bf16.mxu0 0
  %7422 = vmatmul.mubr.bf16.gmra.mrb[0].mxu0 %v7367
  %v7423 = vpop.f32.mrb[0].mxu0
  %v7424 = vadd.f32 0.0, %v7423
  %v7425 = vpop.f32.mrb[0].mxu0
  %v7426 = vpop.f32.mrb[0].mxu0
  %v7427 = vadd.f32 0.0, %v7426
  %v7428 = vpop.f32.mrb[0].mxu0
  %7429 = vmatprep.mubr.bf16.mxu0 0
  %7430 = vmatmul.mubr.bf16.gmra.mrb[0].mxu0 %v7370
  %v7431 = vpop.f32.mrb[0].mxu0
  %v7432 = vadd.f32 0.0, %v7431
  %v7433 = vpop.f32.mrb[0].mxu0
  %v7434 = vpop.f32.mrb[0].mxu0
  %v7435 = vadd.f32 0.0, %v7434
  %v7436 = vpop.f32.mrb[0].mxu0
  %7437 = vmatprep.mubr.bf16.mxu0 0
  %7438 = vmatmul.mubr.bf16.gmra.mrb[0].mxu0 %v7373
  %v7439 = vpop.f32.mrb[0].mxu0
  %v7440 = vadd.f32 0.0, %v7439
  %v7441 = vpop.f32.mrb[0].mxu0
  %v7442 = vpop.f32.mrb[0].mxu0
  %v7443 = vadd.f32 0.0, %v7442
  %v7444 = vpop.f32.mrb[0].mxu0
  %7445 = vmatprep.mubr.bf16.mxu0 0
  %7446 = vmatmul.mubr.bf16.gmra.mrb[0].mxu0 %v7376
  %v7447 = vpop.f32.mrb[0].mxu0
  %v7448 = vadd.f32 0.0, %v7447
  %v7449 = vpop.f32.mrb[0].mxu0
  %v7450 = vpop.f32.mrb[0].mxu0
  %v7451 = vadd.f32 0.0, %v7450
  %v7452 = vpop.f32.mrb[0].mxu0
  %7453 = vmatprep.mubr.bf16.mxu0 0
  %7454 = vmatmul.mubr.bf16.gmra.mrb[0].mxu0 %v7379
  %v7455 = vpop.f32.mrb[0].mxu0
  %v7456 = vadd.f32 0.0, %v7455
  %v7457 = vpop.f32.mrb[0].mxu0
  %v7458 = vpop.f32.mrb[0].mxu0
  %v7459 = vadd.f32 0.0, %v7458
  %v7460 = vpop.f32.mrb[0].mxu0
  %7461 = vdwg.mxu0
  %v7462 = vadd.f32 %v6916, %v7416
  %v7463 = vadd.f32 %v6917, %v7419
  %v7464 = vadd.f32 %v6918, %v7424
  %v7465 = vadd.f32 %v6919, %v7427
  %v7466 = vadd.f32 %v6920, %v7432
  %v7467 = vadd.f32 %v6921, %v7435
  %v7468 = vadd.f32 %v6922, %v7440
  %v7469 = vadd.f32 %v6923, %v7443
  %v7470 = vadd.f32 %v6924, %v7448
  %v7471 = vadd.f32 %v6925, %v7451
  %v7472 = vadd.f32 %v6926, %v7456
  %v7473 = vadd.f32 %v6927, %v7459
  %v7474 = vadd.f32 %v4933, %v7462
  %v7475 = vadd.f32 %v4934, %v7463
  %v7476 = vadd.f32 %v4935, %v7464
  %v7477 = vadd.f32 %v4936, %v7465
  %v7478 = vadd.f32 %v4937, %v7466
  %v7479 = vadd.f32 %v4938, %v7467
  %v7480 = vadd.f32 %v4939, %v7468
  %v7481 = vadd.f32 %v4940, %v7469
  %v7482 = vadd.f32 %v4941, %v7470
  %v7483 = vadd.f32 %v4942, %v7471
  %v7484 = vadd.f32 %v4943, %v7472
  %v7485 = vadd.f32 %v4944, %v7473
  %s7486 = scalar_lea.vmem %s39, 1
  %v7487 = vld [vmem:[%s7486] sm:$0x1]
  %v7489 = vlaneseq
  %v7490 = vshrl.u32 %v7489, 7
  %v7491 = vsub.s32 0, %v7490
  %v7492 = vrot.slane %v7487, %v7491
  %v7494 = vadd.f32 %v7474, %v7492
  %v7495 = vadd.f32 %v7475, %v7492
  %v7496 = vadd.f32 %v7476, %v7492
  %v7497 = vadd.f32 %v7477, %v7492
  %v7498 = vadd.f32 %v7478, %v7492
  %v7499 = vadd.f32 %v7479, %v7492
  %v7500 = vadd.f32 %v7480, %v7492
  %v7501 = vadd.f32 %v7481, %v7492
  %v7502 = vadd.f32 %v7482, %v7492
  %v7503 = vadd.f32 %v7483, %v7492
  %v7504 = vadd.f32 %v7484, %v7492
  %v7505 = vadd.f32 %v7485, %v7492
  %s7506 = scalar_lea.vmem %s41, 1
  %v7507 = vld [vmem:[%s7506] sm:$0x1]
  %s7508 = scalar_lea.vmem %s43, 1
  %v7509 = vld [vmem:[%s7508] sm:$0x1]
  %v7510 = vsel %vm485, %v7494, 0.0
  %7511 = vadd.xlane.f32.xlu0 %v7510
  %v7512 = vpop.xlane.xlu0 %7511
  %v7513 = vsel %vm485, %v7495, 0.0
  %7514 = vadd.xlane.f32.xlu0 %v7513
  %v7515 = vpop.xlane.xlu0 %7514
  %v7516 = vsel %vm485, %v7496, 0.0
  %7517 = vadd.xlane.f32.xlu0 %v7516
  %v7518 = vpop.xlane.xlu0 %7517
  %v7519 = vsel %vm485, %v7497, 0.0
  %7520 = vadd.xlane.f32.xlu0 %v7519
  %v7521 = vpop.xlane.xlu0 %7520
  %v7522 = vsel %vm485, %v7498, 0.0
  %7523 = vadd.xlane.f32.xlu0 %v7522
  %v7524 = vpop.xlane.xlu0 %7523
  %v7525 = vsel %vm485, %v7499, 0.0
  %7526 = vadd.xlane.f32.xlu0 %v7525
  %v7527 = vpop.xlane.xlu0 %7526
  %v7528 = vsel %vm485, %v7500, 0.0
  %7529 = vadd.xlane.f32.xlu0 %v7528
  %v7530 = vpop.xlane.xlu0 %7529
  %v7531 = vsel %vm485, %v7501, 0.0
  %7532 = vadd.xlane.f32.xlu0 %v7531
  %v7533 = vpop.xlane.xlu0 %7532
  %v7534 = vsel %vm485, %v7502, 0.0
  %7535 = vadd.xlane.f32.xlu0 %v7534
  %v7536 = vpop.xlane.xlu0 %7535
  %v7537 = vsel %vm485, %v7503, 0.0
  %7538 = vadd.xlane.f32.xlu0 %v7537
  %v7539 = vpop.xlane.xlu0 %7538
  %v7540 = vsel %vm485, %v7504, 0.0
  %7541 = vadd.xlane.f32.xlu0 %v7540
  %v7542 = vpop.xlane.xlu0 %7541
  %v7543 = vsel %vm485, %v7505, 0.0
  %7544 = vadd.xlane.f32.xlu0 %v7543
  %v7545 = vpop.xlane.xlu0 %7544
  %v7546 = vmul.f32 %v7512, %v1586
  %v7547 = vmul.f32 %v7515, %v1586
  %v7548 = vmul.f32 %v7518, %v1586
  %v7549 = vmul.f32 %v7521, %v1586
  %v7550 = vmul.f32 %v7524, %v1586
  %v7551 = vmul.f32 %v7527, %v1586
  %v7552 = vmul.f32 %v7530, %v1586
  %v7553 = vmul.f32 %v7533, %v1586
  %v7554 = vmul.f32 %v7536, %v1586
  %v7555 = vmul.f32 %v7539, %v1586
  %v7556 = vmul.f32 %v7542, %v1586
  %v7557 = vmul.f32 %v7545, %v1586
  %v7558 = vsub.f32 %v7494, %v7546
  %v7559 = vsub.f32 %v7495, %v7547
  %v7560 = vsub.f32 %v7496, %v7548
  %v7561 = vsub.f32 %v7497, %v7549
  %v7562 = vsub.f32 %v7498, %v7550
  %v7563 = vsub.f32 %v7499, %v7551
  %v7564 = vsub.f32 %v7500, %v7552
  %v7565 = vsub.f32 %v7501, %v7553
  %v7566 = vsub.f32 %v7502, %v7554
  %v7567 = vsub.f32 %v7503, %v7555
  %v7568 = vsub.f32 %v7504, %v7556
  %v7569 = vsub.f32 %v7505, %v7557
  %v7570 = vmul.f32 %v7558, %v7558
  %v7571 = vmul.f32 %v7559, %v7559
  %v7572 = vmul.f32 %v7560, %v7560
  %v7573 = vmul.f32 %v7561, %v7561
  %v7574 = vmul.f32 %v7562, %v7562
  %v7575 = vmul.f32 %v7563, %v7563
  %v7576 = vmul.f32 %v7564, %v7564
  %v7577 = vmul.f32 %v7565, %v7565
  %v7578 = vmul.f32 %v7566, %v7566
  %v7579 = vmul.f32 %v7567, %v7567
  %v7580 = vmul.f32 %v7568, %v7568
  %v7581 = vmul.f32 %v7569, %v7569
  %v7582 = vsel %vm485, %v7570, 0.0
  %7583 = vadd.xlane.f32.xlu0 %v7582
  %v7584 = vpop.xlane.xlu0 %7583
  %v7585 = vsel %vm485, %v7571, 0.0
  %7586 = vadd.xlane.f32.xlu0 %v7585
  %v7587 = vpop.xlane.xlu0 %7586
  %v7588 = vsel %vm485, %v7572, 0.0
  %7589 = vadd.xlane.f32.xlu0 %v7588
  %v7590 = vpop.xlane.xlu0 %7589
  %v7591 = vsel %vm485, %v7573, 0.0
  %7592 = vadd.xlane.f32.xlu0 %v7591
  %v7593 = vpop.xlane.xlu0 %7592
  %v7594 = vsel %vm485, %v7574, 0.0
  %7595 = vadd.xlane.f32.xlu0 %v7594
  %v7596 = vpop.xlane.xlu0 %7595
  %v7597 = vsel %vm485, %v7575, 0.0
  %7598 = vadd.xlane.f32.xlu0 %v7597
  %v7599 = vpop.xlane.xlu0 %7598
  %v7600 = vsel %vm485, %v7576, 0.0
  %7601 = vadd.xlane.f32.xlu0 %v7600
  %v7602 = vpop.xlane.xlu0 %7601
  %v7603 = vsel %vm485, %v7577, 0.0
  %7604 = vadd.xlane.f32.xlu0 %v7603
  %v7605 = vpop.xlane.xlu0 %7604
  %v7606 = vsel %vm485, %v7578, 0.0
  %7607 = vadd.xlane.f32.xlu0 %v7606
  %v7608 = vpop.xlane.xlu0 %7607
  %v7609 = vsel %vm485, %v7579, 0.0
  %7610 = vadd.xlane.f32.xlu0 %v7609
  %v7611 = vpop.xlane.xlu0 %7610
  %v7612 = vsel %vm485, %v7580, 0.0
  %7613 = vadd.xlane.f32.xlu0 %v7612
  %v7614 = vpop.xlane.xlu0 %7613
  %v7615 = vsel %vm485, %v7581, 0.0
  %7616 = vadd.xlane.f32.xlu0 %v7615
  %v7617 = vpop.xlane.xlu0 %7616
  %v7618 = vmul.f32 %v7584, %v1586
  %v7619 = vmul.f32 %v7587, %v1586
  %v7620 = vmul.f32 %v7590, %v1586
  %v7621 = vmul.f32 %v7593, %v1586
  %v7622 = vmul.f32 %v7596, %v1586
  %v7623 = vmul.f32 %v7599, %v1586
  %v7624 = vmul.f32 %v7602, %v1586
  %v7625 = vmul.f32 %v7605, %v1586
  %v7626 = vmul.f32 %v7608, %v1586
  %v7627 = vmul.f32 %v7611, %v1586
  %v7628 = vmul.f32 %v7614, %v1586
  %v7629 = vmul.f32 %v7617, %v1586
  %v7630 = vadd.f32 %v7618, 1e-05
  %v7631 = vadd.f32 %v7619, 1e-05
  %v7632 = vadd.f32 %v7620, 1e-05
  %v7633 = vadd.f32 %v7621, 1e-05
  %v7634 = vadd.f32 %v7622, 1e-05
  %v7635 = vadd.f32 %v7623, 1e-05
  %v7636 = vadd.f32 %v7624, 1e-05
  %v7637 = vadd.f32 %v7625, 1e-05
  %v7638 = vadd.f32 %v7626, 1e-05
  %v7639 = vadd.f32 %v7627, 1e-05
  %v7640 = vadd.f32 %v7628, 1e-05
  %v7641 = vadd.f32 %v7629, 1e-05
  %v7642 = vrsqrt.pop %v7630
  %v7643 = vrsqrt.pop %v7631
  %v7644 = vrsqrt.pop %v7632
  %v7645 = vrsqrt.pop %v7633
  %v7646 = vrsqrt.pop %v7634
  %v7647 = vrsqrt.pop %v7635
  %v7648 = vrsqrt.pop %v7636
  %v7649 = vrsqrt.pop %v7637
  %v7650 = vrsqrt.pop %v7638
  %v7651 = vrsqrt.pop %v7639
  %v7652 = vrsqrt.pop %v7640
  %v7653 = vrsqrt.pop %v7641
  %v7654 = vmul.f32 %v7558, %v7642
  %v7655 = vmul.f32 %v7559, %v7643
  %v7656 = vmul.f32 %v7560, %v7644
  %v7657 = vmul.f32 %v7561, %v7645
  %v7658 = vmul.f32 %v7562, %v7646
  %v7659 = vmul.f32 %v7563, %v7647
  %v7660 = vmul.f32 %v7564, %v7648
  %v7661 = vmul.f32 %v7565, %v7649
  %v7662 = vmul.f32 %v7566, %v7650
  %v7663 = vmul.f32 %v7567, %v7651
  %v7664 = vmul.f32 %v7568, %v7652
  %v7665 = vmul.f32 %v7569, %v7653
  %v7667 = vlaneseq
  %v7668 = vshrl.u32 %v7667, 7
  %v7669 = vsub.s32 0, %v7668
  %v7670 = vrot.slane %v7507, %v7669
  %v7672 = vmul.f32 %v7654, %v7670
  %v7673 = vmul.f32 %v7655, %v7670
  %v7674 = vmul.f32 %v7656, %v7670
  %v7675 = vmul.f32 %v7657, %v7670
  %v7676 = vmul.f32 %v7658, %v7670
  %v7677 = vmul.f32 %v7659, %v7670
  %v7678 = vmul.f32 %v7660, %v7670
  %v7679 = vmul.f32 %v7661, %v7670
  %v7680 = vmul.f32 %v7662, %v7670
  %v7681 = vmul.f32 %v7663, %v7670
  %v7682 = vmul.f32 %v7664, %v7670
  %v7683 = vmul.f32 %v7665, %v7670
  %v7685 = vlaneseq
  %v7686 = vshrl.u32 %v7685, 7
  %v7687 = vsub.s32 0, %v7686
  %v7688 = vrot.slane %v7509, %v7687
  %v7690 = vadd.f32 %v7672, %v7688
  %v7691 = vadd.f32 %v7673, %v7688
  %v7692 = vadd.f32 %v7674, %v7688
  %v7693 = vadd.f32 %v7675, %v7688
  %v7694 = vadd.f32 %v7676, %v7688
  %v7695 = vadd.f32 %v7677, %v7688
  %v7696 = vadd.f32 %v7678, %v7688
  %v7697 = vadd.f32 %v7679, %v7688
  %v7698 = vadd.f32 %v7680, %v7688
  %v7699 = vadd.f32 %v7681, %v7688
  %v7700 = vadd.f32 %v7682, %v7688
  %v7701 = vadd.f32 %v7683, %v7688
  %v7702 = vpack.c.bf16 %v7691, %v7690
  %v7703 = vpack.c.bf16 %v7693, %v7692
  %v7704 = vpack.c.bf16 %v7695, %v7694
  %v7705 = vpack.c.bf16 %v7697, %v7696
  %v7706 = vpack.c.bf16 %v7699, %v7698
  %v7707 = vpack.c.bf16 %v7701, %v7700
  %s7708 = scalar_lea.vmem %s45, 64
  %v7709 = vld [vmem:[%s7708] sm:$0xff]
  %v7710 = vld [vmem:[%s7708 + $0x8] sm:$0xff]
  %v7711 = vld [vmem:[%s7708 + $0x10] sm:$0xff]
  %v7712 = vld [vmem:[%s7708 + $0x18] sm:$0xff]
  %v7713 = vld [vmem:[%s7708 + $0x20] sm:$0xff]
  %v7714 = vld [vmem:[%s7708 + $0x28] sm:$0xff]
  %v7715 = vld [vmem:[%s7708 + $0x30] sm:$0xff]
  %v7716 = vld [vmem:[%s7708 + $0x38] sm:$0xff]
  %s7717 = scalar_lea.vmem %s47, 2
  %v7718 = vld [vmem:[%s7717] sm:$0x3]
  %v7720 = vlaneseq
  %v7721 = vshrl.u32 %v7720, 7
  %v7722 = vsub.s32 0, %v7721
  %v7723 = vrot.slane %v7718, %v7722
  %v7724 = vlaneseq
  %v7725 = vshrl.u32 %v7724, 7
  %v7726 = vsub.s32 1, %v7725
  %v7727 = vrot.slane %v7718, %v7726
  %v7738 = vunpack.c.l.b16 %v7709
  %v7739 = vunpack.c.h.b16 %v7709
  %v7740 = vunpack.c.l.b16 %v7710
  %v7741 = vunpack.c.h.b16 %v7710
  %v7742 = vunpack.c.l.b16 %v7711
  %v7743 = vunpack.c.h.b16 %v7711
  %v7744 = vunpack.c.l.b16 %v7712
  %v7745 = vunpack.c.h.b16 %v7712
  %v7746 = vunpack.c.l.b16 %v7713
  %v7747 = vunpack.c.h.b16 %v7713
  %v7748 = vunpack.c.l.b16 %v7714
  %v7749 = vunpack.c.h.b16 %v7714
  %v7750 = vunpack.c.l.b16 %v7715
  %v7751 = vunpack.c.h.b16 %v7715
  %v7752 = vunpack.c.l.b16 %v7716
  %v7753 = vunpack.c.h.b16 %v7716
  %v7754 = vpack.c.b16 %v7740, %v7738
  %v7755 = vpack.c.b16 %v7741, %v7739
  %v7756 = vpack.c.b16 %v7744, %v7742
  %v7757 = vpack.c.b16 %v7745, %v7743
  %v7758 = vpack.c.b16 %v7748, %v7746
  %v7759 = vpack.c.b16 %v7749, %v7747
  %v7760 = vpack.c.b16 %v7752, %v7750
  %v7761 = vpack.c.b16 %v7753, %v7751
  %v7771 = vsel %vm485, %v7702, 0
  %v7774 = vsel %vm485, %v7703, 0
  %v7777 = vsel %vm485, %v7704, 0
  %v7780 = vsel %vm485, %v7705, 0
  %v7783 = vsel %vm485, %v7706, 0
  %v7786 = vsel %vm485, %v7707, 0
  %7788 = vmatprep.subr.bf16.mxu0 %v7755
  %7789 = vmatpush1.bf16.msra.mxu0 %v7754
  %7790 = vmatprep.subr.bf16.mxu0 %v7757
  %7791 = vmatpush1.bf16.msra.mxu0 %v7756
  %7792 = vmatprep.subr.bf16.mxu0 %v7759
  %7793 = vmatpush1.bf16.msra.mxu0 %v7758
  %7794 = vmatprep.subr.bf16.mxu0 %v7761
  %7795 = vmatpush1.bf16.msra.mxu0 %v7760
  %7796 = vmatprep.subr.bf16.mxu0 0
  %7797 = vmatpush1.bf16.msra.mxu0 0
  %7798 = vmatprep.subr.bf16.mxu0 0
  %7799 = vmatpush1.bf16.msra.mxu0 0
  %7800 = vmatprep.subr.bf16.mxu0 0
  %7801 = vmatpush1.bf16.msra.mxu0 0
  %7802 = vmatprep.subr.bf16.mxu0 0
  %7803 = vmatpush1.bf16.msra.mxu0 0
  %7804 = vmatprep.subr.bf16.mxu0 0
  %7805 = vmatpush1.bf16.msra.mxu0 0
  %7806 = vmatprep.subr.bf16.mxu0 0
  %7807 = vmatpush1.bf16.msra.mxu0 0
  %7808 = vmatprep.subr.bf16.mxu0 0
  %7809 = vmatpush1.bf16.msra.mxu0 0
  %7810 = vmatprep.subr.bf16.mxu0 0
  %7811 = vmatpush1.bf16.msra.mxu0 0
  %7812 = vmatprep.subr.bf16.mxu0 0
  %7813 = vmatpush1.bf16.msra.mxu0 0
  %7814 = vmatprep.subr.bf16.mxu0 0
  %7815 = vmatpush1.bf16.msra.mxu0 0
  %7816 = vmatprep.subr.bf16.mxu0 0
  %7817 = vmatpush1.bf16.msra.mxu0 0
  %7818 = vmatprep.subr.bf16.mxu0 0
  %7819 = vmatpush1.bf16.msra.mxu0 0
  %7820 = vmatprep.mubr.bf16.mxu0 0
  %7821 = vmatmul.mubr.bf16.gmra.mrb[0].mxu0 %v7771
  %v7822 = vpop.f32.mrb[0].mxu0
  %v7823 = vadd.f32 %v7723, %v7822
  %v7824 = vpop.f32.mrb[0].mxu0
  %v7825 = vadd.f32 %v7727, %v7824
  %v7826 = vpop.f32.mrb[0].mxu0
  %v7827 = vadd.f32 %v7723, %v7826
  %v7828 = vpop.f32.mrb[0].mxu0
  %v7829 = vadd.f32 %v7727, %v7828
  %7830 = vmatprep.mubr.bf16.mxu0 0
  %7831 = vmatmul.mubr.bf16.gmra.mrb[0].mxu0 %v7774
  %v7832 = vpop.f32.mrb[0].mxu0
  %v7833 = vadd.f32 %v7723, %v7832
  %v7834 = vpop.f32.mrb[0].mxu0
  %v7835 = vadd.f32 %v7727, %v7834
  %v7836 = vpop.f32.mrb[0].mxu0
  %v7837 = vadd.f32 %v7723, %v7836
  %v7838 = vpop.f32.mrb[0].mxu0
  %v7839 = vadd.f32 %v7727, %v7838
  %7840 = vmatprep.mubr.bf16.mxu0 0
  %7841 = vmatmul.mubr.bf16.gmra.mrb[0].mxu0 %v7777
  %v7842 = vpop.f32.mrb[0].mxu0
  %v7843 = vadd.f32 %v7723, %v7842
  %v7844 = vpop.f32.mrb[0].mxu0
  %v7845 = vadd.f32 %v7727, %v7844
  %v7846 = vpop.f32.mrb[0].mxu0
  %v7847 = vadd.f32 %v7723, %v7846
  %v7848 = vpop.f32.mrb[0].mxu0
  %v7849 = vadd.f32 %v7727, %v7848
  %7850 = vmatprep.mubr.bf16.mxu0 0
  %7851 = vmatmul.mubr.bf16.gmra.mrb[0].mxu0 %v7780
  %v7852 = vpop.f32.mrb[0].mxu0
  %v7853 = vadd.f32 %v7723, %v7852
  %v7854 = vpop.f32.mrb[0].mxu0
  %v7855 = vadd.f32 %v7727, %v7854
  %v7856 = vpop.f32.mrb[0].mxu0
  %v7857 = vadd.f32 %v7723, %v7856
  %v7858 = vpop.f32.mrb[0].mxu0
  %v7859 = vadd.f32 %v7727, %v7858
  %7860 = vmatprep.mubr.bf16.mxu0 0
  %7861 = vmatmul.mubr.bf16.gmra.mrb[0].mxu0 %v7783
  %v7862 = vpop.f32.mrb[0].mxu0
  %v7863 = vadd.f32 %v7723, %v7862
  %v7864 = vpop.f32.mrb[0].mxu0
  %v7865 = vadd.f32 %v7727, %v7864
  %v7866 = vpop.f32.mrb[0].mxu0
  %v7867 = vadd.f32 %v7723, %v7866
  %v7868 = vpop.f32.mrb[0].mxu0
  %v7869 = vadd.f32 %v7727, %v7868
  %7870 = vmatprep.mubr.bf16.mxu0 0
  %7871 = vmatmul.mubr.bf16.gmra.mrb[0].mxu0 %v7786
  %v7872 = vpop.f32.mrb[0].mxu0
  %v7873 = vadd.f32 %v7723, %v7872
  %v7874 = vpop.f32.mrb[0].mxu0
  %v7875 = vadd.f32 %v7727, %v7874
  %v7876 = vpop.f32.mrb[0].mxu0
  %v7877 = vadd.f32 %v7723, %v7876
  %v7878 = vpop.f32.mrb[0].mxu0
  %v7879 = vadd.f32 %v7727, %v7878
  %7880 = vdwg.mxu0
  %v7881 = vmul.f32 %v7823, %v7823
  %v7882 = vmul.f32 %v7825, %v7825
  %v7883 = vmul.f32 %v7827, %v7827
  %v7884 = vmul.f32 %v7829, %v7829
  %v7885 = vmul.f32 %v7833, %v7833
  %v7886 = vmul.f32 %v7835, %v7835
  %v7887 = vmul.f32 %v7837, %v7837
  %v7888 = vmul.f32 %v7839, %v7839
  %v7889 = vmul.f32 %v7843, %v7843
  %v7890 = vmul.f32 %v7845, %v7845
  %v7891 = vmul.f32 %v7847, %v7847
  %v7892 = vmul.f32 %v7849, %v7849
  %v7893 = vmul.f32 %v7853, %v7853
  %v7894 = vmul.f32 %v7855, %v7855
  %v7895 = vmul.f32 %v7857, %v7857
  %v7896 = vmul.f32 %v7859, %v7859
  %v7897 = vmul.f32 %v7863, %v7863
  %v7898 = vmul.f32 %v7865, %v7865
  %v7899 = vmul.f32 %v7867, %v7867
  %v7900 = vmul.f32 %v7869, %v7869
  %v7901 = vmul.f32 %v7873, %v7873
  %v7902 = vmul.f32 %v7875, %v7875
  %v7903 = vmul.f32 %v7877, %v7877
  %v7904 = vmul.f32 %v7879, %v7879
  %v7905 = vmul.f32 %v7823, %v7881
  %v7906 = vmul.f32 %v7825, %v7882
  %v7907 = vmul.f32 %v7827, %v7883
  %v7908 = vmul.f32 %v7829, %v7884
  %v7909 = vmul.f32 %v7833, %v7885
  %v7910 = vmul.f32 %v7835, %v7886
  %v7911 = vmul.f32 %v7837, %v7887
  %v7912 = vmul.f32 %v7839, %v7888
  %v7913 = vmul.f32 %v7843, %v7889
  %v7914 = vmul.f32 %v7845, %v7890
  %v7915 = vmul.f32 %v7847, %v7891
  %v7916 = vmul.f32 %v7849, %v7892
  %v7917 = vmul.f32 %v7853, %v7893
  %v7918 = vmul.f32 %v7855, %v7894
  %v7919 = vmul.f32 %v7857, %v7895
  %v7920 = vmul.f32 %v7859, %v7896
  %v7921 = vmul.f32 %v7863, %v7897
  %v7922 = vmul.f32 %v7865, %v7898
  %v7923 = vmul.f32 %v7867, %v7899
  %v7924 = vmul.f32 %v7869, %v7900
  %v7925 = vmul.f32 %v7873, %v7901
  %v7926 = vmul.f32 %v7875, %v7902
  %v7927 = vmul.f32 %v7877, %v7903
  %v7928 = vmul.f32 %v7879, %v7904
  %v7929 = vmul.f32 %v7905, 0.044715
  %v7930 = vmul.f32 %v7906, 0.044715
  %v7931 = vmul.f32 %v7907, 0.044715
  %v7932 = vmul.f32 %v7908, 0.044715
  %v7933 = vmul.f32 %v7909, 0.044715
  %v7934 = vmul.f32 %v7910, 0.044715
  %v7935 = vmul.f32 %v7911, 0.044715
  %v7936 = vmul.f32 %v7912, 0.044715
  %v7937 = vmul.f32 %v7913, 0.044715
  %v7938 = vmul.f32 %v7914, 0.044715
  %v7939 = vmul.f32 %v7915, 0.044715
  %v7940 = vmul.f32 %v7916, 0.044715
  %v7941 = vmul.f32 %v7917, 0.044715
  %v7942 = vmul.f32 %v7918, 0.044715
  %v7943 = vmul.f32 %v7919, 0.044715
  %v7944 = vmul.f32 %v7920, 0.044715
  %v7945 = vmul.f32 %v7921, 0.044715
  %v7946 = vmul.f32 %v7922, 0.044715
  %v7947 = vmul.f32 %v7923, 0.044715
  %v7948 = vmul.f32 %v7924, 0.044715
  %v7949 = vmul.f32 %v7925, 0.044715
  %v7950 = vmul.f32 %v7926, 0.044715
  %v7951 = vmul.f32 %v7927, 0.044715
  %v7952 = vmul.f32 %v7928, 0.044715
  %v7953 = vadd.f32 %v7823, %v7929
  %v7954 = vadd.f32 %v7825, %v7930
  %v7955 = vadd.f32 %v7827, %v7931
  %v7956 = vadd.f32 %v7829, %v7932
  %v7957 = vadd.f32 %v7833, %v7933
  %v7958 = vadd.f32 %v7835, %v7934
  %v7959 = vadd.f32 %v7837, %v7935
  %v7960 = vadd.f32 %v7839, %v7936
  %v7961 = vadd.f32 %v7843, %v7937
  %v7962 = vadd.f32 %v7845, %v7938
  %v7963 = vadd.f32 %v7847, %v7939
  %v7964 = vadd.f32 %v7849, %v7940
  %v7965 = vadd.f32 %v7853, %v7941
  %v7966 = vadd.f32 %v7855, %v7942
  %v7967 = vadd.f32 %v7857, %v7943
  %v7968 = vadd.f32 %v7859, %v7944
  %v7969 = vadd.f32 %v7863, %v7945
  %v7970 = vadd.f32 %v7865, %v7946
  %v7971 = vadd.f32 %v7867, %v7947
  %v7972 = vadd.f32 %v7869, %v7948
  %v7973 = vadd.f32 %v7873, %v7949
  %v7974 = vadd.f32 %v7875, %v7950
  %v7975 = vadd.f32 %v7877, %v7951
  %v7976 = vadd.f32 %v7879, %v7952
  %v7977 = vmul.f32 %v7953, 0.7978846
  %v7978 = vmul.f32 %v7954, 0.7978846
  %v7979 = vmul.f32 %v7955, 0.7978846
  %v7980 = vmul.f32 %v7956, 0.7978846
  %v7981 = vmul.f32 %v7957, 0.7978846
  %v7982 = vmul.f32 %v7958, 0.7978846
  %v7983 = vmul.f32 %v7959, 0.7978846
  %v7984 = vmul.f32 %v7960, 0.7978846
  %v7985 = vmul.f32 %v7961, 0.7978846
  %v7986 = vmul.f32 %v7962, 0.7978846
  %v7987 = vmul.f32 %v7963, 0.7978846
  %v7988 = vmul.f32 %v7964, 0.7978846
  %v7989 = vmul.f32 %v7965, 0.7978846
  %v7990 = vmul.f32 %v7966, 0.7978846
  %v7991 = vmul.f32 %v7967, 0.7978846
  %v7992 = vmul.f32 %v7968, 0.7978846
  %v7993 = vmul.f32 %v7969, 0.7978846
  %v7994 = vmul.f32 %v7970, 0.7978846
  %v7995 = vmul.f32 %v7971, 0.7978846
  %v7996 = vmul.f32 %v7972, 0.7978846
  %v7997 = vmul.f32 %v7973, 0.7978846
  %v7998 = vmul.f32 %v7974, 0.7978846
  %v7999 = vmul.f32 %v7975, 0.7978846
  %v8000 = vmul.f32 %v7976, 0.7978846
  %v8001 = vtanh.pop %v7977
  %v8002 = vtanh.pop %v7978
  %v8003 = vtanh.pop %v7979
  %v8004 = vtanh.pop %v7980
  %v8005 = vtanh.pop %v7981
  %v8006 = vtanh.pop %v7982
  %v8007 = vtanh.pop %v7983
  %v8008 = vtanh.pop %v7984
  %v8009 = vtanh.pop %v7985
  %v8010 = vtanh.pop %v7986
  %v8011 = vtanh.pop %v7987
  %v8012 = vtanh.pop %v7988
  %v8013 = vtanh.pop %v7989
  %v8014 = vtanh.pop %v7990
  %v8015 = vtanh.pop %v7991
  %v8016 = vtanh.pop %v7992
  %v8017 = vtanh.pop %v7993
  %v8018 = vtanh.pop %v7994
  %v8019 = vtanh.pop %v7995
  %v8020 = vtanh.pop %v7996
  %v8021 = vtanh.pop %v7997
  %v8022 = vtanh.pop %v7998
  %v8023 = vtanh.pop %v7999
  %v8024 = vtanh.pop %v8000
  %v8025 = vadd.f32 %v8001, 1.0
  %v8026 = vadd.f32 %v8002, 1.0
  %v8027 = vadd.f32 %v8003, 1.0
  %v8028 = vadd.f32 %v8004, 1.0
  %v8029 = vadd.f32 %v8005, 1.0
  %v8030 = vadd.f32 %v8006, 1.0
  %v8031 = vadd.f32 %v8007, 1.0
  %v8032 = vadd.f32 %v8008, 1.0
  %v8033 = vadd.f32 %v8009, 1.0
  %v8034 = vadd.f32 %v8010, 1.0
  %v8035 = vadd.f32 %v8011, 1.0
  %v8036 = vadd.f32 %v8012, 1.0
  %v8037 = vadd.f32 %v8013, 1.0
  %v8038 = vadd.f32 %v8014, 1.0
  %v8039 = vadd.f32 %v8015, 1.0
  %v8040 = vadd.f32 %v8016, 1.0
  %v8041 = vadd.f32 %v8017, 1.0
  %v8042 = vadd.f32 %v8018, 1.0
  %v8043 = vadd.f32 %v8019, 1.0
  %v8044 = vadd.f32 %v8020, 1.0
  %v8045 = vadd.f32 %v8021, 1.0
  %v8046 = vadd.f32 %v8022, 1.0
  %v8047 = vadd.f32 %v8023, 1.0
  %v8048 = vadd.f32 %v8024, 1.0
  %v8049 = vmul.f32 %v8025, 0.5
  %v8050 = vmul.f32 %v8026, 0.5
  %v8051 = vmul.f32 %v8027, 0.5
  %v8052 = vmul.f32 %v8028, 0.5
  %v8053 = vmul.f32 %v8029, 0.5
  %v8054 = vmul.f32 %v8030, 0.5
  %v8055 = vmul.f32 %v8031, 0.5
  %v8056 = vmul.f32 %v8032, 0.5
  %v8057 = vmul.f32 %v8033, 0.5
  %v8058 = vmul.f32 %v8034, 0.5
  %v8059 = vmul.f32 %v8035, 0.5
  %v8060 = vmul.f32 %v8036, 0.5
  %v8061 = vmul.f32 %v8037, 0.5
  %v8062 = vmul.f32 %v8038, 0.5
  %v8063 = vmul.f32 %v8039, 0.5
  %v8064 = vmul.f32 %v8040, 0.5
  %v8065 = vmul.f32 %v8041, 0.5
  %v8066 = vmul.f32 %v8042, 0.5
  %v8067 = vmul.f32 %v8043, 0.5
  %v8068 = vmul.f32 %v8044, 0.5
  %v8069 = vmul.f32 %v8045, 0.5
  %v8070 = vmul.f32 %v8046, 0.5
  %v8071 = vmul.f32 %v8047, 0.5
  %v8072 = vmul.f32 %v8048, 0.5
  %v8073 = vmul.f32 %v7823, %v8049
  %v8074 = vmul.f32 %v7825, %v8050
  %v8075 = vmul.f32 %v7827, %v8051
  %v8076 = vmul.f32 %v7829, %v8052
  %v8077 = vmul.f32 %v7833, %v8053
  %v8078 = vmul.f32 %v7835, %v8054
  %v8079 = vmul.f32 %v7837, %v8055
  %v8080 = vmul.f32 %v7839, %v8056
  %v8081 = vmul.f32 %v7843, %v8057
  %v8082 = vmul.f32 %v7845, %v8058
  %v8083 = vmul.f32 %v7847, %v8059
  %v8084 = vmul.f32 %v7849, %v8060
  %v8085 = vmul.f32 %v7853, %v8061
  %v8086 = vmul.f32 %v7855, %v8062
  %v8087 = vmul.f32 %v7857, %v8063
  %v8088 = vmul.f32 %v7859, %v8064
  %v8089 = vmul.f32 %v7863, %v8065
  %v8090 = vmul.f32 %v7865, %v8066
  %v8091 = vmul.f32 %v7867, %v8067
  %v8092 = vmul.f32 %v7869, %v8068
  %v8093 = vmul.f32 %v7873, %v8069
  %v8094 = vmul.f32 %v7875, %v8070
  %v8095 = vmul.f32 %v7877, %v8071
  %v8096 = vmul.f32 %v7879, %v8072
  %v8097 = vpack.c.bf16 %v8075, %v8073
  %v8098 = vpack.c.bf16 %v8076, %v8074
  %v8099 = vpack.c.bf16 %v8079, %v8077
  %v8100 = vpack.c.bf16 %v8080, %v8078
  %v8101 = vpack.c.bf16 %v8083, %v8081
  %v8102 = vpack.c.bf16 %v8084, %v8082
  %v8103 = vpack.c.bf16 %v8087, %v8085
  %v8104 = vpack.c.bf16 %v8088, %v8086
  %v8105 = vpack.c.bf16 %v8091, %v8089
  %v8106 = vpack.c.bf16 %v8092, %v8090
  %v8107 = vpack.c.bf16 %v8095, %v8093
  %v8108 = vpack.c.bf16 %v8096, %v8094
  %s8109 = scalar_lea.vmem %s49, 128
  %v8110 = vld [vmem:[%s8109] sm:$0xf]
  %v8111 = vld [vmem:[%s8109 + $0x4] sm:$0xf]
  %v8112 = vld [vmem:[%s8109 + $0x8] sm:$0xf]
  %v8113 = vld [vmem:[%s8109 + $0xc] sm:$0xf]
  %v8114 = vld [vmem:[%s8109 + $0x10] sm:$0xf]
  %v8115 = vld [vmem:[%s8109 + $0x14] sm:$0xf]
  %v8116 = vld [vmem:[%s8109 + $0x18] sm:$0xf]
  %v8117 = vld [vmem:[%s8109 + $0x1c] sm:$0xf]
  %v8118 = vld [vmem:[%s8109 + $0x20] sm:$0xf]
  %v8119 = vld [vmem:[%s8109 + $0x24] sm:$0xf]
  %v8120 = vld [vmem:[%s8109 + $0x28] sm:$0xf]
  %v8121 = vld [vmem:[%s8109 + $0x2c] sm:$0xf]
  %v8122 = vld [vmem:[%s8109 + $0x30] sm:$0xf]
  %v8123 = vld [vmem:[%s8109 + $0x34] sm:$0xf]
  %v8124 = vld [vmem:[%s8109 + $0x38] sm:$0xf]
  %v8125 = vld [vmem:[%s8109 + $0x3c] sm:$0xf]
  %v8126 = vld [vmem:[%s8109 + $0x40] sm:$0xf]
  %v8127 = vld [vmem:[%s8109 + $0x44] sm:$0xf]
  %v8128 = vld [vmem:[%s8109 + $0x48] sm:$0xf]
  %v8129 = vld [vmem:[%s8109 + $0x4c] sm:$0xf]
  %v8130 = vld [vmem:[%s8109 + $0x50] sm:$0xf]
  %v8131 = vld [vmem:[%s8109 + $0x54] sm:$0xf]
  %v8132 = vld [vmem:[%s8109 + $0x58] sm:$0xf]
  %v8133 = vld [vmem:[%s8109 + $0x5c] sm:$0xf]
  %v8134 = vld [vmem:[%s8109 + $0x60] sm:$0xf]
  %v8135 = vld [vmem:[%s8109 + $0x64] sm:$0xf]
  %v8136 = vld [vmem:[%s8109 + $0x68] sm:$0xf]
  %v8137 = vld [vmem:[%s8109 + $0x6c] sm:$0xf]
  %v8138 = vld [vmem:[%s8109 + $0x70] sm:$0xf]
  %v8139 = vld [vmem:[%s8109 + $0x74] sm:$0xf]
  %v8140 = vld [vmem:[%s8109 + $0x78] sm:$0xf]
  %v8141 = vld [vmem:[%s8109 + $0x7c] sm:$0xf]
  %v8174 = vunpack.c.l.b16 %v8110
  %v8175 = vunpack.c.l.b16 %v8111
  %v8176 = vunpack.c.l.b16 %v8112
  %v8177 = vunpack.c.l.b16 %v8113
  %v8178 = vunpack.c.l.b16 %v8114
  %v8179 = vunpack.c.l.b16 %v8115
  %v8180 = vunpack.c.l.b16 %v8116
  %v8181 = vunpack.c.l.b16 %v8117
  %v8182 = vunpack.c.l.b16 %v8118
  %v8183 = vunpack.c.l.b16 %v8119
  %v8184 = vunpack.c.l.b16 %v8120
  %v8185 = vunpack.c.l.b16 %v8121
  %v8186 = vunpack.c.l.b16 %v8122
  %v8187 = vunpack.c.l.b16 %v8123
  %v8188 = vunpack.c.l.b16 %v8124
  %v8189 = vunpack.c.l.b16 %v8125
  %v8190 = vunpack.c.l.b16 %v8126
  %v8191 = vunpack.c.l.b16 %v8127
  %v8192 = vunpack.c.l.b16 %v8128
  %v8193 = vunpack.c.l.b16 %v8129
  %v8194 = vunpack.c.l.b16 %v8130
  %v8195 = vunpack.c.l.b16 %v8131
  %v8196 = vunpack.c.l.b16 %v8132
  %v8197 = vunpack.c.l.b16 %v8133
  %v8198 = vunpack.c.l.b16 %v8134
  %v8199 = vunpack.c.l.b16 %v8135
  %v8200 = vunpack.c.l.b16 %v8136
  %v8201 = vunpack.c.l.b16 %v8137
  %v8202 = vunpack.c.l.b16 %v8138
  %v8203 = vunpack.c.l.b16 %v8139
  %v8204 = vunpack.c.l.b16 %v8140
  %v8205 = vunpack.c.l.b16 %v8141
  %v8206 = vpack.c.b16 %v8175, %v8174
  %v8207 = vpack.c.b16 %v8177, %v8176
  %v8208 = vpack.c.b16 %v8179, %v8178
  %v8209 = vpack.c.b16 %v8181, %v8180
  %v8210 = vpack.c.b16 %v8183, %v8182
  %v8211 = vpack.c.b16 %v8185, %v8184
  %v8212 = vpack.c.b16 %v8187, %v8186
  %v8213 = vpack.c.b16 %v8189, %v8188
  %v8214 = vpack.c.b16 %v8191, %v8190
  %v8215 = vpack.c.b16 %v8193, %v8192
  %v8216 = vpack.c.b16 %v8195, %v8194
  %v8217 = vpack.c.b16 %v8197, %v8196
  %v8218 = vpack.c.b16 %v8199, %v8198
  %v8219 = vpack.c.b16 %v8201, %v8200
  %v8220 = vpack.c.b16 %v8203, %v8202
  %v8221 = vpack.c.b16 %v8205, %v8204
  %8238 = vmatprep.subr.bf16.mxu0 0
  %8239 = vmatpush1.bf16.msra.mxu0 %v8206
  %8240 = vmatprep.subr.bf16.mxu0 0
  %8241 = vmatpush1.bf16.msra.mxu0 %v8207
  %8242 = vmatprep.subr.bf16.mxu0 0
  %8243 = vmatpush1.bf16.msra.mxu0 %v8208
  %8244 = vmatprep.subr.bf16.mxu0 0
  %8245 = vmatpush1.bf16.msra.mxu0 %v8209
  %8246 = vmatprep.subr.bf16.mxu0 0
  %8247 = vmatpush1.bf16.msra.mxu0 %v8210
  %8248 = vmatprep.subr.bf16.mxu0 0
  %8249 = vmatpush1.bf16.msra.mxu0 %v8211
  %8250 = vmatprep.subr.bf16.mxu0 0
  %8251 = vmatpush1.bf16.msra.mxu0 %v8212
  %8252 = vmatprep.subr.bf16.mxu0 0
  %8253 = vmatpush1.bf16.msra.mxu0 %v8213
  %8254 = vmatprep.subr.bf16.mxu0 0
  %8255 = vmatpush1.bf16.msra.mxu0 %v8214
  %8256 = vmatprep.subr.bf16.mxu0 0
  %8257 = vmatpush1.bf16.msra.mxu0 %v8215
  %8258 = vmatprep.subr.bf16.mxu0 0
  %8259 = vmatpush1.bf16.msra.mxu0 %v8216
  %8260 = vmatprep.subr.bf16.mxu0 0
  %8261 = vmatpush1.bf16.msra.mxu0 %v8217
  %8262 = vmatprep.subr.bf16.mxu0 0
  %8263 = vmatpush1.bf16.msra.mxu0 %v8218
  %8264 = vmatprep.subr.bf16.mxu0 0
  %8265 = vmatpush1.bf16.msra.mxu0 %v8219
  %8266 = vmatprep.subr.bf16.mxu0 0
  %8267 = vmatpush1.bf16.msra.mxu0 %v8220
  %8268 = vmatprep.subr.bf16.mxu0 0
  %8269 = vmatpush1.bf16.msra.mxu0 %v8221
  %8270 = vmatprep.mubr.bf16.mxu0 %v8098
  %8271 = vmatmul.mubr.bf16.gmra.mrb[0].mxu0 %v8097
  %v8272 = vpop.f32.mrb[0].mxu0
  %v8273 = vpop.f32.mrb[0].mxu0
  %v8274 = vpop.f32.mrb[0].mxu0
  %v8275 = vpop.f32.mrb[0].mxu0
  %8276 = vmatprep.mubr.bf16.mxu0 %v8100
  %8277 = vmatmul.mubr.bf16.gmra.mrb[0].mxu0 %v8099
  %v8278 = vpop.f32.mrb[0].mxu0
  %v8279 = vpop.f32.mrb[0].mxu0
  %v8280 = vpop.f32.mrb[0].mxu0
  %v8281 = vpop.f32.mrb[0].mxu0
  %8282 = vmatprep.mubr.bf16.mxu0 %v8102
  %8283 = vmatmul.mubr.bf16.gmra.mrb[0].mxu0 %v8101
  %v8284 = vpop.f32.mrb[0].mxu0
  %v8285 = vpop.f32.mrb[0].mxu0
  %v8286 = vpop.f32.mrb[0].mxu0
  %v8287 = vpop.f32.mrb[0].mxu0
  %8288 = vmatprep.mubr.bf16.mxu0 %v8104
  %8289 = vmatmul.mubr.bf16.gmra.mrb[0].mxu0 %v8103
  %v8290 = vpop.f32.mrb[0].mxu0
  %v8291 = vpop.f32.mrb[0].mxu0
  %v8292 = vpop.f32.mrb[0].mxu0
  %v8293 = vpop.f32.mrb[0].mxu0
  %8294 = vmatprep.mubr.bf16.mxu0 %v8106
  %8295 = vmatmul.mubr.bf16.gmra.mrb[0].mxu0 %v8105
  %v8296 = vpop.f32.mrb[0].mxu0
  %v8297 = vadd.f32 0.0, %v8296
  %v8298 = vpop.f32.mrb[0].mxu0
  %v8299 = vpop.f32.mrb[0].mxu0
  %v8300 = vadd.f32 0.0, %v8299
  %v8301 = vpop.f32.mrb[0].mxu0
  %8302 = vmatprep.mubr.bf16.mxu0 %v8108
  %8303 = vmatmul.mubr.bf16.gmra.mrb[0].mxu0 %v8107
  %v8304 = vpop.f32.mrb[0].mxu0
  %v8305 = vadd.f32 0.0, %v8304
  %v8306 = vpop.f32.mrb[0].mxu0
  %v8307 = vpop.f32.mrb[0].mxu0
  %v8308 = vadd.f32 0.0, %v8307
  %v8309 = vpop.f32.mrb[0].mxu0
  %8310 = vdwg.mxu0
  %v8311 = vadd.f32 %v7502, %v8297
  %v8312 = vadd.f32 %v7503, %v8300
  %v8313 = vadd.f32 %v7504, %v8305
  %v8314 = vadd.f32 %v7505, %v8308
  %s8315 = scalar_lea.vmem %s51, 1
  %v8316 = vld [vmem:[%s8315] sm:$0x1]
  %v8318 = vlaneseq
  %v8319 = vshrl.u32 %v8318, 7
  %v8320 = vsub.s32 0, %v8319
  %v8321 = vrot.slane %v8316, %v8320
  %v8323 = vadd.f32 %v8311, %v8321
  %v8324 = vadd.f32 %v8312, %v8321
  %v8325 = vadd.f32 %v8313, %v8321
  %v8326 = vadd.f32 %v8314, %v8321
  %v8327 = vld [vmem:[%s53] sm:$0x1]
  %v8328 = vld [vmem:[%s55] sm:$0x1]
  %v8329 = vsel %vm485, %v8323, 0.0
  %8330 = vadd.xlane.f32.xlu0 %v8329
  %v8331 = vpop.xlane.xlu0 %8330
  %v8332 = vsel %vm485, %v8324, 0.0
  %8333 = vadd.xlane.f32.xlu0 %v8332
  %v8334 = vpop.xlane.xlu0 %8333
  %v8335 = vsel %vm485, %v8325, 0.0
  %8336 = vadd.xlane.f32.xlu0 %v8335
  %v8337 = vpop.xlane.xlu0 %8336
  %v8338 = vsel %vm485, %v8326, 0.0
  %8339 = vadd.xlane.f32.xlu0 %v8338
  %v8340 = vpop.xlane.xlu0 %8339
  %v8341 = vmul.f32 %v8331, %v1586
  %v8342 = vmul.f32 %v8334, %v1586
  %v8343 = vmul.f32 %v8337, %v1586
  %v8344 = vmul.f32 %v8340, %v1586
  %v8345 = vsub.f32 %v8323, %v8341
  %v8346 = vsub.f32 %v8324, %v8342
  %v8347 = vsub.f32 %v8325, %v8343
  %v8348 = vsub.f32 %v8326, %v8344
  %v8349 = vmul.f32 %v8345, %v8345
  %v8350 = vmul.f32 %v8346, %v8346
  %v8351 = vmul.f32 %v8347, %v8347
  %v8352 = vmul.f32 %v8348, %v8348
  %v8353 = vsel %vm485, %v8349, 0.0
  %8354 = vadd.xlane.f32.xlu0 %v8353
  %v8355 = vpop.xlane.xlu0 %8354
  %v8356 = vsel %vm485, %v8350, 0.0
  %8357 = vadd.xlane.f32.xlu0 %v8356
  %v8358 = vpop.xlane.xlu0 %8357
  %v8359 = vsel %vm485, %v8351, 0.0
  %8360 = vadd.xlane.f32.xlu0 %v8359
  %v8361 = vpop.xlane.xlu0 %8360
  %v8362 = vsel %vm485, %v8352, 0.0
  %8363 = vadd.xlane.f32.xlu0 %v8362
  %v8364 = vpop.xlane.xlu0 %8363
  %v8365 = vmul.f32 %v8355, %v1586
  %v8366 = vmul.f32 %v8358, %v1586
  %v8367 = vmul.f32 %v8361, %v1586
  %v8368 = vmul.f32 %v8364, %v1586
  %v8369 = vadd.f32 %v8365, 1e-05
  %v8370 = vadd.f32 %v8366, 1e-05
  %v8371 = vadd.f32 %v8367, 1e-05
  %v8372 = vadd.f32 %v8368, 1e-05
  %v8373 = vrsqrt.pop %v8369
  %v8374 = vrsqrt.pop %v8370
  %v8375 = vrsqrt.pop %v8371
  %v8376 = vrsqrt.pop %v8372
  %v8377 = vmul.f32 %v8345, %v8373
  %v8378 = vmul.f32 %v8346, %v8374
  %v8379 = vmul.f32 %v8347, %v8375
  %v8380 = vmul.f32 %v8348, %v8376
  %v8382 = vlaneseq
  %v8383 = vshrl.u32 %v8382, 7
  %v8384 = vsub.s32 0, %v8383
  %v8385 = vrot.slane %v8327, %v8384
  %v8387 = vmul.f32 %v8377, %v8385
  %v8388 = vmul.f32 %v8378, %v8385
  %v8389 = vmul.f32 %v8379, %v8385
  %v8390 = vmul.f32 %v8380, %v8385
  %v8392 = vlaneseq
  %v8393 = vshrl.u32 %v8392, 7
  %v8394 = vsub.s32 0, %v8393
  %v8395 = vrot.slane %v8328, %v8394
  %v8397 = vadd.f32 %v8387, %v8395
  %v8398 = vadd.f32 %v8388, %v8395
  %v8399 = vadd.f32 %v8389, %v8395
  %v8400 = vadd.f32 %v8390, %v8395
  %v8401 = vpack.c.bf16 %v8397, %v8397
  %v8402 = vld [vmem:[%s57] sm:$0xf]
  %v8403 = vld [vmem:[%s57 + $0x4] sm:$0xf]
  %v8404 = vld [vmem:[%s57 + $0x8] sm:$0xf]
  %v8405 = vld [vmem:[%s57 + $0xc] sm:$0xf]
  %v8406 = vpack.c.bf16 %v8398, %v8398
  %s8407 = scalar_lea.vmem %s57, 16
  %v8408 = vld [vmem:[%s8407] sm:$0xf]
  %v8409 = vld [vmem:[%s8407 + $0x4] sm:$0xf]
  %v8410 = vld [vmem:[%s8407 + $0x8] sm:$0xf]
  %v8411 = vld [vmem:[%s8407 + $0xc] sm:$0xf]
  %v8416 = vunpack.c.l.b16 %v8408
  %v8417 = vunpack.c.l.b16 %v8409
  %v8418 = vunpack.c.l.b16 %v8410
  %v8419 = vunpack.c.l.b16 %v8411
  %v8420 = vpack.c.b16 %v8417, %v8416
  %v8421 = vpack.c.b16 %v8419, %v8418
  %v8425 = vsel %vm390, %v8406, 0
  %8427 = vmatprep.subr.bf16.mxu0 0
  %8428 = vmatpush1.bf16.msra.mxu0 %v8420
  %8429 = vmatprep.subr.bf16.mxu0 0
  %8430 = vmatpush1.bf16.msra.mxu0 %v8421
  %8431 = vmatprep.subr.bf16.mxu0 0
  %8432 = vmatpush1.bf16.msra.mxu0 0
  %8433 = vmatprep.subr.bf16.mxu0 0
  %8434 = vmatpush1.bf16.msra.mxu0 0
  %8435 = vmatprep.subr.bf16.mxu0 0
  %8436 = vmatpush1.bf16.msra.mxu0 0
  %8437 = vmatprep.subr.bf16.mxu0 0
  %8438 = vmatpush1.bf16.msra.mxu0 0
  %8439 = vmatprep.subr.bf16.mxu0 0
  %8440 = vmatpush1.bf16.msra.mxu0 0
  %8441 = vmatprep.subr.bf16.mxu0 0
  %8442 = vmatpush1.bf16.msra.mxu0 0
  %8443 = vmatprep.subr.bf16.mxu0 0
  %8444 = vmatpush1.bf16.msra.mxu0 0
  %8445 = vmatprep.subr.bf16.mxu0 0
  %8446 = vmatpush1.bf16.msra.mxu0 0
  %8447 = vmatprep.subr.bf16.mxu0 0
  %8448 = vmatpush1.bf16.msra.mxu0 0
  %8449 = vmatprep.subr.bf16.mxu0 0
  %8450 = vmatpush1.bf16.msra.mxu0 0
  %8451 = vmatprep.subr.bf16.mxu0 0
  %8452 = vmatpush1.bf16.msra.mxu0 0
  %8453 = vmatprep.subr.bf16.mxu0 0
  %8454 = vmatpush1.bf16.msra.mxu0 0
  %8455 = vmatprep.subr.bf16.mxu0 0
  %8456 = vmatpush1.bf16.msra.mxu0 0
  %8457 = vmatprep.subr.bf16.mxu0 0
  %8458 = vmatpush1.bf16.msra.mxu0 0
  %8459 = vmatprep.mubr.bf16.mxu0 0
  %8460 = vmatmul.mubr.bf16.gmra.mrb[0].mxu0 %v8425
  %v8461 = vpop.f32.mrb[0].mxu0
  %v8462 = vadd.f32 0.0, %v8461
  %v8463 = vpop.f32.mrb[0].mxu0
  %v8464 = vpop.f32.mrb[0].mxu0
  %v8465 = vpop.f32.mrb[0].mxu0
  %8466 = vdwg.mxu0
  %v8471 = vunpack.c.l.b16 %v8402
  %v8472 = vunpack.c.l.b16 %v8403
  %v8473 = vunpack.c.l.b16 %v8404
  %v8474 = vunpack.c.l.b16 %v8405
  %v8475 = vpack.c.b16 %v8472, %v8471
  %v8476 = vpack.c.b16 %v8474, %v8473
  %v8480 = vsel %vm390, %v8401, 0
  %8482 = vmatprep.subr.bf16.mxu0 0
  %8483 = vmatpush1.bf16.msra.mxu0 %v8475
  %8484 = vmatprep.subr.bf16.mxu0 0
  %8485 = vmatpush1.bf16.msra.mxu0 %v8476
  %8486 = vmatprep.subr.bf16.mxu0 0
  %8487 = vmatpush1.bf16.msra.mxu0 0
  %8488 = vmatprep.subr.bf16.mxu0 0
  %8489 = vmatpush1.bf16.msra.mxu0 0
  %8490 = vmatprep.subr.bf16.mxu0 0
  %8491 = vmatpush1.bf16.msra.mxu0 0
  %8492 = vmatprep.subr.bf16.mxu0 0
  %8493 = vmatpush1.bf16.msra.mxu0 0
  %8494 = vmatprep.subr.bf16.mxu0 0
  %8495 = vmatpush1.bf16.msra.mxu0 0
  %8496 = vmatprep.subr.bf16.mxu0 0
  %8497 = vmatpush1.bf16.msra.mxu0 0
  %8498 = vmatprep.subr.bf16.mxu0 0
  %8499 = vmatpush1.bf16.msra.mxu0 0
  %8500 = vmatprep.subr.bf16.mxu0 0
  %8501 = vmatpush1.bf16.msra.mxu0 0
  %8502 = vmatprep.subr.bf16.mxu0 0
  %8503 = vmatpush1.bf16.msra.mxu0 0
  %8504 = vmatprep.subr.bf16.mxu0 0
  %8505 = vmatpush1.bf16.msra.mxu0 0
  %8506 = vmatprep.subr.bf16.mxu0 0
  %8507 = vmatpush1.bf16.msra.mxu0 0
  %8508 = vmatprep.subr.bf16.mxu0 0
  %8509 = vmatpush1.bf16.msra.mxu0 0
  %8510 = vmatprep.subr.bf16.mxu0 0
  %8511 = vmatpush1.bf16.msra.mxu0 0
  %8512 = vmatprep.subr.bf16.mxu0 0
  %8513 = vmatpush1.bf16.msra.mxu0 0
  %8514 = vmatprep.mubr.bf16.mxu0 0
  %8515 = vmatmul.mubr.bf16.gmra.mrb[0].mxu0 %v8480
  %v8516 = vpop.f32.mrb[0].mxu0
  %v8517 = vadd.f32 %v8462, %v8516
  %v8518 = vpop.f32.mrb[0].mxu0
  %v8519 = vpop.f32.mrb[0].mxu0
  %v8520 = vpop.f32.mrb[0].mxu0
  %8521 = vdwg.mxu0
  %v8522 = vpack.c.bf16 %v8399, %v8399
  %s8523 = scalar_lea.vmem %s57, 32
  %v8524 = vld [vmem:[%s8523] sm:$0xf]
  %v8525 = vld [vmem:[%s8523 + $0x4] sm:$0xf]
  %v8526 = vld [vmem:[%s8523 + $0x8] sm:$0xf]
  %v8527 = vld [vmem:[%s8523 + $0xc] sm:$0xf]
  %v8532 = vunpack.c.l.b16 %v8524
  %v8533 = vunpack.c.l.b16 %v8525
  %v8534 = vunpack.c.l.b16 %v8526
  %v8535 = vunpack.c.l.b16 %v8527
  %v8536 = vpack.c.b16 %v8533, %v8532
  %v8537 = vpack.c.b16 %v8535, %v8534
  %v8541 = vsel %vm390, %v8522, 0
  %8543 = vmatprep.subr.bf16.mxu0 0
  %8544 = vmatpush1.bf16.msra.mxu0 %v8536
  %8545 = vmatprep.subr.bf16.mxu0 0
  %8546 = vmatpush1.bf16.msra.mxu0 %v8537
  %8547 = vmatprep.subr.bf16.mxu0 0
  %8548 = vmatpush1.bf16.msra.mxu0 0
  %8549 = vmatprep.subr.bf16.mxu0 0
  %8550 = vmatpush1.bf16.msra.mxu0 0
  %8551 = vmatprep.subr.bf16.mxu0 0
  %8552 = vmatpush1.bf16.msra.mxu0 0
  %8553 = vmatprep.subr.bf16.mxu0 0
  %8554 = vmatpush1.bf16.msra.mxu0 0
  %8555 = vmatprep.subr.bf16.mxu0 0
  %8556 = vmatpush1.bf16.msra.mxu0 0
  %8557 = vmatprep.subr.bf16.mxu0 0
  %8558 = vmatpush1.bf16.msra.mxu0 0
  %8559 = vmatprep.subr.bf16.mxu0 0
  %8560 = vmatpush1.bf16.msra.mxu0 0
  %8561 = vmatprep.subr.bf16.mxu0 0
  %8562 = vmatpush1.bf16.msra.mxu0 0
  %8563 = vmatprep.subr.bf16.mxu0 0
  %8564 = vmatpush1.bf16.msra.mxu0 0
  %8565 = vmatprep.subr.bf16.mxu0 0
  %8566 = vmatpush1.bf16.msra.mxu0 0
  %8567 = vmatprep.subr.bf16.mxu0 0
  %8568 = vmatpush1.bf16.msra.mxu0 0
  %8569 = vmatprep.subr.bf16.mxu0 0
  %8570 = vmatpush1.bf16.msra.mxu0 0
  %8571 = vmatprep.subr.bf16.mxu0 0
  %8572 = vmatpush1.bf16.msra.mxu0 0
  %8573 = vmatprep.subr.bf16.mxu0 0
  %8574 = vmatpush1.bf16.msra.mxu0 0
  %8575 = vmatprep.mubr.bf16.mxu0 0
  %8576 = vmatmul.mubr.bf16.gmra.mrb[0].mxu0 %v8541
  %v8577 = vpop.f32.mrb[0].mxu0
  %v8578 = vadd.f32 0.0, %v8577
  %v8579 = vpop.f32.mrb[0].mxu0
  %v8580 = vpop.f32.mrb[0].mxu0
  %v8581 = vpop.f32.mrb[0].mxu0
  %8582 = vdwg.mxu0
  %v8583 = vadd.f32 %v8517, %v8578
  %v8584 = vpack.c.bf16 %v8400, %v8400
  %s8585 = scalar_lea.vmem %s57, 48
  %v8586 = vld [vmem:[%s8585] sm:$0xf]
  %v8587 = vld [vmem:[%s8585 + $0x4] sm:$0xf]
  %v8588 = vld [vmem:[%s8585 + $0x8] sm:$0xf]
  %v8589 = vld [vmem:[%s8585 + $0xc] sm:$0xf]
  %v8594 = vunpack.c.l.b16 %v8586
  %v8595 = vunpack.c.l.b16 %v8587
  %v8596 = vunpack.c.l.b16 %v8588
  %v8597 = vunpack.c.l.b16 %v8589
  %v8598 = vpack.c.b16 %v8595, %v8594
  %v8599 = vpack.c.b16 %v8597, %v8596
  %v8603 = vsel %vm390, %v8584, 0
  %8605 = vmatprep.subr.bf16.mxu0 0
  %8606 = vmatpush1.bf16.msra.mxu0 %v8598
  %8607 = vmatprep.subr.bf16.mxu0 0
  %8608 = vmatpush1.bf16.msra.mxu0 %v8599
  %8609 = vmatprep.subr.bf16.mxu0 0
  %8610 = vmatpush1.bf16.msra.mxu0 0
  %8611 = vmatprep.subr.bf16.mxu0 0
  %8612 = vmatpush1.bf16.msra.mxu0 0
  %8613 = vmatprep.subr.bf16.mxu0 0
  %8614 = vmatpush1.bf16.msra.mxu0 0
  %8615 = vmatprep.subr.bf16.mxu0 0
  %8616 = vmatpush1.bf16.msra.mxu0 0
  %8617 = vmatprep.subr.bf16.mxu0 0
  %8618 = vmatpush1.bf16.msra.mxu0 0
  %8619 = vmatprep.subr.bf16.mxu0 0
  %8620 = vmatpush1.bf16.msra.mxu0 0
  %8621 = vmatprep.subr.bf16.mxu0 0
  %8622 = vmatpush1.bf16.msra.mxu0 0
  %8623 = vmatprep.subr.bf16.mxu0 0
  %8624 = vmatpush1.bf16.msra.mxu0 0
  %8625 = vmatprep.subr.bf16.mxu0 0
  %8626 = vmatpush1.bf16.msra.mxu0 0
  %8627 = vmatprep.subr.bf16.mxu0 0
  %8628 = vmatpush1.bf16.msra.mxu0 0
  %8629 = vmatprep.subr.bf16.mxu0 0
  %8630 = vmatpush1.bf16.msra.mxu0 0
  %8631 = vmatprep.subr.bf16.mxu0 0
  %8632 = vmatpush1.bf16.msra.mxu0 0
  %8633 = vmatprep.subr.bf16.mxu0 0
  %8634 = vmatpush1.bf16.msra.mxu0 0
  %8635 = vmatprep.subr.bf16.mxu0 0
  %8636 = vmatpush1.bf16.msra.mxu0 0
  %8637 = vmatprep.mubr.bf16.mxu0 0
  %8638 = vmatmul.mubr.bf16.gmra.mrb[0].mxu0 %v8603
  %v8639 = vpop.f32.mrb[0].mxu0
  %v8640 = vadd.f32 0.0, %v8639
  %v8641 = vpop.f32.mrb[0].mxu0
  %v8642 = vpop.f32.mrb[0].mxu0
  %v8643 = vpop.f32.mrb[0].mxu0
  %8644 = vdwg.mxu0
  %v8645 = vadd.f32 %v8583, %v8640
  %v8646 = vld [vmem:[%s59] sm:$0x1]
  %v8648 = vlaneseq
  %v8649 = vshrl.u32 %v8648, 7
  %v8650 = vsub.s32 0, %v8649
  %v8651 = vrot.slane %v8646, %v8650
  %v8653 = vadd.f32 %v8645, %v8651
  %8654 = vst.msk [vmem:[%s61] sm:$0xff] %vm267, %v8653
  // Predicated region
  $region122: #{timellm_forward.1} parent=0 // pred_check
    _
  $region123: #{timellm_forward.1} parent=0 // pred_check_branch
    %8656 = sbr.rel (0) target = $region125
  $region124: #{timellm_forward.1} parent=0 // pred_region
    _
  $region125: #{timellm_forward.1} parent=0 // pred_fallthru
    _
  // Predicated region
  $region126: #{timellm_forward.1} parent=0 // pred_check
    _
  $region127: #{timellm_forward.1} parent=0 // pred_check_branch
    %8658 = sbr.rel (0) target = $region129
  $region128: #{timellm_forward.1} parent=0 // pred_region
    _
  $region129: #{timellm_forward.1} parent=0 // pred_fallthru
    _

</llo_original>
